<compile_context>
chip_gen: v6e
topology: v6e:2x2x1
jax: 0.10.0
libtpu: 0.0.40
codegen_flags: <defaults>
</compile_context>

<pallas_src>
import functools

import jax
import jax.numpy as jnp
import numpy as np
from jax.experimental import pallas as pl
from jax.experimental.pallas import tpu as pltpu


# ----------------------------------------------------------------------------------
# Kernel 1: Conv1d(Cin->C1,K)+ReLU+MaxPool(3,3)+BN then Conv1d(C1->C2,K)+ReLU+Pool+BN,
#           batch folded into matmul rows, output stored transposed (B, C2, T) so the
#           PyTorch reshape quirk #1 becomes a zero-copy wrapper reshape.
# ----------------------------------------------------------------------------------
def _conv12_kernel(a1_ref, w1_ref, bb1_ref, w2_ref, bb2_ref, o_ref, *, B, K, Q1, L2):
    # a1_ref : (B*9*Q1, K*Cin) bf16, row = b*9*Q1 + (3r+j)*Q1 + q  (conv1 im2col)
    # w1_ref : (K*Cin, C1) bf16     w1r[k*Cin+c, cout] = w1[cout, c, k]
    # bb1_ref: (3, C1) f32          rows = [conv bias, BN scale, BN shift]
    # w2_ref : (K*C1, C2) bf16 ; bb2_ref: (3, C2) f32
    # o_ref  : (B, C2, L2) bf16     o_ref[b] = (conv2 block output).T
    C1 = w1_ref.shape[1]
    b1, s1, t1 = bb1_ref[0:1, :], bb1_ref[1:2, :], bb1_ref[2:3, :]
    b2, s2, t2 = bb2_ref[0:1, :], bb2_ref[1:2, :], bb2_ref[2:3, :]

    # conv1: one MXU matmul for all batches / pool offsets / positions
    y1 = jnp.dot(a1_ref[...], w1_ref[...], preferred_element_type=jnp.float32) + b1
    y1 = jnp.maximum(y1, 0.0)

    # pool + BN  ->  planes[r][q, c] = pooled1[3q + r, c]   then conv2 im2col rows
    a2_rows = []
    for b in range(B):
        base_b = b * 9 * Q1
        planes = []
        for r in range(3):
            m = None
            for j in range(3):
                blk = y1[base_b + (3 * r + j) * Q1: base_b + (3 * r + j + 1) * Q1, :]
                m = blk if m is None else jnp.maximum(m, blk)     # MaxPool1d(3,3)
            planes.append(m * s1 + t1)                            # BN (eval), (Q1, C1)
        for j in range(3):                                        # pool offset j
            pieces = [planes[(j + k) % 3][(j + k) // 3:(j + k) // 3 + L2, :]
                      for k in range(K)]
            a2_rows.append(jnp.concatenate(pieces, axis=1))       # (L2, K*C1)
    a2 = jnp.concatenate(a2_rows, axis=0).astype(jnp.bfloat16)    # (B*3*L2, K*C1)

    # conv2: one lane-dense matmul for all batches / pool offsets
    y2 = jnp.dot(a2, w2_ref[...], preferred_element_type=jnp.float32) + b2
    y2 = jnp.maximum(y2, 0.0)
    for b in range(B):
        pooled = None
        for j in range(3):
            blk = y2[(b * 3 + j) * L2:(b * 3 + j + 1) * L2, :]
            pooled = blk if pooled is None else jnp.maximum(pooled, blk)
        p = pooled * s2 + t2                                      # (L2, C2)
        pad = (-L2) % 8                                           # sublane-align for XLU
        if pad:
            p = jnp.concatenate([p, jnp.zeros((pad, p.shape[1]), p.dtype)], axis=0)
        # store transposed so quirk #1 (NCL raw reshape) is a free wrapper reshape
        o_ref[b] = p.T[:, :L2].astype(o_ref.dtype)                # (C2, L2)


# ----------------------------------------------------------------------------------
# Kernel 2: all LSTM layers in one wavefront (layer l at time t = s - l), batch folded
#           into matmul rows, layer-0 input projection hoisted (bf16), per-step stores.
# ----------------------------------------------------------------------------------
def _lstm_kernel(x_ref, *rest, T, B, H, num_layers):
    o_ref = rest[-1]
    wrefs = rest[:-1]
    wih0 = wrefs[0][...]                              # (D, 4H) bf16
    whh0 = wrefs[1][...]                              # (H, 4H) f32
    bias0 = wrefs[2][...]                             # (1, 4H) f32 = b_ih + b_hh
    wcat = [wrefs[3 + 2 * (l - 1)][...] for l in range(1, num_layers)]   # (2H, 4H)
    biasl = [wrefs[4 + 2 * (l - 1)][...] for l in range(1, num_layers)]  # (1, 4H)

    # hoisted layer-0 input projection: one bf16 matmul per batch element
    gx = [jnp.dot(x_ref[b], wih0, preferred_element_type=jnp.float32) + bias0
          for b in range(B)]                          # each (T, 4H) f32

    def cell(pre, c_old):
        sg = jax.nn.sigmoid(pre)                      # full 128-lane EUP ops,
        th = jnp.tanh(pre)                            # then static lane splits
        c_new = sg[:, H:2 * H] * c_old + sg[:, 0:H] * th[:, 2 * H:3 * H]
        h_new = sg[:, 3 * H:4 * H] * jnp.tanh(c_new)
        return h_new, c_new

    def store(t, val):                                # per-step store, no concat
        for b in range(B):
            o_ref[b, t:t + 1, :] = val[b:b + 1, :].astype(o_ref.dtype)

    zeros = jnp.zeros((B, H), jnp.float32)
    h = [zeros] * num_layers
    c = [zeros] * num_layers
    prev = [zeros] * num_layers                       # layer outputs of previous step

    for s in range(T + num_layers - 1):               # wavefront over time x layers
        nh, ncell, nprev = list(h), list(c), list(prev)
        if s < T:                                     # layer 0 at time t = s
            g0 = jnp.concatenate([gx[b][s:s + 1, :] for b in range(B)], axis=0)
            pre0 = g0 + jnp.dot(h[0], whh0, preferred_element_type=jnp.float32)
            nh[0], ncell[0] = cell(pre0, c[0])
            nprev[0] = nh[0]
            if num_layers == 1:
                store(s, nh[0])
        for l in range(1, num_layers):                # layer l at time t = s - l
            t = s - l
            if 0 <= t < T:
                xin = jnp.concatenate([prev[l - 1], h[l]], axis=1)        # (B, 2H)
                pre = jnp.dot(xin, wcat[l - 1],
                              preferred_element_type=jnp.float32) + biasl[l - 1]
                nh[l], ncell[l] = cell(pre, c[l])
                nprev[l] = nh[l]
                if l == num_layers - 1:
                    store(t, nh[l])
        h, c, prev = nh, ncell, nprev


# ----------------------------------------------------------------------------------
# Kernel 3: Conv1d(H->C3,K)+ReLU+MaxPool(3,3)+BN + flatten + Linear, batch folded.
#           Takes the raw-reshaped (B, H, T) LSTM output (quirk #2) and transposes
#           in-kernel; im2col is built from static sublane slices.
# ----------------------------------------------------------------------------------
def _conv3_dense_kernel(cin_ref, w3_ref, bb3_ref, wd_ref, bd_ref, o_ref, *, B, K):
    # cin_ref: (B, H, T) f32 ; w3_ref: (K*H, C3) bf16 ; bb3_ref: (3, C3) f32
    # wd_ref : (npool*C3, nc) f32, row = m*C3 + co  (PyTorch flatten folded in)
    # bd_ref : (1, nc) f32 ; o_ref: (B, nc) f32
    T = cin_ref.shape[2]
    C3 = w3_ref.shape[1]
    Lc = T - K + 1
    npool = (Lc - 3) // 3 + 1
    b3, s3, t3 = bb3_ref[0:1, :], bb3_ref[1:2, :], bb3_ref[2:3, :]

    rows = []
    for b in range(B):
        x3 = cin_ref[b].T                                          # (T, H) position-major
        rows.append(jnp.concatenate([x3[k:k + Lc, :] for k in range(K)], axis=1))
    a3 = jnp.concatenate(rows, axis=0).astype(jnp.bfloat16)        # (B*Lc, K*H)

    y = jnp.dot(a3, w3_ref[...], preferred_element_type=jnp.float32) + b3
    y = jnp.maximum(y, 0.0)                                        # (B*Lc, C3)

    feats = []
    for b in range(B):
        parts = []
        for m in range(npool):
            w = y[b * Lc + 3 * m: b * Lc + 3 * m + 3, :]           # pool window (3, C3)
            parts.append(jnp.max(w, axis=0, keepdims=True) * s3 + t3)
        feats.append(jnp.concatenate(parts, axis=1))               # (1, npool*C3)
    flat = jnp.concatenate(feats, axis=0)                          # (B, npool*C3)
    o_ref[...] = (jnp.dot(flat, wd_ref[...], preferred_element_type=jnp.float32)
                  + bd_ref[...]).astype(o_ref.dtype)


# ------------------------------------ wrappers -------------------------------------
def _fold_bn(gamma, beta, mean, var, eps=1e-5):
    inv = gamma / jnp.sqrt(var + eps)
    return inv, beta - mean * inv


def _full_spec(arr):
    nd = arr.ndim
    return pl.BlockSpec(arr.shape, lambda i, _nd=nd: (0,) * _nd)


def conv12_block(a1, w1r, bb1, w2r, bb2, *, B, K, Q1, L2):
    C2 = w2r.shape[1]
    kern = functools.partial(_conv12_kernel, B=B, K=K, Q1=Q1, L2=L2)
    return pl.pallas_call(
        kern,
        out_shape=jax.ShapeDtypeStruct((B, C2, L2), jnp.bfloat16),
        grid=(1,),
        in_specs=[_full_spec(a) for a in (a1, w1r, bb1, w2r, bb2)],
        out_specs=pl.BlockSpec((B, C2, L2), lambda i: (0, 0, 0)),
        compiler_params=pltpu.CompilerParams(dimension_semantics=("arbitrary",)),
    )(a1, w1r, bb1, w2r, bb2)


def lstm_stack(x, layer_args, *, T, B, H, nl):
    kern = functools.partial(_lstm_kernel, T=T, B=B, H=H, num_layers=nl)
    operands = (x,) + tuple(layer_args)
    return pl.pallas_call(
        kern,
        out_shape=jax.ShapeDtypeStruct((B, T, H), jnp.float32),
        grid=(1,),
        in_specs=[_full_spec(a) for a in operands],
        out_specs=pl.BlockSpec((B, T, H), lambda i: (0, 0, 0)),
        compiler_params=pltpu.CompilerParams(dimension_semantics=("arbitrary",)),
    )(*operands)


def conv3_dense(conv3_in, w3r, bb3, wdr, bdr, *, K):
    B = conv3_in.shape[0]
    nc = wdr.shape[1]
    kern = functools.partial(_conv3_dense_kernel, B=B, K=K)
    return pl.pallas_call(
        kern,
        out_shape=jax.ShapeDtypeStruct((B, nc), jnp.float32),
        grid=(1,),
        in_specs=[_full_spec(a) for a in (conv3_in, w3r, bb3, wdr, bdr)],
        out_specs=pl.BlockSpec((B, nc), lambda i: (0, 0)),
        compiler_params=pltpu.CompilerParams(dimension_semantics=("arbitrary",)),
    )(conv3_in, w3r, bb3, wdr, bdr)


# ------------------------------------ full model -----------------------------------
def cnn_lstm_forward(params, x):
    p = params
    B, Cin, L = x.shape
    C1, _, K = p['w1'].shape
    C2 = p['w2'].shape[0]
    C3 = p['w3'].shape[0]
    nc = p['wd'].shape[0]
    H = p['whh'][0].shape[1]
    nl = len(p['wih'])

    L_pool1 = ((L - K + 1) - 3) // 3 + 1             # conv1 -> pool length (64)
    T = ((L_pool1 - K + 1) - 3) // 3 + 1             # conv2 -> pool length == seq len (18)
    Q1 = (T - 1) + (K + 1) // 3 + 1                  # rows of each mod-3 pooled1 plane
    Lc = T - K + 1                                   # conv3 output length (10)
    npool = (Lc - 3) // 3 + 1                        # conv3 pooled length (3)
    assert npool * C3 == p['wd'].shape[1]

    # -------- conv1 im2col, built once in the wrapper straight from the HBM input ----
    rr = np.arange(3)[:, None, None, None]
    jj = np.arange(3)[None, :, None, None]
    qq = np.arange(Q1)[None, None, :, None]
    kk = np.arange(K)[None, None, None, :]
    pos1 = 9 * qq + 3 * rr + jj + kk                 # (3, 3, Q1, K)
    need = int(pos1.max()) + 1
    xp = x if need <= L else jnp.pad(x, ((0, 0), (0, 0), (0, need - L)))
    a1 = jnp.transpose(xp[:, :, pos1], (0, 2, 3, 4, 5, 1)).reshape(
        B * 9 * Q1, K * Cin).astype(jnp.bfloat16)

    w1r = jnp.transpose(p['w1'], (2, 1, 0)).reshape(K * Cin, C1).astype(jnp.bfloat16)
    w2r = jnp.transpose(p['w2'], (2, 1, 0)).reshape(K * C1, C2).astype(jnp.bfloat16)
    s1, t1 = _fold_bn(p['g1'], p['bt1'], p['rm1'], p['rv1'])
    s2, t2 = _fold_bn(p['g2'], p['bt2'], p['rm2'], p['rv2'])
    bb1 = jnp.stack([p['b1'], s1, t1], axis=0)
    bb2 = jnp.stack([p['b2'], s2, t2], axis=0)

    o1 = conv12_block(a1, w1r, bb1, w2r, bb2, B=B, K=K, Q1=Q1, L2=T)  # (B, C2, T) bf16

    # PyTorch quirk #1: x.reshape(B, 18, 128) of the NCL (B, 128, 18) -- zero-copy here
    lstm_in = o1.reshape(B, T, C2)

    layer_args = []
    for l in range(nl):
        bias = (p['bih'][l] + p['bhh'][l]).reshape(1, 4 * H)
        if l == 0:
            layer_args += [p['wih'][0].T.astype(jnp.bfloat16), p['whh'][0].T, bias]
        else:
            wcat = jnp.concatenate([p['wih'][l].T, p['whh'][l].T], axis=0)  # (2H, 4H)
            layer_args += [wcat, bias]

    h_all = lstm_stack(lstm_in, layer_args, T=T, B=B, H=H, nl=nl)     # (B, T, H) f32

    # PyTorch quirk #2: x.reshape(B, 32, 18) of the (B, 18, 32) output -- zero-copy here
    conv3_in = h_all.reshape(B, H, T)

    w3r = jnp.transpose(p['w3'], (2, 1, 0)).reshape(K * H, C3).astype(jnp.bfloat16)
    s3, t3 = _fold_bn(p['g3'], p['bt3'], p['rm3'], p['rv3'])
    bb3 = jnp.stack([p['b3'], s3, t3], axis=0)
    # dense: PyTorch flattens NCL (C3, 3) with flat index 3*co + m; fold into the weight.
    wdr = jnp.transpose(p['wd'].reshape(nc, C3, npool), (2, 1, 0)).reshape(npool * C3, nc)
    bdr = p['bd'].reshape(1, nc)

    return conv3_dense(conv3_in, w3r, bb3, wdr, bdr, K=K)            # (B, nc)


def init_params(key, input_size=3, hidden=32, num_layers=2, num_classes=6):
    ks = iter(jax.random.split(key, 40))

    def nrm(shape, scale=0.1):
        return scale * jax.random.normal(next(ks), shape, dtype=jnp.float32)

    p = {}

    def conv_bn(idx, cin, cout, k=9):
        p[f'w{idx}'] = nrm((cout, cin, k))
        p[f'b{idx}'] = nrm((cout,))
        p[f'g{idx}'] = 1.0 + nrm((cout,))            # BN gamma
        p[f'bt{idx}'] = nrm((cout,))                 # BN beta
        p[f'rm{idx}'] = nrm((cout,))                 # BN running mean
        p[f'rv{idx}'] = 1.0 + jnp.abs(nrm((cout,)))  # BN running var

    conv_bn(1, input_size, 64)
    conv_bn(2, 64, 128)
    conv_bn(3, hidden, 128)

    wih, whh, bih, bhh = [], [], [], []
    for l in range(num_layers):
        din = 128 if l == 0 else hidden
        wih.append(nrm((4 * hidden, din)))
        whh.append(nrm((4 * hidden, hidden)))
        bih.append(nrm((4 * hidden,)))
        bhh.append(nrm((4 * hidden,)))
    p['wih'], p['whh'], p['bih'], p['bhh'] = wih, whh, bih, bhh

    p['wd'] = nrm((num_classes, 128 * 3))
    p['bd'] = nrm((num_classes,))
    return p


if __name__ == "__main__":
    key = jax.random.PRNGKey(0)
    pkey, xkey = jax.random.split(key)
    # small config: batch=2, input_size=3, hidden=32, num_layers=2, num_classes=6.
    # input_length must be 200 so the final flatten is 128*3 as the dense layer requires.
    params = init_params(pkey, input_size=3, hidden=32, num_layers=2, num_classes=6)
    B, C, L = 2, 3, 200
    x = jax.random.normal(xkey, (B, C, L), dtype=jnp.float32)
    fwd = jax.jit(cnn_lstm_forward)
    y = fwd(params, x)
    jax.block_until_ready(y)
    assert y.shape == (B, 6) and y.dtype == jnp.float32
    print("KERNEL_OK")
</pallas_src>

<mosaic_0001>
module attributes {stable_mosaic.version = 11 : i64} {
  func.func @_lstm_kernel(%arg0: i32, %arg1: memref<2x18x128xbf16, #tpu.memory_space<vmem>>, %arg2: memref<128x128xbf16, #tpu.memory_space<vmem>>, %arg3: memref<32x128xf32, #tpu.memory_space<vmem>>, %arg4: memref<1x128xf32, #tpu.memory_space<vmem>>, %arg5: memref<64x128xf32, #tpu.memory_space<vmem>>, %arg6: memref<1x128xf32, #tpu.memory_space<vmem>>, %arg7: memref<2x18x32xf32, #tpu.memory_space<vmem>>) attributes {dimension_semantics = [#tpu.dimension_semantics<arbitrary>], iteration_bounds = array<i64: 1>, scalar_prefetch = 0 : i64, scratch_operands = 0 : i64, tpu.core_type = #tpu.core_type<tc>, window_params = [{pipeline_mode = #tpu.pipeline_mode<synchronous>, transform_indices = @transform_0, window_bounds = array<i64: 2, 18, 128>}, {pipeline_mode = #tpu.pipeline_mode<synchronous>, transform_indices = @transform_1, window_bounds = array<i64: 128, 128>}, {pipeline_mode = #tpu.pipeline_mode<synchronous>, transform_indices = @transform_2, window_bounds = array<i64: 32, 128>}, {pipeline_mode = #tpu.pipeline_mode<synchronous>, transform_indices = @transform_3, window_bounds = array<i64: 1, 128>}, {pipeline_mode = #tpu.pipeline_mode<synchronous>, transform_indices = @transform_4, window_bounds = array<i64: 64, 128>}, {pipeline_mode = #tpu.pipeline_mode<synchronous>, transform_indices = @transform_5, window_bounds = array<i64: 1, 128>}, {pipeline_mode = #tpu.pipeline_mode<synchronous>, transform_indices = @transform_6, window_bounds = array<i64: 2, 18, 32>}]} {
    %c0 = arith.constant 0 : index
    %c0_0 = arith.constant 0 : index
    %0 = vector.load %arg2[%c0, %c0_0] : memref<128x128xbf16, #tpu.memory_space<vmem>>, vector<128x128xbf16>
    %c0_1 = arith.constant 0 : index
    %c0_2 = arith.constant 0 : index
    %1 = vector.load %arg3[%c0_1, %c0_2] : memref<32x128xf32, #tpu.memory_space<vmem>>, vector<32x128xf32>
    %c0_3 = arith.constant 0 : index
    %c0_4 = arith.constant 0 : index
    %2 = vector.load %arg4[%c0_3, %c0_4] : memref<1x128xf32, #tpu.memory_space<vmem>>, vector<1x128xf32>
    %c0_5 = arith.constant 0 : index
    %c0_6 = arith.constant 0 : index
    %3 = vector.load %arg5[%c0_5, %c0_6] : memref<64x128xf32, #tpu.memory_space<vmem>>, vector<64x128xf32>
    %c0_7 = arith.constant 0 : index
    %c0_8 = arith.constant 0 : index
    %4 = vector.load %arg6[%c0_7, %c0_8] : memref<1x128xf32, #tpu.memory_space<vmem>>, vector<1x128xf32>
    %c0_9 = arith.constant 0 : index
    %c0_10 = arith.constant 0 : index
    %c0_11 = arith.constant 0 : index
    %5 = vector.load %arg1[%c0_9, %c0_10, %c0_11] : memref<2x18x128xbf16, #tpu.memory_space<vmem>>, vector<1x18x128xbf16>
    %6 = vector.shape_cast %5 : vector<1x18x128xbf16> to vector<18x128xbf16>
    %cst = arith.constant dense<0.000000e+00> : vector<18x128xf32>
    %7 = tpu.matmul %6, %0, %cst {dimension_numbers = #tpu.dot_dimension_numbers<[1], [0], [0], [1], [0, 0, 1, 1], [], []>} : vector<18x128xbf16>, vector<128x128xbf16>, vector<18x128xf32> -> vector<18x128xf32>
    %8 = vector.broadcast %2 : vector<1x128xf32> to vector<18x128xf32>
    %9 = arith.addf %7, %8 : vector<18x128xf32>
    %c1 = arith.constant 1 : index
    %c0_12 = arith.constant 0 : index
    %c0_13 = arith.constant 0 : index
    %10 = vector.load %arg1[%c1, %c0_12, %c0_13] : memref<2x18x128xbf16, #tpu.memory_space<vmem>>, vector<1x18x128xbf16>
    %11 = vector.shape_cast %10 : vector<1x18x128xbf16> to vector<18x128xbf16>
    %cst_14 = arith.constant dense<0.000000e+00> : vector<18x128xf32>
    %12 = tpu.matmul %11, %0, %cst_14 {dimension_numbers = #tpu.dot_dimension_numbers<[1], [0], [0], [1], [0, 0, 1, 1], [], []>} : vector<18x128xbf16>, vector<128x128xbf16>, vector<18x128xf32> -> vector<18x128xf32>
    %13 = vector.broadcast %2 : vector<1x128xf32> to vector<18x128xf32>
    %14 = arith.addf %12, %13 : vector<18x128xf32>
    %cst_15 = arith.constant 0.000000e+00 : f32
    %15 = vector.broadcast %cst_15 : f32 to vector<2x32xf32>
    %16 = vector.extract_strided_slice %9 {offsets = [0, 0], sizes = [1, 128], strides = [1, 1]} : vector<18x128xf32> to vector<1x128xf32>
    %17 = vector.extract_strided_slice %14 {offsets = [0, 0], sizes = [1, 128], strides = [1, 1]} : vector<18x128xf32> to vector<1x128xf32>
    %18 = tpu.concatenate %16, %17 in 0 : vector<1x128xf32>, vector<1x128xf32> -> vector<2x128xf32>
    %cst_16 = arith.constant dense<0.000000e+00> : vector<2x128xf32>
    %19 = tpu.matmul %15, %1, %cst_16 {dimension_numbers = #tpu.dot_dimension_numbers<[1], [0], [0], [1], [0, 0, 1, 1], [], []>} : vector<2x32xf32>, vector<32x128xf32>, vector<2x128xf32> -> vector<2x128xf32>
    %20 = arith.addf %18, %19 : vector<2x128xf32>
    %21 = arith.negf %20 : vector<2x128xf32>
    %22 = math.exp %21 : vector<2x128xf32>
    %cst_17 = arith.constant 1.000000e+00 : f32
    %23 = vector.broadcast %cst_17 : f32 to vector<2x128xf32>
    %24 = arith.addf %23, %22 : vector<2x128xf32>
    %25 = arith.divf %23, %24 : vector<2x128xf32>
    %26 = math.tanh %20 : vector<2x128xf32>
    %27 = vector.extract_strided_slice %25 {offsets = [0, 32], sizes = [2, 32], strides = [1, 1]} : vector<2x128xf32> to vector<2x32xf32>
    %28 = arith.mulf %27, %15 : vector<2x32xf32>
    %29 = vector.extract_strided_slice %25 {offsets = [0, 0], sizes = [2, 32], strides = [1, 1]} : vector<2x128xf32> to vector<2x32xf32>
    %30 = vector.extract_strided_slice %26 {offsets = [0, 64], sizes = [2, 32], strides = [1, 1]} : vector<2x128xf32> to vector<2x32xf32>
    %31 = arith.mulf %29, %30 : vector<2x32xf32>
    %32 = arith.addf %28, %31 : vector<2x32xf32>
    %33 = vector.extract_strided_slice %25 {offsets = [0, 96], sizes = [2, 32], strides = [1, 1]} : vector<2x128xf32> to vector<2x32xf32>
    %34 = math.tanh %32 : vector<2x32xf32>
    %35 = arith.mulf %33, %34 : vector<2x32xf32>
    %36 = vector.extract_strided_slice %9 {offsets = [1, 0], sizes = [1, 128], strides = [1, 1]} : vector<18x128xf32> to vector<1x128xf32>
    %37 = vector.extract_strided_slice %14 {offsets = [1, 0], sizes = [1, 128], strides = [1, 1]} : vector<18x128xf32> to vector<1x128xf32>
    %38 = tpu.concatenate %36, %37 in 0 : vector<1x128xf32>, vector<1x128xf32> -> vector<2x128xf32>
    %cst_18 = arith.constant dense<0.000000e+00> : vector<2x128xf32>
    %39 = tpu.matmul %35, %1, %cst_18 {dimension_numbers = #tpu.dot_dimension_numbers<[1], [0], [0], [1], [0, 0, 1, 1], [], []>} : vector<2x32xf32>, vector<32x128xf32>, vector<2x128xf32> -> vector<2x128xf32>
    %40 = arith.addf %38, %39 : vector<2x128xf32>
    %41 = arith.negf %40 : vector<2x128xf32>
    %42 = math.exp %41 : vector<2x128xf32>
    %cst_19 = arith.constant 1.000000e+00 : f32
    %43 = vector.broadcast %cst_19 : f32 to vector<2x128xf32>
    %44 = arith.addf %43, %42 : vector<2x128xf32>
    %45 = arith.divf %43, %44 : vector<2x128xf32>
    %46 = math.tanh %40 : vector<2x128xf32>
    %47 = vector.extract_strided_slice %45 {offsets = [0, 32], sizes = [2, 32], strides = [1, 1]} : vector<2x128xf32> to vector<2x32xf32>
    %48 = arith.mulf %47, %32 : vector<2x32xf32>
    %49 = vector.extract_strided_slice %45 {offsets = [0, 0], sizes = [2, 32], strides = [1, 1]} : vector<2x128xf32> to vector<2x32xf32>
    %50 = vector.extract_strided_slice %46 {offsets = [0, 64], sizes = [2, 32], strides = [1, 1]} : vector<2x128xf32> to vector<2x32xf32>
    %51 = arith.mulf %49, %50 : vector<2x32xf32>
    %52 = arith.addf %48, %51 : vector<2x32xf32>
    %53 = vector.extract_strided_slice %45 {offsets = [0, 96], sizes = [2, 32], strides = [1, 1]} : vector<2x128xf32> to vector<2x32xf32>
    %54 = math.tanh %52 : vector<2x32xf32>
    %55 = arith.mulf %53, %54 : vector<2x32xf32>
    %56 = tpu.concatenate %35, %15 in 1 : vector<2x32xf32>, vector<2x32xf32> -> vector<2x64xf32>
    %cst_20 = arith.constant dense<0.000000e+00> : vector<2x128xf32>
    %57 = tpu.matmul %56, %3, %cst_20 {dimension_numbers = #tpu.dot_dimension_numbers<[1], [0], [0], [1], [0, 0, 1, 1], [], []>} : vector<2x64xf32>, vector<64x128xf32>, vector<2x128xf32> -> vector<2x128xf32>
    %58 = vector.broadcast %4 : vector<1x128xf32> to vector<2x128xf32>
    %59 = arith.addf %57, %58 : vector<2x128xf32>
    %60 = arith.negf %59 : vector<2x128xf32>
    %61 = math.exp %60 : vector<2x128xf32>
    %cst_21 = arith.constant 1.000000e+00 : f32
    %62 = vector.broadcast %cst_21 : f32 to vector<2x128xf32>
    %63 = arith.addf %62, %61 : vector<2x128xf32>
    %64 = arith.divf %62, %63 : vector<2x128xf32>
    %65 = math.tanh %59 : vector<2x128xf32>
    %66 = vector.extract_strided_slice %64 {offsets = [0, 32], sizes = [2, 32], strides = [1, 1]} : vector<2x128xf32> to vector<2x32xf32>
    %67 = arith.mulf %66, %15 : vector<2x32xf32>
    %68 = vector.extract_strided_slice %64 {offsets = [0, 0], sizes = [2, 32], strides = [1, 1]} : vector<2x128xf32> to vector<2x32xf32>
    %69 = vector.extract_strided_slice %65 {offsets = [0, 64], sizes = [2, 32], strides = [1, 1]} : vector<2x128xf32> to vector<2x32xf32>
    %70 = arith.mulf %68, %69 : vector<2x32xf32>
    %71 = arith.addf %67, %70 : vector<2x32xf32>
    %72 = vector.extract_strided_slice %64 {offsets = [0, 96], sizes = [2, 32], strides = [1, 1]} : vector<2x128xf32> to vector<2x32xf32>
    %73 = math.tanh %71 : vector<2x32xf32>
    %74 = arith.mulf %72, %73 : vector<2x32xf32>
    %75 = vector.extract_strided_slice %74 {offsets = [0, 0], sizes = [1, 32], strides = [1, 1]} : vector<2x32xf32> to vector<1x32xf32>
    %c0_22 = arith.constant 0 : index
    %c0_23 = arith.constant 0 : index
    %c0_24 = arith.constant 0 : index
    %76 = vector.load %arg7[%c0_22, %c0_23, %c0_24] : memref<2x18x32xf32, #tpu.memory_space<vmem>>, vector<1x1x32xf32>
    %77 = vector.shape_cast %76 : vector<1x1x32xf32> to vector<1x32xf32>
    %78 = vector.shape_cast %75 : vector<1x32xf32> to vector<1x1x32xf32>
    tpu.vector_store %arg7[%c0_22, %c0_23, %c0_24], %78 {strides = array<i32>} : memref<2x18x32xf32, #tpu.memory_space<vmem>>, vector<1x1x32xf32>,
    %79 = vector.extract_strided_slice %74 {offsets = [1, 0], sizes = [1, 32], strides = [1, 1]} : vector<2x32xf32> to vector<1x32xf32>
    %c1_25 = arith.constant 1 : index
    %c0_26 = arith.constant 0 : index
    %c0_27 = arith.constant 0 : index
    %80 = vector.load %arg7[%c1_25, %c0_26, %c0_27] : memref<2x18x32xf32, #tpu.memory_space<vmem>>, vector<1x1x32xf32>
    %81 = vector.shape_cast %80 : vector<1x1x32xf32> to vector<1x32xf32>
    %82 = vector.shape_cast %79 : vector<1x32xf32> to vector<1x1x32xf32>
    tpu.vector_store %arg7[%c1_25, %c0_26, %c0_27], %82 {strides = array<i32>} : memref<2x18x32xf32, #tpu.memory_space<vmem>>, vector<1x1x32xf32>,
    %83 = vector.extract_strided_slice %9 {offsets = [2, 0], sizes = [1, 128], strides = [1, 1]} : vector<18x128xf32> to vector<1x128xf32>
    %84 = vector.extract_strided_slice %14 {offsets = [2, 0], sizes = [1, 128], strides = [1, 1]} : vector<18x128xf32> to vector<1x128xf32>
    %85 = tpu.concatenate %83, %84 in 0 : vector<1x128xf32>, vector<1x128xf32> -> vector<2x128xf32>
    %cst_28 = arith.constant dense<0.000000e+00> : vector<2x128xf32>
    %86 = tpu.matmul %55, %1, %cst_28 {dimension_numbers = #tpu.dot_dimension_numbers<[1], [0], [0], [1], [0, 0, 1, 1], [], []>} : vector<2x32xf32>, vector<32x128xf32>, vector<2x128xf32> -> vector<2x128xf32>
    %87 = arith.addf %85, %86 : vector<2x128xf32>
    %88 = arith.negf %87 : vector<2x128xf32>
    %89 = math.exp %88 : vector<2x128xf32>
    %cst_29 = arith.constant 1.000000e+00 : f32
    %90 = vector.broadcast %cst_29 : f32 to vector<2x128xf32>
    %91 = arith.addf %90, %89 : vector<2x128xf32>
    %92 = arith.divf %90, %91 : vector<2x128xf32>
    %93 = math.tanh %87 : vector<2x128xf32>
    %94 = vector.extract_strided_slice %92 {offsets = [0, 32], sizes = [2, 32], strides = [1, 1]} : vector<2x128xf32> to vector<2x32xf32>
    %95 = arith.mulf %94, %52 : vector<2x32xf32>
    %96 = vector.extract_strided_slice %92 {offsets = [0, 0], sizes = [2, 32], strides = [1, 1]} : vector<2x128xf32> to vector<2x32xf32>
    %97 = vector.extract_strided_slice %93 {offsets = [0, 64], sizes = [2, 32], strides = [1, 1]} : vector<2x128xf32> to vector<2x32xf32>
    %98 = arith.mulf %96, %97 : vector<2x32xf32>
    %99 = arith.addf %95, %98 : vector<2x32xf32>
    %100 = vector.extract_strided_slice %92 {offsets = [0, 96], sizes = [2, 32], strides = [1, 1]} : vector<2x128xf32> to vector<2x32xf32>
    %101 = math.tanh %99 : vector<2x32xf32>
    %102 = arith.mulf %100, %101 : vector<2x32xf32>
    %103 = tpu.concatenate %55, %74 in 1 : vector<2x32xf32>, vector<2x32xf32> -> vector<2x64xf32>
    %cst_30 = arith.constant dense<0.000000e+00> : vector<2x128xf32>
    %104 = tpu.matmul %103, %3, %cst_30 {dimension_numbers = #tpu.dot_dimension_numbers<[1], [0], [0], [1], [0, 0, 1, 1], [], []>} : vector<2x64xf32>, vector<64x128xf32>, vector<2x128xf32> -> vector<2x128xf32>
    %105 = vector.broadcast %4 : vector<1x128xf32> to vector<2x128xf32>
    %106 = arith.addf %104, %105 : vector<2x128xf32>
    %107 = arith.negf %106 : vector<2x128xf32>
    %108 = math.exp %107 : vector<2x128xf32>
    %cst_31 = arith.constant 1.000000e+00 : f32
    %109 = vector.broadcast %cst_31 : f32 to vector<2x128xf32>
    %110 = arith.addf %109, %108 : vector<2x128xf32>
    %111 = arith.divf %109, %110 : vector<2x128xf32>
    %112 = math.tanh %106 : vector<2x128xf32>
    %113 = vector.extract_strided_slice %111 {offsets = [0, 32], sizes = [2, 32], strides = [1, 1]} : vector<2x128xf32> to vector<2x32xf32>
    %114 = arith.mulf %113, %71 : vector<2x32xf32>
    %115 = vector.extract_strided_slice %111 {offsets = [0, 0], sizes = [2, 32], strides = [1, 1]} : vector<2x128xf32> to vector<2x32xf32>
    %116 = vector.extract_strided_slice %112 {offsets = [0, 64], sizes = [2, 32], strides = [1, 1]} : vector<2x128xf32> to vector<2x32xf32>
    %117 = arith.mulf %115, %116 : vector<2x32xf32>
    %118 = arith.addf %114, %117 : vector<2x32xf32>
    %119 = vector.extract_strided_slice %111 {offsets = [0, 96], sizes = [2, 32], strides = [1, 1]} : vector<2x128xf32> to vector<2x32xf32>
    %120 = math.tanh %118 : vector<2x32xf32>
    %121 = arith.mulf %119, %120 : vector<2x32xf32>
    %122 = vector.extract_strided_slice %121 {offsets = [0, 0], sizes = [1, 32], strides = [1, 1]} : vector<2x32xf32> to vector<1x32xf32>
    %c0_32 = arith.constant 0 : index
    %c1_33 = arith.constant 1 : index
    %c0_34 = arith.constant 0 : index
    %123 = vector.load %arg7[%c0_32, %c1_33, %c0_34] : memref<2x18x32xf32, #tpu.memory_space<vmem>>, vector<1x1x32xf32>
    %124 = vector.shape_cast %123 : vector<1x1x32xf32> to vector<1x32xf32>
    %125 = vector.shape_cast %122 : vector<1x32xf32> to vector<1x1x32xf32>
    tpu.vector_store %arg7[%c0_32, %c1_33, %c0_34], %125 {strides = array<i32>} : memref<2x18x32xf32, #tpu.memory_space<vmem>>, vector<1x1x32xf32>,
    %126 = vector.extract_strided_slice %121 {offsets = [1, 0], sizes = [1, 32], strides = [1, 1]} : vector<2x32xf32> to vector<1x32xf32>
    %c1_35 = arith.constant 1 : index
    %c1_36 = arith.constant 1 : index
    %c0_37 = arith.constant 0 : index
    %127 = vector.load %arg7[%c1_35, %c1_36, %c0_37] : memref<2x18x32xf32, #tpu.memory_space<vmem>>, vector<1x1x32xf32>
    %128 = vector.shape_cast %127 : vector<1x1x32xf32> to vector<1x32xf32>
    %129 = vector.shape_cast %126 : vector<1x32xf32> to vector<1x1x32xf32>
    tpu.vector_store %arg7[%c1_35, %c1_36, %c0_37], %129 {strides = array<i32>} : memref<2x18x32xf32, #tpu.memory_space<vmem>>, vector<1x1x32xf32>,
    %130 = vector.extract_strided_slice %9 {offsets = [3, 0], sizes = [1, 128], strides = [1, 1]} : vector<18x128xf32> to vector<1x128xf32>
    %131 = vector.extract_strided_slice %14 {offsets = [3, 0], sizes = [1, 128], strides = [1, 1]} : vector<18x128xf32> to vector<1x128xf32>
    %132 = tpu.concatenate %130, %131 in 0 : vector<1x128xf32>, vector<1x128xf32> -> vector<2x128xf32>
    %cst_38 = arith.constant dense<0.000000e+00> : vector<2x128xf32>
    %133 = tpu.matmul %102, %1, %cst_38 {dimension_numbers = #tpu.dot_dimension_numbers<[1], [0], [0], [1], [0, 0, 1, 1], [], []>} : vector<2x32xf32>, vector<32x128xf32>, vector<2x128xf32> -> vector<2x128xf32>
    %134 = arith.addf %132, %133 : vector<2x128xf32>
    %135 = arith.negf %134 : vector<2x128xf32>
    %136 = math.exp %135 : vector<2x128xf32>
    %cst_39 = arith.constant 1.000000e+00 : f32
    %137 = vector.broadcast %cst_39 : f32 to vector<2x128xf32>
    %138 = arith.addf %137, %136 : vector<2x128xf32>
    %139 = arith.divf %137, %138 : vector<2x128xf32>
    %140 = math.tanh %134 : vector<2x128xf32>
    %141 = vector.extract_strided_slice %139 {offsets = [0, 32], sizes = [2, 32], strides = [1, 1]} : vector<2x128xf32> to vector<2x32xf32>
    %142 = arith.mulf %141, %99 : vector<2x32xf32>
    %143 = vector.extract_strided_slice %139 {offsets = [0, 0], sizes = [2, 32], strides = [1, 1]} : vector<2x128xf32> to vector<2x32xf32>
    %144 = vector.extract_strided_slice %140 {offsets = [0, 64], sizes = [2, 32], strides = [1, 1]} : vector<2x128xf32> to vector<2x32xf32>
    %145 = arith.mulf %143, %144 : vector<2x32xf32>
    %146 = arith.addf %142, %145 : vector<2x32xf32>
    %147 = vector.extract_strided_slice %139 {offsets = [0, 96], sizes = [2, 32], strides = [1, 1]} : vector<2x128xf32> to vector<2x32xf32>
    %148 = math.tanh %146 : vector<2x32xf32>
    %149 = arith.mulf %147, %148 : vector<2x32xf32>
    %150 = tpu.concatenate %102, %121 in 1 : vector<2x32xf32>, vector<2x32xf32> -> vector<2x64xf32>
    %cst_40 = arith.constant dense<0.000000e+00> : vector<2x128xf32>
    %151 = tpu.matmul %150, %3, %cst_40 {dimension_numbers = #tpu.dot_dimension_numbers<[1], [0], [0], [1], [0, 0, 1, 1], [], []>} : vector<2x64xf32>, vector<64x128xf32>, vector<2x128xf32> -> vector<2x128xf32>
    %152 = vector.broadcast %4 : vector<1x128xf32> to vector<2x128xf32>
    %153 = arith.addf %151, %152 : vector<2x128xf32>
    %154 = arith.negf %153 : vector<2x128xf32>
    %155 = math.exp %154 : vector<2x128xf32>
    %cst_41 = arith.constant 1.000000e+00 : f32
    %156 = vector.broadcast %cst_41 : f32 to vector<2x128xf32>
    %157 = arith.addf %156, %155 : vector<2x128xf32>
    %158 = arith.divf %156, %157 : vector<2x128xf32>
    %159 = math.tanh %153 : vector<2x128xf32>
    %160 = vector.extract_strided_slice %158 {offsets = [0, 32], sizes = [2, 32], strides = [1, 1]} : vector<2x128xf32> to vector<2x32xf32>
    %161 = arith.mulf %160, %118 : vector<2x32xf32>
    %162 = vector.extract_strided_slice %158 {offsets = [0, 0], sizes = [2, 32], strides = [1, 1]} : vector<2x128xf32> to vector<2x32xf32>
    %163 = vector.extract_strided_slice %159 {offsets = [0, 64], sizes = [2, 32], strides = [1, 1]} : vector<2x128xf32> to vector<2x32xf32>
    %164 = arith.mulf %162, %163 : vector<2x32xf32>
    %165 = arith.addf %161, %164 : vector<2x32xf32>
    %166 = vector.extract_strided_slice %158 {offsets = [0, 96], sizes = [2, 32], strides = [1, 1]} : vector<2x128xf32> to vector<2x32xf32>
    %167 = math.tanh %165 : vector<2x32xf32>
    %168 = arith.mulf %166, %167 : vector<2x32xf32>
    %169 = vector.extract_strided_slice %168 {offsets = [0, 0], sizes = [1, 32], strides = [1, 1]} : vector<2x32xf32> to vector<1x32xf32>
    %c0_42 = arith.constant 0 : index
    %c2 = arith.constant 2 : index
    %c0_43 = arith.constant 0 : index
    %170 = vector.load %arg7[%c0_42, %c2, %c0_43] : memref<2x18x32xf32, #tpu.memory_space<vmem>>, vector<1x1x32xf32>
    %171 = vector.shape_cast %170 : vector<1x1x32xf32> to vector<1x32xf32>
    %172 = vector.shape_cast %169 : vector<1x32xf32> to vector<1x1x32xf32>
    tpu.vector_store %arg7[%c0_42, %c2, %c0_43], %172 {strides = array<i32>} : memref<2x18x32xf32, #tpu.memory_space<vmem>>, vector<1x1x32xf32>,
    %173 = vector.extract_strided_slice %168 {offsets = [1, 0], sizes = [1, 32], strides = [1, 1]} : vector<2x32xf32> to vector<1x32xf32>
    %c1_44 = arith.constant 1 : index
    %c2_45 = arith.constant 2 : index
    %c0_46 = arith.constant 0 : index
    %174 = vector.load %arg7[%c1_44, %c2_45, %c0_46] : memref<2x18x32xf32, #tpu.memory_space<vmem>>, vector<1x1x32xf32>
    %175 = vector.shape_cast %174 : vector<1x1x32xf32> to vector<1x32xf32>
    %176 = vector.shape_cast %173 : vector<1x32xf32> to vector<1x1x32xf32>
    tpu.vector_store %arg7[%c1_44, %c2_45, %c0_46], %176 {strides = array<i32>} : memref<2x18x32xf32, #tpu.memory_space<vmem>>, vector<1x1x32xf32>,
    %177 = vector.extract_strided_slice %9 {offsets = [4, 0], sizes = [1, 128], strides = [1, 1]} : vector<18x128xf32> to vector<1x128xf32>
    %178 = vector.extract_strided_slice %14 {offsets = [4, 0], sizes = [1, 128], strides = [1, 1]} : vector<18x128xf32> to vector<1x128xf32>
    %179 = tpu.concatenate %177, %178 in 0 : vector<1x128xf32>, vector<1x128xf32> -> vector<2x128xf32>
    %cst_47 = arith.constant dense<0.000000e+00> : vector<2x128xf32>
    %180 = tpu.matmul %149, %1, %cst_47 {dimension_numbers = #tpu.dot_dimension_numbers<[1], [0], [0], [1], [0, 0, 1, 1], [], []>} : vector<2x32xf32>, vector<32x128xf32>, vector<2x128xf32> -> vector<2x128xf32>
    %181 = arith.addf %179, %180 : vector<2x128xf32>
    %182 = arith.negf %181 : vector<2x128xf32>
    %183 = math.exp %182 : vector<2x128xf32>
    %cst_48 = arith.constant 1.000000e+00 : f32
    %184 = vector.broadcast %cst_48 : f32 to vector<2x128xf32>
    %185 = arith.addf %184, %183 : vector<2x128xf32>
    %186 = arith.divf %184, %185 : vector<2x128xf32>
    %187 = math.tanh %181 : vector<2x128xf32>
    %188 = vector.extract_strided_slice %186 {offsets = [0, 32], sizes = [2, 32], strides = [1, 1]} : vector<2x128xf32> to vector<2x32xf32>
    %189 = arith.mulf %188, %146 : vector<2x32xf32>
    %190 = vector.extract_strided_slice %186 {offsets = [0, 0], sizes = [2, 32], strides = [1, 1]} : vector<2x128xf32> to vector<2x32xf32>
    %191 = vector.extract_strided_slice %187 {offsets = [0, 64], sizes = [2, 32], strides = [1, 1]} : vector<2x128xf32> to vector<2x32xf32>
    %192 = arith.mulf %190, %191 : vector<2x32xf32>
    %193 = arith.addf %189, %192 : vector<2x32xf32>
    %194 = vector.extract_strided_slice %186 {offsets = [0, 96], sizes = [2, 32], strides = [1, 1]} : vector<2x128xf32> to vector<2x32xf32>
    %195 = math.tanh %193 : vector<2x32xf32>
    %196 = arith.mulf %194, %195 : vector<2x32xf32>
    %197 = tpu.concatenate %149, %168 in 1 : vector<2x32xf32>, vector<2x32xf32> -> vector<2x64xf32>
    %cst_49 = arith.constant dense<0.000000e+00> : vector<2x128xf32>
    %198 = tpu.matmul %197, %3, %cst_49 {dimension_numbers = #tpu.dot_dimension_numbers<[1], [0], [0], [1], [0, 0, 1, 1], [], []>} : vector<2x64xf32>, vector<64x128xf32>, vector<2x128xf32> -> vector<2x128xf32>
    %199 = vector.broadcast %4 : vector<1x128xf32> to vector<2x128xf32>
    %200 = arith.addf %198, %199 : vector<2x128xf32>
    %201 = arith.negf %200 : vector<2x128xf32>
    %202 = math.exp %201 : vector<2x128xf32>
    %cst_50 = arith.constant 1.000000e+00 : f32
    %203 = vector.broadcast %cst_50 : f32 to vector<2x128xf32>
    %204 = arith.addf %203, %202 : vector<2x128xf32>
    %205 = arith.divf %203, %204 : vector<2x128xf32>
    %206 = math.tanh %200 : vector<2x128xf32>
    %207 = vector.extract_strided_slice %205 {offsets = [0, 32], sizes = [2, 32], strides = [1, 1]} : vector<2x128xf32> to vector<2x32xf32>
    %208 = arith.mulf %207, %165 : vector<2x32xf32>
    %209 = vector.extract_strided_slice %205 {offsets = [0, 0], sizes = [2, 32], strides = [1, 1]} : vector<2x128xf32> to vector<2x32xf32>
    %210 = vector.extract_strided_slice %206 {offsets = [0, 64], sizes = [2, 32], strides = [1, 1]} : vector<2x128xf32> to vector<2x32xf32>
    %211 = arith.mulf %209, %210 : vector<2x32xf32>
    %212 = arith.addf %208, %211 : vector<2x32xf32>
    %213 = vector.extract_strided_slice %205 {offsets = [0, 96], sizes = [2, 32], strides = [1, 1]} : vector<2x128xf32> to vector<2x32xf32>
    %214 = math.tanh %212 : vector<2x32xf32>
    %215 = arith.mulf %213, %214 : vector<2x32xf32>
    %216 = vector.extract_strided_slice %215 {offsets = [0, 0], sizes = [1, 32], strides = [1, 1]} : vector<2x32xf32> to vector<1x32xf32>
    %c0_51 = arith.constant 0 : index
    %c3 = arith.constant 3 : index
    %c0_52 = arith.constant 0 : index
    %217 = vector.load %arg7[%c0_51, %c3, %c0_52] : memref<2x18x32xf32, #tpu.memory_space<vmem>>, vector<1x1x32xf32>
    %218 = vector.shape_cast %217 : vector<1x1x32xf32> to vector<1x32xf32>
    %219 = vector.shape_cast %216 : vector<1x32xf32> to vector<1x1x32xf32>
    tpu.vector_store %arg7[%c0_51, %c3, %c0_52], %219 {strides = array<i32>} : memref<2x18x32xf32, #tpu.memory_space<vmem>>, vector<1x1x32xf32>,
    %220 = vector.extract_strided_slice %215 {offsets = [1, 0], sizes = [1, 32], strides = [1, 1]} : vector<2x32xf32> to vector<1x32xf32>
    %c1_53 = arith.constant 1 : index
    %c3_54 = arith.constant 3 : index
    %c0_55 = arith.constant 0 : index
    %221 = vector.load %arg7[%c1_53, %c3_54, %c0_55] : memref<2x18x32xf32, #tpu.memory_space<vmem>>, vector<1x1x32xf32>
    %222 = vector.shape_cast %221 : vector<1x1x32xf32> to vector<1x32xf32>
    %223 = vector.shape_cast %220 : vector<1x32xf32> to vector<1x1x32xf32>
    tpu.vector_store %arg7[%c1_53, %c3_54, %c0_55], %223 {strides = array<i32>} : memref<2x18x32xf32, #tpu.memory_space<vmem>>, vector<1x1x32xf32>,
    %224 = vector.extract_strided_slice %9 {offsets = [5, 0], sizes = [1, 128], strides = [1, 1]} : vector<18x128xf32> to vector<1x128xf32>
    %225 = vector.extract_strided_slice %14 {offsets = [5, 0], sizes = [1, 128], strides = [1, 1]} : vector<18x128xf32> to vector<1x128xf32>
    %226 = tpu.concatenate %224, %225 in 0 : vector<1x128xf32>, vector<1x128xf32> -> vector<2x128xf32>
    %cst_56 = arith.constant dense<0.000000e+00> : vector<2x128xf32>
    %227 = tpu.matmul %196, %1, %cst_56 {dimension_numbers = #tpu.dot_dimension_numbers<[1], [0], [0], [1], [0, 0, 1, 1], [], []>} : vector<2x32xf32>, vector<32x128xf32>, vector<2x128xf32> -> vector<2x128xf32>
    %228 = arith.addf %226, %227 : vector<2x128xf32>
    %229 = arith.negf %228 : vector<2x128xf32>
    %230 = math.exp %229 : vector<2x128xf32>
    %cst_57 = arith.constant 1.000000e+00 : f32
    %231 = vector.broadcast %cst_57 : f32 to vector<2x128xf32>
    %232 = arith.addf %231, %230 : vector<2x128xf32>
    %233 = arith.divf %231, %232 : vector<2x128xf32>
    %234 = math.tanh %228 : vector<2x128xf32>
    %235 = vector.extract_strided_slice %233 {offsets = [0, 32], sizes = [2, 32], strides = [1, 1]} : vector<2x128xf32> to vector<2x32xf32>
    %236 = arith.mulf %235, %193 : vector<2x32xf32>
    %237 = vector.extract_strided_slice %233 {offsets = [0, 0], sizes = [2, 32], strides = [1, 1]} : vector<2x128xf32> to vector<2x32xf32>
    %238 = vector.extract_strided_slice %234 {offsets = [0, 64], sizes = [2, 32], strides = [1, 1]} : vector<2x128xf32> to vector<2x32xf32>
    %239 = arith.mulf %237, %238 : vector<2x32xf32>
    %240 = arith.addf %236, %239 : vector<2x32xf32>
    %241 = vector.extract_strided_slice %233 {offsets = [0, 96], sizes = [2, 32], strides = [1, 1]} : vector<2x128xf32> to vector<2x32xf32>
    %242 = math.tanh %240 : vector<2x32xf32>
    %243 = arith.mulf %241, %242 : vector<2x32xf32>
    %244 = tpu.concatenate %196, %215 in 1 : vector<2x32xf32>, vector<2x32xf32> -> vector<2x64xf32>
    %cst_58 = arith.constant dense<0.000000e+00> : vector<2x128xf32>
    %245 = tpu.matmul %244, %3, %cst_58 {dimension_numbers = #tpu.dot_dimension_numbers<[1], [0], [0], [1], [0, 0, 1, 1], [], []>} : vector<2x64xf32>, vector<64x128xf32>, vector<2x128xf32> -> vector<2x128xf32>
    %246 = vector.broadcast %4 : vector<1x128xf32> to vector<2x128xf32>
    %247 = arith.addf %245, %246 : vector<2x128xf32>
    %248 = arith.negf %247 : vector<2x128xf32>
    %249 = math.exp %248 : vector<2x128xf32>
    %cst_59 = arith.constant 1.000000e+00 : f32
    %250 = vector.broadcast %cst_59 : f32 to vector<2x128xf32>
    %251 = arith.addf %250, %249 : vector<2x128xf32>
    %252 = arith.divf %250, %251 : vector<2x128xf32>
    %253 = math.tanh %247 : vector<2x128xf32>
    %254 = vector.extract_strided_slice %252 {offsets = [0, 32], sizes = [2, 32], strides = [1, 1]} : vector<2x128xf32> to vector<2x32xf32>
    %255 = arith.mulf %254, %212 : vector<2x32xf32>
    %256 = vector.extract_strided_slice %252 {offsets = [0, 0], sizes = [2, 32], strides = [1, 1]} : vector<2x128xf32> to vector<2x32xf32>
    %257 = vector.extract_strided_slice %253 {offsets = [0, 64], sizes = [2, 32], strides = [1, 1]} : vector<2x128xf32> to vector<2x32xf32>
    %258 = arith.mulf %256, %257 : vector<2x32xf32>
    %259 = arith.addf %255, %258 : vector<2x32xf32>
    %260 = vector.extract_strided_slice %252 {offsets = [0, 96], sizes = [2, 32], strides = [1, 1]} : vector<2x128xf32> to vector<2x32xf32>
    %261 = math.tanh %259 : vector<2x32xf32>
    %262 = arith.mulf %260, %261 : vector<2x32xf32>
    %263 = vector.extract_strided_slice %262 {offsets = [0, 0], sizes = [1, 32], strides = [1, 1]} : vector<2x32xf32> to vector<1x32xf32>
    %c0_60 = arith.constant 0 : index
    %c4 = arith.constant 4 : index
    %c0_61 = arith.constant 0 : index
    %264 = vector.load %arg7[%c0_60, %c4, %c0_61] : memref<2x18x32xf32, #tpu.memory_space<vmem>>, vector<1x1x32xf32>
    %265 = vector.shape_cast %264 : vector<1x1x32xf32> to vector<1x32xf32>
    %266 = vector.shape_cast %263 : vector<1x32xf32> to vector<1x1x32xf32>
    tpu.vector_store %arg7[%c0_60, %c4, %c0_61], %266 {strides = array<i32>} : memref<2x18x32xf32, #tpu.memory_space<vmem>>, vector<1x1x32xf32>,
    %267 = vector.extract_strided_slice %262 {offsets = [1, 0], sizes = [1, 32], strides = [1, 1]} : vector<2x32xf32> to vector<1x32xf32>
    %c1_62 = arith.constant 1 : index
    %c4_63 = arith.constant 4 : index
    %c0_64 = arith.constant 0 : index
    %268 = vector.load %arg7[%c1_62, %c4_63, %c0_64] : memref<2x18x32xf32, #tpu.memory_space<vmem>>, vector<1x1x32xf32>
    %269 = vector.shape_cast %268 : vector<1x1x32xf32> to vector<1x32xf32>
    %270 = vector.shape_cast %267 : vector<1x32xf32> to vector<1x1x32xf32>
    tpu.vector_store %arg7[%c1_62, %c4_63, %c0_64], %270 {strides = array<i32>} : memref<2x18x32xf32, #tpu.memory_space<vmem>>, vector<1x1x32xf32>,
    %271 = vector.extract_strided_slice %9 {offsets = [6, 0], sizes = [1, 128], strides = [1, 1]} : vector<18x128xf32> to vector<1x128xf32>
    %272 = vector.extract_strided_slice %14 {offsets = [6, 0], sizes = [1, 128], strides = [1, 1]} : vector<18x128xf32> to vector<1x128xf32>
    %273 = tpu.concatenate %271, %272 in 0 : vector<1x128xf32>, vector<1x128xf32> -> vector<2x128xf32>
    %cst_65 = arith.constant dense<0.000000e+00> : vector<2x128xf32>
    %274 = tpu.matmul %243, %1, %cst_65 {dimension_numbers = #tpu.dot_dimension_numbers<[1], [0], [0], [1], [0, 0, 1, 1], [], []>} : vector<2x32xf32>, vector<32x128xf32>, vector<2x128xf32> -> vector<2x128xf32>
    %275 = arith.addf %273, %274 : vector<2x128xf32>
    %276 = arith.negf %275 : vector<2x128xf32>
    %277 = math.exp %276 : vector<2x128xf32>
    %cst_66 = arith.constant 1.000000e+00 : f32
    %278 = vector.broadcast %cst_66 : f32 to vector<2x128xf32>
    %279 = arith.addf %278, %277 : vector<2x128xf32>
    %280 = arith.divf %278, %279 : vector<2x128xf32>
    %281 = math.tanh %275 : vector<2x128xf32>
    %282 = vector.extract_strided_slice %280 {offsets = [0, 32], sizes = [2, 32], strides = [1, 1]} : vector<2x128xf32> to vector<2x32xf32>
    %283 = arith.mulf %282, %240 : vector<2x32xf32>
    %284 = vector.extract_strided_slice %280 {offsets = [0, 0], sizes = [2, 32], strides = [1, 1]} : vector<2x128xf32> to vector<2x32xf32>
    %285 = vector.extract_strided_slice %281 {offsets = [0, 64], sizes = [2, 32], strides = [1, 1]} : vector<2x128xf32> to vector<2x32xf32>
    %286 = arith.mulf %284, %285 : vector<2x32xf32>
    %287 = arith.addf %283, %286 : vector<2x32xf32>
    %288 = vector.extract_strided_slice %280 {offsets = [0, 96], sizes = [2, 32], strides = [1, 1]} : vector<2x128xf32> to vector<2x32xf32>
    %289 = math.tanh %287 : vector<2x32xf32>
    %290 = arith.mulf %288, %289 : vector<2x32xf32>
    %291 = tpu.concatenate %243, %262 in 1 : vector<2x32xf32>, vector<2x32xf32> -> vector<2x64xf32>
    %cst_67 = arith.constant dense<0.000000e+00> : vector<2x128xf32>
    %292 = tpu.matmul %291, %3, %cst_67 {dimension_numbers = #tpu.dot_dimension_numbers<[1], [0], [0], [1], [0, 0, 1, 1], [], []>} : vector<2x64xf32>, vector<64x128xf32>, vector<2x128xf32> -> vector<2x128xf32>
    %293 = vector.broadcast %4 : vector<1x128xf32> to vector<2x128xf32>
    %294 = arith.addf %292, %293 : vector<2x128xf32>
    %295 = arith.negf %294 : vector<2x128xf32>
    %296 = math.exp %295 : vector<2x128xf32>
    %cst_68 = arith.constant 1.000000e+00 : f32
    %297 = vector.broadcast %cst_68 : f32 to vector<2x128xf32>
    %298 = arith.addf %297, %296 : vector<2x128xf32>
    %299 = arith.divf %297, %298 : vector<2x128xf32>
    %300 = math.tanh %294 : vector<2x128xf32>
    %301 = vector.extract_strided_slice %299 {offsets = [0, 32], sizes = [2, 32], strides = [1, 1]} : vector<2x128xf32> to vector<2x32xf32>
    %302 = arith.mulf %301, %259 : vector<2x32xf32>
    %303 = vector.extract_strided_slice %299 {offsets = [0, 0], sizes = [2, 32], strides = [1, 1]} : vector<2x128xf32> to vector<2x32xf32>
    %304 = vector.extract_strided_slice %300 {offsets = [0, 64], sizes = [2, 32], strides = [1, 1]} : vector<2x128xf32> to vector<2x32xf32>
    %305 = arith.mulf %303, %304 : vector<2x32xf32>
    %306 = arith.addf %302, %305 : vector<2x32xf32>
    %307 = vector.extract_strided_slice %299 {offsets = [0, 96], sizes = [2, 32], strides = [1, 1]} : vector<2x128xf32> to vector<2x32xf32>
    %308 = math.tanh %306 : vector<2x32xf32>
    %309 = arith.mulf %307, %308 : vector<2x32xf32>
    %310 = vector.extract_strided_slice %309 {offsets = [0, 0], sizes = [1, 32], strides = [1, 1]} : vector<2x32xf32> to vector<1x32xf32>
    %c0_69 = arith.constant 0 : index
    %c5 = arith.constant 5 : index
    %c0_70 = arith.constant 0 : index
    %311 = vector.load %arg7[%c0_69, %c5, %c0_70] : memref<2x18x32xf32, #tpu.memory_space<vmem>>, vector<1x1x32xf32>
    %312 = vector.shape_cast %311 : vector<1x1x32xf32> to vector<1x32xf32>
    %313 = vector.shape_cast %310 : vector<1x32xf32> to vector<1x1x32xf32>
    tpu.vector_store %arg7[%c0_69, %c5, %c0_70], %313 {strides = array<i32>} : memref<2x18x32xf32, #tpu.memory_space<vmem>>, vector<1x1x32xf32>,
    %314 = vector.extract_strided_slice %309 {offsets = [1, 0], sizes = [1, 32], strides = [1, 1]} : vector<2x32xf32> to vector<1x32xf32>
    %c1_71 = arith.constant 1 : index
    %c5_72 = arith.constant 5 : index
    %c0_73 = arith.constant 0 : index
    %315 = vector.load %arg7[%c1_71, %c5_72, %c0_73] : memref<2x18x32xf32, #tpu.memory_space<vmem>>, vector<1x1x32xf32>
    %316 = vector.shape_cast %315 : vector<1x1x32xf32> to vector<1x32xf32>
    %317 = vector.shape_cast %314 : vector<1x32xf32> to vector<1x1x32xf32>
    tpu.vector_store %arg7[%c1_71, %c5_72, %c0_73], %317 {strides = array<i32>} : memref<2x18x32xf32, #tpu.memory_space<vmem>>, vector<1x1x32xf32>,
    %318 = vector.extract_strided_slice %9 {offsets = [7, 0], sizes = [1, 128], strides = [1, 1]} : vector<18x128xf32> to vector<1x128xf32>
    %319 = vector.extract_strided_slice %14 {offsets = [7, 0], sizes = [1, 128], strides = [1, 1]} : vector<18x128xf32> to vector<1x128xf32>
    %320 = tpu.concatenate %318, %319 in 0 : vector<1x128xf32>, vector<1x128xf32> -> vector<2x128xf32>
    %cst_74 = arith.constant dense<0.000000e+00> : vector<2x128xf32>
    %321 = tpu.matmul %290, %1, %cst_74 {dimension_numbers = #tpu.dot_dimension_numbers<[1], [0], [0], [1], [0, 0, 1, 1], [], []>} : vector<2x32xf32>, vector<32x128xf32>, vector<2x128xf32> -> vector<2x128xf32>
    %322 = arith.addf %320, %321 : vector<2x128xf32>
    %323 = arith.negf %322 : vector<2x128xf32>
    %324 = math.exp %323 : vector<2x128xf32>
    %cst_75 = arith.constant 1.000000e+00 : f32
    %325 = vector.broadcast %cst_75 : f32 to vector<2x128xf32>
    %326 = arith.addf %325, %324 : vector<2x128xf32>
    %327 = arith.divf %325, %326 : vector<2x128xf32>
    %328 = math.tanh %322 : vector<2x128xf32>
    %329 = vector.extract_strided_slice %327 {offsets = [0, 32], sizes = [2, 32], strides = [1, 1]} : vector<2x128xf32> to vector<2x32xf32>
    %330 = arith.mulf %329, %287 : vector<2x32xf32>
    %331 = vector.extract_strided_slice %327 {offsets = [0, 0], sizes = [2, 32], strides = [1, 1]} : vector<2x128xf32> to vector<2x32xf32>
    %332 = vector.extract_strided_slice %328 {offsets = [0, 64], sizes = [2, 32], strides = [1, 1]} : vector<2x128xf32> to vector<2x32xf32>
    %333 = arith.mulf %331, %332 : vector<2x32xf32>
    %334 = arith.addf %330, %333 : vector<2x32xf32>
    %335 = vector.extract_strided_slice %327 {offsets = [0, 96], sizes = [2, 32], strides = [1, 1]} : vector<2x128xf32> to vector<2x32xf32>
    %336 = math.tanh %334 : vector<2x32xf32>
    %337 = arith.mulf %335, %336 : vector<2x32xf32>
    %338 = tpu.concatenate %290, %309 in 1 : vector<2x32xf32>, vector<2x32xf32> -> vector<2x64xf32>
    %cst_76 = arith.constant dense<0.000000e+00> : vector<2x128xf32>
    %339 = tpu.matmul %338, %3, %cst_76 {dimension_numbers = #tpu.dot_dimension_numbers<[1], [0], [0], [1], [0, 0, 1, 1], [], []>} : vector<2x64xf32>, vector<64x128xf32>, vector<2x128xf32> -> vector<2x128xf32>
    %340 = vector.broadcast %4 : vector<1x128xf32> to vector<2x128xf32>
    %341 = arith.addf %339, %340 : vector<2x128xf32>
    %342 = arith.negf %341 : vector<2x128xf32>
    %343 = math.exp %342 : vector<2x128xf32>
    %cst_77 = arith.constant 1.000000e+00 : f32
    %344 = vector.broadcast %cst_77 : f32 to vector<2x128xf32>
    %345 = arith.addf %344, %343 : vector<2x128xf32>
    %346 = arith.divf %344, %345 : vector<2x128xf32>
    %347 = math.tanh %341 : vector<2x128xf32>
    %348 = vector.extract_strided_slice %346 {offsets = [0, 32], sizes = [2, 32], strides = [1, 1]} : vector<2x128xf32> to vector<2x32xf32>
    %349 = arith.mulf %348, %306 : vector<2x32xf32>
    %350 = vector.extract_strided_slice %346 {offsets = [0, 0], sizes = [2, 32], strides = [1, 1]} : vector<2x128xf32> to vector<2x32xf32>
    %351 = vector.extract_strided_slice %347 {offsets = [0, 64], sizes = [2, 32], strides = [1, 1]} : vector<2x128xf32> to vector<2x32xf32>
    %352 = arith.mulf %350, %351 : vector<2x32xf32>
    %353 = arith.addf %349, %352 : vector<2x32xf32>
    %354 = vector.extract_strided_slice %346 {offsets = [0, 96], sizes = [2, 32], strides = [1, 1]} : vector<2x128xf32> to vector<2x32xf32>
    %355 = math.tanh %353 : vector<2x32xf32>
    %356 = arith.mulf %354, %355 : vector<2x32xf32>
    %357 = vector.extract_strided_slice %356 {offsets = [0, 0], sizes = [1, 32], strides = [1, 1]} : vector<2x32xf32> to vector<1x32xf32>
    %c0_78 = arith.constant 0 : index
    %c6 = arith.constant 6 : index
    %c0_79 = arith.constant 0 : index
    %358 = vector.load %arg7[%c0_78, %c6, %c0_79] : memref<2x18x32xf32, #tpu.memory_space<vmem>>, vector<1x1x32xf32>
    %359 = vector.shape_cast %358 : vector<1x1x32xf32> to vector<1x32xf32>
    %360 = vector.shape_cast %357 : vector<1x32xf32> to vector<1x1x32xf32>
    tpu.vector_store %arg7[%c0_78, %c6, %c0_79], %360 {strides = array<i32>} : memref<2x18x32xf32, #tpu.memory_space<vmem>>, vector<1x1x32xf32>,
    %361 = vector.extract_strided_slice %356 {offsets = [1, 0], sizes = [1, 32], strides = [1, 1]} : vector<2x32xf32> to vector<1x32xf32>
    %c1_80 = arith.constant 1 : index
    %c6_81 = arith.constant 6 : index
    %c0_82 = arith.constant 0 : index
    %362 = vector.load %arg7[%c1_80, %c6_81, %c0_82] : memref<2x18x32xf32, #tpu.memory_space<vmem>>, vector<1x1x32xf32>
    %363 = vector.shape_cast %362 : vector<1x1x32xf32> to vector<1x32xf32>
    %364 = vector.shape_cast %361 : vector<1x32xf32> to vector<1x1x32xf32>
    tpu.vector_store %arg7[%c1_80, %c6_81, %c0_82], %364 {strides = array<i32>} : memref<2x18x32xf32, #tpu.memory_space<vmem>>, vector<1x1x32xf32>,
    %365 = vector.extract_strided_slice %9 {offsets = [8, 0], sizes = [1, 128], strides = [1, 1]} : vector<18x128xf32> to vector<1x128xf32>
    %366 = vector.extract_strided_slice %14 {offsets = [8, 0], sizes = [1, 128], strides = [1, 1]} : vector<18x128xf32> to vector<1x128xf32>
    %367 = tpu.concatenate %365, %366 in 0 : vector<1x128xf32>, vector<1x128xf32> -> vector<2x128xf32>
    %cst_83 = arith.constant dense<0.000000e+00> : vector<2x128xf32>
    %368 = tpu.matmul %337, %1, %cst_83 {dimension_numbers = #tpu.dot_dimension_numbers<[1], [0], [0], [1], [0, 0, 1, 1], [], []>} : vector<2x32xf32>, vector<32x128xf32>, vector<2x128xf32> -> vector<2x128xf32>
    %369 = arith.addf %367, %368 : vector<2x128xf32>
    %370 = arith.negf %369 : vector<2x128xf32>
    %371 = math.exp %370 : vector<2x128xf32>
    %cst_84 = arith.constant 1.000000e+00 : f32
    %372 = vector.broadcast %cst_84 : f32 to vector<2x128xf32>
    %373 = arith.addf %372, %371 : vector<2x128xf32>
    %374 = arith.divf %372, %373 : vector<2x128xf32>
    %375 = math.tanh %369 : vector<2x128xf32>
    %376 = vector.extract_strided_slice %374 {offsets = [0, 32], sizes = [2, 32], strides = [1, 1]} : vector<2x128xf32> to vector<2x32xf32>
    %377 = arith.mulf %376, %334 : vector<2x32xf32>
    %378 = vector.extract_strided_slice %374 {offsets = [0, 0], sizes = [2, 32], strides = [1, 1]} : vector<2x128xf32> to vector<2x32xf32>
    %379 = vector.extract_strided_slice %375 {offsets = [0, 64], sizes = [2, 32], strides = [1, 1]} : vector<2x128xf32> to vector<2x32xf32>
    %380 = arith.mulf %378, %379 : vector<2x32xf32>
    %381 = arith.addf %377, %380 : vector<2x32xf32>
    %382 = vector.extract_strided_slice %374 {offsets = [0, 96], sizes = [2, 32], strides = [1, 1]} : vector<2x128xf32> to vector<2x32xf32>
    %383 = math.tanh %381 : vector<2x32xf32>
    %384 = arith.mulf %382, %383 : vector<2x32xf32>
    %385 = tpu.concatenate %337, %356 in 1 : vector<2x32xf32>, vector<2x32xf32> -> vector<2x64xf32>
    %cst_85 = arith.constant dense<0.000000e+00> : vector<2x128xf32>
    %386 = tpu.matmul %385, %3, %cst_85 {dimension_numbers = #tpu.dot_dimension_numbers<[1], [0], [0], [1], [0, 0, 1, 1], [], []>} : vector<2x64xf32>, vector<64x128xf32>, vector<2x128xf32> -> vector<2x128xf32>
    %387 = vector.broadcast %4 : vector<1x128xf32> to vector<2x128xf32>
    %388 = arith.addf %386, %387 : vector<2x128xf32>
    %389 = arith.negf %388 : vector<2x128xf32>
    %390 = math.exp %389 : vector<2x128xf32>
    %cst_86 = arith.constant 1.000000e+00 : f32
    %391 = vector.broadcast %cst_86 : f32 to vector<2x128xf32>
    %392 = arith.addf %391, %390 : vector<2x128xf32>
    %393 = arith.divf %391, %392 : vector<2x128xf32>
    %394 = math.tanh %388 : vector<2x128xf32>
    %395 = vector.extract_strided_slice %393 {offsets = [0, 32], sizes = [2, 32], strides = [1, 1]} : vector<2x128xf32> to vector<2x32xf32>
    %396 = arith.mulf %395, %353 : vector<2x32xf32>
    %397 = vector.extract_strided_slice %393 {offsets = [0, 0], sizes = [2, 32], strides = [1, 1]} : vector<2x128xf32> to vector<2x32xf32>
    %398 = vector.extract_strided_slice %394 {offsets = [0, 64], sizes = [2, 32], strides = [1, 1]} : vector<2x128xf32> to vector<2x32xf32>
    %399 = arith.mulf %397, %398 : vector<2x32xf32>
    %400 = arith.addf %396, %399 : vector<2x32xf32>
    %401 = vector.extract_strided_slice %393 {offsets = [0, 96], sizes = [2, 32], strides = [1, 1]} : vector<2x128xf32> to vector<2x32xf32>
    %402 = math.tanh %400 : vector<2x32xf32>
    %403 = arith.mulf %401, %402 : vector<2x32xf32>
    %404 = vector.extract_strided_slice %403 {offsets = [0, 0], sizes = [1, 32], strides = [1, 1]} : vector<2x32xf32> to vector<1x32xf32>
    %c0_87 = arith.constant 0 : index
    %c7 = arith.constant 7 : index
    %c0_88 = arith.constant 0 : index
    %405 = vector.load %arg7[%c0_87, %c7, %c0_88] : memref<2x18x32xf32, #tpu.memory_space<vmem>>, vector<1x1x32xf32>
    %406 = vector.shape_cast %405 : vector<1x1x32xf32> to vector<1x32xf32>
    %407 = vector.shape_cast %404 : vector<1x32xf32> to vector<1x1x32xf32>
    tpu.vector_store %arg7[%c0_87, %c7, %c0_88], %407 {strides = array<i32>} : memref<2x18x32xf32, #tpu.memory_space<vmem>>, vector<1x1x32xf32>,
    %408 = vector.extract_strided_slice %403 {offsets = [1, 0], sizes = [1, 32], strides = [1, 1]} : vector<2x32xf32> to vector<1x32xf32>
    %c1_89 = arith.constant 1 : index
    %c7_90 = arith.constant 7 : index
    %c0_91 = arith.constant 0 : index
    %409 = vector.load %arg7[%c1_89, %c7_90, %c0_91] : memref<2x18x32xf32, #tpu.memory_space<vmem>>, vector<1x1x32xf32>
    %410 = vector.shape_cast %409 : vector<1x1x32xf32> to vector<1x32xf32>
    %411 = vector.shape_cast %408 : vector<1x32xf32> to vector<1x1x32xf32>
    tpu.vector_store %arg7[%c1_89, %c7_90, %c0_91], %411 {strides = array<i32>} : memref<2x18x32xf32, #tpu.memory_space<vmem>>, vector<1x1x32xf32>,
    %412 = vector.extract_strided_slice %9 {offsets = [9, 0], sizes = [1, 128], strides = [1, 1]} : vector<18x128xf32> to vector<1x128xf32>
    %413 = vector.extract_strided_slice %14 {offsets = [9, 0], sizes = [1, 128], strides = [1, 1]} : vector<18x128xf32> to vector<1x128xf32>
    %414 = tpu.concatenate %412, %413 in 0 : vector<1x128xf32>, vector<1x128xf32> -> vector<2x128xf32>
    %cst_92 = arith.constant dense<0.000000e+00> : vector<2x128xf32>
    %415 = tpu.matmul %384, %1, %cst_92 {dimension_numbers = #tpu.dot_dimension_numbers<[1], [0], [0], [1], [0, 0, 1, 1], [], []>} : vector<2x32xf32>, vector<32x128xf32>, vector<2x128xf32> -> vector<2x128xf32>
    %416 = arith.addf %414, %415 : vector<2x128xf32>
    %417 = arith.negf %416 : vector<2x128xf32>
    %418 = math.exp %417 : vector<2x128xf32>
    %cst_93 = arith.constant 1.000000e+00 : f32
    %419 = vector.broadcast %cst_93 : f32 to vector<2x128xf32>
    %420 = arith.addf %419, %418 : vector<2x128xf32>
    %421 = arith.divf %419, %420 : vector<2x128xf32>
    %422 = math.tanh %416 : vector<2x128xf32>
    %423 = vector.extract_strided_slice %421 {offsets = [0, 32], sizes = [2, 32], strides = [1, 1]} : vector<2x128xf32> to vector<2x32xf32>
    %424 = arith.mulf %423, %381 : vector<2x32xf32>
    %425 = vector.extract_strided_slice %421 {offsets = [0, 0], sizes = [2, 32], strides = [1, 1]} : vector<2x128xf32> to vector<2x32xf32>
    %426 = vector.extract_strided_slice %422 {offsets = [0, 64], sizes = [2, 32], strides = [1, 1]} : vector<2x128xf32> to vector<2x32xf32>
    %427 = arith.mulf %425, %426 : vector<2x32xf32>
    %428 = arith.addf %424, %427 : vector<2x32xf32>
    %429 = vector.extract_strided_slice %421 {offsets = [0, 96], sizes = [2, 32], strides = [1, 1]} : vector<2x128xf32> to vector<2x32xf32>
    %430 = math.tanh %428 : vector<2x32xf32>
    %431 = arith.mulf %429, %430 : vector<2x32xf32>
    %432 = tpu.concatenate %384, %403 in 1 : vector<2x32xf32>, vector<2x32xf32> -> vector<2x64xf32>
    %cst_94 = arith.constant dense<0.000000e+00> : vector<2x128xf32>
    %433 = tpu.matmul %432, %3, %cst_94 {dimension_numbers = #tpu.dot_dimension_numbers<[1], [0], [0], [1], [0, 0, 1, 1], [], []>} : vector<2x64xf32>, vector<64x128xf32>, vector<2x128xf32> -> vector<2x128xf32>
    %434 = vector.broadcast %4 : vector<1x128xf32> to vector<2x128xf32>
    %435 = arith.addf %433, %434 : vector<2x128xf32>
    %436 = arith.negf %435 : vector<2x128xf32>
    %437 = math.exp %436 : vector<2x128xf32>
    %cst_95 = arith.constant 1.000000e+00 : f32
    %438 = vector.broadcast %cst_95 : f32 to vector<2x128xf32>
    %439 = arith.addf %438, %437 : vector<2x128xf32>
    %440 = arith.divf %438, %439 : vector<2x128xf32>
    %441 = math.tanh %435 : vector<2x128xf32>
    %442 = vector.extract_strided_slice %440 {offsets = [0, 32], sizes = [2, 32], strides = [1, 1]} : vector<2x128xf32> to vector<2x32xf32>
    %443 = arith.mulf %442, %400 : vector<2x32xf32>
    %444 = vector.extract_strided_slice %440 {offsets = [0, 0], sizes = [2, 32], strides = [1, 1]} : vector<2x128xf32> to vector<2x32xf32>
    %445 = vector.extract_strided_slice %441 {offsets = [0, 64], sizes = [2, 32], strides = [1, 1]} : vector<2x128xf32> to vector<2x32xf32>
    %446 = arith.mulf %444, %445 : vector<2x32xf32>
    %447 = arith.addf %443, %446 : vector<2x32xf32>
    %448 = vector.extract_strided_slice %440 {offsets = [0, 96], sizes = [2, 32], strides = [1, 1]} : vector<2x128xf32> to vector<2x32xf32>
    %449 = math.tanh %447 : vector<2x32xf32>
    %450 = arith.mulf %448, %449 : vector<2x32xf32>
    %451 = vector.extract_strided_slice %450 {offsets = [0, 0], sizes = [1, 32], strides = [1, 1]} : vector<2x32xf32> to vector<1x32xf32>
    %c0_96 = arith.constant 0 : index
    %c8 = arith.constant 8 : index
    %c0_97 = arith.constant 0 : index
    %452 = vector.load %arg7[%c0_96, %c8, %c0_97] : memref<2x18x32xf32, #tpu.memory_space<vmem>>, vector<1x1x32xf32>
    %453 = vector.shape_cast %452 : vector<1x1x32xf32> to vector<1x32xf32>
    %454 = vector.shape_cast %451 : vector<1x32xf32> to vector<1x1x32xf32>
    tpu.vector_store %arg7[%c0_96, %c8, %c0_97], %454 {strides = array<i32>} : memref<2x18x32xf32, #tpu.memory_space<vmem>>, vector<1x1x32xf32>,
    %455 = vector.extract_strided_slice %450 {offsets = [1, 0], sizes = [1, 32], strides = [1, 1]} : vector<2x32xf32> to vector<1x32xf32>
    %c1_98 = arith.constant 1 : index
    %c8_99 = arith.constant 8 : index
    %c0_100 = arith.constant 0 : index
    %456 = vector.load %arg7[%c1_98, %c8_99, %c0_100] : memref<2x18x32xf32, #tpu.memory_space<vmem>>, vector<1x1x32xf32>
    %457 = vector.shape_cast %456 : vector<1x1x32xf32> to vector<1x32xf32>
    %458 = vector.shape_cast %455 : vector<1x32xf32> to vector<1x1x32xf32>
    tpu.vector_store %arg7[%c1_98, %c8_99, %c0_100], %458 {strides = array<i32>} : memref<2x18x32xf32, #tpu.memory_space<vmem>>, vector<1x1x32xf32>,
    %459 = vector.extract_strided_slice %9 {offsets = [10, 0], sizes = [1, 128], strides = [1, 1]} : vector<18x128xf32> to vector<1x128xf32>
    %460 = vector.extract_strided_slice %14 {offsets = [10, 0], sizes = [1, 128], strides = [1, 1]} : vector<18x128xf32> to vector<1x128xf32>
    %461 = tpu.concatenate %459, %460 in 0 : vector<1x128xf32>, vector<1x128xf32> -> vector<2x128xf32>
    %cst_101 = arith.constant dense<0.000000e+00> : vector<2x128xf32>
    %462 = tpu.matmul %431, %1, %cst_101 {dimension_numbers = #tpu.dot_dimension_numbers<[1], [0], [0], [1], [0, 0, 1, 1], [], []>} : vector<2x32xf32>, vector<32x128xf32>, vector<2x128xf32> -> vector<2x128xf32>
    %463 = arith.addf %461, %462 : vector<2x128xf32>
    %464 = arith.negf %463 : vector<2x128xf32>
    %465 = math.exp %464 : vector<2x128xf32>
    %cst_102 = arith.constant 1.000000e+00 : f32
    %466 = vector.broadcast %cst_102 : f32 to vector<2x128xf32>
    %467 = arith.addf %466, %465 : vector<2x128xf32>
    %468 = arith.divf %466, %467 : vector<2x128xf32>
    %469 = math.tanh %463 : vector<2x128xf32>
    %470 = vector.extract_strided_slice %468 {offsets = [0, 32], sizes = [2, 32], strides = [1, 1]} : vector<2x128xf32> to vector<2x32xf32>
    %471 = arith.mulf %470, %428 : vector<2x32xf32>
    %472 = vector.extract_strided_slice %468 {offsets = [0, 0], sizes = [2, 32], strides = [1, 1]} : vector<2x128xf32> to vector<2x32xf32>
    %473 = vector.extract_strided_slice %469 {offsets = [0, 64], sizes = [2, 32], strides = [1, 1]} : vector<2x128xf32> to vector<2x32xf32>
    %474 = arith.mulf %472, %473 : vector<2x32xf32>
    %475 = arith.addf %471, %474 : vector<2x32xf32>
    %476 = vector.extract_strided_slice %468 {offsets = [0, 96], sizes = [2, 32], strides = [1, 1]} : vector<2x128xf32> to vector<2x32xf32>
    %477 = math.tanh %475 : vector<2x32xf32>
    %478 = arith.mulf %476, %477 : vector<2x32xf32>
    %479 = tpu.concatenate %431, %450 in 1 : vector<2x32xf32>, vector<2x32xf32> -> vector<2x64xf32>
    %cst_103 = arith.constant dense<0.000000e+00> : vector<2x128xf32>
    %480 = tpu.matmul %479, %3, %cst_103 {dimension_numbers = #tpu.dot_dimension_numbers<[1], [0], [0], [1], [0, 0, 1, 1], [], []>} : vector<2x64xf32>, vector<64x128xf32>, vector<2x128xf32> -> vector<2x128xf32>
    %481 = vector.broadcast %4 : vector<1x128xf32> to vector<2x128xf32>
    %482 = arith.addf %480, %481 : vector<2x128xf32>
    %483 = arith.negf %482 : vector<2x128xf32>
    %484 = math.exp %483 : vector<2x128xf32>
    %cst_104 = arith.constant 1.000000e+00 : f32
    %485 = vector.broadcast %cst_104 : f32 to vector<2x128xf32>
    %486 = arith.addf %485, %484 : vector<2x128xf32>
    %487 = arith.divf %485, %486 : vector<2x128xf32>
    %488 = math.tanh %482 : vector<2x128xf32>
    %489 = vector.extract_strided_slice %487 {offsets = [0, 32], sizes = [2, 32], strides = [1, 1]} : vector<2x128xf32> to vector<2x32xf32>
    %490 = arith.mulf %489, %447 : vector<2x32xf32>
    %491 = vector.extract_strided_slice %487 {offsets = [0, 0], sizes = [2, 32], strides = [1, 1]} : vector<2x128xf32> to vector<2x32xf32>
    %492 = vector.extract_strided_slice %488 {offsets = [0, 64], sizes = [2, 32], strides = [1, 1]} : vector<2x128xf32> to vector<2x32xf32>
    %493 = arith.mulf %491, %492 : vector<2x32xf32>
    %494 = arith.addf %490, %493 : vector<2x32xf32>
    %495 = vector.extract_strided_slice %487 {offsets = [0, 96], sizes = [2, 32], strides = [1, 1]} : vector<2x128xf32> to vector<2x32xf32>
    %496 = math.tanh %494 : vector<2x32xf32>
    %497 = arith.mulf %495, %496 : vector<2x32xf32>
    %498 = vector.extract_strided_slice %497 {offsets = [0, 0], sizes = [1, 32], strides = [1, 1]} : vector<2x32xf32> to vector<1x32xf32>
    %c0_105 = arith.constant 0 : index
    %c9 = arith.constant 9 : index
    %c0_106 = arith.constant 0 : index
    %499 = vector.load %arg7[%c0_105, %c9, %c0_106] : memref<2x18x32xf32, #tpu.memory_space<vmem>>, vector<1x1x32xf32>
    %500 = vector.shape_cast %499 : vector<1x1x32xf32> to vector<1x32xf32>
    %501 = vector.shape_cast %498 : vector<1x32xf32> to vector<1x1x32xf32>
    tpu.vector_store %arg7[%c0_105, %c9, %c0_106], %501 {strides = array<i32>} : memref<2x18x32xf32, #tpu.memory_space<vmem>>, vector<1x1x32xf32>,
    %502 = vector.extract_strided_slice %497 {offsets = [1, 0], sizes = [1, 32], strides = [1, 1]} : vector<2x32xf32> to vector<1x32xf32>
    %c1_107 = arith.constant 1 : index
    %c9_108 = arith.constant 9 : index
    %c0_109 = arith.constant 0 : index
    %503 = vector.load %arg7[%c1_107, %c9_108, %c0_109] : memref<2x18x32xf32, #tpu.memory_space<vmem>>, vector<1x1x32xf32>
    %504 = vector.shape_cast %503 : vector<1x1x32xf32> to vector<1x32xf32>
    %505 = vector.shape_cast %502 : vector<1x32xf32> to vector<1x1x32xf32>
    tpu.vector_store %arg7[%c1_107, %c9_108, %c0_109], %505 {strides = array<i32>} : memref<2x18x32xf32, #tpu.memory_space<vmem>>, vector<1x1x32xf32>,
    %506 = vector.extract_strided_slice %9 {offsets = [11, 0], sizes = [1, 128], strides = [1, 1]} : vector<18x128xf32> to vector<1x128xf32>
    %507 = vector.extract_strided_slice %14 {offsets = [11, 0], sizes = [1, 128], strides = [1, 1]} : vector<18x128xf32> to vector<1x128xf32>
    %508 = tpu.concatenate %506, %507 in 0 : vector<1x128xf32>, vector<1x128xf32> -> vector<2x128xf32>
    %cst_110 = arith.constant dense<0.000000e+00> : vector<2x128xf32>
    %509 = tpu.matmul %478, %1, %cst_110 {dimension_numbers = #tpu.dot_dimension_numbers<[1], [0], [0], [1], [0, 0, 1, 1], [], []>} : vector<2x32xf32>, vector<32x128xf32>, vector<2x128xf32> -> vector<2x128xf32>
    %510 = arith.addf %508, %509 : vector<2x128xf32>
    %511 = arith.negf %510 : vector<2x128xf32>
    %512 = math.exp %511 : vector<2x128xf32>
    %cst_111 = arith.constant 1.000000e+00 : f32
    %513 = vector.broadcast %cst_111 : f32 to vector<2x128xf32>
    %514 = arith.addf %513, %512 : vector<2x128xf32>
    %515 = arith.divf %513, %514 : vector<2x128xf32>
    %516 = math.tanh %510 : vector<2x128xf32>
    %517 = vector.extract_strided_slice %515 {offsets = [0, 32], sizes = [2, 32], strides = [1, 1]} : vector<2x128xf32> to vector<2x32xf32>
    %518 = arith.mulf %517, %475 : vector<2x32xf32>
    %519 = vector.extract_strided_slice %515 {offsets = [0, 0], sizes = [2, 32], strides = [1, 1]} : vector<2x128xf32> to vector<2x32xf32>
    %520 = vector.extract_strided_slice %516 {offsets = [0, 64], sizes = [2, 32], strides = [1, 1]} : vector<2x128xf32> to vector<2x32xf32>
    %521 = arith.mulf %519, %520 : vector<2x32xf32>
    %522 = arith.addf %518, %521 : vector<2x32xf32>
    %523 = vector.extract_strided_slice %515 {offsets = [0, 96], sizes = [2, 32], strides = [1, 1]} : vector<2x128xf32> to vector<2x32xf32>
    %524 = math.tanh %522 : vector<2x32xf32>
    %525 = arith.mulf %523, %524 : vector<2x32xf32>
    %526 = tpu.concatenate %478, %497 in 1 : vector<2x32xf32>, vector<2x32xf32> -> vector<2x64xf32>
    %cst_112 = arith.constant dense<0.000000e+00> : vector<2x128xf32>
    %527 = tpu.matmul %526, %3, %cst_112 {dimension_numbers = #tpu.dot_dimension_numbers<[1], [0], [0], [1], [0, 0, 1, 1], [], []>} : vector<2x64xf32>, vector<64x128xf32>, vector<2x128xf32> -> vector<2x128xf32>
    %528 = vector.broadcast %4 : vector<1x128xf32> to vector<2x128xf32>
    %529 = arith.addf %527, %528 : vector<2x128xf32>
    %530 = arith.negf %529 : vector<2x128xf32>
    %531 = math.exp %530 : vector<2x128xf32>
    %cst_113 = arith.constant 1.000000e+00 : f32
    %532 = vector.broadcast %cst_113 : f32 to vector<2x128xf32>
    %533 = arith.addf %532, %531 : vector<2x128xf32>
    %534 = arith.divf %532, %533 : vector<2x128xf32>
    %535 = math.tanh %529 : vector<2x128xf32>
    %536 = vector.extract_strided_slice %534 {offsets = [0, 32], sizes = [2, 32], strides = [1, 1]} : vector<2x128xf32> to vector<2x32xf32>
    %537 = arith.mulf %536, %494 : vector<2x32xf32>
    %538 = vector.extract_strided_slice %534 {offsets = [0, 0], sizes = [2, 32], strides = [1, 1]} : vector<2x128xf32> to vector<2x32xf32>
    %539 = vector.extract_strided_slice %535 {offsets = [0, 64], sizes = [2, 32], strides = [1, 1]} : vector<2x128xf32> to vector<2x32xf32>
    %540 = arith.mulf %538, %539 : vector<2x32xf32>
    %541 = arith.addf %537, %540 : vector<2x32xf32>
    %542 = vector.extract_strided_slice %534 {offsets = [0, 96], sizes = [2, 32], strides = [1, 1]} : vector<2x128xf32> to vector<2x32xf32>
    %543 = math.tanh %541 : vector<2x32xf32>
    %544 = arith.mulf %542, %543 : vector<2x32xf32>
    %545 = vector.extract_strided_slice %544 {offsets = [0, 0], sizes = [1, 32], strides = [1, 1]} : vector<2x32xf32> to vector<1x32xf32>
    %c0_114 = arith.constant 0 : index
    %c10 = arith.constant 10 : index
    %c0_115 = arith.constant 0 : index
    %546 = vector.load %arg7[%c0_114, %c10, %c0_115] : memref<2x18x32xf32, #tpu.memory_space<vmem>>, vector<1x1x32xf32>
    %547 = vector.shape_cast %546 : vector<1x1x32xf32> to vector<1x32xf32>
    %548 = vector.shape_cast %545 : vector<1x32xf32> to vector<1x1x32xf32>
    tpu.vector_store %arg7[%c0_114, %c10, %c0_115], %548 {strides = array<i32>} : memref<2x18x32xf32, #tpu.memory_space<vmem>>, vector<1x1x32xf32>,
    %549 = vector.extract_strided_slice %544 {offsets = [1, 0], sizes = [1, 32], strides = [1, 1]} : vector<2x32xf32> to vector<1x32xf32>
    %c1_116 = arith.constant 1 : index
    %c10_117 = arith.constant 10 : index
    %c0_118 = arith.constant 0 : index
    %550 = vector.load %arg7[%c1_116, %c10_117, %c0_118] : memref<2x18x32xf32, #tpu.memory_space<vmem>>, vector<1x1x32xf32>
    %551 = vector.shape_cast %550 : vector<1x1x32xf32> to vector<1x32xf32>
    %552 = vector.shape_cast %549 : vector<1x32xf32> to vector<1x1x32xf32>
    tpu.vector_store %arg7[%c1_116, %c10_117, %c0_118], %552 {strides = array<i32>} : memref<2x18x32xf32, #tpu.memory_space<vmem>>, vector<1x1x32xf32>,
    %553 = vector.extract_strided_slice %9 {offsets = [12, 0], sizes = [1, 128], strides = [1, 1]} : vector<18x128xf32> to vector<1x128xf32>
    %554 = vector.extract_strided_slice %14 {offsets = [12, 0], sizes = [1, 128], strides = [1, 1]} : vector<18x128xf32> to vector<1x128xf32>
    %555 = tpu.concatenate %553, %554 in 0 : vector<1x128xf32>, vector<1x128xf32> -> vector<2x128xf32>
    %cst_119 = arith.constant dense<0.000000e+00> : vector<2x128xf32>
    %556 = tpu.matmul %525, %1, %cst_119 {dimension_numbers = #tpu.dot_dimension_numbers<[1], [0], [0], [1], [0, 0, 1, 1], [], []>} : vector<2x32xf32>, vector<32x128xf32>, vector<2x128xf32> -> vector<2x128xf32>
    %557 = arith.addf %555, %556 : vector<2x128xf32>
    %558 = arith.negf %557 : vector<2x128xf32>
    %559 = math.exp %558 : vector<2x128xf32>
    %cst_120 = arith.constant 1.000000e+00 : f32
    %560 = vector.broadcast %cst_120 : f32 to vector<2x128xf32>
    %561 = arith.addf %560, %559 : vector<2x128xf32>
    %562 = arith.divf %560, %561 : vector<2x128xf32>
    %563 = math.tanh %557 : vector<2x128xf32>
    %564 = vector.extract_strided_slice %562 {offsets = [0, 32], sizes = [2, 32], strides = [1, 1]} : vector<2x128xf32> to vector<2x32xf32>
    %565 = arith.mulf %564, %522 : vector<2x32xf32>
    %566 = vector.extract_strided_slice %562 {offsets = [0, 0], sizes = [2, 32], strides = [1, 1]} : vector<2x128xf32> to vector<2x32xf32>
    %567 = vector.extract_strided_slice %563 {offsets = [0, 64], sizes = [2, 32], strides = [1, 1]} : vector<2x128xf32> to vector<2x32xf32>
    %568 = arith.mulf %566, %567 : vector<2x32xf32>
    %569 = arith.addf %565, %568 : vector<2x32xf32>
    %570 = vector.extract_strided_slice %562 {offsets = [0, 96], sizes = [2, 32], strides = [1, 1]} : vector<2x128xf32> to vector<2x32xf32>
    %571 = math.tanh %569 : vector<2x32xf32>
    %572 = arith.mulf %570, %571 : vector<2x32xf32>
    %573 = tpu.concatenate %525, %544 in 1 : vector<2x32xf32>, vector<2x32xf32> -> vector<2x64xf32>
    %cst_121 = arith.constant dense<0.000000e+00> : vector<2x128xf32>
    %574 = tpu.matmul %573, %3, %cst_121 {dimension_numbers = #tpu.dot_dimension_numbers<[1], [0], [0], [1], [0, 0, 1, 1], [], []>} : vector<2x64xf32>, vector<64x128xf32>, vector<2x128xf32> -> vector<2x128xf32>
    %575 = vector.broadcast %4 : vector<1x128xf32> to vector<2x128xf32>
    %576 = arith.addf %574, %575 : vector<2x128xf32>
    %577 = arith.negf %576 : vector<2x128xf32>
    %578 = math.exp %577 : vector<2x128xf32>
    %cst_122 = arith.constant 1.000000e+00 : f32
    %579 = vector.broadcast %cst_122 : f32 to vector<2x128xf32>
    %580 = arith.addf %579, %578 : vector<2x128xf32>
    %581 = arith.divf %579, %580 : vector<2x128xf32>
    %582 = math.tanh %576 : vector<2x128xf32>
    %583 = vector.extract_strided_slice %581 {offsets = [0, 32], sizes = [2, 32], strides = [1, 1]} : vector<2x128xf32> to vector<2x32xf32>
    %584 = arith.mulf %583, %541 : vector<2x32xf32>
    %585 = vector.extract_strided_slice %581 {offsets = [0, 0], sizes = [2, 32], strides = [1, 1]} : vector<2x128xf32> to vector<2x32xf32>
    %586 = vector.extract_strided_slice %582 {offsets = [0, 64], sizes = [2, 32], strides = [1, 1]} : vector<2x128xf32> to vector<2x32xf32>
    %587 = arith.mulf %585, %586 : vector<2x32xf32>
    %588 = arith.addf %584, %587 : vector<2x32xf32>
    %589 = vector.extract_strided_slice %581 {offsets = [0, 96], sizes = [2, 32], strides = [1, 1]} : vector<2x128xf32> to vector<2x32xf32>
    %590 = math.tanh %588 : vector<2x32xf32>
    %591 = arith.mulf %589, %590 : vector<2x32xf32>
    %592 = vector.extract_strided_slice %591 {offsets = [0, 0], sizes = [1, 32], strides = [1, 1]} : vector<2x32xf32> to vector<1x32xf32>
    %c0_123 = arith.constant 0 : index
    %c11 = arith.constant 11 : index
    %c0_124 = arith.constant 0 : index
    %593 = vector.load %arg7[%c0_123, %c11, %c0_124] : memref<2x18x32xf32, #tpu.memory_space<vmem>>, vector<1x1x32xf32>
    %594 = vector.shape_cast %593 : vector<1x1x32xf32> to vector<1x32xf32>
    %595 = vector.shape_cast %592 : vector<1x32xf32> to vector<1x1x32xf32>
    tpu.vector_store %arg7[%c0_123, %c11, %c0_124], %595 {strides = array<i32>} : memref<2x18x32xf32, #tpu.memory_space<vmem>>, vector<1x1x32xf32>,
    %596 = vector.extract_strided_slice %591 {offsets = [1, 0], sizes = [1, 32], strides = [1, 1]} : vector<2x32xf32> to vector<1x32xf32>
    %c1_125 = arith.constant 1 : index
    %c11_126 = arith.constant 11 : index
    %c0_127 = arith.constant 0 : index
    %597 = vector.load %arg7[%c1_125, %c11_126, %c0_127] : memref<2x18x32xf32, #tpu.memory_space<vmem>>, vector<1x1x32xf32>
    %598 = vector.shape_cast %597 : vector<1x1x32xf32> to vector<1x32xf32>
    %599 = vector.shape_cast %596 : vector<1x32xf32> to vector<1x1x32xf32>
    tpu.vector_store %arg7[%c1_125, %c11_126, %c0_127], %599 {strides = array<i32>} : memref<2x18x32xf32, #tpu.memory_space<vmem>>, vector<1x1x32xf32>,
    %600 = vector.extract_strided_slice %9 {offsets = [13, 0], sizes = [1, 128], strides = [1, 1]} : vector<18x128xf32> to vector<1x128xf32>
    %601 = vector.extract_strided_slice %14 {offsets = [13, 0], sizes = [1, 128], strides = [1, 1]} : vector<18x128xf32> to vector<1x128xf32>
    %602 = tpu.concatenate %600, %601 in 0 : vector<1x128xf32>, vector<1x128xf32> -> vector<2x128xf32>
    %cst_128 = arith.constant dense<0.000000e+00> : vector<2x128xf32>
    %603 = tpu.matmul %572, %1, %cst_128 {dimension_numbers = #tpu.dot_dimension_numbers<[1], [0], [0], [1], [0, 0, 1, 1], [], []>} : vector<2x32xf32>, vector<32x128xf32>, vector<2x128xf32> -> vector<2x128xf32>
    %604 = arith.addf %602, %603 : vector<2x128xf32>
    %605 = arith.negf %604 : vector<2x128xf32>
    %606 = math.exp %605 : vector<2x128xf32>
    %cst_129 = arith.constant 1.000000e+00 : f32
    %607 = vector.broadcast %cst_129 : f32 to vector<2x128xf32>
    %608 = arith.addf %607, %606 : vector<2x128xf32>
    %609 = arith.divf %607, %608 : vector<2x128xf32>
    %610 = math.tanh %604 : vector<2x128xf32>
    %611 = vector.extract_strided_slice %609 {offsets = [0, 32], sizes = [2, 32], strides = [1, 1]} : vector<2x128xf32> to vector<2x32xf32>
    %612 = arith.mulf %611, %569 : vector<2x32xf32>
    %613 = vector.extract_strided_slice %609 {offsets = [0, 0], sizes = [2, 32], strides = [1, 1]} : vector<2x128xf32> to vector<2x32xf32>
    %614 = vector.extract_strided_slice %610 {offsets = [0, 64], sizes = [2, 32], strides = [1, 1]} : vector<2x128xf32> to vector<2x32xf32>
    %615 = arith.mulf %613, %614 : vector<2x32xf32>
    %616 = arith.addf %612, %615 : vector<2x32xf32>
    %617 = vector.extract_strided_slice %609 {offsets = [0, 96], sizes = [2, 32], strides = [1, 1]} : vector<2x128xf32> to vector<2x32xf32>
    %618 = math.tanh %616 : vector<2x32xf32>
    %619 = arith.mulf %617, %618 : vector<2x32xf32>
    %620 = tpu.concatenate %572, %591 in 1 : vector<2x32xf32>, vector<2x32xf32> -> vector<2x64xf32>
    %cst_130 = arith.constant dense<0.000000e+00> : vector<2x128xf32>
    %621 = tpu.matmul %620, %3, %cst_130 {dimension_numbers = #tpu.dot_dimension_numbers<[1], [0], [0], [1], [0, 0, 1, 1], [], []>} : vector<2x64xf32>, vector<64x128xf32>, vector<2x128xf32> -> vector<2x128xf32>
    %622 = vector.broadcast %4 : vector<1x128xf32> to vector<2x128xf32>
    %623 = arith.addf %621, %622 : vector<2x128xf32>
    %624 = arith.negf %623 : vector<2x128xf32>
    %625 = math.exp %624 : vector<2x128xf32>
    %cst_131 = arith.constant 1.000000e+00 : f32
    %626 = vector.broadcast %cst_131 : f32 to vector<2x128xf32>
    %627 = arith.addf %626, %625 : vector<2x128xf32>
    %628 = arith.divf %626, %627 : vector<2x128xf32>
    %629 = math.tanh %623 : vector<2x128xf32>
    %630 = vector.extract_strided_slice %628 {offsets = [0, 32], sizes = [2, 32], strides = [1, 1]} : vector<2x128xf32> to vector<2x32xf32>
    %631 = arith.mulf %630, %588 : vector<2x32xf32>
    %632 = vector.extract_strided_slice %628 {offsets = [0, 0], sizes = [2, 32], strides = [1, 1]} : vector<2x128xf32> to vector<2x32xf32>
    %633 = vector.extract_strided_slice %629 {offsets = [0, 64], sizes = [2, 32], strides = [1, 1]} : vector<2x128xf32> to vector<2x32xf32>
    %634 = arith.mulf %632, %633 : vector<2x32xf32>
    %635 = arith.addf %631, %634 : vector<2x32xf32>
    %636 = vector.extract_strided_slice %628 {offsets = [0, 96], sizes = [2, 32], strides = [1, 1]} : vector<2x128xf32> to vector<2x32xf32>
    %637 = math.tanh %635 : vector<2x32xf32>
    %638 = arith.mulf %636, %637 : vector<2x32xf32>
    %639 = vector.extract_strided_slice %638 {offsets = [0, 0], sizes = [1, 32], strides = [1, 1]} : vector<2x32xf32> to vector<1x32xf32>
    %c0_132 = arith.constant 0 : index
    %c12 = arith.constant 12 : index
    %c0_133 = arith.constant 0 : index
    %640 = vector.load %arg7[%c0_132, %c12, %c0_133] : memref<2x18x32xf32, #tpu.memory_space<vmem>>, vector<1x1x32xf32>
    %641 = vector.shape_cast %640 : vector<1x1x32xf32> to vector<1x32xf32>
    %642 = vector.shape_cast %639 : vector<1x32xf32> to vector<1x1x32xf32>
    tpu.vector_store %arg7[%c0_132, %c12, %c0_133], %642 {strides = array<i32>} : memref<2x18x32xf32, #tpu.memory_space<vmem>>, vector<1x1x32xf32>,
    %643 = vector.extract_strided_slice %638 {offsets = [1, 0], sizes = [1, 32], strides = [1, 1]} : vector<2x32xf32> to vector<1x32xf32>
    %c1_134 = arith.constant 1 : index
    %c12_135 = arith.constant 12 : index
    %c0_136 = arith.constant 0 : index
    %644 = vector.load %arg7[%c1_134, %c12_135, %c0_136] : memref<2x18x32xf32, #tpu.memory_space<vmem>>, vector<1x1x32xf32>
    %645 = vector.shape_cast %644 : vector<1x1x32xf32> to vector<1x32xf32>
    %646 = vector.shape_cast %643 : vector<1x32xf32> to vector<1x1x32xf32>
    tpu.vector_store %arg7[%c1_134, %c12_135, %c0_136], %646 {strides = array<i32>} : memref<2x18x32xf32, #tpu.memory_space<vmem>>, vector<1x1x32xf32>,
    %647 = vector.extract_strided_slice %9 {offsets = [14, 0], sizes = [1, 128], strides = [1, 1]} : vector<18x128xf32> to vector<1x128xf32>
    %648 = vector.extract_strided_slice %14 {offsets = [14, 0], sizes = [1, 128], strides = [1, 1]} : vector<18x128xf32> to vector<1x128xf32>
    %649 = tpu.concatenate %647, %648 in 0 : vector<1x128xf32>, vector<1x128xf32> -> vector<2x128xf32>
    %cst_137 = arith.constant dense<0.000000e+00> : vector<2x128xf32>
    %650 = tpu.matmul %619, %1, %cst_137 {dimension_numbers = #tpu.dot_dimension_numbers<[1], [0], [0], [1], [0, 0, 1, 1], [], []>} : vector<2x32xf32>, vector<32x128xf32>, vector<2x128xf32> -> vector<2x128xf32>
    %651 = arith.addf %649, %650 : vector<2x128xf32>
    %652 = arith.negf %651 : vector<2x128xf32>
    %653 = math.exp %652 : vector<2x128xf32>
    %cst_138 = arith.constant 1.000000e+00 : f32
    %654 = vector.broadcast %cst_138 : f32 to vector<2x128xf32>
    %655 = arith.addf %654, %653 : vector<2x128xf32>
    %656 = arith.divf %654, %655 : vector<2x128xf32>
    %657 = math.tanh %651 : vector<2x128xf32>
    %658 = vector.extract_strided_slice %656 {offsets = [0, 32], sizes = [2, 32], strides = [1, 1]} : vector<2x128xf32> to vector<2x32xf32>
    %659 = arith.mulf %658, %616 : vector<2x32xf32>
    %660 = vector.extract_strided_slice %656 {offsets = [0, 0], sizes = [2, 32], strides = [1, 1]} : vector<2x128xf32> to vector<2x32xf32>
    %661 = vector.extract_strided_slice %657 {offsets = [0, 64], sizes = [2, 32], strides = [1, 1]} : vector<2x128xf32> to vector<2x32xf32>
    %662 = arith.mulf %660, %661 : vector<2x32xf32>
    %663 = arith.addf %659, %662 : vector<2x32xf32>
    %664 = vector.extract_strided_slice %656 {offsets = [0, 96], sizes = [2, 32], strides = [1, 1]} : vector<2x128xf32> to vector<2x32xf32>
    %665 = math.tanh %663 : vector<2x32xf32>
    %666 = arith.mulf %664, %665 : vector<2x32xf32>
    %667 = tpu.concatenate %619, %638 in 1 : vector<2x32xf32>, vector<2x32xf32> -> vector<2x64xf32>
    %cst_139 = arith.constant dense<0.000000e+00> : vector<2x128xf32>
    %668 = tpu.matmul %667, %3, %cst_139 {dimension_numbers = #tpu.dot_dimension_numbers<[1], [0], [0], [1], [0, 0, 1, 1], [], []>} : vector<2x64xf32>, vector<64x128xf32>, vector<2x128xf32> -> vector<2x128xf32>
    %669 = vector.broadcast %4 : vector<1x128xf32> to vector<2x128xf32>
    %670 = arith.addf %668, %669 : vector<2x128xf32>
    %671 = arith.negf %670 : vector<2x128xf32>
    %672 = math.exp %671 : vector<2x128xf32>
    %cst_140 = arith.constant 1.000000e+00 : f32
    %673 = vector.broadcast %cst_140 : f32 to vector<2x128xf32>
    %674 = arith.addf %673, %672 : vector<2x128xf32>
    %675 = arith.divf %673, %674 : vector<2x128xf32>
    %676 = math.tanh %670 : vector<2x128xf32>
    %677 = vector.extract_strided_slice %675 {offsets = [0, 32], sizes = [2, 32], strides = [1, 1]} : vector<2x128xf32> to vector<2x32xf32>
    %678 = arith.mulf %677, %635 : vector<2x32xf32>
    %679 = vector.extract_strided_slice %675 {offsets = [0, 0], sizes = [2, 32], strides = [1, 1]} : vector<2x128xf32> to vector<2x32xf32>
    %680 = vector.extract_strided_slice %676 {offsets = [0, 64], sizes = [2, 32], strides = [1, 1]} : vector<2x128xf32> to vector<2x32xf32>
    %681 = arith.mulf %679, %680 : vector<2x32xf32>
    %682 = arith.addf %678, %681 : vector<2x32xf32>
    %683 = vector.extract_strided_slice %675 {offsets = [0, 96], sizes = [2, 32], strides = [1, 1]} : vector<2x128xf32> to vector<2x32xf32>
    %684 = math.tanh %682 : vector<2x32xf32>
    %685 = arith.mulf %683, %684 : vector<2x32xf32>
    %686 = vector.extract_strided_slice %685 {offsets = [0, 0], sizes = [1, 32], strides = [1, 1]} : vector<2x32xf32> to vector<1x32xf32>
    %c0_141 = arith.constant 0 : index
    %c13 = arith.constant 13 : index
    %c0_142 = arith.constant 0 : index
    %687 = vector.load %arg7[%c0_141, %c13, %c0_142] : memref<2x18x32xf32, #tpu.memory_space<vmem>>, vector<1x1x32xf32>
    %688 = vector.shape_cast %687 : vector<1x1x32xf32> to vector<1x32xf32>
    %689 = vector.shape_cast %686 : vector<1x32xf32> to vector<1x1x32xf32>
    tpu.vector_store %arg7[%c0_141, %c13, %c0_142], %689 {strides = array<i32>} : memref<2x18x32xf32, #tpu.memory_space<vmem>>, vector<1x1x32xf32>,
    %690 = vector.extract_strided_slice %685 {offsets = [1, 0], sizes = [1, 32], strides = [1, 1]} : vector<2x32xf32> to vector<1x32xf32>
    %c1_143 = arith.constant 1 : index
    %c13_144 = arith.constant 13 : index
    %c0_145 = arith.constant 0 : index
    %691 = vector.load %arg7[%c1_143, %c13_144, %c0_145] : memref<2x18x32xf32, #tpu.memory_space<vmem>>, vector<1x1x32xf32>
    %692 = vector.shape_cast %691 : vector<1x1x32xf32> to vector<1x32xf32>
    %693 = vector.shape_cast %690 : vector<1x32xf32> to vector<1x1x32xf32>
    tpu.vector_store %arg7[%c1_143, %c13_144, %c0_145], %693 {strides = array<i32>} : memref<2x18x32xf32, #tpu.memory_space<vmem>>, vector<1x1x32xf32>,
    %694 = vector.extract_strided_slice %9 {offsets = [15, 0], sizes = [1, 128], strides = [1, 1]} : vector<18x128xf32> to vector<1x128xf32>
    %695 = vector.extract_strided_slice %14 {offsets = [15, 0], sizes = [1, 128], strides = [1, 1]} : vector<18x128xf32> to vector<1x128xf32>
    %696 = tpu.concatenate %694, %695 in 0 : vector<1x128xf32>, vector<1x128xf32> -> vector<2x128xf32>
    %cst_146 = arith.constant dense<0.000000e+00> : vector<2x128xf32>
    %697 = tpu.matmul %666, %1, %cst_146 {dimension_numbers = #tpu.dot_dimension_numbers<[1], [0], [0], [1], [0, 0, 1, 1], [], []>} : vector<2x32xf32>, vector<32x128xf32>, vector<2x128xf32> -> vector<2x128xf32>
    %698 = arith.addf %696, %697 : vector<2x128xf32>
    %699 = arith.negf %698 : vector<2x128xf32>
    %700 = math.exp %699 : vector<2x128xf32>
    %cst_147 = arith.constant 1.000000e+00 : f32
    %701 = vector.broadcast %cst_147 : f32 to vector<2x128xf32>
    %702 = arith.addf %701, %700 : vector<2x128xf32>
    %703 = arith.divf %701, %702 : vector<2x128xf32>
    %704 = math.tanh %698 : vector<2x128xf32>
    %705 = vector.extract_strided_slice %703 {offsets = [0, 32], sizes = [2, 32], strides = [1, 1]} : vector<2x128xf32> to vector<2x32xf32>
    %706 = arith.mulf %705, %663 : vector<2x32xf32>
    %707 = vector.extract_strided_slice %703 {offsets = [0, 0], sizes = [2, 32], strides = [1, 1]} : vector<2x128xf32> to vector<2x32xf32>
    %708 = vector.extract_strided_slice %704 {offsets = [0, 64], sizes = [2, 32], strides = [1, 1]} : vector<2x128xf32> to vector<2x32xf32>
    %709 = arith.mulf %707, %708 : vector<2x32xf32>
    %710 = arith.addf %706, %709 : vector<2x32xf32>
    %711 = vector.extract_strided_slice %703 {offsets = [0, 96], sizes = [2, 32], strides = [1, 1]} : vector<2x128xf32> to vector<2x32xf32>
    %712 = math.tanh %710 : vector<2x32xf32>
    %713 = arith.mulf %711, %712 : vector<2x32xf32>
    %714 = tpu.concatenate %666, %685 in 1 : vector<2x32xf32>, vector<2x32xf32> -> vector<2x64xf32>
    %cst_148 = arith.constant dense<0.000000e+00> : vector<2x128xf32>
    %715 = tpu.matmul %714, %3, %cst_148 {dimension_numbers = #tpu.dot_dimension_numbers<[1], [0], [0], [1], [0, 0, 1, 1], [], []>} : vector<2x64xf32>, vector<64x128xf32>, vector<2x128xf32> -> vector<2x128xf32>
    %716 = vector.broadcast %4 : vector<1x128xf32> to vector<2x128xf32>
    %717 = arith.addf %715, %716 : vector<2x128xf32>
    %718 = arith.negf %717 : vector<2x128xf32>
    %719 = math.exp %718 : vector<2x128xf32>
    %cst_149 = arith.constant 1.000000e+00 : f32
    %720 = vector.broadcast %cst_149 : f32 to vector<2x128xf32>
    %721 = arith.addf %720, %719 : vector<2x128xf32>
    %722 = arith.divf %720, %721 : vector<2x128xf32>
    %723 = math.tanh %717 : vector<2x128xf32>
    %724 = vector.extract_strided_slice %722 {offsets = [0, 32], sizes = [2, 32], strides = [1, 1]} : vector<2x128xf32> to vector<2x32xf32>
    %725 = arith.mulf %724, %682 : vector<2x32xf32>
    %726 = vector.extract_strided_slice %722 {offsets = [0, 0], sizes = [2, 32], strides = [1, 1]} : vector<2x128xf32> to vector<2x32xf32>
    %727 = vector.extract_strided_slice %723 {offsets = [0, 64], sizes = [2, 32], strides = [1, 1]} : vector<2x128xf32> to vector<2x32xf32>
    %728 = arith.mulf %726, %727 : vector<2x32xf32>
    %729 = arith.addf %725, %728 : vector<2x32xf32>
    %730 = vector.extract_strided_slice %722 {offsets = [0, 96], sizes = [2, 32], strides = [1, 1]} : vector<2x128xf32> to vector<2x32xf32>
    %731 = math.tanh %729 : vector<2x32xf32>
    %732 = arith.mulf %730, %731 : vector<2x32xf32>
    %733 = vector.extract_strided_slice %732 {offsets = [0, 0], sizes = [1, 32], strides = [1, 1]} : vector<2x32xf32> to vector<1x32xf32>
    %c0_150 = arith.constant 0 : index
    %c14 = arith.constant 14 : index
    %c0_151 = arith.constant 0 : index
    %734 = vector.load %arg7[%c0_150, %c14, %c0_151] : memref<2x18x32xf32, #tpu.memory_space<vmem>>, vector<1x1x32xf32>
    %735 = vector.shape_cast %734 : vector<1x1x32xf32> to vector<1x32xf32>
    %736 = vector.shape_cast %733 : vector<1x32xf32> to vector<1x1x32xf32>
    tpu.vector_store %arg7[%c0_150, %c14, %c0_151], %736 {strides = array<i32>} : memref<2x18x32xf32, #tpu.memory_space<vmem>>, vector<1x1x32xf32>,
    %737 = vector.extract_strided_slice %732 {offsets = [1, 0], sizes = [1, 32], strides = [1, 1]} : vector<2x32xf32> to vector<1x32xf32>
    %c1_152 = arith.constant 1 : index
    %c14_153 = arith.constant 14 : index
    %c0_154 = arith.constant 0 : index
    %738 = vector.load %arg7[%c1_152, %c14_153, %c0_154] : memref<2x18x32xf32, #tpu.memory_space<vmem>>, vector<1x1x32xf32>
    %739 = vector.shape_cast %738 : vector<1x1x32xf32> to vector<1x32xf32>
    %740 = vector.shape_cast %737 : vector<1x32xf32> to vector<1x1x32xf32>
    tpu.vector_store %arg7[%c1_152, %c14_153, %c0_154], %740 {strides = array<i32>} : memref<2x18x32xf32, #tpu.memory_space<vmem>>, vector<1x1x32xf32>,
    %741 = vector.extract_strided_slice %9 {offsets = [16, 0], sizes = [1, 128], strides = [1, 1]} : vector<18x128xf32> to vector<1x128xf32>
    %742 = vector.extract_strided_slice %14 {offsets = [16, 0], sizes = [1, 128], strides = [1, 1]} : vector<18x128xf32> to vector<1x128xf32>
    %743 = tpu.concatenate %741, %742 in 0 : vector<1x128xf32>, vector<1x128xf32> -> vector<2x128xf32>
    %cst_155 = arith.constant dense<0.000000e+00> : vector<2x128xf32>
    %744 = tpu.matmul %713, %1, %cst_155 {dimension_numbers = #tpu.dot_dimension_numbers<[1], [0], [0], [1], [0, 0, 1, 1], [], []>} : vector<2x32xf32>, vector<32x128xf32>, vector<2x128xf32> -> vector<2x128xf32>
    %745 = arith.addf %743, %744 : vector<2x128xf32>
    %746 = arith.negf %745 : vector<2x128xf32>
    %747 = math.exp %746 : vector<2x128xf32>
    %cst_156 = arith.constant 1.000000e+00 : f32
    %748 = vector.broadcast %cst_156 : f32 to vector<2x128xf32>
    %749 = arith.addf %748, %747 : vector<2x128xf32>
    %750 = arith.divf %748, %749 : vector<2x128xf32>
    %751 = math.tanh %745 : vector<2x128xf32>
    %752 = vector.extract_strided_slice %750 {offsets = [0, 32], sizes = [2, 32], strides = [1, 1]} : vector<2x128xf32> to vector<2x32xf32>
    %753 = arith.mulf %752, %710 : vector<2x32xf32>
    %754 = vector.extract_strided_slice %750 {offsets = [0, 0], sizes = [2, 32], strides = [1, 1]} : vector<2x128xf32> to vector<2x32xf32>
    %755 = vector.extract_strided_slice %751 {offsets = [0, 64], sizes = [2, 32], strides = [1, 1]} : vector<2x128xf32> to vector<2x32xf32>
    %756 = arith.mulf %754, %755 : vector<2x32xf32>
    %757 = arith.addf %753, %756 : vector<2x32xf32>
    %758 = vector.extract_strided_slice %750 {offsets = [0, 96], sizes = [2, 32], strides = [1, 1]} : vector<2x128xf32> to vector<2x32xf32>
    %759 = math.tanh %757 : vector<2x32xf32>
    %760 = arith.mulf %758, %759 : vector<2x32xf32>
    %761 = tpu.concatenate %713, %732 in 1 : vector<2x32xf32>, vector<2x32xf32> -> vector<2x64xf32>
    %cst_157 = arith.constant dense<0.000000e+00> : vector<2x128xf32>
    %762 = tpu.matmul %761, %3, %cst_157 {dimension_numbers = #tpu.dot_dimension_numbers<[1], [0], [0], [1], [0, 0, 1, 1], [], []>} : vector<2x64xf32>, vector<64x128xf32>, vector<2x128xf32> -> vector<2x128xf32>
    %763 = vector.broadcast %4 : vector<1x128xf32> to vector<2x128xf32>
    %764 = arith.addf %762, %763 : vector<2x128xf32>
    %765 = arith.negf %764 : vector<2x128xf32>
    %766 = math.exp %765 : vector<2x128xf32>
    %cst_158 = arith.constant 1.000000e+00 : f32
    %767 = vector.broadcast %cst_158 : f32 to vector<2x128xf32>
    %768 = arith.addf %767, %766 : vector<2x128xf32>
    %769 = arith.divf %767, %768 : vector<2x128xf32>
    %770 = math.tanh %764 : vector<2x128xf32>
    %771 = vector.extract_strided_slice %769 {offsets = [0, 32], sizes = [2, 32], strides = [1, 1]} : vector<2x128xf32> to vector<2x32xf32>
    %772 = arith.mulf %771, %729 : vector<2x32xf32>
    %773 = vector.extract_strided_slice %769 {offsets = [0, 0], sizes = [2, 32], strides = [1, 1]} : vector<2x128xf32> to vector<2x32xf32>
    %774 = vector.extract_strided_slice %770 {offsets = [0, 64], sizes = [2, 32], strides = [1, 1]} : vector<2x128xf32> to vector<2x32xf32>
    %775 = arith.mulf %773, %774 : vector<2x32xf32>
    %776 = arith.addf %772, %775 : vector<2x32xf32>
    %777 = vector.extract_strided_slice %769 {offsets = [0, 96], sizes = [2, 32], strides = [1, 1]} : vector<2x128xf32> to vector<2x32xf32>
    %778 = math.tanh %776 : vector<2x32xf32>
    %779 = arith.mulf %777, %778 : vector<2x32xf32>
    %780 = vector.extract_strided_slice %779 {offsets = [0, 0], sizes = [1, 32], strides = [1, 1]} : vector<2x32xf32> to vector<1x32xf32>
    %c0_159 = arith.constant 0 : index
    %c15 = arith.constant 15 : index
    %c0_160 = arith.constant 0 : index
    %781 = vector.load %arg7[%c0_159, %c15, %c0_160] : memref<2x18x32xf32, #tpu.memory_space<vmem>>, vector<1x1x32xf32>
    %782 = vector.shape_cast %781 : vector<1x1x32xf32> to vector<1x32xf32>
    %783 = vector.shape_cast %780 : vector<1x32xf32> to vector<1x1x32xf32>
    tpu.vector_store %arg7[%c0_159, %c15, %c0_160], %783 {strides = array<i32>} : memref<2x18x32xf32, #tpu.memory_space<vmem>>, vector<1x1x32xf32>,
    %784 = vector.extract_strided_slice %779 {offsets = [1, 0], sizes = [1, 32], strides = [1, 1]} : vector<2x32xf32> to vector<1x32xf32>
    %c1_161 = arith.constant 1 : index
    %c15_162 = arith.constant 15 : index
    %c0_163 = arith.constant 0 : index
    %785 = vector.load %arg7[%c1_161, %c15_162, %c0_163] : memref<2x18x32xf32, #tpu.memory_space<vmem>>, vector<1x1x32xf32>
    %786 = vector.shape_cast %785 : vector<1x1x32xf32> to vector<1x32xf32>
    %787 = vector.shape_cast %784 : vector<1x32xf32> to vector<1x1x32xf32>
    tpu.vector_store %arg7[%c1_161, %c15_162, %c0_163], %787 {strides = array<i32>} : memref<2x18x32xf32, #tpu.memory_space<vmem>>, vector<1x1x32xf32>,
    %788 = vector.extract_strided_slice %9 {offsets = [17, 0], sizes = [1, 128], strides = [1, 1]} : vector<18x128xf32> to vector<1x128xf32>
    %789 = vector.extract_strided_slice %14 {offsets = [17, 0], sizes = [1, 128], strides = [1, 1]} : vector<18x128xf32> to vector<1x128xf32>
    %790 = tpu.concatenate %788, %789 in 0 : vector<1x128xf32>, vector<1x128xf32> -> vector<2x128xf32>
    %cst_164 = arith.constant dense<0.000000e+00> : vector<2x128xf32>
    %791 = tpu.matmul %760, %1, %cst_164 {dimension_numbers = #tpu.dot_dimension_numbers<[1], [0], [0], [1], [0, 0, 1, 1], [], []>} : vector<2x32xf32>, vector<32x128xf32>, vector<2x128xf32> -> vector<2x128xf32>
    %792 = arith.addf %790, %791 : vector<2x128xf32>
    %793 = arith.negf %792 : vector<2x128xf32>
    %794 = math.exp %793 : vector<2x128xf32>
    %cst_165 = arith.constant 1.000000e+00 : f32
    %795 = vector.broadcast %cst_165 : f32 to vector<2x128xf32>
    %796 = arith.addf %795, %794 : vector<2x128xf32>
    %797 = arith.divf %795, %796 : vector<2x128xf32>
    %798 = math.tanh %792 : vector<2x128xf32>
    %799 = vector.extract_strided_slice %797 {offsets = [0, 32], sizes = [2, 32], strides = [1, 1]} : vector<2x128xf32> to vector<2x32xf32>
    %800 = arith.mulf %799, %757 : vector<2x32xf32>
    %801 = vector.extract_strided_slice %797 {offsets = [0, 0], sizes = [2, 32], strides = [1, 1]} : vector<2x128xf32> to vector<2x32xf32>
    %802 = vector.extract_strided_slice %798 {offsets = [0, 64], sizes = [2, 32], strides = [1, 1]} : vector<2x128xf32> to vector<2x32xf32>
    %803 = arith.mulf %801, %802 : vector<2x32xf32>
    %804 = arith.addf %800, %803 : vector<2x32xf32>
    %805 = vector.extract_strided_slice %797 {offsets = [0, 96], sizes = [2, 32], strides = [1, 1]} : vector<2x128xf32> to vector<2x32xf32>
    %806 = math.tanh %804 : vector<2x32xf32>
    %807 = arith.mulf %805, %806 : vector<2x32xf32>
    %808 = tpu.concatenate %760, %779 in 1 : vector<2x32xf32>, vector<2x32xf32> -> vector<2x64xf32>
    %cst_166 = arith.constant dense<0.000000e+00> : vector<2x128xf32>
    %809 = tpu.matmul %808, %3, %cst_166 {dimension_numbers = #tpu.dot_dimension_numbers<[1], [0], [0], [1], [0, 0, 1, 1], [], []>} : vector<2x64xf32>, vector<64x128xf32>, vector<2x128xf32> -> vector<2x128xf32>
    %810 = vector.broadcast %4 : vector<1x128xf32> to vector<2x128xf32>
    %811 = arith.addf %809, %810 : vector<2x128xf32>
    %812 = arith.negf %811 : vector<2x128xf32>
    %813 = math.exp %812 : vector<2x128xf32>
    %cst_167 = arith.constant 1.000000e+00 : f32
    %814 = vector.broadcast %cst_167 : f32 to vector<2x128xf32>
    %815 = arith.addf %814, %813 : vector<2x128xf32>
    %816 = arith.divf %814, %815 : vector<2x128xf32>
    %817 = math.tanh %811 : vector<2x128xf32>
    %818 = vector.extract_strided_slice %816 {offsets = [0, 32], sizes = [2, 32], strides = [1, 1]} : vector<2x128xf32> to vector<2x32xf32>
    %819 = arith.mulf %818, %776 : vector<2x32xf32>
    %820 = vector.extract_strided_slice %816 {offsets = [0, 0], sizes = [2, 32], strides = [1, 1]} : vector<2x128xf32> to vector<2x32xf32>
    %821 = vector.extract_strided_slice %817 {offsets = [0, 64], sizes = [2, 32], strides = [1, 1]} : vector<2x128xf32> to vector<2x32xf32>
    %822 = arith.mulf %820, %821 : vector<2x32xf32>
    %823 = arith.addf %819, %822 : vector<2x32xf32>
    %824 = vector.extract_strided_slice %816 {offsets = [0, 96], sizes = [2, 32], strides = [1, 1]} : vector<2x128xf32> to vector<2x32xf32>
    %825 = math.tanh %823 : vector<2x32xf32>
    %826 = arith.mulf %824, %825 : vector<2x32xf32>
    %827 = vector.extract_strided_slice %826 {offsets = [0, 0], sizes = [1, 32], strides = [1, 1]} : vector<2x32xf32> to vector<1x32xf32>
    %c0_168 = arith.constant 0 : index
    %c16 = arith.constant 16 : index
    %c0_169 = arith.constant 0 : index
    %828 = vector.load %arg7[%c0_168, %c16, %c0_169] : memref<2x18x32xf32, #tpu.memory_space<vmem>>, vector<1x1x32xf32>
    %829 = vector.shape_cast %828 : vector<1x1x32xf32> to vector<1x32xf32>
    %830 = vector.shape_cast %827 : vector<1x32xf32> to vector<1x1x32xf32>
    tpu.vector_store %arg7[%c0_168, %c16, %c0_169], %830 {strides = array<i32>} : memref<2x18x32xf32, #tpu.memory_space<vmem>>, vector<1x1x32xf32>,
    %831 = vector.extract_strided_slice %826 {offsets = [1, 0], sizes = [1, 32], strides = [1, 1]} : vector<2x32xf32> to vector<1x32xf32>
    %c1_170 = arith.constant 1 : index
    %c16_171 = arith.constant 16 : index
    %c0_172 = arith.constant 0 : index
    %832 = vector.load %arg7[%c1_170, %c16_171, %c0_172] : memref<2x18x32xf32, #tpu.memory_space<vmem>>, vector<1x1x32xf32>
    %833 = vector.shape_cast %832 : vector<1x1x32xf32> to vector<1x32xf32>
    %834 = vector.shape_cast %831 : vector<1x32xf32> to vector<1x1x32xf32>
    tpu.vector_store %arg7[%c1_170, %c16_171, %c0_172], %834 {strides = array<i32>} : memref<2x18x32xf32, #tpu.memory_space<vmem>>, vector<1x1x32xf32>,
    %835 = tpu.concatenate %807, %826 in 1 : vector<2x32xf32>, vector<2x32xf32> -> vector<2x64xf32>
    %cst_173 = arith.constant dense<0.000000e+00> : vector<2x128xf32>
    %836 = tpu.matmul %835, %3, %cst_173 {dimension_numbers = #tpu.dot_dimension_numbers<[1], [0], [0], [1], [0, 0, 1, 1], [], []>} : vector<2x64xf32>, vector<64x128xf32>, vector<2x128xf32> -> vector<2x128xf32>
    %837 = vector.broadcast %4 : vector<1x128xf32> to vector<2x128xf32>
    %838 = arith.addf %836, %837 : vector<2x128xf32>
    %839 = arith.negf %838 : vector<2x128xf32>
    %840 = math.exp %839 : vector<2x128xf32>
    %cst_174 = arith.constant 1.000000e+00 : f32
    %841 = vector.broadcast %cst_174 : f32 to vector<2x128xf32>
    %842 = arith.addf %841, %840 : vector<2x128xf32>
    %843 = arith.divf %841, %842 : vector<2x128xf32>
    %844 = math.tanh %838 : vector<2x128xf32>
    %845 = vector.extract_strided_slice %843 {offsets = [0, 32], sizes = [2, 32], strides = [1, 1]} : vector<2x128xf32> to vector<2x32xf32>
    %846 = arith.mulf %845, %823 : vector<2x32xf32>
    %847 = vector.extract_strided_slice %843 {offsets = [0, 0], sizes = [2, 32], strides = [1, 1]} : vector<2x128xf32> to vector<2x32xf32>
    %848 = vector.extract_strided_slice %844 {offsets = [0, 64], sizes = [2, 32], strides = [1, 1]} : vector<2x128xf32> to vector<2x32xf32>
    %849 = arith.mulf %847, %848 : vector<2x32xf32>
    %850 = arith.addf %846, %849 : vector<2x32xf32>
    %851 = vector.extract_strided_slice %843 {offsets = [0, 96], sizes = [2, 32], strides = [1, 1]} : vector<2x128xf32> to vector<2x32xf32>
    %852 = math.tanh %850 : vector<2x32xf32>
    %853 = arith.mulf %851, %852 : vector<2x32xf32>
    %854 = vector.extract_strided_slice %853 {offsets = [0, 0], sizes = [1, 32], strides = [1, 1]} : vector<2x32xf32> to vector<1x32xf32>
    %c0_175 = arith.constant 0 : index
    %c17 = arith.constant 17 : index
    %c0_176 = arith.constant 0 : index
    %855 = vector.load %arg7[%c0_175, %c17, %c0_176] : memref<2x18x32xf32, #tpu.memory_space<vmem>>, vector<1x1x32xf32>
    %856 = vector.shape_cast %855 : vector<1x1x32xf32> to vector<1x32xf32>
    %857 = vector.shape_cast %854 : vector<1x32xf32> to vector<1x1x32xf32>
    tpu.vector_store %arg7[%c0_175, %c17, %c0_176], %857 {strides = array<i32>} : memref<2x18x32xf32, #tpu.memory_space<vmem>>, vector<1x1x32xf32>,
    %858 = vector.extract_strided_slice %853 {offsets = [1, 0], sizes = [1, 32], strides = [1, 1]} : vector<2x32xf32> to vector<1x32xf32>
    %c1_177 = arith.constant 1 : index
    %c17_178 = arith.constant 17 : index
    %c0_179 = arith.constant 0 : index
    %859 = vector.load %arg7[%c1_177, %c17_178, %c0_179] : memref<2x18x32xf32, #tpu.memory_space<vmem>>, vector<1x1x32xf32>
    %860 = vector.shape_cast %859 : vector<1x1x32xf32> to vector<1x32xf32>
    %861 = vector.shape_cast %858 : vector<1x32xf32> to vector<1x1x32xf32>
    tpu.vector_store %arg7[%c1_177, %c17_178, %c0_179], %861 {strides = array<i32>} : memref<2x18x32xf32, #tpu.memory_space<vmem>>, vector<1x1x32xf32>,
    return
  }
  func.func @transform_0(%arg0: i32) -> (i32, i32, i32) {
    %c0_i32 = arith.constant 0 : i32
    %c0_i32_0 = arith.constant 0 : i32
    %c0_i32_1 = arith.constant 0 : i32
    %c0_i32_2 = arith.constant 0 : i32
    return %c0_i32, %c0_i32_0, %c0_i32_1 : i32, i32, i32
  }
  func.func @transform_1(%arg0: i32) -> (i32, i32) {
    %c0_i32 = arith.constant 0 : i32
    %c0_i32_0 = arith.constant 0 : i32
    %c0_i32_1 = arith.constant 0 : i32
    return %c0_i32, %c0_i32_0 : i32, i32
  }
  func.func @transform_2(%arg0: i32) -> (i32, i32) {
    %c0_i32 = arith.constant 0 : i32
    %c0_i32_0 = arith.constant 0 : i32
    %c0_i32_1 = arith.constant 0 : i32
    return %c0_i32, %c0_i32_0 : i32, i32
  }
  func.func @transform_3(%arg0: i32) -> (i32, i32) {
    %c0_i32 = arith.constant 0 : i32
    %c0_i32_0 = arith.constant 0 : i32
    %c0_i32_1 = arith.constant 0 : i32
    return %c0_i32, %c0_i32_0 : i32, i32
  }
  func.func @transform_4(%arg0: i32) -> (i32, i32) {
    %c0_i32 = arith.constant 0 : i32
    %c0_i32_0 = arith.constant 0 : i32
    %c0_i32_1 = arith.constant 0 : i32
    return %c0_i32, %c0_i32_0 : i32, i32
  }
  func.func @transform_5(%arg0: i32) -> (i32, i32) {
    %c0_i32 = arith.constant 0 : i32
    %c0_i32_0 = arith.constant 0 : i32
    %c0_i32_1 = arith.constant 0 : i32
    return %c0_i32, %c0_i32_0 : i32, i32
  }
  func.func @transform_6(%arg0: i32) -> (i32, i32, i32) {
    %c0_i32 = arith.constant 0 : i32
    %c0_i32_0 = arith.constant 0 : i32
    %c0_i32_1 = arith.constant 0 : i32
    %c0_i32_2 = arith.constant 0 : i32
    return %c0_i32, %c0_i32_0, %c0_i32_1 : i32, i32, i32
  }
}

module attributes {stable_mosaic.version = 11 : i64} {
  func.func @_conv12_kernel(%arg0: i32, %arg1: memref<378x27xbf16, #tpu.memory_space<vmem>>, %arg2: memref<27x64xbf16, #tpu.memory_space<vmem>>, %arg3: memref<3x64xf32, #tpu.memory_space<vmem>>, %arg4: memref<576x128xbf16, #tpu.memory_space<vmem>>, %arg5: memref<3x128xf32, #tpu.memory_space<vmem>>, %arg6: memref<2x128x18xbf16, #tpu.memory_space<vmem>>) attributes {dimension_semantics = [#tpu.dimension_semantics<arbitrary>], iteration_bounds = array<i64: 1>, scalar_prefetch = 0 : i64, scratch_operands = 0 : i64, tpu.core_type = #tpu.core_type<tc>, window_params = [{pipeline_mode = #tpu.pipeline_mode<synchronous>, transform_indices = @transform_0, window_bounds = array<i64: 378, 27>}, {pipeline_mode = #tpu.pipeline_mode<synchronous>, transform_indices = @transform_1, window_bounds = array<i64: 27, 64>}, {pipeline_mode = #tpu.pipeline_mode<synchronous>, transform_indices = @transform_2, window_bounds = array<i64: 3, 64>}, {pipeline_mode = #tpu.pipeline_mode<synchronous>, transform_indices = @transform_3, window_bounds = array<i64: 576, 128>}, {pipeline_mode = #tpu.pipeline_mode<synchronous>, transform_indices = @transform_4, window_bounds = array<i64: 3, 128>}, {pipeline_mode = #tpu.pipeline_mode<synchronous>, transform_indices = @transform_5, window_bounds = array<i64: 2, 128, 18>}]} {
    %c0 = arith.constant 0 : index
    %c0_0 = arith.constant 0 : index
    %0 = vector.load %arg3[%c0, %c0_0] : memref<3x64xf32, #tpu.memory_space<vmem>>, vector<1x64xf32>
    %c1 = arith.constant 1 : index
    %c0_1 = arith.constant 0 : index
    %1 = vector.load %arg3[%c1, %c0_1] : memref<3x64xf32, #tpu.memory_space<vmem>>, vector<1x64xf32>
    %c2 = arith.constant 2 : index
    %c0_2 = arith.constant 0 : index
    %2 = vector.load %arg3[%c2, %c0_2] : memref<3x64xf32, #tpu.memory_space<vmem>>, vector<1x64xf32>
    %c0_3 = arith.constant 0 : index
    %c0_4 = arith.constant 0 : index
    %3 = vector.load %arg5[%c0_3, %c0_4] : memref<3x128xf32, #tpu.memory_space<vmem>>, vector<1x128xf32>
    %c1_5 = arith.constant 1 : index
    %c0_6 = arith.constant 0 : index
    %4 = vector.load %arg5[%c1_5, %c0_6] : memref<3x128xf32, #tpu.memory_space<vmem>>, vector<1x128xf32>
    %c2_7 = arith.constant 2 : index
    %c0_8 = arith.constant 0 : index
    %5 = vector.load %arg5[%c2_7, %c0_8] : memref<3x128xf32, #tpu.memory_space<vmem>>, vector<1x128xf32>
    %c0_9 = arith.constant 0 : index
    %c0_10 = arith.constant 0 : index
    %6 = vector.load %arg1[%c0_9, %c0_10] : memref<378x27xbf16, #tpu.memory_space<vmem>>, vector<378x27xbf16>
    %c0_11 = arith.constant 0 : index
    %c0_12 = arith.constant 0 : index
    %7 = vector.load %arg2[%c0_11, %c0_12] : memref<27x64xbf16, #tpu.memory_space<vmem>>, vector<27x64xbf16>
    %cst = arith.constant dense<0.000000e+00> : vector<378x64xf32>
    %8 = tpu.matmul %6, %7, %cst {dimension_numbers = #tpu.dot_dimension_numbers<[1], [0], [0], [1], [0, 0, 1, 1], [], []>} : vector<378x27xbf16>, vector<27x64xbf16>, vector<378x64xf32> -> vector<378x64xf32>
    %9 = vector.broadcast %0 : vector<1x64xf32> to vector<378x64xf32>
    %10 = arith.addf %8, %9 : vector<378x64xf32>
    %cst_13 = arith.constant 0.000000e+00 : f32
    %11 = vector.broadcast %cst_13 : f32 to vector<378x64xf32>
    %12 = arith.maximumf %10, %11 : vector<378x64xf32>
    %13 = vector.extract_strided_slice %12 {offsets = [0, 0], sizes = [21, 64], strides = [1, 1]} : vector<378x64xf32> to vector<21x64xf32>
    %14 = vector.extract_strided_slice %12 {offsets = [21, 0], sizes = [21, 64], strides = [1, 1]} : vector<378x64xf32> to vector<21x64xf32>
    %15 = arith.maximumf %13, %14 : vector<21x64xf32>
    %16 = vector.extract_strided_slice %12 {offsets = [42, 0], sizes = [21, 64], strides = [1, 1]} : vector<378x64xf32> to vector<21x64xf32>
    %17 = arith.maximumf %15, %16 : vector<21x64xf32>
    %18 = vector.broadcast %1 : vector<1x64xf32> to vector<21x64xf32>
    %19 = arith.mulf %17, %18 : vector<21x64xf32>
    %20 = vector.broadcast %2 : vector<1x64xf32> to vector<21x64xf32>
    %21 = arith.addf %19, %20 : vector<21x64xf32>
    %22 = vector.extract_strided_slice %12 {offsets = [63, 0], sizes = [21, 64], strides = [1, 1]} : vector<378x64xf32> to vector<21x64xf32>
    %23 = vector.extract_strided_slice %12 {offsets = [84, 0], sizes = [21, 64], strides = [1, 1]} : vector<378x64xf32> to vector<21x64xf32>
    %24 = arith.maximumf %22, %23 : vector<21x64xf32>
    %25 = vector.extract_strided_slice %12 {offsets = [105, 0], sizes = [21, 64], strides = [1, 1]} : vector<378x64xf32> to vector<21x64xf32>
    %26 = arith.maximumf %24, %25 : vector<21x64xf32>
    %27 = vector.broadcast %1 : vector<1x64xf32> to vector<21x64xf32>
    %28 = arith.mulf %26, %27 : vector<21x64xf32>
    %29 = vector.broadcast %2 : vector<1x64xf32> to vector<21x64xf32>
    %30 = arith.addf %28, %29 : vector<21x64xf32>
    %31 = vector.extract_strided_slice %12 {offsets = [126, 0], sizes = [21, 64], strides = [1, 1]} : vector<378x64xf32> to vector<21x64xf32>
    %32 = vector.extract_strided_slice %12 {offsets = [147, 0], sizes = [21, 64], strides = [1, 1]} : vector<378x64xf32> to vector<21x64xf32>
    %33 = arith.maximumf %31, %32 : vector<21x64xf32>
    %34 = vector.extract_strided_slice %12 {offsets = [168, 0], sizes = [21, 64], strides = [1, 1]} : vector<378x64xf32> to vector<21x64xf32>
    %35 = arith.maximumf %33, %34 : vector<21x64xf32>
    %36 = vector.broadcast %1 : vector<1x64xf32> to vector<21x64xf32>
    %37 = arith.mulf %35, %36 : vector<21x64xf32>
    %38 = vector.broadcast %2 : vector<1x64xf32> to vector<21x64xf32>
    %39 = arith.addf %37, %38 : vector<21x64xf32>
    %40 = vector.extract_strided_slice %21 {offsets = [0, 0], sizes = [18, 64], strides = [1, 1]} : vector<21x64xf32> to vector<18x64xf32>
    %41 = vector.extract_strided_slice %30 {offsets = [0, 0], sizes = [18, 64], strides = [1, 1]} : vector<21x64xf32> to vector<18x64xf32>
    %42 = vector.extract_strided_slice %39 {offsets = [0, 0], sizes = [18, 64], strides = [1, 1]} : vector<21x64xf32> to vector<18x64xf32>
    %43 = vector.extract_strided_slice %21 {offsets = [1, 0], sizes = [18, 64], strides = [1, 1]} : vector<21x64xf32> to vector<18x64xf32>
    %44 = vector.extract_strided_slice %30 {offsets = [1, 0], sizes = [18, 64], strides = [1, 1]} : vector<21x64xf32> to vector<18x64xf32>
    %45 = vector.extract_strided_slice %39 {offsets = [1, 0], sizes = [18, 64], strides = [1, 1]} : vector<21x64xf32> to vector<18x64xf32>
    %46 = vector.extract_strided_slice %21 {offsets = [2, 0], sizes = [18, 64], strides = [1, 1]} : vector<21x64xf32> to vector<18x64xf32>
    %47 = vector.extract_strided_slice %30 {offsets = [2, 0], sizes = [18, 64], strides = [1, 1]} : vector<21x64xf32> to vector<18x64xf32>
    %48 = vector.extract_strided_slice %39 {offsets = [2, 0], sizes = [18, 64], strides = [1, 1]} : vector<21x64xf32> to vector<18x64xf32>
    %49 = tpu.concatenate %40, %41, %42, %43, %44, %45, %46, %47, %48 in 1 : vector<18x64xf32>, vector<18x64xf32>, vector<18x64xf32>, vector<18x64xf32>, vector<18x64xf32>, vector<18x64xf32>, vector<18x64xf32>, vector<18x64xf32>, vector<18x64xf32> -> vector<18x576xf32>
    %50 = vector.extract_strided_slice %30 {offsets = [0, 0], sizes = [18, 64], strides = [1, 1]} : vector<21x64xf32> to vector<18x64xf32>
    %51 = vector.extract_strided_slice %39 {offsets = [0, 0], sizes = [18, 64], strides = [1, 1]} : vector<21x64xf32> to vector<18x64xf32>
    %52 = vector.extract_strided_slice %21 {offsets = [1, 0], sizes = [18, 64], strides = [1, 1]} : vector<21x64xf32> to vector<18x64xf32>
    %53 = vector.extract_strided_slice %30 {offsets = [1, 0], sizes = [18, 64], strides = [1, 1]} : vector<21x64xf32> to vector<18x64xf32>
    %54 = vector.extract_strided_slice %39 {offsets = [1, 0], sizes = [18, 64], strides = [1, 1]} : vector<21x64xf32> to vector<18x64xf32>
    %55 = vector.extract_strided_slice %21 {offsets = [2, 0], sizes = [18, 64], strides = [1, 1]} : vector<21x64xf32> to vector<18x64xf32>
    %56 = vector.extract_strided_slice %30 {offsets = [2, 0], sizes = [18, 64], strides = [1, 1]} : vector<21x64xf32> to vector<18x64xf32>
    %57 = vector.extract_strided_slice %39 {offsets = [2, 0], sizes = [18, 64], strides = [1, 1]} : vector<21x64xf32> to vector<18x64xf32>
    %58 = vector.extract_strided_slice %21 {offsets = [3, 0], sizes = [18, 64], strides = [1, 1]} : vector<21x64xf32> to vector<18x64xf32>
    %59 = tpu.concatenate %50, %51, %52, %53, %54, %55, %56, %57, %58 in 1 : vector<18x64xf32>, vector<18x64xf32>, vector<18x64xf32>, vector<18x64xf32>, vector<18x64xf32>, vector<18x64xf32>, vector<18x64xf32>, vector<18x64xf32>, vector<18x64xf32> -> vector<18x576xf32>
    %60 = vector.extract_strided_slice %39 {offsets = [0, 0], sizes = [18, 64], strides = [1, 1]} : vector<21x64xf32> to vector<18x64xf32>
    %61 = vector.extract_strided_slice %21 {offsets = [1, 0], sizes = [18, 64], strides = [1, 1]} : vector<21x64xf32> to vector<18x64xf32>
    %62 = vector.extract_strided_slice %30 {offsets = [1, 0], sizes = [18, 64], strides = [1, 1]} : vector<21x64xf32> to vector<18x64xf32>
    %63 = vector.extract_strided_slice %39 {offsets = [1, 0], sizes = [18, 64], strides = [1, 1]} : vector<21x64xf32> to vector<18x64xf32>
    %64 = vector.extract_strided_slice %21 {offsets = [2, 0], sizes = [18, 64], strides = [1, 1]} : vector<21x64xf32> to vector<18x64xf32>
    %65 = vector.extract_strided_slice %30 {offsets = [2, 0], sizes = [18, 64], strides = [1, 1]} : vector<21x64xf32> to vector<18x64xf32>
    %66 = vector.extract_strided_slice %39 {offsets = [2, 0], sizes = [18, 64], strides = [1, 1]} : vector<21x64xf32> to vector<18x64xf32>
    %67 = vector.extract_strided_slice %21 {offsets = [3, 0], sizes = [18, 64], strides = [1, 1]} : vector<21x64xf32> to vector<18x64xf32>
    %68 = vector.extract_strided_slice %30 {offsets = [3, 0], sizes = [18, 64], strides = [1, 1]} : vector<21x64xf32> to vector<18x64xf32>
    %69 = tpu.concatenate %60, %61, %62, %63, %64, %65, %66, %67, %68 in 1 : vector<18x64xf32>, vector<18x64xf32>, vector<18x64xf32>, vector<18x64xf32>, vector<18x64xf32>, vector<18x64xf32>, vector<18x64xf32>, vector<18x64xf32>, vector<18x64xf32> -> vector<18x576xf32>
    %70 = vector.extract_strided_slice %12 {offsets = [189, 0], sizes = [21, 64], strides = [1, 1]} : vector<378x64xf32> to vector<21x64xf32>
    %71 = vector.extract_strided_slice %12 {offsets = [210, 0], sizes = [21, 64], strides = [1, 1]} : vector<378x64xf32> to vector<21x64xf32>
    %72 = arith.maximumf %70, %71 : vector<21x64xf32>
    %73 = vector.extract_strided_slice %12 {offsets = [231, 0], sizes = [21, 64], strides = [1, 1]} : vector<378x64xf32> to vector<21x64xf32>
    %74 = arith.maximumf %72, %73 : vector<21x64xf32>
    %75 = vector.broadcast %1 : vector<1x64xf32> to vector<21x64xf32>
    %76 = arith.mulf %74, %75 : vector<21x64xf32>
    %77 = vector.broadcast %2 : vector<1x64xf32> to vector<21x64xf32>
    %78 = arith.addf %76, %77 : vector<21x64xf32>
    %79 = vector.extract_strided_slice %12 {offsets = [252, 0], sizes = [21, 64], strides = [1, 1]} : vector<378x64xf32> to vector<21x64xf32>
    %80 = vector.extract_strided_slice %12 {offsets = [273, 0], sizes = [21, 64], strides = [1, 1]} : vector<378x64xf32> to vector<21x64xf32>
    %81 = arith.maximumf %79, %80 : vector<21x64xf32>
    %82 = vector.extract_strided_slice %12 {offsets = [294, 0], sizes = [21, 64], strides = [1, 1]} : vector<378x64xf32> to vector<21x64xf32>
    %83 = arith.maximumf %81, %82 : vector<21x64xf32>
    %84 = vector.broadcast %1 : vector<1x64xf32> to vector<21x64xf32>
    %85 = arith.mulf %83, %84 : vector<21x64xf32>
    %86 = vector.broadcast %2 : vector<1x64xf32> to vector<21x64xf32>
    %87 = arith.addf %85, %86 : vector<21x64xf32>
    %88 = vector.extract_strided_slice %12 {offsets = [315, 0], sizes = [21, 64], strides = [1, 1]} : vector<378x64xf32> to vector<21x64xf32>
    %89 = vector.extract_strided_slice %12 {offsets = [336, 0], sizes = [21, 64], strides = [1, 1]} : vector<378x64xf32> to vector<21x64xf32>
    %90 = arith.maximumf %88, %89 : vector<21x64xf32>
    %91 = vector.extract_strided_slice %12 {offsets = [357, 0], sizes = [21, 64], strides = [1, 1]} : vector<378x64xf32> to vector<21x64xf32>
    %92 = arith.maximumf %90, %91 : vector<21x64xf32>
    %93 = vector.broadcast %1 : vector<1x64xf32> to vector<21x64xf32>
    %94 = arith.mulf %92, %93 : vector<21x64xf32>
    %95 = vector.broadcast %2 : vector<1x64xf32> to vector<21x64xf32>
    %96 = arith.addf %94, %95 : vector<21x64xf32>
    %97 = vector.extract_strided_slice %78 {offsets = [0, 0], sizes = [18, 64], strides = [1, 1]} : vector<21x64xf32> to vector<18x64xf32>
    %98 = vector.extract_strided_slice %87 {offsets = [0, 0], sizes = [18, 64], strides = [1, 1]} : vector<21x64xf32> to vector<18x64xf32>
    %99 = vector.extract_strided_slice %96 {offsets = [0, 0], sizes = [18, 64], strides = [1, 1]} : vector<21x64xf32> to vector<18x64xf32>
    %100 = vector.extract_strided_slice %78 {offsets = [1, 0], sizes = [18, 64], strides = [1, 1]} : vector<21x64xf32> to vector<18x64xf32>
    %101 = vector.extract_strided_slice %87 {offsets = [1, 0], sizes = [18, 64], strides = [1, 1]} : vector<21x64xf32> to vector<18x64xf32>
    %102 = vector.extract_strided_slice %96 {offsets = [1, 0], sizes = [18, 64], strides = [1, 1]} : vector<21x64xf32> to vector<18x64xf32>
    %103 = vector.extract_strided_slice %78 {offsets = [2, 0], sizes = [18, 64], strides = [1, 1]} : vector<21x64xf32> to vector<18x64xf32>
    %104 = vector.extract_strided_slice %87 {offsets = [2, 0], sizes = [18, 64], strides = [1, 1]} : vector<21x64xf32> to vector<18x64xf32>
    %105 = vector.extract_strided_slice %96 {offsets = [2, 0], sizes = [18, 64], strides = [1, 1]} : vector<21x64xf32> to vector<18x64xf32>
    %106 = tpu.concatenate %97, %98, %99, %100, %101, %102, %103, %104, %105 in 1 : vector<18x64xf32>, vector<18x64xf32>, vector<18x64xf32>, vector<18x64xf32>, vector<18x64xf32>, vector<18x64xf32>, vector<18x64xf32>, vector<18x64xf32>, vector<18x64xf32> -> vector<18x576xf32>
    %107 = vector.extract_strided_slice %87 {offsets = [0, 0], sizes = [18, 64], strides = [1, 1]} : vector<21x64xf32> to vector<18x64xf32>
    %108 = vector.extract_strided_slice %96 {offsets = [0, 0], sizes = [18, 64], strides = [1, 1]} : vector<21x64xf32> to vector<18x64xf32>
    %109 = vector.extract_strided_slice %78 {offsets = [1, 0], sizes = [18, 64], strides = [1, 1]} : vector<21x64xf32> to vector<18x64xf32>
    %110 = vector.extract_strided_slice %87 {offsets = [1, 0], sizes = [18, 64], strides = [1, 1]} : vector<21x64xf32> to vector<18x64xf32>
    %111 = vector.extract_strided_slice %96 {offsets = [1, 0], sizes = [18, 64], strides = [1, 1]} : vector<21x64xf32> to vector<18x64xf32>
    %112 = vector.extract_strided_slice %78 {offsets = [2, 0], sizes = [18, 64], strides = [1, 1]} : vector<21x64xf32> to vector<18x64xf32>
    %113 = vector.extract_strided_slice %87 {offsets = [2, 0], sizes = [18, 64], strides = [1, 1]} : vector<21x64xf32> to vector<18x64xf32>
    %114 = vector.extract_strided_slice %96 {offsets = [2, 0], sizes = [18, 64], strides = [1, 1]} : vector<21x64xf32> to vector<18x64xf32>
    %115 = vector.extract_strided_slice %78 {offsets = [3, 0], sizes = [18, 64], strides = [1, 1]} : vector<21x64xf32> to vector<18x64xf32>
    %116 = tpu.concatenate %107, %108, %109, %110, %111, %112, %113, %114, %115 in 1 : vector<18x64xf32>, vector<18x64xf32>, vector<18x64xf32>, vector<18x64xf32>, vector<18x64xf32>, vector<18x64xf32>, vector<18x64xf32>, vector<18x64xf32>, vector<18x64xf32> -> vector<18x576xf32>
    %117 = vector.extract_strided_slice %96 {offsets = [0, 0], sizes = [18, 64], strides = [1, 1]} : vector<21x64xf32> to vector<18x64xf32>
    %118 = vector.extract_strided_slice %78 {offsets = [1, 0], sizes = [18, 64], strides = [1, 1]} : vector<21x64xf32> to vector<18x64xf32>
    %119 = vector.extract_strided_slice %87 {offsets = [1, 0], sizes = [18, 64], strides = [1, 1]} : vector<21x64xf32> to vector<18x64xf32>
    %120 = vector.extract_strided_slice %96 {offsets = [1, 0], sizes = [18, 64], strides = [1, 1]} : vector<21x64xf32> to vector<18x64xf32>
    %121 = vector.extract_strided_slice %78 {offsets = [2, 0], sizes = [18, 64], strides = [1, 1]} : vector<21x64xf32> to vector<18x64xf32>
    %122 = vector.extract_strided_slice %87 {offsets = [2, 0], sizes = [18, 64], strides = [1, 1]} : vector<21x64xf32> to vector<18x64xf32>
    %123 = vector.extract_strided_slice %96 {offsets = [2, 0], sizes = [18, 64], strides = [1, 1]} : vector<21x64xf32> to vector<18x64xf32>
    %124 = vector.extract_strided_slice %78 {offsets = [3, 0], sizes = [18, 64], strides = [1, 1]} : vector<21x64xf32> to vector<18x64xf32>
    %125 = vector.extract_strided_slice %87 {offsets = [3, 0], sizes = [18, 64], strides = [1, 1]} : vector<21x64xf32> to vector<18x64xf32>
    %126 = tpu.concatenate %117, %118, %119, %120, %121, %122, %123, %124, %125 in 1 : vector<18x64xf32>, vector<18x64xf32>, vector<18x64xf32>, vector<18x64xf32>, vector<18x64xf32>, vector<18x64xf32>, vector<18x64xf32>, vector<18x64xf32>, vector<18x64xf32> -> vector<18x576xf32>
    %127 = tpu.concatenate %49, %59, %69, %106, %116, %126 in 0 : vector<18x576xf32>, vector<18x576xf32>, vector<18x576xf32>, vector<18x576xf32>, vector<18x576xf32>, vector<18x576xf32> -> vector<108x576xf32>
    %128 = arith.truncf %127 : vector<108x576xf32> to vector<108x576xbf16>
    %c0_14 = arith.constant 0 : index
    %c0_15 = arith.constant 0 : index
    %129 = vector.load %arg4[%c0_14, %c0_15] : memref<576x128xbf16, #tpu.memory_space<vmem>>, vector<576x128xbf16>
    %cst_16 = arith.constant dense<0.000000e+00> : vector<108x128xf32>
    %130 = tpu.matmul %128, %129, %cst_16 {dimension_numbers = #tpu.dot_dimension_numbers<[1], [0], [0], [1], [0, 0, 1, 1], [], []>} : vector<108x576xbf16>, vector<576x128xbf16>, vector<108x128xf32> -> vector<108x128xf32>
    %131 = vector.broadcast %3 : vector<1x128xf32> to vector<108x128xf32>
    %132 = arith.addf %130, %131 : vector<108x128xf32>
    %cst_17 = arith.constant 0.000000e+00 : f32
    %133 = vector.broadcast %cst_17 : f32 to vector<108x128xf32>
    %134 = arith.maximumf %132, %133 : vector<108x128xf32>
    %135 = vector.extract_strided_slice %134 {offsets = [0, 0], sizes = [18, 128], strides = [1, 1]} : vector<108x128xf32> to vector<18x128xf32>
    %136 = vector.extract_strided_slice %134 {offsets = [18, 0], sizes = [18, 128], strides = [1, 1]} : vector<108x128xf32> to vector<18x128xf32>
    %137 = arith.maximumf %135, %136 : vector<18x128xf32>
    %138 = vector.extract_strided_slice %134 {offsets = [36, 0], sizes = [18, 128], strides = [1, 1]} : vector<108x128xf32> to vector<18x128xf32>
    %139 = arith.maximumf %137, %138 : vector<18x128xf32>
    %140 = vector.broadcast %4 : vector<1x128xf32> to vector<18x128xf32>
    %141 = arith.mulf %139, %140 : vector<18x128xf32>
    %142 = vector.broadcast %5 : vector<1x128xf32> to vector<18x128xf32>
    %143 = arith.addf %141, %142 : vector<18x128xf32>
    %cst_18 = arith.constant 0.000000e+00 : f32
    %144 = vector.broadcast %cst_18 : f32 to vector<6x128xf32>
    %145 = tpu.concatenate %143, %144 in 0 : vector<18x128xf32>, vector<6x128xf32> -> vector<24x128xf32>
    %146 = tpu.transpose %145, [1, 0] : vector<24x128xf32> -> vector<128x24xf32>
    %147 = vector.extract_strided_slice %146 {offsets = [0, 0], sizes = [128, 18], strides = [1, 1]} : vector<128x24xf32> to vector<128x18xf32>
    %148 = arith.truncf %147 : vector<128x18xf32> to vector<128x18xbf16>
    %c0_19 = arith.constant 0 : index
    %c0_20 = arith.constant 0 : index
    %c0_21 = arith.constant 0 : index
    %149 = vector.load %arg6[%c0_19, %c0_20, %c0_21] : memref<2x128x18xbf16, #tpu.memory_space<vmem>>, vector<1x128x18xbf16>
    %150 = vector.shape_cast %149 : vector<1x128x18xbf16> to vector<128x18xbf16>
    %151 = vector.shape_cast %148 : vector<128x18xbf16> to vector<1x128x18xbf16>
    tpu.vector_store %arg6[%c0_19, %c0_20, %c0_21], %151 {strides = array<i32>} : memref<2x128x18xbf16, #tpu.memory_space<vmem>>, vector<1x128x18xbf16>,
    %152 = vector.extract_strided_slice %134 {offsets = [54, 0], sizes = [18, 128], strides = [1, 1]} : vector<108x128xf32> to vector<18x128xf32>
    %153 = vector.extract_strided_slice %134 {offsets = [72, 0], sizes = [18, 128], strides = [1, 1]} : vector<108x128xf32> to vector<18x128xf32>
    %154 = arith.maximumf %152, %153 : vector<18x128xf32>
    %155 = vector.extract_strided_slice %134 {offsets = [90, 0], sizes = [18, 128], strides = [1, 1]} : vector<108x128xf32> to vector<18x128xf32>
    %156 = arith.maximumf %154, %155 : vector<18x128xf32>
    %157 = vector.broadcast %4 : vector<1x128xf32> to vector<18x128xf32>
    %158 = arith.mulf %156, %157 : vector<18x128xf32>
    %159 = vector.broadcast %5 : vector<1x128xf32> to vector<18x128xf32>
    %160 = arith.addf %158, %159 : vector<18x128xf32>
    %cst_22 = arith.constant 0.000000e+00 : f32
    %161 = vector.broadcast %cst_22 : f32 to vector<6x128xf32>
    %162 = tpu.concatenate %160, %161 in 0 : vector<18x128xf32>, vector<6x128xf32> -> vector<24x128xf32>
    %163 = tpu.transpose %162, [1, 0] : vector<24x128xf32> -> vector<128x24xf32>
    %164 = vector.extract_strided_slice %163 {offsets = [0, 0], sizes = [128, 18], strides = [1, 1]} : vector<128x24xf32> to vector<128x18xf32>
    %165 = arith.truncf %164 : vector<128x18xf32> to vector<128x18xbf16>
    %c1_23 = arith.constant 1 : index
    %c0_24 = arith.constant 0 : index
    %c0_25 = arith.constant 0 : index
    %166 = vector.load %arg6[%c1_23, %c0_24, %c0_25] : memref<2x128x18xbf16, #tpu.memory_space<vmem>>, vector<1x128x18xbf16>
    %167 = vector.shape_cast %166 : vector<1x128x18xbf16> to vector<128x18xbf16>
    %168 = vector.shape_cast %165 : vector<128x18xbf16> to vector<1x128x18xbf16>
    tpu.vector_store %arg6[%c1_23, %c0_24, %c0_25], %168 {strides = array<i32>} : memref<2x128x18xbf16, #tpu.memory_space<vmem>>, vector<1x128x18xbf16>,
    return
  }
  func.func @transform_0(%arg0: i32) -> (i32, i32) {
    %c0_i32 = arith.constant 0 : i32
    %c0_i32_0 = arith.constant 0 : i32
    %c0_i32_1 = arith.constant 0 : i32
    return %c0_i32, %c0_i32_0 : i32, i32
  }
  func.func @transform_1(%arg0: i32) -> (i32, i32) {
    %c0_i32 = arith.constant 0 : i32
    %c0_i32_0 = arith.constant 0 : i32
    %c0_i32_1 = arith.constant 0 : i32
    return %c0_i32, %c0_i32_0 : i32, i32
  }
  func.func @transform_2(%arg0: i32) -> (i32, i32) {
    %c0_i32 = arith.constant 0 : i32
    %c0_i32_0 = arith.constant 0 : i32
    %c0_i32_1 = arith.constant 0 : i32
    return %c0_i32, %c0_i32_0 : i32, i32
  }
  func.func @transform_3(%arg0: i32) -> (i32, i32) {
    %c0_i32 = arith.constant 0 : i32
    %c0_i32_0 = arith.constant 0 : i32
    %c0_i32_1 = arith.constant 0 : i32
    return %c0_i32, %c0_i32_0 : i32, i32
  }
  func.func @transform_4(%arg0: i32) -> (i32, i32) {
    %c0_i32 = arith.constant 0 : i32
    %c0_i32_0 = arith.constant 0 : i32
    %c0_i32_1 = arith.constant 0 : i32
    return %c0_i32, %c0_i32_0 : i32, i32
  }
  func.func @transform_5(%arg0: i32) -> (i32, i32, i32) {
    %c0_i32 = arith.constant 0 : i32
    %c0_i32_0 = arith.constant 0 : i32
    %c0_i32_1 = arith.constant 0 : i32
    %c0_i32_2 = arith.constant 0 : i32
    return %c0_i32, %c0_i32_0, %c0_i32_1 : i32, i32, i32
  }
}

module attributes {stable_mosaic.version = 11 : i64} {
  func.func @_conv3_dense_kernel(%arg0: i32, %arg1: memref<2x32x18xf32, #tpu.memory_space<vmem>>, %arg2: memref<288x128xbf16, #tpu.memory_space<vmem>>, %arg3: memref<3x128xf32, #tpu.memory_space<vmem>>, %arg4: memref<384x6xf32, #tpu.memory_space<vmem>>, %arg5: memref<1x6xf32, #tpu.memory_space<vmem>>, %arg6: memref<2x6xf32, #tpu.memory_space<vmem>>) attributes {dimension_semantics = [#tpu.dimension_semantics<arbitrary>], iteration_bounds = array<i64: 1>, scalar_prefetch = 0 : i64, scratch_operands = 0 : i64, tpu.core_type = #tpu.core_type<tc>, window_params = [{pipeline_mode = #tpu.pipeline_mode<synchronous>, transform_indices = @transform_0, window_bounds = array<i64: 2, 32, 18>}, {pipeline_mode = #tpu.pipeline_mode<synchronous>, transform_indices = @transform_1, window_bounds = array<i64: 288, 128>}, {pipeline_mode = #tpu.pipeline_mode<synchronous>, transform_indices = @transform_2, window_bounds = array<i64: 3, 128>}, {pipeline_mode = #tpu.pipeline_mode<synchronous>, transform_indices = @transform_3, window_bounds = array<i64: 384, 6>}, {pipeline_mode = #tpu.pipeline_mode<synchronous>, transform_indices = @transform_4, window_bounds = array<i64: 1, 6>}, {pipeline_mode = #tpu.pipeline_mode<synchronous>, transform_indices = @transform_5, window_bounds = array<i64: 2, 6>}]} {
    %c0 = arith.constant 0 : index
    %c0_0 = arith.constant 0 : index
    %0 = vector.load %arg3[%c0, %c0_0] : memref<3x128xf32, #tpu.memory_space<vmem>>, vector<1x128xf32>
    %c1 = arith.constant 1 : index
    %c0_1 = arith.constant 0 : index
    %1 = vector.load %arg3[%c1, %c0_1] : memref<3x128xf32, #tpu.memory_space<vmem>>, vector<1x128xf32>
    %c2 = arith.constant 2 : index
    %c0_2 = arith.constant 0 : index
    %2 = vector.load %arg3[%c2, %c0_2] : memref<3x128xf32, #tpu.memory_space<vmem>>, vector<1x128xf32>
    %c0_3 = arith.constant 0 : index
    %c0_4 = arith.constant 0 : index
    %c0_5 = arith.constant 0 : index
    %3 = vector.load %arg1[%c0_3, %c0_4, %c0_5] : memref<2x32x18xf32, #tpu.memory_space<vmem>>, vector<1x32x18xf32>
    %4 = vector.shape_cast %3 : vector<1x32x18xf32> to vector<32x18xf32>
    %5 = tpu.transpose %4, [1, 0] : vector<32x18xf32> -> vector<18x32xf32>
    %6 = vector.extract_strided_slice %5 {offsets = [0, 0], sizes = [10, 32], strides = [1, 1]} : vector<18x32xf32> to vector<10x32xf32>
    %7 = vector.extract_strided_slice %5 {offsets = [1, 0], sizes = [10, 32], strides = [1, 1]} : vector<18x32xf32> to vector<10x32xf32>
    %8 = vector.extract_strided_slice %5 {offsets = [2, 0], sizes = [10, 32], strides = [1, 1]} : vector<18x32xf32> to vector<10x32xf32>
    %9 = vector.extract_strided_slice %5 {offsets = [3, 0], sizes = [10, 32], strides = [1, 1]} : vector<18x32xf32> to vector<10x32xf32>
    %10 = vector.extract_strided_slice %5 {offsets = [4, 0], sizes = [10, 32], strides = [1, 1]} : vector<18x32xf32> to vector<10x32xf32>
    %11 = vector.extract_strided_slice %5 {offsets = [5, 0], sizes = [10, 32], strides = [1, 1]} : vector<18x32xf32> to vector<10x32xf32>
    %12 = vector.extract_strided_slice %5 {offsets = [6, 0], sizes = [10, 32], strides = [1, 1]} : vector<18x32xf32> to vector<10x32xf32>
    %13 = vector.extract_strided_slice %5 {offsets = [7, 0], sizes = [10, 32], strides = [1, 1]} : vector<18x32xf32> to vector<10x32xf32>
    %14 = vector.extract_strided_slice %5 {offsets = [8, 0], sizes = [10, 32], strides = [1, 1]} : vector<18x32xf32> to vector<10x32xf32>
    %15 = tpu.concatenate %6, %7, %8, %9, %10, %11, %12, %13, %14 in 1 : vector<10x32xf32>, vector<10x32xf32>, vector<10x32xf32>, vector<10x32xf32>, vector<10x32xf32>, vector<10x32xf32>, vector<10x32xf32>, vector<10x32xf32>, vector<10x32xf32> -> vector<10x288xf32>
    %c1_6 = arith.constant 1 : index
    %c0_7 = arith.constant 0 : index
    %c0_8 = arith.constant 0 : index
    %16 = vector.load %arg1[%c1_6, %c0_7, %c0_8] : memref<2x32x18xf32, #tpu.memory_space<vmem>>, vector<1x32x18xf32>
    %17 = vector.shape_cast %16 : vector<1x32x18xf32> to vector<32x18xf32>
    %18 = tpu.transpose %17, [1, 0] : vector<32x18xf32> -> vector<18x32xf32>
    %19 = vector.extract_strided_slice %18 {offsets = [0, 0], sizes = [10, 32], strides = [1, 1]} : vector<18x32xf32> to vector<10x32xf32>
    %20 = vector.extract_strided_slice %18 {offsets = [1, 0], sizes = [10, 32], strides = [1, 1]} : vector<18x32xf32> to vector<10x32xf32>
    %21 = vector.extract_strided_slice %18 {offsets = [2, 0], sizes = [10, 32], strides = [1, 1]} : vector<18x32xf32> to vector<10x32xf32>
    %22 = vector.extract_strided_slice %18 {offsets = [3, 0], sizes = [10, 32], strides = [1, 1]} : vector<18x32xf32> to vector<10x32xf32>
    %23 = vector.extract_strided_slice %18 {offsets = [4, 0], sizes = [10, 32], strides = [1, 1]} : vector<18x32xf32> to vector<10x32xf32>
    %24 = vector.extract_strided_slice %18 {offsets = [5, 0], sizes = [10, 32], strides = [1, 1]} : vector<18x32xf32> to vector<10x32xf32>
    %25 = vector.extract_strided_slice %18 {offsets = [6, 0], sizes = [10, 32], strides = [1, 1]} : vector<18x32xf32> to vector<10x32xf32>
    %26 = vector.extract_strided_slice %18 {offsets = [7, 0], sizes = [10, 32], strides = [1, 1]} : vector<18x32xf32> to vector<10x32xf32>
    %27 = vector.extract_strided_slice %18 {offsets = [8, 0], sizes = [10, 32], strides = [1, 1]} : vector<18x32xf32> to vector<10x32xf32>
    %28 = tpu.concatenate %19, %20, %21, %22, %23, %24, %25, %26, %27 in 1 : vector<10x32xf32>, vector<10x32xf32>, vector<10x32xf32>, vector<10x32xf32>, vector<10x32xf32>, vector<10x32xf32>, vector<10x32xf32>, vector<10x32xf32>, vector<10x32xf32> -> vector<10x288xf32>
    %29 = tpu.concatenate %15, %28 in 0 : vector<10x288xf32>, vector<10x288xf32> -> vector<20x288xf32>
    %30 = arith.truncf %29 : vector<20x288xf32> to vector<20x288xbf16>
    %c0_9 = arith.constant 0 : index
    %c0_10 = arith.constant 0 : index
    %31 = vector.load %arg2[%c0_9, %c0_10] : memref<288x128xbf16, #tpu.memory_space<vmem>>, vector<288x128xbf16>
    %cst = arith.constant dense<0.000000e+00> : vector<20x128xf32>
    %32 = tpu.matmul %30, %31, %cst {dimension_numbers = #tpu.dot_dimension_numbers<[1], [0], [0], [1], [0, 0, 1, 1], [], []>} : vector<20x288xbf16>, vector<288x128xbf16>, vector<20x128xf32> -> vector<20x128xf32>
    %33 = vector.broadcast %0 : vector<1x128xf32> to vector<20x128xf32>
    %34 = arith.addf %32, %33 : vector<20x128xf32>
    %cst_11 = arith.constant 0.000000e+00 : f32
    %35 = vector.broadcast %cst_11 : f32 to vector<20x128xf32>
    %36 = arith.maximumf %34, %35 : vector<20x128xf32>
    %37 = vector.extract_strided_slice %36 {offsets = [0, 0], sizes = [3, 128], strides = [1, 1]} : vector<20x128xf32> to vector<3x128xf32>
    %cst_12 = arith.constant dense<0xFF800000> : vector<128xf32>
    %38 = vector.multi_reduction <maximumf>, %37, %cst_12 [0] : vector<3x128xf32> to vector<128xf32>
    %39 = vector.shape_cast %38 : vector<128xf32> to vector<1x128xf32>
    %40 = arith.mulf %39, %1 : vector<1x128xf32>
    %41 = arith.addf %40, %2 : vector<1x128xf32>
    %42 = vector.extract_strided_slice %36 {offsets = [3, 0], sizes = [3, 128], strides = [1, 1]} : vector<20x128xf32> to vector<3x128xf32>
    %cst_13 = arith.constant dense<0xFF800000> : vector<128xf32>
    %43 = vector.multi_reduction <maximumf>, %42, %cst_13 [0] : vector<3x128xf32> to vector<128xf32>
    %44 = vector.shape_cast %43 : vector<128xf32> to vector<1x128xf32>
    %45 = arith.mulf %44, %1 : vector<1x128xf32>
    %46 = arith.addf %45, %2 : vector<1x128xf32>
    %47 = vector.extract_strided_slice %36 {offsets = [6, 0], sizes = [3, 128], strides = [1, 1]} : vector<20x128xf32> to vector<3x128xf32>
    %cst_14 = arith.constant dense<0xFF800000> : vector<128xf32>
    %48 = vector.multi_reduction <maximumf>, %47, %cst_14 [0] : vector<3x128xf32> to vector<128xf32>
    %49 = vector.shape_cast %48 : vector<128xf32> to vector<1x128xf32>
    %50 = arith.mulf %49, %1 : vector<1x128xf32>
    %51 = arith.addf %50, %2 : vector<1x128xf32>
    %52 = tpu.concatenate %41, %46, %51 in 1 : vector<1x128xf32>, vector<1x128xf32>, vector<1x128xf32> -> vector<1x384xf32>
    %53 = vector.extract_strided_slice %36 {offsets = [10, 0], sizes = [3, 128], strides = [1, 1]} : vector<20x128xf32> to vector<3x128xf32>
    %cst_15 = arith.constant dense<0xFF800000> : vector<128xf32>
    %54 = vector.multi_reduction <maximumf>, %53, %cst_15 [0] : vector<3x128xf32> to vector<128xf32>
    %55 = vector.shape_cast %54 : vector<128xf32> to vector<1x128xf32>
    %56 = arith.mulf %55, %1 : vector<1x128xf32>
    %57 = arith.addf %56, %2 : vector<1x128xf32>
    %58 = vector.extract_strided_slice %36 {offsets = [13, 0], sizes = [3, 128], strides = [1, 1]} : vector<20x128xf32> to vector<3x128xf32>
    %cst_16 = arith.constant dense<0xFF800000> : vector<128xf32>
    %59 = vector.multi_reduction <maximumf>, %58, %cst_16 [0] : vector<3x128xf32> to vector<128xf32>
    %60 = vector.shape_cast %59 : vector<128xf32> to vector<1x128xf32>
    %61 = arith.mulf %60, %1 : vector<1x128xf32>
    %62 = arith.addf %61, %2 : vector<1x128xf32>
    %63 = vector.extract_strided_slice %36 {offsets = [16, 0], sizes = [3, 128], strides = [1, 1]} : vector<20x128xf32> to vector<3x128xf32>
    %cst_17 = arith.constant dense<0xFF800000> : vector<128xf32>
    %64 = vector.multi_reduction <maximumf>, %63, %cst_17 [0] : vector<3x128xf32> to vector<128xf32>
    %65 = vector.shape_cast %64 : vector<128xf32> to vector<1x128xf32>
    %66 = arith.mulf %65, %1 : vector<1x128xf32>
    %67 = arith.addf %66, %2 : vector<1x128xf32>
    %68 = tpu.concatenate %57, %62, %67 in 1 : vector<1x128xf32>, vector<1x128xf32>, vector<1x128xf32> -> vector<1x384xf32>
    %69 = tpu.concatenate %52, %68 in 0 : vector<1x384xf32>, vector<1x384xf32> -> vector<2x384xf32>
    %c0_18 = arith.constant 0 : index
    %c0_19 = arith.constant 0 : index
    %70 = vector.load %arg4[%c0_18, %c0_19] : memref<384x6xf32, #tpu.memory_space<vmem>>, vector<384x6xf32>
    %cst_20 = arith.constant dense<0.000000e+00> : vector<2x6xf32>
    %71 = tpu.matmul %69, %70, %cst_20 {dimension_numbers = #tpu.dot_dimension_numbers<[1], [0], [0], [1], [0, 0, 1, 1], [], []>} : vector<2x384xf32>, vector<384x6xf32>, vector<2x6xf32> -> vector<2x6xf32>
    %c0_21 = arith.constant 0 : index
    %c0_22 = arith.constant 0 : index
    %72 = vector.load %arg5[%c0_21, %c0_22] : memref<1x6xf32, #tpu.memory_space<vmem>>, vector<1x6xf32>
    %73 = vector.broadcast %72 : vector<1x6xf32> to vector<2x6xf32>
    %74 = arith.addf %71, %73 : vector<2x6xf32>
    %c0_23 = arith.constant 0 : index
    %c0_24 = arith.constant 0 : index
    %75 = vector.load %arg6[%c0_23, %c0_24] : memref<2x6xf32, #tpu.memory_space<vmem>>, vector<2x6xf32>
    tpu.vector_store %arg6[%c0_23, %c0_24], %74 {strides = array<i32>} : memref<2x6xf32, #tpu.memory_space<vmem>>, vector<2x6xf32>,
    return
  }
  func.func @transform_0(%arg0: i32) -> (i32, i32, i32) {
    %c0_i32 = arith.constant 0 : i32
    %c0_i32_0 = arith.constant 0 : i32
    %c0_i32_1 = arith.constant 0 : i32
    %c0_i32_2 = arith.constant 0 : i32
    return %c0_i32, %c0_i32_0, %c0_i32_1 : i32, i32, i32
  }
  func.func @transform_1(%arg0: i32) -> (i32, i32) {
    %c0_i32 = arith.constant 0 : i32
    %c0_i32_0 = arith.constant 0 : i32
    %c0_i32_1 = arith.constant 0 : i32
    return %c0_i32, %c0_i32_0 : i32, i32
  }
  func.func @transform_2(%arg0: i32) -> (i32, i32) {
    %c0_i32 = arith.constant 0 : i32
    %c0_i32_0 = arith.constant 0 : i32
    %c0_i32_1 = arith.constant 0 : i32
    return %c0_i32, %c0_i32_0 : i32, i32
  }
  func.func @transform_3(%arg0: i32) -> (i32, i32) {
    %c0_i32 = arith.constant 0 : i32
    %c0_i32_0 = arith.constant 0 : i32
    %c0_i32_1 = arith.constant 0 : i32
    return %c0_i32, %c0_i32_0 : i32, i32
  }
  func.func @transform_4(%arg0: i32) -> (i32, i32) {
    %c0_i32 = arith.constant 0 : i32
    %c0_i32_0 = arith.constant 0 : i32
    %c0_i32_1 = arith.constant 0 : i32
    return %c0_i32, %c0_i32_0 : i32, i32
  }
  func.func @transform_5(%arg0: i32) -> (i32, i32) {
    %c0_i32 = arith.constant 0 : i32
    %c0_i32_0 = arith.constant 0 : i32
    %c0_i32_1 = arith.constant 0 : i32
    return %c0_i32, %c0_i32_0 : i32, i32
  }
}

</mosaic_0001>

<llo_original>
// kernel: cnn_lstm_forward.3
$region0: #{cnn_lstm_forward.3}
  #allocation0 [shape = 'u32[]', space=smem, size = 0x4, offset = 0x4, fixed_abs, tag = 'smem constant byte address 0x4 - core index']
  #allocation1 [shape = 'u32[144,128]{1,0:T(1,128)}', space=vmem, size = 0x12000, scoped, tag = 'internal scratch']
  %s0 = inlined_call_operand.vmem [shape: bf16[378,27], index: 0, kind: input, shape index: {}]
  %s1 = inlined_call_operand.vmem [shape: bf16[27,64], index: 1, kind: input, shape index: {}]
  %s2 = inlined_call_operand.vmem [shape: f32[3,64], index: 2, kind: input, shape index: {}]
  %s3 = inlined_call_operand.vmem [shape: bf16[576,128], index: 3, kind: input, shape index: {}]
  %s4 = inlined_call_operand.vmem [shape: f32[3,128], index: 4, kind: input, shape index: {}]
  %s5 = inlined_call_operand.vmem [shape: bf16[2,128,18], index: 5, kind: output, shape index: {}]
  %s6 = sld [smem:[#allocation0]]
  $region30: #{cnn_lstm_forward.3} parent=0
    _
  %s8 = ssub.s32 1, %s6
  %s9 = scalar_select 0, %s8, %s6
  // Predicated region
  $region2: #{cnn_lstm_forward.3} parent=0 // pred_check
    _
  $region3: #{cnn_lstm_forward.3} parent=0 // pred_check_branch
    %11 = sbr.rel (0) target = $region5
  $region4: #{cnn_lstm_forward.3} parent=0 // pred_region
    _
  $region5: #{cnn_lstm_forward.3} parent=0 // pred_fallthru
    _
  // Predicated region
  $region6: #{cnn_lstm_forward.3} parent=0 // pred_check
    _
  $region7: #{cnn_lstm_forward.3} parent=0 // pred_check_branch
    %13 = sbr.rel (0) target = $region9
  $region8: #{cnn_lstm_forward.3} parent=0 // pred_region
    _
  $region9: #{cnn_lstm_forward.3} parent=0 // pred_fallthru
    _
  // Predicated region
  $region10: #{cnn_lstm_forward.3} parent=0 // pred_check
    _
  $region11: #{cnn_lstm_forward.3} parent=0 // pred_check_branch
    %15 = sbr.rel (0) target = $region13
  $region12: #{cnn_lstm_forward.3} parent=0 // pred_region
    _
  $region13: #{cnn_lstm_forward.3} parent=0 // pred_fallthru
    _
  // Predicated region
  $region14: #{cnn_lstm_forward.3} parent=0 // pred_check
    _
  $region15: #{cnn_lstm_forward.3} parent=0 // pred_check_branch
    %17 = sbr.rel (0) target = $region17
  $region16: #{cnn_lstm_forward.3} parent=0 // pred_region
    _
  $region17: #{cnn_lstm_forward.3} parent=0 // pred_fallthru
    _
  // Predicated region
  $region18: #{cnn_lstm_forward.3} parent=0 // pred_check
    _
  $region19: #{cnn_lstm_forward.3} parent=0 // pred_check_branch
    %19 = sbr.rel (0) target = $region21
  $region20: #{cnn_lstm_forward.3} parent=0 // pred_region
    _
  $region21: #{cnn_lstm_forward.3} parent=0 // pred_fallthru
    _
  %v21 = vld [vmem:[%s2] sm:$0x1]
  %v22 = vld [vmem:[%s2 + $0x1] sm:$0x1]
  %v23 = vld [vmem:[%s2 + $0x2] sm:$0x1]
  %v24 = vld [vmem:[%s4] sm:$0x1]
  %v25 = vld [vmem:[%s4 + $0x1] sm:$0x1]
  %v26 = vld [vmem:[%s4 + $0x2] sm:$0x1]
  %v27 = vld [vmem:[%s0] sm:$0xf]
  %v28 = vld [vmem:[%s0 + $0x4] sm:$0xf]
  %v29 = vld [vmem:[%s0 + $0x8] sm:$0xf]
  %v30 = vld [vmem:[%s0 + $0xc] sm:$0xf]
  %v31 = vld [vmem:[%s0 + $0x10] sm:$0xf]
  %v32 = vld [vmem:[%s0 + $0x14] sm:$0xf]
  %v33 = vld [vmem:[%s0 + $0x18] sm:$0xf]
  %v34 = vld [vmem:[%s0 + $0x1c] sm:$0xf]
  %v35 = vld [vmem:[%s0 + $0x20] sm:$0xf]
  %v36 = vld [vmem:[%s0 + $0x24] sm:$0xf]
  %v37 = vld [vmem:[%s0 + $0x28] sm:$0xf]
  %v38 = vld [vmem:[%s0 + $0x2c] sm:$0xf]
  %v39 = vld [vmem:[%s0 + $0x30] sm:$0xf]
  %v40 = vld [vmem:[%s0 + $0x34] sm:$0xf]
  %v41 = vld [vmem:[%s0 + $0x38] sm:$0xf]
  %v42 = vld [vmem:[%s0 + $0x3c] sm:$0xf]
  %v43 = vld [vmem:[%s0 + $0x40] sm:$0xf]
  %v44 = vld [vmem:[%s0 + $0x44] sm:$0xf]
  %v45 = vld [vmem:[%s0 + $0x48] sm:$0xf]
  %v46 = vld [vmem:[%s0 + $0x4c] sm:$0xf]
  %v47 = vld [vmem:[%s0 + $0x50] sm:$0xf]
  %v48 = vld [vmem:[%s0 + $0x54] sm:$0xf]
  %v49 = vld [vmem:[%s0 + $0x58] sm:$0xf]
  %v50 = vld [vmem:[%s0 + $0x5c] sm:$0xf]
  %v51 = vld [vmem:[%s0 + $0x60] sm:$0xf]
  %v52 = vld [vmem:[%s0 + $0x64] sm:$0xf]
  %v53 = vld [vmem:[%s0 + $0x68] sm:$0xf]
  %v54 = vld [vmem:[%s0 + $0x6c] sm:$0xf]
  %v55 = vld [vmem:[%s0 + $0x70] sm:$0xf]
  %v56 = vld [vmem:[%s0 + $0x74] sm:$0xf]
  %v57 = vld [vmem:[%s0 + $0x78] sm:$0xf]
  %v58 = vld [vmem:[%s0 + $0x7c] sm:$0xf]
  %v59 = vld [vmem:[%s0 + $0x80] sm:$0xf]
  %v60 = vld [vmem:[%s0 + $0x84] sm:$0xf]
  %v61 = vld [vmem:[%s0 + $0x88] sm:$0xf]
  %v62 = vld [vmem:[%s0 + $0x8c] sm:$0xf]
  %v63 = vld [vmem:[%s0 + $0x90] sm:$0xf]
  %v64 = vld [vmem:[%s0 + $0x94] sm:$0xf]
  %v65 = vld [vmem:[%s0 + $0x98] sm:$0xf]
  %v66 = vld [vmem:[%s0 + $0x9c] sm:$0xf]
  %v67 = vld [vmem:[%s0 + $0xa0] sm:$0xf]
  %v68 = vld [vmem:[%s0 + $0xa4] sm:$0xf]
  %v69 = vld [vmem:[%s0 + $0xa8] sm:$0xf]
  %v70 = vld [vmem:[%s0 + $0xac] sm:$0xf]
  %v71 = vld [vmem:[%s0 + $0xb0] sm:$0xf]
  %v72 = vld [vmem:[%s0 + $0xb4] sm:$0xf]
  %v73 = vld [vmem:[%s0 + $0xb8] sm:$0xf]
  %v74 = vld [vmem:[%s0 + $0xbc] sm:$0x1]
  %v75 = vld [vmem:[%s1] sm:$0xf]
  %v76 = vld [vmem:[%s1 + $0x4] sm:$0xf]
  %v77 = vld [vmem:[%s1 + $0x8] sm:$0xf]
  %v78 = vld [vmem:[%s1 + $0xc] sm:$0x3]
  %v79 = vlaneseq
  %v80 = vshrl.u32 %v79, 7
  %v81 = vsub.s32 0, %v80
  %v82 = vrot.slane %v21, %v81
  %v131 = vunpack.c.l.b16 %v27
  %v132 = vunpack.c.l.b16 %v28
  %v133 = vunpack.c.l.b16 %v29
  %v134 = vunpack.c.l.b16 %v30
  %v135 = vunpack.c.l.b16 %v31
  %v136 = vunpack.c.l.b16 %v32
  %v137 = vunpack.c.l.b16 %v33
  %v138 = vunpack.c.l.b16 %v34
  %v139 = vunpack.c.l.b16 %v35
  %v140 = vunpack.c.l.b16 %v36
  %v141 = vunpack.c.l.b16 %v37
  %v142 = vunpack.c.l.b16 %v38
  %v143 = vunpack.c.l.b16 %v39
  %v144 = vunpack.c.l.b16 %v40
  %v145 = vunpack.c.l.b16 %v41
  %v146 = vunpack.c.l.b16 %v42
  %v147 = vunpack.c.l.b16 %v43
  %v148 = vunpack.c.l.b16 %v44
  %v149 = vunpack.c.l.b16 %v45
  %v150 = vunpack.c.l.b16 %v46
  %v151 = vunpack.c.l.b16 %v47
  %v152 = vunpack.c.l.b16 %v48
  %v153 = vunpack.c.l.b16 %v49
  %v154 = vunpack.c.l.b16 %v50
  %v155 = vunpack.c.l.b16 %v51
  %v156 = vunpack.c.l.b16 %v52
  %v157 = vunpack.c.l.b16 %v53
  %v158 = vunpack.c.l.b16 %v54
  %v159 = vunpack.c.l.b16 %v55
  %v160 = vunpack.c.l.b16 %v56
  %v161 = vunpack.c.l.b16 %v57
  %v162 = vunpack.c.l.b16 %v58
  %v163 = vunpack.c.l.b16 %v59
  %v164 = vunpack.c.l.b16 %v60
  %v165 = vunpack.c.l.b16 %v61
  %v166 = vunpack.c.l.b16 %v62
  %v167 = vunpack.c.l.b16 %v63
  %v168 = vunpack.c.l.b16 %v64
  %v169 = vunpack.c.l.b16 %v65
  %v170 = vunpack.c.l.b16 %v66
  %v171 = vunpack.c.l.b16 %v67
  %v172 = vunpack.c.l.b16 %v68
  %v173 = vunpack.c.l.b16 %v69
  %v174 = vunpack.c.l.b16 %v70
  %v175 = vunpack.c.l.b16 %v71
  %v176 = vunpack.c.l.b16 %v72
  %v177 = vunpack.c.l.b16 %v73
  %v178 = vunpack.c.l.b16 %v74
  %v179 = vpack.c.b16 %v132, %v131
  %v180 = vpack.c.b16 %v134, %v133
  %v181 = vpack.c.b16 %v136, %v135
  %v182 = vpack.c.b16 %v138, %v137
  %v183 = vpack.c.b16 %v140, %v139
  %v184 = vpack.c.b16 %v142, %v141
  %v185 = vpack.c.b16 %v144, %v143
  %v186 = vpack.c.b16 %v146, %v145
  %v187 = vpack.c.b16 %v148, %v147
  %v188 = vpack.c.b16 %v150, %v149
  %v189 = vpack.c.b16 %v152, %v151
  %v190 = vpack.c.b16 %v154, %v153
  %v191 = vpack.c.b16 %v156, %v155
  %v192 = vpack.c.b16 %v158, %v157
  %v193 = vpack.c.b16 %v160, %v159
  %v194 = vpack.c.b16 %v162, %v161
  %v195 = vpack.c.b16 %v164, %v163
  %v196 = vpack.c.b16 %v166, %v165
  %v197 = vpack.c.b16 %v168, %v167
  %v198 = vpack.c.b16 %v170, %v169
  %v199 = vpack.c.b16 %v172, %v171
  %v200 = vpack.c.b16 %v174, %v173
  %v201 = vpack.c.b16 %v176, %v175
  %v202 = vpack.c.b16 %v178, %v177
  %v207 = vunpack.c.l.b16 %v75
  %v208 = vunpack.c.l.b16 %v76
  %v209 = vunpack.c.l.b16 %v77
  %v210 = vunpack.c.l.b16 %v78
  %v211 = vpack.c.b16 %v208, %v207
  %v212 = vpack.c.b16 %v210, %v209
  %vm214 = vcmask 220160
  %v216 = vsel %vm214, %v179, 0
  %v219 = vsel %vm214, %v180, 0
  %v222 = vsel %vm214, %v181, 0
  %v225 = vsel %vm214, %v182, 0
  %v228 = vsel %vm214, %v183, 0
  %v231 = vsel %vm214, %v184, 0
  %v234 = vsel %vm214, %v185, 0
  %v237 = vsel %vm214, %v186, 0
  %v240 = vsel %vm214, %v187, 0
  %v243 = vsel %vm214, %v188, 0
  %v246 = vsel %vm214, %v189, 0
  %v249 = vsel %vm214, %v190, 0
  %v252 = vsel %vm214, %v191, 0
  %v255 = vsel %vm214, %v192, 0
  %v258 = vsel %vm214, %v193, 0
  %v261 = vsel %vm214, %v194, 0
  %v264 = vsel %vm214, %v195, 0
  %v267 = vsel %vm214, %v196, 0
  %v270 = vsel %vm214, %v197, 0
  %v273 = vsel %vm214, %v198, 0
  %v276 = vsel %vm214, %v199, 0
  %v279 = vsel %vm214, %v200, 0
  %v282 = vsel %vm214, %v201, 0
  %v285 = vsel %vm214, %v202, 0
  %vm287 = vcmask 1044480
  %vm288 = vcmask 1045504
  %v289 = vsel %vm287, 4294967295, 65535
  %v290 = vsel %vm288, %v289, 0
  %v292 = vand.u32 %v212, %v290
  %294 = vmatprep.subr.bf16.mxu0 0
  %295 = vmatpush1.bf16.msra.mxu0 0
  %296 = vmatprep.subr.bf16.mxu0 0
  %297 = vmatpush1.bf16.msra.mxu0 0
  %298 = vmatprep.subr.bf16.mxu0 0
  %299 = vmatpush1.bf16.msra.mxu0 0
  %300 = vmatprep.subr.bf16.mxu0 0
  %301 = vmatpush1.bf16.msra.mxu0 0
  %302 = vmatprep.subr.bf16.mxu0 0
  %303 = vmatpush1.bf16.msra.mxu0 0
  %304 = vmatprep.subr.bf16.mxu0 0
  %305 = vmatpush1.bf16.msra.mxu0 0
  %306 = vmatprep.subr.bf16.mxu0 0
  %307 = vmatpush1.bf16.msra.mxu0 %v292
  %308 = vmatprep.subr.bf16.mxu0 0
  %309 = vmatpush1.bf16.msra.mxu0 %v211
  %310 = vmatprep.subr.bf16.mxu0 0
  %311 = vmatpush2.bf16.msra.mxu0 0
  %312 = vmatprep.subr.bf16.mxu0 0
  %313 = vmatpush2.bf16.msra.mxu0 0
  %314 = vmatprep.subr.bf16.mxu0 0
  %315 = vmatpush2.bf16.msra.mxu0 0
  %316 = vmatprep.subr.bf16.mxu0 0
  %317 = vmatpush2.bf16.msra.mxu0 0
  %318 = vmatprep.subr.bf16.mxu0 0
  %319 = vmatpush2.bf16.msra.mxu0 0
  %320 = vmatprep.subr.bf16.mxu0 0
  %321 = vmatpush2.bf16.msra.mxu0 0
  %322 = vmatprep.subr.bf16.mxu0 0
  %323 = vmatpush2.bf16.msra.mxu0 0
  %324 = vmatprep.subr.bf16.mxu0 0
  %325 = vmatpush2.bf16.msra.mxu0 0
  %326 = vmatprep.mubr.bf16.mxu0 0
  %327 = vmatmul.mubr.bf16.gmra.mxu0 %v216
  %v328 = vpop.f32.mrf.mxu0
  %v329 = vadd.f32 %v82, %v328
  %v330 = vpop.f32.mrf.mxu0
  %v331 = vpop.f32.mrf.mxu0
  %v332 = vadd.f32 %v82, %v331
  %v333 = vpop.f32.mrf.mxu0
  %334 = vmatprep.mubr.bf16.mxu0 0
  %335 = vmatmul.mubr.bf16.gmra.mxu0 %v219
  %v336 = vpop.f32.mrf.mxu0
  %v337 = vadd.f32 %v82, %v336
  %v338 = vpop.f32.mrf.mxu0
  %v339 = vpop.f32.mrf.mxu0
  %v340 = vadd.f32 %v82, %v339
  %v341 = vpop.f32.mrf.mxu0
  %342 = vmatprep.mubr.bf16.mxu0 0
  %343 = vmatmul.mubr.bf16.gmra.mxu0 %v222
  %v344 = vpop.f32.mrf.mxu0
  %v345 = vadd.f32 %v82, %v344
  %v346 = vpop.f32.mrf.mxu0
  %v347 = vpop.f32.mrf.mxu0
  %v348 = vadd.f32 %v82, %v347
  %v349 = vpop.f32.mrf.mxu0
  %350 = vmatprep.mubr.bf16.mxu0 0
  %351 = vmatmul.mubr.bf16.gmra.mxu0 %v225
  %v352 = vpop.f32.mrf.mxu0
  %v353 = vadd.f32 %v82, %v352
  %v354 = vpop.f32.mrf.mxu0
  %v355 = vpop.f32.mrf.mxu0
  %v356 = vadd.f32 %v82, %v355
  %v357 = vpop.f32.mrf.mxu0
  %358 = vmatprep.mubr.bf16.mxu0 0
  %359 = vmatmul.mubr.bf16.gmra.mxu0 %v228
  %v360 = vpop.f32.mrf.mxu0
  %v361 = vadd.f32 %v82, %v360
  %v362 = vpop.f32.mrf.mxu0
  %v363 = vpop.f32.mrf.mxu0
  %v364 = vadd.f32 %v82, %v363
  %v365 = vpop.f32.mrf.mxu0
  %366 = vmatprep.mubr.bf16.mxu0 0
  %367 = vmatmul.mubr.bf16.gmra.mxu0 %v231
  %v368 = vpop.f32.mrf.mxu0
  %v369 = vadd.f32 %v82, %v368
  %v370 = vpop.f32.mrf.mxu0
  %v371 = vpop.f32.mrf.mxu0
  %v372 = vadd.f32 %v82, %v371
  %v373 = vpop.f32.mrf.mxu0
  %374 = vmatprep.mubr.bf16.mxu0 0
  %375 = vmatmul.mubr.bf16.gmra.mxu0 %v234
  %v376 = vpop.f32.mrf.mxu0
  %v377 = vadd.f32 %v82, %v376
  %v378 = vpop.f32.mrf.mxu0
  %v379 = vpop.f32.mrf.mxu0
  %v380 = vadd.f32 %v82, %v379
  %v381 = vpop.f32.mrf.mxu0
  %382 = vmatprep.mubr.bf16.mxu0 0
  %383 = vmatmul.mubr.bf16.gmra.mxu0 %v237
  %v384 = vpop.f32.mrf.mxu0
  %v385 = vadd.f32 %v82, %v384
  %v386 = vpop.f32.mrf.mxu0
  %v387 = vpop.f32.mrf.mxu0
  %v388 = vadd.f32 %v82, %v387
  %v389 = vpop.f32.mrf.mxu0
  %390 = vmatprep.mubr.bf16.mxu0 0
  %391 = vmatmul.mubr.bf16.gmra.mxu0 %v240
  %v392 = vpop.f32.mrf.mxu0
  %v393 = vadd.f32 %v82, %v392
  %v394 = vpop.f32.mrf.mxu0
  %v395 = vpop.f32.mrf.mxu0
  %v396 = vadd.f32 %v82, %v395
  %v397 = vpop.f32.mrf.mxu0
  %398 = vmatprep.mubr.bf16.mxu0 0
  %399 = vmatmul.mubr.bf16.gmra.mxu0 %v243
  %v400 = vpop.f32.mrf.mxu0
  %v401 = vadd.f32 %v82, %v400
  %v402 = vpop.f32.mrf.mxu0
  %v403 = vpop.f32.mrf.mxu0
  %v404 = vadd.f32 %v82, %v403
  %v405 = vpop.f32.mrf.mxu0
  %406 = vmatprep.mubr.bf16.mxu0 0
  %407 = vmatmul.mubr.bf16.gmra.mxu0 %v246
  %v408 = vpop.f32.mrf.mxu0
  %v409 = vadd.f32 %v82, %v408
  %v410 = vpop.f32.mrf.mxu0
  %v411 = vpop.f32.mrf.mxu0
  %v412 = vadd.f32 %v82, %v411
  %v413 = vpop.f32.mrf.mxu0
  %414 = vmatprep.mubr.bf16.mxu0 0
  %415 = vmatmul.mubr.bf16.gmra.mxu0 %v249
  %v416 = vpop.f32.mrf.mxu0
  %v417 = vadd.f32 %v82, %v416
  %v418 = vpop.f32.mrf.mxu0
  %v419 = vpop.f32.mrf.mxu0
  %v420 = vadd.f32 %v82, %v419
  %v421 = vpop.f32.mrf.mxu0
  %422 = vmatprep.mubr.bf16.mxu0 0
  %423 = vmatmul.mubr.bf16.gmra.mxu0 %v252
  %v424 = vpop.f32.mrf.mxu0
  %v425 = vadd.f32 %v82, %v424
  %v426 = vpop.f32.mrf.mxu0
  %v427 = vpop.f32.mrf.mxu0
  %v428 = vadd.f32 %v82, %v427
  %v429 = vpop.f32.mrf.mxu0
  %430 = vmatprep.mubr.bf16.mxu0 0
  %431 = vmatmul.mubr.bf16.gmra.mxu0 %v255
  %v432 = vpop.f32.mrf.mxu0
  %v433 = vadd.f32 %v82, %v432
  %v434 = vpop.f32.mrf.mxu0
  %v435 = vpop.f32.mrf.mxu0
  %v436 = vadd.f32 %v82, %v435
  %v437 = vpop.f32.mrf.mxu0
  %438 = vmatprep.mubr.bf16.mxu0 0
  %439 = vmatmul.mubr.bf16.gmra.mxu0 %v258
  %v440 = vpop.f32.mrf.mxu0
  %v441 = vadd.f32 %v82, %v440
  %v442 = vpop.f32.mrf.mxu0
  %v443 = vpop.f32.mrf.mxu0
  %v444 = vadd.f32 %v82, %v443
  %v445 = vpop.f32.mrf.mxu0
  %446 = vmatprep.mubr.bf16.mxu0 0
  %447 = vmatmul.mubr.bf16.gmra.mxu0 %v261
  %v448 = vpop.f32.mrf.mxu0
  %v449 = vadd.f32 %v82, %v448
  %v450 = vpop.f32.mrf.mxu0
  %v451 = vpop.f32.mrf.mxu0
  %v452 = vadd.f32 %v82, %v451
  %v453 = vpop.f32.mrf.mxu0
  %454 = vmatprep.mubr.bf16.mxu0 0
  %455 = vmatmul.mubr.bf16.gmra.mxu0 %v264
  %v456 = vpop.f32.mrf.mxu0
  %v457 = vadd.f32 %v82, %v456
  %v458 = vpop.f32.mrf.mxu0
  %v459 = vpop.f32.mrf.mxu0
  %v460 = vadd.f32 %v82, %v459
  %v461 = vpop.f32.mrf.mxu0
  %462 = vmatprep.mubr.bf16.mxu0 0
  %463 = vmatmul.mubr.bf16.gmra.mxu0 %v267
  %v464 = vpop.f32.mrf.mxu0
  %v465 = vadd.f32 %v82, %v464
  %v466 = vpop.f32.mrf.mxu0
  %v467 = vpop.f32.mrf.mxu0
  %v468 = vadd.f32 %v82, %v467
  %v469 = vpop.f32.mrf.mxu0
  %470 = vmatprep.mubr.bf16.mxu0 0
  %471 = vmatmul.mubr.bf16.gmra.mxu0 %v270
  %v472 = vpop.f32.mrf.mxu0
  %v473 = vadd.f32 %v82, %v472
  %v474 = vpop.f32.mrf.mxu0
  %v475 = vpop.f32.mrf.mxu0
  %v476 = vadd.f32 %v82, %v475
  %v477 = vpop.f32.mrf.mxu0
  %478 = vmatprep.mubr.bf16.mxu0 0
  %479 = vmatmul.mubr.bf16.gmra.mxu0 %v273
  %v480 = vpop.f32.mrf.mxu0
  %v481 = vadd.f32 %v82, %v480
  %v482 = vpop.f32.mrf.mxu0
  %v483 = vpop.f32.mrf.mxu0
  %v484 = vadd.f32 %v82, %v483
  %v485 = vpop.f32.mrf.mxu0
  %486 = vmatprep.mubr.bf16.mxu0 0
  %487 = vmatmul.mubr.bf16.gmra.mxu0 %v276
  %v488 = vpop.f32.mrf.mxu0
  %v489 = vadd.f32 %v82, %v488
  %v490 = vpop.f32.mrf.mxu0
  %v491 = vpop.f32.mrf.mxu0
  %v492 = vadd.f32 %v82, %v491
  %v493 = vpop.f32.mrf.mxu0
  %494 = vmatprep.mubr.bf16.mxu0 0
  %495 = vmatmul.mubr.bf16.gmra.mxu0 %v279
  %v496 = vpop.f32.mrf.mxu0
  %v497 = vadd.f32 %v82, %v496
  %v498 = vpop.f32.mrf.mxu0
  %v499 = vpop.f32.mrf.mxu0
  %v500 = vadd.f32 %v82, %v499
  %v501 = vpop.f32.mrf.mxu0
  %502 = vmatprep.mubr.bf16.mxu0 0
  %503 = vmatmul.mubr.bf16.gmra.mxu0 %v282
  %v504 = vpop.f32.mrf.mxu0
  %v505 = vadd.f32 %v82, %v504
  %v506 = vpop.f32.mrf.mxu0
  %v507 = vpop.f32.mrf.mxu0
  %v508 = vadd.f32 %v82, %v507
  %v509 = vpop.f32.mrf.mxu0
  %510 = vmatprep.mubr.bf16.mxu0 0
  %511 = vmatmul.mubr.bf16.gmra.mxu0 %v285
  %v512 = vpop.f32.mrf.mxu0
  %v513 = vadd.f32 %v82, %v512
  %v514 = vpop.f32.mrf.mxu0
  %v515 = vpop.f32.mrf.mxu0
  %v516 = vadd.f32 %v82, %v515
  %v517 = vpop.f32.mrf.mxu0
  %518 = vdwg.mxu0
  %v519 = vmax.f32 %v329, 0.0
  %v520 = vmax.f32 %v332, 0.0
  %v521 = vmax.f32 %v337, 0.0
  %v522 = vmax.f32 %v340, 0.0
  %v523 = vmax.f32 %v345, 0.0
  %v524 = vmax.f32 %v348, 0.0
  %v525 = vmax.f32 %v353, 0.0
  %v526 = vmax.f32 %v356, 0.0
  %v527 = vmax.f32 %v361, 0.0
  %v528 = vmax.f32 %v364, 0.0
  %v529 = vmax.f32 %v369, 0.0
  %v530 = vmax.f32 %v372, 0.0
  %v531 = vmax.f32 %v377, 0.0
  %v532 = vmax.f32 %v380, 0.0
  %v533 = vmax.f32 %v385, 0.0
  %v534 = vmax.f32 %v388, 0.0
  %v535 = vmax.f32 %v393, 0.0
  %v536 = vmax.f32 %v396, 0.0
  %v537 = vmax.f32 %v401, 0.0
  %v538 = vmax.f32 %v404, 0.0
  %v539 = vmax.f32 %v409, 0.0
  %v540 = vmax.f32 %v412, 0.0
  %v541 = vmax.f32 %v417, 0.0
  %v542 = vmax.f32 %v420, 0.0
  %v543 = vmax.f32 %v425, 0.0
  %v544 = vmax.f32 %v428, 0.0
  %v545 = vmax.f32 %v433, 0.0
  %v546 = vmax.f32 %v436, 0.0
  %v547 = vmax.f32 %v441, 0.0
  %v548 = vmax.f32 %v444, 0.0
  %v549 = vmax.f32 %v449, 0.0
  %v550 = vmax.f32 %v452, 0.0
  %v551 = vmax.f32 %v457, 0.0
  %v552 = vmax.f32 %v460, 0.0
  %v553 = vmax.f32 %v465, 0.0
  %v554 = vmax.f32 %v468, 0.0
  %v555 = vmax.f32 %v473, 0.0
  %v556 = vmax.f32 %v476, 0.0
  %v557 = vmax.f32 %v481, 0.0
  %v558 = vmax.f32 %v484, 0.0
  %v559 = vmax.f32 %v489, 0.0
  %v560 = vmax.f32 %v492, 0.0
  %v561 = vmax.f32 %v497, 0.0
  %v562 = vmax.f32 %v500, 0.0
  %v563 = vmax.f32 %v505, 0.0
  %v564 = vmax.f32 %v508, 0.0
  %v565 = vmax.f32 %v513, 0.0
  %v566 = vmax.f32 %v516, 0.0
  %vm571 = vcmask 1042432
  %v572 = vrot.slane %v521, 5
  %v573 = vrot.slane %v522, 5
  %v574 = vsel %vm571, %v572, %v573
  %v575 = vrot.slane %v523, 5
  %v576 = vsel %vm571, %v573, %v575
  %v577 = vrot.slane %v524, 5
  %v578 = vsel %vm571, %v575, %v577
  %v582 = vmax.f32 %v519, %v574
  %v583 = vmax.f32 %v520, %v576
  %v584 = vmax.f32 %v521, %v578
  %v587 = vrot.slane %v524, 2
  %v588 = vrot.slane %v525, 2
  %v589 = vsel %vm288, %v587, %v588
  %v590 = vrot.slane %v526, 2
  %v591 = vsel %vm288, %v588, %v590
  %v595 = vmax.f32 %v582, %v589
  %v596 = vmax.f32 %v583, %v591
  %v597 = vmax.f32 %v584, %v590
  %v598 = vlaneseq
  %v599 = vshrl.u32 %v598, 7
  %v600 = vsub.s32 0, %v599
  %v601 = vrot.slane %v22, %v600
  %v602 = vmul.f32 %v595, %v601
  %v603 = vmul.f32 %v596, %v601
  %v604 = vmul.f32 %v597, %v601
  %v605 = vlaneseq
  %v606 = vshrl.u32 %v605, 7
  %v607 = vsub.s32 0, %v606
  %v608 = vrot.slane %v23, %v607
  %v609 = vadd.f32 %v602, %v608
  %v610 = vadd.f32 %v603, %v608
  %v611 = vadd.f32 %v604, %v608
  %v616 = vrot.slane %v529, 5
  %v617 = vrot.slane %v530, 5
  %v618 = vsel %vm571, %v616, %v617
  %v619 = vrot.slane %v531, 5
  %v620 = vsel %vm571, %v617, %v619
  %v621 = vrot.slane %v532, 5
  %v622 = vsel %vm571, %v619, %v621
  %v627 = vmax.f32 %v526, %v616
  %v628 = vmax.f32 %v527, %v618
  %v629 = vmax.f32 %v528, %v620
  %v630 = vmax.f32 %v529, %v622
  %v633 = vrot.slane %v532, 2
  %v634 = vrot.slane %v533, 2
  %v635 = vsel %vm288, %v633, %v634
  %v636 = vrot.slane %v534, 2
  %v637 = vsel %vm288, %v634, %v636
  %v642 = vmax.f32 %v627, %v633
  %v643 = vmax.f32 %v628, %v635
  %v644 = vmax.f32 %v629, %v637
  %v645 = vmax.f32 %v630, %v636
  %v646 = vmul.f32 %v642, %v601
  %v647 = vmul.f32 %v643, %v601
  %v648 = vmul.f32 %v644, %v601
  %v649 = vmul.f32 %v645, %v601
  %v650 = vadd.f32 %v646, %v608
  %v651 = vadd.f32 %v647, %v608
  %v652 = vadd.f32 %v648, %v608
  %v653 = vadd.f32 %v649, %v608
  %v657 = vrot.slane %v537, 5
  %v658 = vrot.slane %v538, 5
  %v659 = vsel %vm571, %v657, %v658
  %v660 = vrot.slane %v539, 5
  %v661 = vsel %vm571, %v658, %v660
  %v666 = vmax.f32 %v534, %v657
  %v667 = vmax.f32 %v535, %v659
  %v668 = vmax.f32 %v536, %v661
  %v669 = vmax.f32 %v537, %v660
  %v673 = vrot.slane %v540, 2
  %v674 = vrot.slane %v541, 2
  %v675 = vsel %vm288, %v673, %v674
  %v676 = vrot.slane %v542, 2
  %v677 = vsel %vm288, %v674, %v676
  %v682 = vmax.f32 %v666, %v673
  %v683 = vmax.f32 %v667, %v675
  %v684 = vmax.f32 %v668, %v677
  %v685 = vmax.f32 %v669, %v676
  %v686 = vmul.f32 %v682, %v601
  %v687 = vmul.f32 %v683, %v601
  %v688 = vmul.f32 %v684, %v601
  %v689 = vmul.f32 %v685, %v601
  %v690 = vadd.f32 %v686, %v608
  %v691 = vadd.f32 %v687, %v608
  %v692 = vadd.f32 %v688, %v608
  %v693 = vadd.f32 %v689, %v608
  %vm698 = vcmask 1040384
  %v699 = vrot.slane %v650, 7
  %v700 = vrot.slane %v651, 7
  %v701 = vsel %vm698, %v699, %v700
  %v702 = vrot.slane %v652, 7
  %v703 = vsel %vm698, %v700, %v702
  %v704 = vrot.slane %v653, 7
  %v705 = vsel %vm698, %v702, %v704
  %706 = vrot.lane.b32.xlu0 %v701, 64
  %v707 = vpop.permute.xlu0 %706
  %708 = vrot.lane.b32.xlu0 %v703, 64
  %v709 = vpop.permute.xlu0 %708
  %710 = vrot.lane.b32.xlu0 %v705, 64
  %v711 = vpop.permute.xlu0 %710
  %vm718 = vcmask 1041408
  %v719 = vrot.slane %v690, 6
  %v720 = vrot.slane %v691, 6
  %v721 = vsel %vm718, %v719, %v720
  %v722 = vrot.slane %v692, 6
  %v723 = vsel %vm718, %v720, %v722
  %vm730 = vcmask 1046528
  %v731 = vrot.slane %v609, 1
  %v732 = vrot.slane %v610, 1
  %v733 = vsel %vm730, %v731, %v732
  %v734 = vrot.slane %v611, 1
  %v735 = vsel %vm730, %v732, %v734
  %736 = vrot.lane.b32.xlu0 %v733, 64
  %v737 = vpop.permute.xlu0 %736
  %738 = vrot.lane.b32.xlu0 %v735, 64
  %v739 = vpop.permute.xlu0 %738
  %740 = vrot.lane.b32.xlu0 %v734, 64
  %v741 = vpop.permute.xlu0 %740
  %v746 = vrot.slane %v690, 7
  %v747 = vrot.slane %v691, 7
  %v748 = vsel %vm698, %v746, %v747
  %v749 = vrot.slane %v692, 7
  %v750 = vsel %vm698, %v747, %v749
  %v751 = vrot.slane %v693, 7
  %v752 = vsel %vm698, %v749, %v751
  %753 = vrot.lane.b32.xlu0 %v748, 64
  %v754 = vpop.permute.xlu0 %753
  %755 = vrot.lane.b32.xlu0 %v750, 64
  %v756 = vpop.permute.xlu0 %755
  %757 = vrot.lane.b32.xlu0 %v752, 64
  %v758 = vpop.permute.xlu0 %757
  %v762 = vrot.slane %v609, 2
  %v763 = vrot.slane %v610, 2
  %v764 = vsel %vm288, %v762, %v763
  %v765 = vrot.slane %v611, 2
  %v766 = vsel %vm288, %v763, %v765
  %v770 = vrot.slane %v651, 1
  %v771 = vrot.slane %v652, 1
  %v772 = vsel %vm730, %v770, %v771
  %v773 = vrot.slane %v653, 1
  %v774 = vsel %vm730, %v771, %v773
  %775 = vrot.lane.b32.xlu0 %v772, 64
  %v776 = vpop.permute.xlu0 %775
  %777 = vrot.lane.b32.xlu0 %v774, 64
  %v778 = vpop.permute.xlu0 %777
  %779 = vrot.lane.b32.xlu0 %v773, 64
  %v780 = vpop.permute.xlu0 %779
  %vm784 = vcmask 523264
  %v785 = vsel %vm784, %v609, %v707
  %v786 = vsel %vm784, %v610, %v709
  %v787 = vsel %vm784, %v611, %v711
  %v788 = vsel %vm784, %v721, %v737
  %v789 = vsel %vm784, %v723, %v739
  %v790 = vsel %vm784, %v722, %v741
  %v791 = vsel %vm784, %v651, %v754
  %v792 = vsel %vm784, %v652, %v756
  %v793 = vsel %vm784, %v653, %v758
  %v794 = vsel %vm784, %v764, %v776
  %v795 = vsel %vm784, %v766, %v778
  %v796 = vsel %vm784, %v765, %v780
  %797 = vrot.lane.b32.xlu0 %v746, 64
  %v798 = vpop.permute.xlu0 %797
  %799 = vrot.lane.b32.xlu0 %v749, 64
  %v800 = vpop.permute.xlu0 %799
  %804 = vrot.lane.b32.xlu0 %v770, 64
  %v805 = vpop.permute.xlu0 %804
  %v807 = vrot.slane %v609, 3
  %v808 = vrot.slane %v610, 3
  %v809 = vsel %vm287, %v807, %v808
  %v810 = vrot.slane %v611, 3
  %v811 = vsel %vm287, %v808, %v810
  %812 = vrot.lane.b32.xlu0 %v807, 64
  %v813 = vpop.permute.xlu0 %812
  %814 = vrot.lane.b32.xlu0 %v809, 64
  %v815 = vpop.permute.xlu0 %814
  %816 = vrot.lane.b32.xlu0 %v811, 64
  %v817 = vpop.permute.xlu0 %816
  %818 = vrot.lane.b32.xlu0 %v810, 64
  %v819 = vpop.permute.xlu0 %818
  %v824 = vrot.slane %v651, 2
  %v825 = vrot.slane %v652, 2
  %v826 = vsel %vm288, %v824, %v825
  %v827 = vrot.slane %v653, 2
  %v828 = vsel %vm288, %v825, %v827
  %v833 = vrot.slane %v691, 1
  %v834 = vrot.slane %v692, 1
  %v835 = vsel %vm730, %v833, %v834
  %v836 = vrot.slane %v693, 1
  %v837 = vsel %vm730, %v834, %v836
  %838 = vrot.lane.b32.xlu0 %v833, 64
  %v839 = vpop.permute.xlu0 %838
  %840 = vrot.lane.b32.xlu0 %v835, 64
  %v841 = vpop.permute.xlu0 %840
  %842 = vrot.lane.b32.xlu0 %v837, 64
  %v843 = vpop.permute.xlu0 %842
  %844 = vrot.lane.b32.xlu0 %v836, 64
  %v845 = vpop.permute.xlu0 %844
  %vm850 = vcmask 1043456
  %v851 = vrot.slane %v609, 4
  %v852 = vrot.slane %v610, 4
  %v853 = vsel %vm850, %v851, %v852
  %v854 = vrot.slane %v611, 4
  %v855 = vsel %vm850, %v852, %v854
  %v856 = vsel %vm784, %v650, %v798
  %v857 = vsel %vm784, %v653, %v800
  %v858 = vsel %vm784, %v762, %v805
  %v859 = vsel %vm784, %v690, %v813
  %v860 = vsel %vm784, %v691, %v815
  %v861 = vsel %vm784, %v692, %v817
  %v862 = vsel %vm784, %v693, %v819
  %v863 = vsel %vm784, %v824, %v839
  %v864 = vsel %vm784, %v826, %v841
  %v865 = vsel %vm784, %v828, %v843
  %v866 = vsel %vm784, %v827, %v845
  %v867 = vrot.slane %v690, 1
  %v868 = vsel %vm730, %v867, %v833
  %869 = vrot.lane.b32.xlu0 %v868, 64
  %v870 = vpop.permute.xlu0 %869
  %v875 = vrot.slane %v651, 3
  %v876 = vrot.slane %v652, 3
  %v877 = vsel %vm287, %v875, %v876
  %v878 = vrot.slane %v653, 3
  %v879 = vsel %vm287, %v876, %v878
  %880 = vrot.lane.b32.xlu0 %v875, 64
  %v881 = vpop.permute.xlu0 %880
  %882 = vrot.lane.b32.xlu0 %v877, 64
  %v883 = vpop.permute.xlu0 %882
  %884 = vrot.lane.b32.xlu0 %v879, 64
  %v885 = vpop.permute.xlu0 %884
  %v889 = vrot.slane %v691, 2
  %v890 = vrot.slane %v692, 2
  %v891 = vsel %vm288, %v889, %v890
  %v892 = vrot.slane %v693, 2
  %v893 = vsel %vm288, %v890, %v892
  %v897 = vrot.slane %v609, 5
  %v898 = vrot.slane %v610, 5
  %v899 = vsel %vm571, %v897, %v898
  %v900 = vrot.slane %v611, 5
  %v901 = vsel %vm571, %v898, %v900
  %902 = vrot.lane.b32.xlu0 %v897, 64
  %v903 = vpop.permute.xlu0 %902
  %904 = vrot.lane.b32.xlu0 %v899, 64
  %v905 = vpop.permute.xlu0 %904
  %906 = vrot.lane.b32.xlu0 %v901, 64
  %v907 = vpop.permute.xlu0 %906
  %v911 = vrot.slane %v651, 4
  %v912 = vrot.slane %v652, 4
  %v913 = vsel %vm850, %v911, %v912
  %v914 = vrot.slane %v653, 4
  %v915 = vsel %vm850, %v912, %v914
  %v916 = vsel %vm784, %v824, %v870
  %v917 = vsel %vm784, %v851, %v881
  %v918 = vsel %vm784, %v853, %v883
  %v919 = vsel %vm784, %v855, %v885
  %v920 = vsel %vm784, %v889, %v903
  %v921 = vsel %vm784, %v891, %v905
  %v922 = vsel %vm784, %v893, %v907
  %v926 = vrot.slane %v545, 5
  %v927 = vrot.slane %v546, 5
  %v928 = vsel %vm571, %v926, %v927
  %v929 = vrot.slane %v547, 5
  %v930 = vsel %vm571, %v927, %v929
  %v935 = vmax.f32 %v542, %v926
  %v936 = vmax.f32 %v543, %v928
  %v937 = vmax.f32 %v544, %v930
  %v938 = vmax.f32 %v545, %v929
  %v942 = vrot.slane %v547, 2
  %v943 = vrot.slane %v548, 2
  %v944 = vsel %vm288, %v942, %v943
  %v945 = vrot.slane %v549, 2
  %v946 = vsel %vm288, %v943, %v945
  %v947 = vrot.slane %v550, 2
  %v948 = vsel %vm288, %v945, %v947
  %v953 = vmax.f32 %v935, %v944
  %v954 = vmax.f32 %v936, %v946
  %v955 = vmax.f32 %v937, %v948
  %v956 = vmax.f32 %v938, %v947
  %v957 = vmul.f32 %v953, %v601
  %v958 = vmul.f32 %v954, %v601
  %v959 = vmul.f32 %v955, %v601
  %v960 = vmul.f32 %v956, %v601
  %v961 = vadd.f32 %v957, %v608
  %v962 = vadd.f32 %v958, %v608
  %v963 = vadd.f32 %v959, %v608
  %v964 = vadd.f32 %v960, %v608
  %v968 = vrot.slane %v553, 5
  %v969 = vrot.slane %v554, 5
  %v970 = vsel %vm571, %v968, %v969
  %v971 = vrot.slane %v555, 5
  %v972 = vsel %vm571, %v969, %v971
  %v977 = vmax.f32 %v550, %v968
  %v978 = vmax.f32 %v551, %v970
  %v979 = vmax.f32 %v552, %v972
  %v980 = vmax.f32 %v553, %v971
  %v984 = vrot.slane %v555, 2
  %v985 = vrot.slane %v556, 2
  %v986 = vsel %vm288, %v984, %v985
  %v987 = vrot.slane %v557, 2
  %v988 = vsel %vm288, %v985, %v987
  %v989 = vrot.slane %v558, 2
  %v990 = vsel %vm288, %v987, %v989
  %v995 = vmax.f32 %v977, %v986
  %v996 = vmax.f32 %v978, %v988
  %v997 = vmax.f32 %v979, %v990
  %v998 = vmax.f32 %v980, %v989
  %v999 = vmul.f32 %v995, %v601
  %v1000 = vmul.f32 %v996, %v601
  %v1001 = vmul.f32 %v997, %v601
  %v1002 = vmul.f32 %v998, %v601
  %v1003 = vadd.f32 %v999, %v608
  %v1004 = vadd.f32 %v1000, %v608
  %v1005 = vadd.f32 %v1001, %v608
  %v1006 = vadd.f32 %v1002, %v608
  %v1010 = vrot.slane %v561, 5
  %v1011 = vrot.slane %v562, 5
  %v1012 = vsel %vm571, %v1010, %v1011
  %v1013 = vrot.slane %v563, 5
  %v1014 = vsel %vm571, %v1011, %v1013
  %v1018 = vmax.f32 %v558, %v1010
  %v1019 = vmax.f32 %v559, %v1012
  %v1020 = vmax.f32 %v560, %v1014
  %v1024 = vrot.slane %v563, 2
  %v1025 = vrot.slane %v564, 2
  %v1026 = vsel %vm288, %v1024, %v1025
  %v1027 = vrot.slane %v565, 2
  %v1028 = vsel %vm288, %v1025, %v1027
  %v1029 = vrot.slane %v566, 2
  %v1030 = vsel %vm288, %v1027, %v1029
  %v1034 = vmax.f32 %v1018, %v1026
  %v1035 = vmax.f32 %v1019, %v1028
  %v1036 = vmax.f32 %v1020, %v1030
  %v1037 = vmul.f32 %v1034, %v601
  %v1038 = vmul.f32 %v1035, %v601
  %v1039 = vmul.f32 %v1036, %v601
  %v1040 = vadd.f32 %v1037, %v608
  %v1041 = vadd.f32 %v1038, %v608
  %v1042 = vadd.f32 %v1039, %v608
  %v1046 = vrot.slane %v1003, 7
  %v1047 = vrot.slane %v1004, 7
  %v1048 = vsel %vm698, %v1046, %v1047
  %v1049 = vrot.slane %v1005, 7
  %v1050 = vsel %vm698, %v1047, %v1049
  %1051 = vrot.lane.b32.xlu0 %v1046, 64
  %v1052 = vpop.permute.xlu0 %1051
  %1053 = vrot.lane.b32.xlu0 %v1048, 64
  %v1054 = vpop.permute.xlu0 %1053
  %1055 = vrot.lane.b32.xlu0 %v1050, 64
  %v1056 = vpop.permute.xlu0 %1055
  %v1063 = vrot.slane %v1040, 6
  %v1064 = vrot.slane %v1041, 6
  %v1065 = vsel %vm718, %v1063, %v1064
  %v1066 = vrot.slane %v1042, 6
  %v1067 = vsel %vm718, %v1064, %v1066
  %v1074 = vrot.slane %v961, 1
  %v1075 = vrot.slane %v962, 1
  %v1076 = vsel %vm730, %v1074, %v1075
  %v1077 = vrot.slane %v963, 1
  %v1078 = vsel %vm730, %v1075, %v1077
  %1079 = vrot.lane.b32.xlu0 %v1076, 64
  %v1080 = vpop.permute.xlu0 %1079
  %1081 = vrot.lane.b32.xlu0 %v1078, 64
  %v1082 = vpop.permute.xlu0 %1081
  %1083 = vrot.lane.b32.xlu0 %v1077, 64
  %v1084 = vpop.permute.xlu0 %1083
  %v1088 = vrot.slane %v1040, 7
  %v1089 = vrot.slane %v1041, 7
  %v1090 = vsel %vm698, %v1088, %v1089
  %v1091 = vrot.slane %v1042, 7
  %v1092 = vsel %vm698, %v1089, %v1091
  %1093 = vrot.lane.b32.xlu0 %v1088, 64
  %v1094 = vpop.permute.xlu0 %1093
  %1095 = vrot.lane.b32.xlu0 %v1090, 64
  %v1096 = vpop.permute.xlu0 %1095
  %1097 = vrot.lane.b32.xlu0 %v1092, 64
  %v1098 = vpop.permute.xlu0 %1097
  %v1103 = vrot.slane %v961, 2
  %v1104 = vrot.slane %v962, 2
  %v1105 = vsel %vm288, %v1103, %v1104
  %v1106 = vrot.slane %v963, 2
  %v1107 = vsel %vm288, %v1104, %v1106
  %v1108 = vrot.slane %v964, 2
  %v1109 = vsel %vm288, %v1106, %v1108
  %v1113 = vrot.slane %v1003, 1
  %v1114 = vrot.slane %v1004, 1
  %v1115 = vsel %vm730, %v1113, %v1114
  %v1116 = vrot.slane %v1005, 1
  %v1117 = vsel %vm730, %v1114, %v1116
  %1118 = vrot.lane.b32.xlu0 %v1115, 64
  %v1119 = vpop.permute.xlu0 %1118
  %1120 = vrot.lane.b32.xlu0 %v1117, 64
  %v1121 = vpop.permute.xlu0 %1120
  %1122 = vrot.lane.b32.xlu0 %v1116, 64
  %v1123 = vpop.permute.xlu0 %1122
  %v1127 = vsel %vm784, %v961, %v1052
  %v1128 = vsel %vm784, %v962, %v1054
  %v1129 = vsel %vm784, %v963, %v1056
  %v1130 = vsel %vm784, %v1063, %v1080
  %v1131 = vsel %vm784, %v1065, %v1082
  %v1132 = vsel %vm784, %v1067, %v1084
  %v1133 = vsel %vm784, %v1003, %v1094
  %v1134 = vsel %vm784, %v1004, %v1096
  %v1135 = vsel %vm784, %v1005, %v1098
  %v1136 = vsel %vm784, %v1105, %v1119
  %v1137 = vsel %vm784, %v1107, %v1121
  %v1138 = vsel %vm784, %v1109, %v1123
  %v1140 = vrot.slane %v961, 3
  %v1141 = vrot.slane %v962, 3
  %v1142 = vsel %vm287, %v1140, %v1141
  %v1143 = vrot.slane %v963, 3
  %v1144 = vsel %vm287, %v1141, %v1143
  %v1145 = vrot.slane %v964, 3
  %v1146 = vsel %vm287, %v1143, %v1145
  %1147 = vrot.lane.b32.xlu0 %v1142, 64
  %v1148 = vpop.permute.xlu0 %1147
  %1149 = vrot.lane.b32.xlu0 %v1144, 64
  %v1150 = vpop.permute.xlu0 %1149
  %1151 = vrot.lane.b32.xlu0 %v1146, 64
  %v1152 = vpop.permute.xlu0 %1151
  %v1156 = vrot.slane %v1003, 2
  %v1157 = vrot.slane %v1004, 2
  %v1158 = vsel %vm288, %v1156, %v1157
  %v1159 = vrot.slane %v1005, 2
  %v1160 = vsel %vm288, %v1157, %v1159
  %v1164 = vrot.slane %v1040, 1
  %v1165 = vrot.slane %v1041, 1
  %v1166 = vsel %vm730, %v1164, %v1165
  %v1167 = vrot.slane %v1042, 1
  %v1168 = vsel %vm730, %v1165, %v1167
  %1169 = vrot.lane.b32.xlu0 %v1166, 64
  %v1170 = vpop.permute.xlu0 %1169
  %1171 = vrot.lane.b32.xlu0 %v1168, 64
  %v1172 = vpop.permute.xlu0 %1171
  %1173 = vrot.lane.b32.xlu0 %v1167, 64
  %v1174 = vpop.permute.xlu0 %1173
  %v1178 = vrot.slane %v962, 4
  %v1179 = vrot.slane %v963, 4
  %v1180 = vsel %vm850, %v1178, %v1179
  %v1181 = vrot.slane %v964, 4
  %v1182 = vsel %vm850, %v1179, %v1181
  %v1183 = vsel %vm784, %v1106, %v1123
  %v1184 = vsel %vm784, %v1040, %v1148
  %v1185 = vsel %vm784, %v1041, %v1150
  %v1186 = vsel %vm784, %v1042, %v1152
  %v1187 = vsel %vm784, %v1158, %v1170
  %v1188 = vsel %vm784, %v1160, %v1172
  %v1189 = vsel %vm784, %v1159, %v1174
  %1190 = vrot.lane.b32.xlu0 %v1143, 64
  %v1191 = vpop.permute.xlu0 %1190
  %v1193 = vrot.slane %v961, 4
  %v1194 = vsel %vm850, %v1193, %v1178
  %v1198 = vrot.slane %v1003, 3
  %v1199 = vrot.slane %v1004, 3
  %v1200 = vsel %vm287, %v1198, %v1199
  %v1201 = vrot.slane %v1005, 3
  %v1202 = vsel %vm287, %v1199, %v1201
  %1203 = vrot.lane.b32.xlu0 %v1200, 64
  %v1204 = vpop.permute.xlu0 %1203
  %1205 = vrot.lane.b32.xlu0 %v1202, 64
  %v1206 = vpop.permute.xlu0 %1205
  %1207 = vrot.lane.b32.xlu0 %v1201, 64
  %v1208 = vpop.permute.xlu0 %1207
  %v1212 = vrot.slane %v1040, 2
  %v1213 = vrot.slane %v1041, 2
  %v1214 = vsel %vm288, %v1212, %v1213
  %v1215 = vrot.slane %v1042, 2
  %v1216 = vsel %vm288, %v1213, %v1215
  %v1220 = vrot.slane %v962, 5
  %v1221 = vrot.slane %v963, 5
  %v1222 = vsel %vm571, %v1220, %v1221
  %v1223 = vrot.slane %v964, 5
  %v1224 = vsel %vm571, %v1221, %v1223
  %1225 = vrot.lane.b32.xlu0 %v1220, 64
  %v1226 = vpop.permute.xlu0 %1225
  %1227 = vrot.lane.b32.xlu0 %v1222, 64
  %v1228 = vpop.permute.xlu0 %1227
  %1229 = vrot.lane.b32.xlu0 %v1224, 64
  %v1230 = vpop.permute.xlu0 %1229
  %v1235 = vrot.slane %v1003, 4
  %v1236 = vrot.slane %v1004, 4
  %v1237 = vsel %vm850, %v1235, %v1236
  %v1238 = vrot.slane %v1005, 4
  %v1239 = vsel %vm850, %v1236, %v1238
  %v1240 = vrot.slane %v1006, 4
  %v1241 = vsel %vm850, %v1238, %v1240
  %v1242 = vsel %vm784, %v1042, %v1191
  %v1243 = vsel %vm784, %v1194, %v1204
  %v1244 = vsel %vm784, %v1180, %v1206
  %v1245 = vsel %vm784, %v1182, %v1208
  %v1246 = vsel %vm784, %v1214, %v1226
  %v1247 = vsel %vm784, %v1216, %v1228
  %v1248 = vsel %vm784, %v1215, %v1230
  %v1265 = vrot.slane %v856, 5
  %v1266 = vrot.slane %v791, 5
  %v1267 = vsel %vm571, %v1265, %v1266
  %v1268 = vrot.slane %v858, 5
  %v1269 = vrot.slane %v794, 5
  %v1270 = vsel %vm571, %v1268, %v1269
  %v1271 = vrot.slane %v859, 5
  %v1272 = vrot.slane %v860, 5
  %v1273 = vsel %vm571, %v1271, %v1272
  %v1274 = vrot.slane %v863, 5
  %v1275 = vrot.slane %v864, 5
  %v1276 = vsel %vm571, %v1274, %v1275
  %v1277 = vrot.slane %v851, 5
  %v1278 = vrot.slane %v853, 5
  %v1279 = vsel %vm571, %v1277, %v1278
  %v1280 = vrot.slane %v792, 5
  %v1281 = vsel %vm571, %v1266, %v1280
  %v1282 = vrot.slane %v795, 5
  %v1283 = vsel %vm571, %v1269, %v1282
  %v1284 = vrot.slane %v861, 5
  %v1285 = vsel %vm571, %v1272, %v1284
  %v1286 = vrot.slane %v865, 5
  %v1287 = vsel %vm571, %v1275, %v1286
  %v1288 = vrot.slane %v855, 5
  %v1289 = vsel %vm571, %v1278, %v1288
  %v1290 = vrot.slane %v857, 5
  %v1291 = vsel %vm571, %v1280, %v1290
  %v1292 = vrot.slane %v796, 5
  %v1293 = vsel %vm571, %v1282, %v1292
  %v1294 = vrot.slane %v862, 5
  %v1295 = vsel %vm571, %v1284, %v1294
  %v1296 = vrot.slane %v866, 5
  %v1297 = vsel %vm571, %v1286, %v1296
  %v1298 = vrot.slane %v854, 5
  %v1299 = vsel %vm571, %v1288, %v1298
  %v1322 = vrot.slane %v859, 2
  %v1323 = vrot.slane %v860, 2
  %v1324 = vsel %vm288, %v1322, %v1323
  %v1325 = vrot.slane %v916, 2
  %v1326 = vrot.slane %v864, 2
  %v1327 = vsel %vm288, %v1325, %v1326
  %v1328 = vrot.slane %v917, 2
  %v1329 = vrot.slane %v918, 2
  %v1330 = vsel %vm288, %v1328, %v1329
  %v1331 = vrot.slane %v920, 2
  %v1332 = vrot.slane %v921, 2
  %v1333 = vsel %vm288, %v1331, %v1332
  %v1334 = vrot.slane %v911, 2
  %v1335 = vrot.slane %v913, 2
  %v1336 = vsel %vm288, %v1334, %v1335
  %v1337 = vrot.slane %v861, 2
  %v1338 = vsel %vm288, %v1323, %v1337
  %v1339 = vrot.slane %v865, 2
  %v1340 = vsel %vm288, %v1326, %v1339
  %v1341 = vrot.slane %v919, 2
  %v1342 = vsel %vm288, %v1329, %v1341
  %v1343 = vrot.slane %v922, 2
  %v1344 = vsel %vm288, %v1332, %v1343
  %v1345 = vrot.slane %v915, 2
  %v1346 = vsel %vm288, %v1335, %v1345
  %v1374 = vrot.slane %v1127, 7
  %v1375 = vrot.slane %v1130, 7
  %v1376 = vrot.slane %v1133, 7
  %v1377 = vrot.slane %v1136, 7
  %v1378 = vrot.slane %v1128, 7
  %v1379 = vsel %vm698, %v1374, %v1378
  %v1380 = vrot.slane %v1131, 7
  %v1381 = vsel %vm698, %v1375, %v1380
  %v1382 = vrot.slane %v1134, 7
  %v1383 = vsel %vm698, %v1376, %v1382
  %v1384 = vrot.slane %v1137, 7
  %v1385 = vsel %vm698, %v1377, %v1384
  %v1386 = vrot.slane %v1129, 7
  %v1387 = vsel %vm698, %v1378, %v1386
  %v1388 = vrot.slane %v1132, 7
  %v1389 = vsel %vm698, %v1380, %v1388
  %v1390 = vrot.slane %v1135, 7
  %v1391 = vsel %vm698, %v1382, %v1390
  %v1392 = vrot.slane %v1138, 7
  %v1393 = vsel %vm698, %v1384, %v1392
  %v1416 = vrot.slane %v1133, 4
  %v1417 = vrot.slane %v1134, 4
  %v1418 = vsel %vm850, %v1416, %v1417
  %v1419 = vrot.slane %v1136, 4
  %v1420 = vrot.slane %v1137, 4
  %v1421 = vsel %vm850, %v1419, %v1420
  %v1422 = vrot.slane %v1184, 4
  %v1423 = vrot.slane %v1185, 4
  %v1424 = vsel %vm850, %v1422, %v1423
  %v1425 = vrot.slane %v1187, 4
  %v1426 = vrot.slane %v1188, 4
  %v1427 = vsel %vm850, %v1425, %v1426
  %v1428 = vrot.slane %v1178, 4
  %v1429 = vrot.slane %v1180, 4
  %v1430 = vsel %vm850, %v1428, %v1429
  %v1431 = vrot.slane %v1135, 4
  %v1432 = vsel %vm850, %v1417, %v1431
  %v1433 = vrot.slane %v1183, 4
  %v1434 = vsel %vm850, %v1420, %v1433
  %v1435 = vrot.slane %v1186, 4
  %v1436 = vsel %vm850, %v1423, %v1435
  %v1437 = vrot.slane %v1189, 4
  %v1438 = vsel %vm850, %v1426, %v1437
  %v1439 = vrot.slane %v1182, 4
  %v1440 = vsel %vm850, %v1429, %v1439
  %v1463 = vrot.slane %v1184, 1
  %v1464 = vrot.slane %v1185, 1
  %v1465 = vsel %vm730, %v1463, %v1464
  %v1466 = vrot.slane %v1187, 1
  %v1467 = vrot.slane %v1188, 1
  %v1468 = vsel %vm730, %v1466, %v1467
  %v1469 = vrot.slane %v1243, 1
  %v1470 = vrot.slane %v1244, 1
  %v1471 = vsel %vm730, %v1469, %v1470
  %v1472 = vrot.slane %v1246, 1
  %v1473 = vrot.slane %v1247, 1
  %v1474 = vsel %vm730, %v1472, %v1473
  %v1475 = vrot.slane %v1237, 1
  %v1476 = vrot.slane %v1239, 1
  %v1477 = vsel %vm730, %v1475, %v1476
  %v1478 = vrot.slane %v1242, 1
  %v1479 = vsel %vm730, %v1464, %v1478
  %v1480 = vrot.slane %v1189, 1
  %v1481 = vsel %vm730, %v1467, %v1480
  %v1482 = vrot.slane %v1245, 1
  %v1483 = vsel %vm730, %v1470, %v1482
  %v1484 = vrot.slane %v1248, 1
  %v1485 = vsel %vm730, %v1473, %v1484
  %v1486 = vrot.slane %v1241, 1
  %v1487 = vsel %vm730, %v1476, %v1486
  %v1503 = vsel %vm718, %v787, %v1267
  %v1504 = vsel %vm718, %v790, %v1270
  %v1505 = vsel %vm718, %v793, %v1273
  %v1506 = vsel %vm718, %v796, %v1276
  %v1507 = vsel %vm718, %v693, %v1279
  %v1508 = vsel %vm850, %v1291, %v1324
  %v1509 = vsel %vm850, %v1293, %v1327
  %v1510 = vsel %vm850, %v1295, %v1330
  %v1511 = vsel %vm850, %v1297, %v1333
  %v1512 = vsel %vm850, %v1299, %v1336
  %v1513 = vsel %vm288, %v1337, %v1374
  %v1514 = vsel %vm288, %v1339, %v1375
  %v1515 = vsel %vm288, %v1341, %v1376
  %v1516 = vsel %vm288, %v1343, %v1377
  %v1517 = vsel %vm288, %v1345, %v1088
  %v1518 = vsel %vm718, %v1431, %v1465
  %v1519 = vsel %vm718, %v1433, %v1468
  %v1520 = vsel %vm718, %v1435, %v1471
  %v1521 = vsel %vm718, %v1437, %v1474
  %v1522 = vsel %vm718, %v1439, %v1477
  %v1523 = vpack.c.bf16 %v786, %v785
  %v1524 = vpack.c.bf16 %v789, %v788
  %v1525 = vpack.c.bf16 %v792, %v791
  %v1526 = vpack.c.bf16 %v795, %v794
  %v1527 = vpack.c.bf16 %v692, %v691
  %v1528 = vpack.c.bf16 %v1281, %v1503
  %v1529 = vpack.c.bf16 %v1283, %v1504
  %v1530 = vpack.c.bf16 %v1285, %v1505
  %v1531 = vpack.c.bf16 %v1287, %v1506
  %v1532 = vpack.c.bf16 %v1289, %v1507
  %v1533 = vpack.c.bf16 %v1338, %v1508
  %v1534 = vpack.c.bf16 %v1340, %v1509
  %v1535 = vpack.c.bf16 %v1342, %v1510
  %v1536 = vpack.c.bf16 %v1344, %v1511
  %v1537 = vpack.c.bf16 %v1346, %v1512
  %v1538 = vpack.c.bf16 %v1379, %v1513
  %v1539 = vpack.c.bf16 %v1381, %v1514
  %v1540 = vpack.c.bf16 %v1383, %v1515
  %v1541 = vpack.c.bf16 %v1385, %v1516
  %v1542 = vpack.c.bf16 %v1090, %v1517
  %v1543 = vpack.c.bf16 %v1418, %v1387
  %v1544 = vpack.c.bf16 %v1421, %v1389
  %v1545 = vpack.c.bf16 %v1424, %v1391
  %v1546 = vpack.c.bf16 %v1427, %v1393
  %v1547 = vpack.c.bf16 %v1430, %v1092
  %v1548 = vpack.c.bf16 %v1518, %v1432
  %v1549 = vpack.c.bf16 %v1519, %v1434
  %v1550 = vpack.c.bf16 %v1520, %v1436
  %v1551 = vpack.c.bf16 %v1521, %v1438
  %v1552 = vpack.c.bf16 %v1522, %v1440
  %v1553 = vpack.c.bf16 %v1478, %v1479
  %v1554 = vpack.c.bf16 %v1480, %v1481
  %v1555 = vpack.c.bf16 %v1482, %v1483
  %v1556 = vpack.c.bf16 %v1484, %v1485
  %v1557 = vpack.c.bf16 %v1486, %v1487
  %v1558 = vld [vmem:[%s3] sm:$0xf]
  %v1559 = vld [vmem:[%s3 + $0x4] sm:$0xf]
  %v1560 = vld [vmem:[%s3 + $0x8] sm:$0xf]
  %v1561 = vld [vmem:[%s3 + $0xc] sm:$0xf]
  %v1562 = vld [vmem:[%s3 + $0x10] sm:$0xf]
  %v1563 = vld [vmem:[%s3 + $0x14] sm:$0xf]
  %v1564 = vld [vmem:[%s3 + $0x18] sm:$0xf]
  %v1565 = vld [vmem:[%s3 + $0x1c] sm:$0xf]
  %v1566 = vld [vmem:[%s3 + $0x20] sm:$0xf]
  %v1567 = vld [vmem:[%s3 + $0x24] sm:$0xf]
  %v1568 = vld [vmem:[%s3 + $0x28] sm:$0xf]
  %v1569 = vld [vmem:[%s3 + $0x2c] sm:$0xf]
  %v1570 = vld [vmem:[%s3 + $0x30] sm:$0xf]
  %v1571 = vld [vmem:[%s3 + $0x34] sm:$0xf]
  %v1572 = vld [vmem:[%s3 + $0x38] sm:$0xf]
  %v1573 = vld [vmem:[%s3 + $0x3c] sm:$0xf]
  %v1574 = vld [vmem:[%s3 + $0x40] sm:$0xf]
  %v1575 = vld [vmem:[%s3 + $0x44] sm:$0xf]
  %v1576 = vld [vmem:[%s3 + $0x48] sm:$0xf]
  %v1577 = vld [vmem:[%s3 + $0x4c] sm:$0xf]
  %v1578 = vld [vmem:[%s3 + $0x50] sm:$0xf]
  %v1579 = vld [vmem:[%s3 + $0x54] sm:$0xf]
  %v1580 = vld [vmem:[%s3 + $0x58] sm:$0xf]
  %v1581 = vld [vmem:[%s3 + $0x5c] sm:$0xf]
  %v1582 = vld [vmem:[%s3 + $0x60] sm:$0xf]
  %v1583 = vld [vmem:[%s3 + $0x64] sm:$0xf]
  %v1584 = vld [vmem:[%s3 + $0x68] sm:$0xf]
  %v1585 = vld [vmem:[%s3 + $0x6c] sm:$0xf]
  %v1586 = vld [vmem:[%s3 + $0x70] sm:$0xf]
  %v1587 = vld [vmem:[%s3 + $0x74] sm:$0xf]
  %v1588 = vld [vmem:[%s3 + $0x78] sm:$0xf]
  %v1589 = vld [vmem:[%s3 + $0x7c] sm:$0xf]
  %v1590 = vld [vmem:[%s3 + $0x80] sm:$0xf]
  %v1591 = vld [vmem:[%s3 + $0x84] sm:$0xf]
  %v1592 = vld [vmem:[%s3 + $0x88] sm:$0xf]
  %v1593 = vld [vmem:[%s3 + $0x8c] sm:$0xf]
  %v1594 = vld [vmem:[%s3 + $0x90] sm:$0xf]
  %v1595 = vld [vmem:[%s3 + $0x94] sm:$0xf]
  %v1596 = vld [vmem:[%s3 + $0x98] sm:$0xf]
  %v1597 = vld [vmem:[%s3 + $0x9c] sm:$0xf]
  %v1598 = vld [vmem:[%s3 + $0xa0] sm:$0xf]
  %v1599 = vld [vmem:[%s3 + $0xa4] sm:$0xf]
  %v1600 = vld [vmem:[%s3 + $0xa8] sm:$0xf]
  %v1601 = vld [vmem:[%s3 + $0xac] sm:$0xf]
  %v1602 = vld [vmem:[%s3 + $0xb0] sm:$0xf]
  %v1603 = vld [vmem:[%s3 + $0xb4] sm:$0xf]
  %v1604 = vld [vmem:[%s3 + $0xb8] sm:$0xf]
  %v1605 = vld [vmem:[%s3 + $0xbc] sm:$0xf]
  %v1606 = vld [vmem:[%s3 + $0xc0] sm:$0xf]
  %v1607 = vld [vmem:[%s3 + $0xc4] sm:$0xf]
  %v1608 = vld [vmem:[%s3 + $0xc8] sm:$0xf]
  %v1609 = vld [vmem:[%s3 + $0xcc] sm:$0xf]
  %v1610 = vld [vmem:[%s3 + $0xd0] sm:$0xf]
  %v1611 = vld [vmem:[%s3 + $0xd4] sm:$0xf]
  %v1612 = vld [vmem:[%s3 + $0xd8] sm:$0xf]
  %v1613 = vld [vmem:[%s3 + $0xdc] sm:$0xf]
  %v1614 = vld [vmem:[%s3 + $0xe0] sm:$0xf]
  %v1615 = vld [vmem:[%s3 + $0xe4] sm:$0xf]
  %v1616 = vld [vmem:[%s3 + $0xe8] sm:$0xf]
  %v1617 = vld [vmem:[%s3 + $0xec] sm:$0xf]
  %v1618 = vld [vmem:[%s3 + $0xf0] sm:$0xf]
  %v1619 = vld [vmem:[%s3 + $0xf4] sm:$0xf]
  %v1620 = vld [vmem:[%s3 + $0xf8] sm:$0xf]
  %v1621 = vld [vmem:[%s3 + $0xfc] sm:$0xf]
  %v1622 = vld [vmem:[%s3 + $0x100] sm:$0xf]
  %v1623 = vld [vmem:[%s3 + $0x104] sm:$0xf]
  %v1624 = vld [vmem:[%s3 + $0x108] sm:$0xf]
  %v1625 = vld [vmem:[%s3 + $0x10c] sm:$0xf]
  %v1626 = vld [vmem:[%s3 + $0x110] sm:$0xf]
  %v1627 = vld [vmem:[%s3 + $0x114] sm:$0xf]
  %v1628 = vld [vmem:[%s3 + $0x118] sm:$0xf]
  %v1629 = vld [vmem:[%s3 + $0x11c] sm:$0xf]
  %v1630 = vlaneseq
  %v1631 = vshrl.u32 %v1630, 7
  %v1632 = vsub.s32 0, %v1631
  %v1633 = vrot.slane %v24, %v1632
  %v1706 = vunpack.c.l.b16 %v1558
  %v1707 = vunpack.c.l.b16 %v1559
  %v1708 = vunpack.c.l.b16 %v1560
  %v1709 = vunpack.c.l.b16 %v1561
  %v1710 = vunpack.c.l.b16 %v1562
  %v1711 = vunpack.c.l.b16 %v1563
  %v1712 = vunpack.c.l.b16 %v1564
  %v1713 = vunpack.c.l.b16 %v1565
  %v1714 = vunpack.c.l.b16 %v1566
  %v1715 = vunpack.c.l.b16 %v1567
  %v1716 = vunpack.c.l.b16 %v1568
  %v1717 = vunpack.c.l.b16 %v1569
  %v1718 = vunpack.c.l.b16 %v1570
  %v1719 = vunpack.c.l.b16 %v1571
  %v1720 = vunpack.c.l.b16 %v1572
  %v1721 = vunpack.c.l.b16 %v1573
  %v1722 = vunpack.c.l.b16 %v1574
  %v1723 = vunpack.c.l.b16 %v1575
  %v1724 = vunpack.c.l.b16 %v1576
  %v1725 = vunpack.c.l.b16 %v1577
  %v1726 = vunpack.c.l.b16 %v1578
  %v1727 = vunpack.c.l.b16 %v1579
  %v1728 = vunpack.c.l.b16 %v1580
  %v1729 = vunpack.c.l.b16 %v1581
  %v1730 = vunpack.c.l.b16 %v1582
  %v1731 = vunpack.c.l.b16 %v1583
  %v1732 = vunpack.c.l.b16 %v1584
  %v1733 = vunpack.c.l.b16 %v1585
  %v1734 = vunpack.c.l.b16 %v1586
  %v1735 = vunpack.c.l.b16 %v1587
  %v1736 = vunpack.c.l.b16 %v1588
  %v1737 = vunpack.c.l.b16 %v1589
  %v1738 = vunpack.c.l.b16 %v1590
  %v1739 = vunpack.c.l.b16 %v1591
  %v1740 = vunpack.c.l.b16 %v1592
  %v1741 = vunpack.c.l.b16 %v1593
  %v1742 = vunpack.c.l.b16 %v1594
  %v1743 = vunpack.c.l.b16 %v1595
  %v1744 = vunpack.c.l.b16 %v1596
  %v1745 = vunpack.c.l.b16 %v1597
  %v1746 = vunpack.c.l.b16 %v1598
  %v1747 = vunpack.c.l.b16 %v1599
  %v1748 = vunpack.c.l.b16 %v1600
  %v1749 = vunpack.c.l.b16 %v1601
  %v1750 = vunpack.c.l.b16 %v1602
  %v1751 = vunpack.c.l.b16 %v1603
  %v1752 = vunpack.c.l.b16 %v1604
  %v1753 = vunpack.c.l.b16 %v1605
  %v1754 = vunpack.c.l.b16 %v1606
  %v1755 = vunpack.c.l.b16 %v1607
  %v1756 = vunpack.c.l.b16 %v1608
  %v1757 = vunpack.c.l.b16 %v1609
  %v1758 = vunpack.c.l.b16 %v1610
  %v1759 = vunpack.c.l.b16 %v1611
  %v1760 = vunpack.c.l.b16 %v1612
  %v1761 = vunpack.c.l.b16 %v1613
  %v1762 = vunpack.c.l.b16 %v1614
  %v1763 = vunpack.c.l.b16 %v1615
  %v1764 = vunpack.c.l.b16 %v1616
  %v1765 = vunpack.c.l.b16 %v1617
  %v1766 = vunpack.c.l.b16 %v1618
  %v1767 = vunpack.c.l.b16 %v1619
  %v1768 = vunpack.c.l.b16 %v1620
  %v1769 = vunpack.c.l.b16 %v1621
  %v1770 = vunpack.c.l.b16 %v1622
  %v1771 = vunpack.c.l.b16 %v1623
  %v1772 = vunpack.c.l.b16 %v1624
  %v1773 = vunpack.c.l.b16 %v1625
  %v1774 = vunpack.c.l.b16 %v1626
  %v1775 = vunpack.c.l.b16 %v1627
  %v1776 = vunpack.c.l.b16 %v1628
  %v1777 = vunpack.c.l.b16 %v1629
  %v1778 = vpack.c.b16 %v1707, %v1706
  %v1779 = vpack.c.b16 %v1709, %v1708
  %v1780 = vpack.c.b16 %v1711, %v1710
  %v1781 = vpack.c.b16 %v1713, %v1712
  %v1782 = vpack.c.b16 %v1715, %v1714
  %v1783 = vpack.c.b16 %v1717, %v1716
  %v1784 = vpack.c.b16 %v1719, %v1718
  %v1785 = vpack.c.b16 %v1721, %v1720
  %v1786 = vpack.c.b16 %v1723, %v1722
  %v1787 = vpack.c.b16 %v1725, %v1724
  %v1788 = vpack.c.b16 %v1727, %v1726
  %v1789 = vpack.c.b16 %v1729, %v1728
  %v1790 = vpack.c.b16 %v1731, %v1730
  %v1791 = vpack.c.b16 %v1733, %v1732
  %v1792 = vpack.c.b16 %v1735, %v1734
  %v1793 = vpack.c.b16 %v1737, %v1736
  %v1794 = vpack.c.b16 %v1739, %v1738
  %v1795 = vpack.c.b16 %v1741, %v1740
  %v1796 = vpack.c.b16 %v1743, %v1742
  %v1797 = vpack.c.b16 %v1745, %v1744
  %v1798 = vpack.c.b16 %v1747, %v1746
  %v1799 = vpack.c.b16 %v1749, %v1748
  %v1800 = vpack.c.b16 %v1751, %v1750
  %v1801 = vpack.c.b16 %v1753, %v1752
  %v1802 = vpack.c.b16 %v1755, %v1754
  %v1803 = vpack.c.b16 %v1757, %v1756
  %v1804 = vpack.c.b16 %v1759, %v1758
  %v1805 = vpack.c.b16 %v1761, %v1760
  %v1806 = vpack.c.b16 %v1763, %v1762
  %v1807 = vpack.c.b16 %v1765, %v1764
  %v1808 = vpack.c.b16 %v1767, %v1766
  %v1809 = vpack.c.b16 %v1769, %v1768
  %v1810 = vpack.c.b16 %v1771, %v1770
  %v1811 = vpack.c.b16 %v1773, %v1772
  %v1812 = vpack.c.b16 %v1775, %v1774
  %v1813 = vpack.c.b16 %v1777, %v1776
  %v1851 = vsel %vm784, %v1527, 0
  %v1854 = vsel %vm784, %v1532, 0
  %v1857 = vsel %vm784, %v1537, 0
  %v1860 = vsel %vm784, %v1542, 0
  %v1863 = vsel %vm784, %v1547, 0
  %v1866 = vsel %vm784, %v1552, 0
  %v1869 = vsel %vm784, %v1557, 0
  %1871 = vmatprep.subr.bf16.mxu0 0
  %1872 = vmatpush1.bf16.msra.mxu0 %v1785
  %1873 = vmatprep.subr.bf16.mxu0 0
  %1874 = vmatpush1.bf16.msra.mxu0 %v1784
  %1875 = vmatprep.subr.bf16.mxu0 0
  %1876 = vmatpush1.bf16.msra.mxu0 %v1783
  %1877 = vmatprep.subr.bf16.mxu0 0
  %1878 = vmatpush1.bf16.msra.mxu0 %v1782
  %1879 = vmatprep.subr.bf16.mxu0 0
  %1880 = vmatpush1.bf16.msra.mxu0 %v1781
  %1881 = vmatprep.subr.bf16.mxu0 0
  %1882 = vmatpush1.bf16.msra.mxu0 %v1780
  %1883 = vmatprep.subr.bf16.mxu0 0
  %1884 = vmatpush1.bf16.msra.mxu0 %v1779
  %1885 = vmatprep.subr.bf16.mxu0 0
  %1886 = vmatpush1.bf16.msra.mxu0 %v1778
  %1887 = vmatprep.subr.bf16.mxu0 0
  %1888 = vmatpush2.bf16.msra.mxu0 %v1793
  %1889 = vmatprep.subr.bf16.mxu0 0
  %1890 = vmatpush2.bf16.msra.mxu0 %v1792
  %1891 = vmatprep.subr.bf16.mxu0 0
  %1892 = vmatpush2.bf16.msra.mxu0 %v1791
  %1893 = vmatprep.subr.bf16.mxu0 0
  %1894 = vmatpush2.bf16.msra.mxu0 %v1790
  %1895 = vmatprep.subr.bf16.mxu0 0
  %1896 = vmatpush2.bf16.msra.mxu0 %v1789
  %1897 = vmatprep.subr.bf16.mxu0 0
  %1898 = vmatpush2.bf16.msra.mxu0 %v1788
  %1899 = vmatprep.subr.bf16.mxu0 0
  %1900 = vmatpush2.bf16.msra.mxu0 %v1787
  %1901 = vmatprep.subr.bf16.mxu0 0
  %1902 = vmatpush2.bf16.msra.mxu0 %v1786
  %1903 = vmatprep.mubr.bf16.mxu0 %v1524
  %1904 = vmatmul.mubr.bf16.gmra.mxu0 %v1523
  %v1905 = vpop.f32.mrf.mxu0
  %v1906 = vadd.f32 %v1633, %v1905
  %v1907 = vpop.f32.mrf.mxu0
  %v1908 = vpop.f32.mrf.mxu0
  %v1909 = vadd.f32 %v1633, %v1908
  %v1910 = vpop.f32.mrf.mxu0
  %1911 = vmatprep.mubr.bf16.mxu0 %v1529
  %1912 = vmatmul.mubr.bf16.gmra.mxu0 %v1528
  %v1913 = vpop.f32.mrf.mxu0
  %v1914 = vadd.f32 %v1633, %v1913
  %v1915 = vpop.f32.mrf.mxu0
  %v1916 = vpop.f32.mrf.mxu0
  %v1917 = vadd.f32 %v1633, %v1916
  %v1918 = vpop.f32.mrf.mxu0
  %1919 = vmatprep.mubr.bf16.mxu0 %v1534
  %1920 = vmatmul.mubr.bf16.gmra.mxu0 %v1533
  %v1921 = vpop.f32.mrf.mxu0
  %v1922 = vadd.f32 %v1633, %v1921
  %v1923 = vpop.f32.mrf.mxu0
  %v1924 = vpop.f32.mrf.mxu0
  %v1925 = vadd.f32 %v1633, %v1924
  %v1926 = vpop.f32.mrf.mxu0
  %1927 = vmatprep.mubr.bf16.mxu0 %v1539
  %1928 = vmatmul.mubr.bf16.gmra.mxu0 %v1538
  %v1929 = vpop.f32.mrf.mxu0
  %v1930 = vadd.f32 %v1633, %v1929
  %v1931 = vpop.f32.mrf.mxu0
  %v1932 = vpop.f32.mrf.mxu0
  %v1933 = vadd.f32 %v1633, %v1932
  %v1934 = vpop.f32.mrf.mxu0
  %1935 = vmatprep.mubr.bf16.mxu0 %v1544
  %1936 = vmatmul.mubr.bf16.gmra.mxu0 %v1543
  %v1937 = vpop.f32.mrf.mxu0
  %v1938 = vadd.f32 %v1633, %v1937
  %v1939 = vpop.f32.mrf.mxu0
  %v1940 = vpop.f32.mrf.mxu0
  %v1941 = vadd.f32 %v1633, %v1940
  %v1942 = vpop.f32.mrf.mxu0
  %1943 = vmatprep.mubr.bf16.mxu0 %v1549
  %1944 = vmatmul.mubr.bf16.gmra.mxu0 %v1548
  %v1945 = vpop.f32.mrf.mxu0
  %v1946 = vadd.f32 %v1633, %v1945
  %v1947 = vpop.f32.mrf.mxu0
  %v1948 = vpop.f32.mrf.mxu0
  %v1949 = vadd.f32 %v1633, %v1948
  %v1950 = vpop.f32.mrf.mxu0
  %1951 = vmatprep.mubr.bf16.mxu0 %v1554
  %1952 = vmatmul.mubr.bf16.gmra.mxu0 %v1553
  %v1953 = vpop.f32.mrf.mxu0
  %v1954 = vadd.f32 %v1633, %v1953
  %v1955 = vpop.f32.mrf.mxu0
  %v1956 = vpop.f32.mrf.mxu0
  %v1957 = vadd.f32 %v1633, %v1956
  %v1958 = vpop.f32.mrf.mxu0
  %1959 = vdwg.mxu0
  %1960 = vmatprep.subr.bf16.mxu0 0
  %1961 = vmatpush1.bf16.msra.mxu0 %v1801
  %1962 = vmatprep.subr.bf16.mxu0 0
  %1963 = vmatpush1.bf16.msra.mxu0 %v1800
  %1964 = vmatprep.subr.bf16.mxu0 0
  %1965 = vmatpush1.bf16.msra.mxu0 %v1799
  %1966 = vmatprep.subr.bf16.mxu0 0
  %1967 = vmatpush1.bf16.msra.mxu0 %v1798
  %1968 = vmatprep.subr.bf16.mxu0 0
  %1969 = vmatpush1.bf16.msra.mxu0 %v1797
  %1970 = vmatprep.subr.bf16.mxu0 0
  %1971 = vmatpush1.bf16.msra.mxu0 %v1796
  %1972 = vmatprep.subr.bf16.mxu0 0
  %1973 = vmatpush1.bf16.msra.mxu0 %v1795
  %1974 = vmatprep.subr.bf16.mxu0 0
  %1975 = vmatpush1.bf16.msra.mxu0 %v1794
  %1976 = vmatprep.subr.bf16.mxu0 0
  %1977 = vmatpush2.bf16.msra.mxu0 %v1809
  %1978 = vmatprep.subr.bf16.mxu0 0
  %1979 = vmatpush2.bf16.msra.mxu0 %v1808
  %1980 = vmatprep.subr.bf16.mxu0 0
  %1981 = vmatpush2.bf16.msra.mxu0 %v1807
  %1982 = vmatprep.subr.bf16.mxu0 0
  %1983 = vmatpush2.bf16.msra.mxu0 %v1806
  %1984 = vmatprep.subr.bf16.mxu0 0
  %1985 = vmatpush2.bf16.msra.mxu0 %v1805
  %1986 = vmatprep.subr.bf16.mxu0 0
  %1987 = vmatpush2.bf16.msra.mxu0 %v1804
  %1988 = vmatprep.subr.bf16.mxu0 0
  %1989 = vmatpush2.bf16.msra.mxu0 %v1803
  %1990 = vmatprep.subr.bf16.mxu0 0
  %1991 = vmatpush2.bf16.msra.mxu0 %v1802
  %1992 = vmatprep.mubr.bf16.mxu0 %v1526
  %1993 = vmatmul.mubr.bf16.gmra.mxu0 %v1525
  %v1994 = vpop.f32.mrf.mxu0
  %v1995 = vadd.f32 %v1906, %v1994
  %v1996 = vpop.f32.mrf.mxu0
  %v1997 = vpop.f32.mrf.mxu0
  %v1998 = vadd.f32 %v1909, %v1997
  %v1999 = vpop.f32.mrf.mxu0
  %2000 = vmatprep.mubr.bf16.mxu0 %v1531
  %2001 = vmatmul.mubr.bf16.gmra.mxu0 %v1530
  %v2002 = vpop.f32.mrf.mxu0
  %v2003 = vadd.f32 %v1914, %v2002
  %v2004 = vpop.f32.mrf.mxu0
  %v2005 = vpop.f32.mrf.mxu0
  %v2006 = vadd.f32 %v1917, %v2005
  %v2007 = vpop.f32.mrf.mxu0
  %2008 = vmatprep.mubr.bf16.mxu0 %v1536
  %2009 = vmatmul.mubr.bf16.gmra.mxu0 %v1535
  %v2010 = vpop.f32.mrf.mxu0
  %v2011 = vadd.f32 %v1922, %v2010
  %v2012 = vpop.f32.mrf.mxu0
  %v2013 = vpop.f32.mrf.mxu0
  %v2014 = vadd.f32 %v1925, %v2013
  %v2015 = vpop.f32.mrf.mxu0
  %2016 = vmatprep.mubr.bf16.mxu0 %v1541
  %2017 = vmatmul.mubr.bf16.gmra.mxu0 %v1540
  %v2018 = vpop.f32.mrf.mxu0
  %v2019 = vadd.f32 %v1930, %v2018
  %v2020 = vpop.f32.mrf.mxu0
  %v2021 = vpop.f32.mrf.mxu0
  %v2022 = vadd.f32 %v1933, %v2021
  %v2023 = vpop.f32.mrf.mxu0
  %2024 = vmatprep.mubr.bf16.mxu0 %v1546
  %2025 = vmatmul.mubr.bf16.gmra.mxu0 %v1545
  %v2026 = vpop.f32.mrf.mxu0
  %v2027 = vadd.f32 %v1938, %v2026
  %v2028 = vpop.f32.mrf.mxu0
  %v2029 = vpop.f32.mrf.mxu0
  %v2030 = vadd.f32 %v1941, %v2029
  %v2031 = vpop.f32.mrf.mxu0
  %2032 = vmatprep.mubr.bf16.mxu0 %v1551
  %2033 = vmatmul.mubr.bf16.gmra.mxu0 %v1550
  %v2034 = vpop.f32.mrf.mxu0
  %v2035 = vadd.f32 %v1946, %v2034
  %v2036 = vpop.f32.mrf.mxu0
  %v2037 = vpop.f32.mrf.mxu0
  %v2038 = vadd.f32 %v1949, %v2037
  %v2039 = vpop.f32.mrf.mxu0
  %2040 = vmatprep.mubr.bf16.mxu0 %v1556
  %2041 = vmatmul.mubr.bf16.gmra.mxu0 %v1555
  %v2042 = vpop.f32.mrf.mxu0
  %v2043 = vadd.f32 %v1954, %v2042
  %v2044 = vpop.f32.mrf.mxu0
  %v2045 = vpop.f32.mrf.mxu0
  %v2046 = vadd.f32 %v1957, %v2045
  %v2047 = vpop.f32.mrf.mxu0
  %2048 = vdwg.mxu0
  %2049 = vmatprep.subr.bf16.mxu0 0
  %2050 = vmatpush1.bf16.msra.mxu0 0
  %2051 = vmatprep.subr.bf16.mxu0 0
  %2052 = vmatpush1.bf16.msra.mxu0 0
  %2053 = vmatprep.subr.bf16.mxu0 0
  %2054 = vmatpush1.bf16.msra.mxu0 0
  %2055 = vmatprep.subr.bf16.mxu0 0
  %2056 = vmatpush1.bf16.msra.mxu0 0
  %2057 = vmatprep.subr.bf16.mxu0 0
  %2058 = vmatpush1.bf16.msra.mxu0 %v1813
  %2059 = vmatprep.subr.bf16.mxu0 0
  %2060 = vmatpush1.bf16.msra.mxu0 %v1812
  %2061 = vmatprep.subr.bf16.mxu0 0
  %2062 = vmatpush1.bf16.msra.mxu0 %v1811
  %2063 = vmatprep.subr.bf16.mxu0 0
  %2064 = vmatpush1.bf16.msra.mxu0 %v1810
  %2065 = vmatprep.subr.bf16.mxu0 0
  %2066 = vmatpush2.bf16.msra.mxu0 0
  %2067 = vmatprep.subr.bf16.mxu0 0
  %2068 = vmatpush2.bf16.msra.mxu0 0
  %2069 = vmatprep.subr.bf16.mxu0 0
  %2070 = vmatpush2.bf16.msra.mxu0 0
  %2071 = vmatprep.subr.bf16.mxu0 0
  %2072 = vmatpush2.bf16.msra.mxu0 0
  %2073 = vmatprep.subr.bf16.mxu0 0
  %2074 = vmatpush2.bf16.msra.mxu0 0
  %2075 = vmatprep.subr.bf16.mxu0 0
  %2076 = vmatpush2.bf16.msra.mxu0 0
  %2077 = vmatprep.subr.bf16.mxu0 0
  %2078 = vmatpush2.bf16.msra.mxu0 0
  %2079 = vmatprep.subr.bf16.mxu0 0
  %2080 = vmatpush2.bf16.msra.mxu0 0
  %2081 = vmatprep.mubr.bf16.mxu0 0
  %2082 = vmatmul.mubr.bf16.gmra.mxu0 %v1851
  %v2083 = vpop.f32.mrf.mxu0
  %v2084 = vadd.f32 %v1995, %v2083
  %v2085 = vpop.f32.mrf.mxu0
  %v2086 = vpop.f32.mrf.mxu0
  %v2087 = vadd.f32 %v1998, %v2086
  %v2088 = vpop.f32.mrf.mxu0
  %2089 = vmatprep.mubr.bf16.mxu0 0
  %2090 = vmatmul.mubr.bf16.gmra.mxu0 %v1854
  %v2091 = vpop.f32.mrf.mxu0
  %v2092 = vadd.f32 %v2003, %v2091
  %v2093 = vpop.f32.mrf.mxu0
  %v2094 = vpop.f32.mrf.mxu0
  %v2095 = vadd.f32 %v2006, %v2094
  %v2096 = vpop.f32.mrf.mxu0
  %2097 = vmatprep.mubr.bf16.mxu0 0
  %2098 = vmatmul.mubr.bf16.gmra.mxu0 %v1857
  %v2099 = vpop.f32.mrf.mxu0
  %v2100 = vadd.f32 %v2011, %v2099
  %v2101 = vpop.f32.mrf.mxu0
  %v2102 = vpop.f32.mrf.mxu0
  %v2103 = vadd.f32 %v2014, %v2102
  %v2104 = vpop.f32.mrf.mxu0
  %2105 = vmatprep.mubr.bf16.mxu0 0
  %2106 = vmatmul.mubr.bf16.gmra.mxu0 %v1860
  %v2107 = vpop.f32.mrf.mxu0
  %v2108 = vadd.f32 %v2019, %v2107
  %v2109 = vpop.f32.mrf.mxu0
  %v2110 = vpop.f32.mrf.mxu0
  %v2111 = vadd.f32 %v2022, %v2110
  %v2112 = vpop.f32.mrf.mxu0
  %2113 = vmatprep.mubr.bf16.mxu0 0
  %2114 = vmatmul.mubr.bf16.gmra.mxu0 %v1863
  %v2115 = vpop.f32.mrf.mxu0
  %v2116 = vadd.f32 %v2027, %v2115
  %v2117 = vpop.f32.mrf.mxu0
  %v2118 = vpop.f32.mrf.mxu0
  %v2119 = vadd.f32 %v2030, %v2118
  %v2120 = vpop.f32.mrf.mxu0
  %2121 = vmatprep.mubr.bf16.mxu0 0
  %2122 = vmatmul.mubr.bf16.gmra.mxu0 %v1866
  %v2123 = vpop.f32.mrf.mxu0
  %v2124 = vadd.f32 %v2035, %v2123
  %v2125 = vpop.f32.mrf.mxu0
  %v2126 = vpop.f32.mrf.mxu0
  %v2127 = vadd.f32 %v2038, %v2126
  %v2128 = vpop.f32.mrf.mxu0
  %2129 = vmatprep.mubr.bf16.mxu0 0
  %2130 = vmatmul.mubr.bf16.gmra.mxu0 %v1869
  %v2131 = vpop.f32.mrf.mxu0
  %v2132 = vadd.f32 %v2043, %v2131
  %v2133 = vpop.f32.mrf.mxu0
  %v2134 = vpop.f32.mrf.mxu0
  %v2135 = vadd.f32 %v2046, %v2134
  %v2136 = vpop.f32.mrf.mxu0
  %2137 = vdwg.mxu0
  %v2138 = vmax.f32 %v2084, 0.0
  %v2139 = vmax.f32 %v2087, 0.0
  %v2140 = vmax.f32 %v2092, 0.0
  %v2141 = vmax.f32 %v2095, 0.0
  %v2142 = vmax.f32 %v2100, 0.0
  %v2143 = vmax.f32 %v2103, 0.0
  %v2144 = vmax.f32 %v2108, 0.0
  %v2145 = vmax.f32 %v2111, 0.0
  %v2146 = vmax.f32 %v2116, 0.0
  %v2147 = vmax.f32 %v2119, 0.0
  %v2148 = vmax.f32 %v2124, 0.0
  %v2149 = vmax.f32 %v2127, 0.0
  %v2150 = vmax.f32 %v2132, 0.0
  %v2151 = vmax.f32 %v2135, 0.0
  %v2155 = vrot.slane %v2140, 2
  %v2156 = vrot.slane %v2141, 2
  %v2157 = vsel %vm288, %v2155, %v2156
  %v2158 = vrot.slane %v2142, 2
  %v2159 = vsel %vm288, %v2156, %v2158
  %v2163 = vmax.f32 %v2138, %v2157
  %v2164 = vmax.f32 %v2139, %v2159
  %v2165 = vmax.f32 %v2140, %v2158
  %v2168 = vrot.slane %v2142, 4
  %v2169 = vrot.slane %v2143, 4
  %v2170 = vsel %vm850, %v2168, %v2169
  %v2171 = vrot.slane %v2144, 4
  %v2172 = vsel %vm850, %v2169, %v2171
  %v2176 = vmax.f32 %v2163, %v2170
  %v2177 = vmax.f32 %v2164, %v2172
  %v2178 = vmax.f32 %v2165, %v2171
  %v2179 = vlaneseq
  %v2180 = vshrl.u32 %v2179, 7
  %v2181 = vsub.s32 0, %v2180
  %v2182 = vrot.slane %v25, %v2181
  %v2183 = vmul.f32 %v2176, %v2182
  %v2184 = vmul.f32 %v2177, %v2182
  %v2185 = vmul.f32 %v2178, %v2182
  %v2186 = vlaneseq
  %v2187 = vshrl.u32 %v2186, 7
  %v2188 = vsub.s32 0, %v2187
  %v2189 = vrot.slane %v26, %v2188
  %v2190 = vadd.f32 %v2183, %v2189
  %v2191 = vadd.f32 %v2184, %v2189
  %v2192 = vadd.f32 %v2185, %v2189
  %v2193 = vsel %vm718, %v2192, 0.0
  %2194 = vxpose.xlu0.b32.start [1/16] %v2190, 128
  %2195 = vxpose.xlu0.b32.cont [2/16] %v2191, 128
  %2196 = vxpose.xlu0.b32.cont [3/16] %v2193, 128
  %2197 = vxpose.xlu0.b32.cont [4/16] 0.0, 128
  %2198 = vxpose.xlu0.b32.cont [5/16] 0.0, 128
  %2199 = vxpose.xlu0.b32.cont [6/16] 0.0, 128
  %2200 = vxpose.xlu0.b32.cont [7/16] 0.0, 128
  %2201 = vxpose.xlu0.b32.cont [8/16] 0.0, 128
  %2202 = vxpose.xlu0.b32.cont [9/16] 0.0, 128
  %2203 = vxpose.xlu0.b32.cont [10/16] 0.0, 128
  %2204 = vxpose.xlu0.b32.cont [11/16] 0.0, 128
  %2205 = vxpose.xlu0.b32.cont [12/16] 0.0, 128
  %2206 = vxpose.xlu0.b32.cont [13/16] 0.0, 128
  %2207 = vxpose.xlu0.b32.cont [14/16] 0.0, 128
  %2208 = vxpose.xlu0.b32.cont [15/16] 0.0, 128
  %2209 = vxpose.xlu0.b32.end [16/16] 0.0, 128
  %v2210 = vpop.trf.xlu0
  %v2211 = vpop.trf.xlu0
  %v2212 = vpop.trf.xlu0
  %v2213 = vpop.trf.xlu0
  %v2214 = vpop.trf.xlu0
  %v2215 = vpop.trf.xlu0
  %v2216 = vpop.trf.xlu0
  %v2217 = vpop.trf.xlu0
  %v2218 = vpop.trf.xlu0
  %v2219 = vpop.trf.xlu0
  %v2220 = vpop.trf.xlu0
  %v2221 = vpop.trf.xlu0
  %v2222 = vpop.trf.xlu0
  %v2223 = vpop.trf.xlu0
  %v2224 = vpop.trf.xlu0
  %v2225 = vpop.trf.xlu0
  %v2226 = vpack.c.bf16 %v2211, %v2210
  %v2227 = vpack.c.bf16 %v2213, %v2212
  %v2228 = vpack.c.bf16 %v2215, %v2214
  %v2229 = vpack.c.bf16 %v2217, %v2216
  %v2230 = vpack.c.bf16 %v2219, %v2218
  %v2231 = vpack.c.bf16 %v2221, %v2220
  %v2232 = vpack.c.bf16 %v2223, %v2222
  %v2233 = vpack.c.bf16 %v2225, %v2224
  %v2242 = vunpack.c.l.b16 %v2226
  %v2243 = vunpack.c.h.b16 %v2226
  %v2244 = vunpack.c.l.b16 %v2227
  %v2245 = vunpack.c.h.b16 %v2227
  %v2246 = vunpack.c.l.b16 %v2228
  %v2247 = vunpack.c.h.b16 %v2228
  %v2248 = vunpack.c.l.b16 %v2229
  %v2249 = vunpack.c.h.b16 %v2229
  %v2250 = vunpack.c.l.b16 %v2230
  %v2251 = vunpack.c.h.b16 %v2230
  %v2252 = vunpack.c.l.b16 %v2231
  %v2253 = vunpack.c.h.b16 %v2231
  %v2254 = vunpack.c.l.b16 %v2232
  %v2255 = vunpack.c.h.b16 %v2232
  %v2256 = vunpack.c.l.b16 %v2233
  %v2257 = vunpack.c.h.b16 %v2233
  %v2258 = vpack.c.b16 %v2242, %v2242
  %v2259 = vpack.c.b16 %v2243, %v2243
  %v2260 = vpack.c.b16 %v2244, %v2244
  %v2261 = vpack.c.b16 %v2245, %v2245
  %v2262 = vpack.c.b16 %v2246, %v2246
  %v2263 = vpack.c.b16 %v2247, %v2247
  %v2264 = vpack.c.b16 %v2248, %v2248
  %v2265 = vpack.c.b16 %v2249, %v2249
  %v2266 = vpack.c.b16 %v2250, %v2250
  %v2267 = vpack.c.b16 %v2251, %v2251
  %v2268 = vpack.c.b16 %v2252, %v2252
  %v2269 = vpack.c.b16 %v2253, %v2253
  %v2270 = vpack.c.b16 %v2254, %v2254
  %v2271 = vpack.c.b16 %v2255, %v2255
  %v2272 = vpack.c.b16 %v2256, %v2256
  %v2273 = vpack.c.b16 %v2257, %v2257
  %vm2290 = vcmask 142336
  %2291 = vst.msk [vmem:[%s5] sm:$0xf] %vm2290, %v2258
  %2292 = vst.msk [vmem:[%s5 + $0x4] sm:$0xf] %vm2290, %v2259
  %2293 = vst.msk [vmem:[%s5 + $0x8] sm:$0xf] %vm2290, %v2260
  %2294 = vst.msk [vmem:[%s5 + $0xc] sm:$0xf] %vm2290, %v2261
  %2295 = vst.msk [vmem:[%s5 + $0x10] sm:$0xf] %vm2290, %v2262
  %2296 = vst.msk [vmem:[%s5 + $0x14] sm:$0xf] %vm2290, %v2263
  %2297 = vst.msk [vmem:[%s5 + $0x18] sm:$0xf] %vm2290, %v2264
  %2298 = vst.msk [vmem:[%s5 + $0x1c] sm:$0xf] %vm2290, %v2265
  %2299 = vst.msk [vmem:[%s5 + $0x20] sm:$0xf] %vm2290, %v2266
  %2300 = vst.msk [vmem:[%s5 + $0x24] sm:$0xf] %vm2290, %v2267
  %2301 = vst.msk [vmem:[%s5 + $0x28] sm:$0xf] %vm2290, %v2268
  %2302 = vst.msk [vmem:[%s5 + $0x2c] sm:$0xf] %vm2290, %v2269
  %2303 = vst.msk [vmem:[%s5 + $0x30] sm:$0xf] %vm2290, %v2270
  %2304 = vst.msk [vmem:[%s5 + $0x34] sm:$0xf] %vm2290, %v2271
  %2305 = vst.msk [vmem:[%s5 + $0x38] sm:$0xf] %vm2290, %v2272
  %2306 = vst.msk [vmem:[%s5 + $0x3c] sm:$0xf] %vm2290, %v2273
  %v2310 = vrot.slane %v2147, 2
  %v2311 = vrot.slane %v2148, 2
  %v2312 = vsel %vm288, %v2310, %v2311
  %v2313 = vrot.slane %v2149, 2
  %v2314 = vsel %vm288, %v2311, %v2313
  %v2318 = vmax.f32 %v2144, %v2310
  %v2319 = vmax.f32 %v2145, %v2312
  %v2320 = vmax.f32 %v2146, %v2314
  %v2323 = vrot.slane %v2149, 4
  %v2324 = vrot.slane %v2150, 4
  %v2325 = vsel %vm850, %v2323, %v2324
  %v2326 = vrot.slane %v2151, 4
  %v2327 = vsel %vm850, %v2324, %v2326
  %v2331 = vmax.f32 %v2318, %v2323
  %v2332 = vmax.f32 %v2319, %v2325
  %v2333 = vmax.f32 %v2320, %v2327
  %v2334 = vmul.f32 %v2331, %v2182
  %v2335 = vmul.f32 %v2332, %v2182
  %v2336 = vmul.f32 %v2333, %v2182
  %v2337 = vadd.f32 %v2334, %v2189
  %v2338 = vadd.f32 %v2335, %v2189
  %v2339 = vadd.f32 %v2336, %v2189
  %v2343 = vrot.slane %v2337, 6
  %v2344 = vrot.slane %v2338, 6
  %v2345 = vsel %vm718, %v2343, %v2344
  %v2346 = vrot.slane %v2339, 6
  %v2347 = vsel %vm718, %v2344, %v2346
  %v2351 = vsel %vm718, %v2346, 0.0
  %2352 = vxpose.xlu0.b32.start [1/16] %v2345, 128
  %2353 = vxpose.xlu0.b32.cont [2/16] %v2347, 128
  %2354 = vxpose.xlu0.b32.cont [3/16] %v2351, 128
  %2355 = vxpose.xlu0.b32.cont [4/16] 0.0, 128
  %2356 = vxpose.xlu0.b32.cont [5/16] 0.0, 128
  %2357 = vxpose.xlu0.b32.cont [6/16] 0.0, 128
  %2358 = vxpose.xlu0.b32.cont [7/16] 0.0, 128
  %2359 = vxpose.xlu0.b32.cont [8/16] 0.0, 128
  %2360 = vxpose.xlu0.b32.cont [9/16] 0.0, 128
  %2361 = vxpose.xlu0.b32.cont [10/16] 0.0, 128
  %2362 = vxpose.xlu0.b32.cont [11/16] 0.0, 128
  %2363 = vxpose.xlu0.b32.cont [12/16] 0.0, 128
  %2364 = vxpose.xlu0.b32.cont [13/16] 0.0, 128
  %2365 = vxpose.xlu0.b32.cont [14/16] 0.0, 128
  %2366 = vxpose.xlu0.b32.cont [15/16] 0.0, 128
  %2367 = vxpose.xlu0.b32.end [16/16] 0.0, 128
  %v2368 = vpop.trf.xlu0
  %v2369 = vpop.trf.xlu0
  %v2370 = vpop.trf.xlu0
  %v2371 = vpop.trf.xlu0
  %v2372 = vpop.trf.xlu0
  %v2373 = vpop.trf.xlu0
  %v2374 = vpop.trf.xlu0
  %v2375 = vpop.trf.xlu0
  %v2376 = vpop.trf.xlu0
  %v2377 = vpop.trf.xlu0
  %v2378 = vpop.trf.xlu0
  %v2379 = vpop.trf.xlu0
  %v2380 = vpop.trf.xlu0
  %v2381 = vpop.trf.xlu0
  %v2382 = vpop.trf.xlu0
  %v2383 = vpop.trf.xlu0
  %v2384 = vpack.c.bf16 %v2369, %v2368
  %v2385 = vpack.c.bf16 %v2371, %v2370
  %v2386 = vpack.c.bf16 %v2373, %v2372
  %v2387 = vpack.c.bf16 %v2375, %v2374
  %v2388 = vpack.c.bf16 %v2377, %v2376
  %v2389 = vpack.c.bf16 %v2379, %v2378
  %v2390 = vpack.c.bf16 %v2381, %v2380
  %v2391 = vpack.c.bf16 %v2383, %v2382
  %v2400 = vunpack.c.l.b16 %v2384
  %v2401 = vunpack.c.h.b16 %v2384
  %v2402 = vunpack.c.l.b16 %v2385
  %v2403 = vunpack.c.h.b16 %v2385
  %v2404 = vunpack.c.l.b16 %v2386
  %v2405 = vunpack.c.h.b16 %v2386
  %v2406 = vunpack.c.l.b16 %v2387
  %v2407 = vunpack.c.h.b16 %v2387
  %v2408 = vunpack.c.l.b16 %v2388
  %v2409 = vunpack.c.h.b16 %v2388
  %v2410 = vunpack.c.l.b16 %v2389
  %v2411 = vunpack.c.h.b16 %v2389
  %v2412 = vunpack.c.l.b16 %v2390
  %v2413 = vunpack.c.h.b16 %v2390
  %v2414 = vunpack.c.l.b16 %v2391
  %v2415 = vunpack.c.h.b16 %v2391
  %v2416 = vpack.c.b16 %v2400, %v2400
  %v2417 = vpack.c.b16 %v2401, %v2401
  %v2418 = vpack.c.b16 %v2402, %v2402
  %v2419 = vpack.c.b16 %v2403, %v2403
  %v2420 = vpack.c.b16 %v2404, %v2404
  %v2421 = vpack.c.b16 %v2405, %v2405
  %v2422 = vpack.c.b16 %v2406, %v2406
  %v2423 = vpack.c.b16 %v2407, %v2407
  %v2424 = vpack.c.b16 %v2408, %v2408
  %v2425 = vpack.c.b16 %v2409, %v2409
  %v2426 = vpack.c.b16 %v2410, %v2410
  %v2427 = vpack.c.b16 %v2411, %v2411
  %v2428 = vpack.c.b16 %v2412, %v2412
  %v2429 = vpack.c.b16 %v2413, %v2413
  %v2430 = vpack.c.b16 %v2414, %v2414
  %v2431 = vpack.c.b16 %v2415, %v2415
  %s2448 = scalar_lea.vmem %s5, 64
  %2449 = vst.msk [vmem:[%s2448] sm:$0xf] %vm2290, %v2416
  %2450 = vst.msk [vmem:[%s2448 + $0x4] sm:$0xf] %vm2290, %v2417
  %2451 = vst.msk [vmem:[%s2448 + $0x8] sm:$0xf] %vm2290, %v2418
  %2452 = vst.msk [vmem:[%s2448 + $0xc] sm:$0xf] %vm2290, %v2419
  %2453 = vst.msk [vmem:[%s2448 + $0x10] sm:$0xf] %vm2290, %v2420
  %2454 = vst.msk [vmem:[%s2448 + $0x14] sm:$0xf] %vm2290, %v2421
  %2455 = vst.msk [vmem:[%s2448 + $0x18] sm:$0xf] %vm2290, %v2422
  %2456 = vst.msk [vmem:[%s2448 + $0x1c] sm:$0xf] %vm2290, %v2423
  %2457 = vst.msk [vmem:[%s2448 + $0x20] sm:$0xf] %vm2290, %v2424
  %2458 = vst.msk [vmem:[%s2448 + $0x24] sm:$0xf] %vm2290, %v2425
  %2459 = vst.msk [vmem:[%s2448 + $0x28] sm:$0xf] %vm2290, %v2426
  %2460 = vst.msk [vmem:[%s2448 + $0x2c] sm:$0xf] %vm2290, %v2427
  %2461 = vst.msk [vmem:[%s2448 + $0x30] sm:$0xf] %vm2290, %v2428
  %2462 = vst.msk [vmem:[%s2448 + $0x34] sm:$0xf] %vm2290, %v2429
  %2463 = vst.msk [vmem:[%s2448 + $0x38] sm:$0xf] %vm2290, %v2430
  %2464 = vst.msk [vmem:[%s2448 + $0x3c] sm:$0xf] %vm2290, %v2431
  // Predicated region
  $region22: #{cnn_lstm_forward.3} parent=0 // pred_check
    _
  $region23: #{cnn_lstm_forward.3} parent=0 // pred_check_branch
    %2466 = sbr.rel (0) target = $region25
  $region24: #{cnn_lstm_forward.3} parent=0 // pred_region
    _
  $region25: #{cnn_lstm_forward.3} parent=0 // pred_fallthru
    _
  // Predicated region
  $region26: #{cnn_lstm_forward.3} parent=0 // pred_check
    _
  $region27: #{cnn_lstm_forward.3} parent=0 // pred_check_branch
    %2468 = sbr.rel (0) target = $region29
  $region28: #{cnn_lstm_forward.3} parent=0 // pred_region
    _
  $region29: #{cnn_lstm_forward.3} parent=0 // pred_fallthru
    _

// kernel: cnn_lstm_forward.4
$region0: #{cnn_lstm_forward.4}
  #allocation0 [shape = 'u32[]', space=smem, size = 0x4, offset = 0x4, fixed_abs, tag = 'smem constant byte address 0x4 - core index']
  #allocation1 [shape = 'u32[144,128]{1,0:T(1,128)}', space=vmem, size = 0x12000, scoped, tag = 'internal scratch']
  %s0 = inlined_call_operand.vmem [shape: bf16[2,18,128], index: 0, kind: input, shape index: {}]
  %s1 = inlined_call_operand.vmem [shape: bf16[128,128], index: 1, kind: input, shape index: {}]
  %s2 = inlined_call_operand.vmem [shape: f32[32,128], index: 2, kind: input, shape index: {}]
  %s3 = inlined_call_operand.vmem [shape: f32[1,128], index: 3, kind: input, shape index: {}]
  %s4 = inlined_call_operand.vmem [shape: f32[64,128], index: 4, kind: input, shape index: {}]
  %s5 = inlined_call_operand.vmem [shape: f32[1,128], index: 5, kind: input, shape index: {}]
  %s6 = inlined_call_operand.vmem [shape: f32[2,18,32], index: 6, kind: output, shape index: {}]
  %s7 = sld [smem:[#allocation0]]
  $region34: #{cnn_lstm_forward.4} parent=0
    _
  %s9 = ssub.s32 1, %s7
  %s10 = scalar_select 0, %s9, %s7
  // Predicated region
  $region2: #{cnn_lstm_forward.4} parent=0 // pred_check
    _
  $region3: #{cnn_lstm_forward.4} parent=0 // pred_check_branch
    %12 = sbr.rel (0) target = $region5
  $region4: #{cnn_lstm_forward.4} parent=0 // pred_region
    _
  $region5: #{cnn_lstm_forward.4} parent=0 // pred_fallthru
    _
  // Predicated region
  $region6: #{cnn_lstm_forward.4} parent=0 // pred_check
    _
  $region7: #{cnn_lstm_forward.4} parent=0 // pred_check_branch
    %14 = sbr.rel (0) target = $region9
  $region8: #{cnn_lstm_forward.4} parent=0 // pred_region
    _
  $region9: #{cnn_lstm_forward.4} parent=0 // pred_fallthru
    _
  // Predicated region
  $region10: #{cnn_lstm_forward.4} parent=0 // pred_check
    _
  $region11: #{cnn_lstm_forward.4} parent=0 // pred_check_branch
    %16 = sbr.rel (0) target = $region13
  $region12: #{cnn_lstm_forward.4} parent=0 // pred_region
    _
  $region13: #{cnn_lstm_forward.4} parent=0 // pred_fallthru
    _
  // Predicated region
  $region14: #{cnn_lstm_forward.4} parent=0 // pred_check
    _
  $region15: #{cnn_lstm_forward.4} parent=0 // pred_check_branch
    %18 = sbr.rel (0) target = $region17
  $region16: #{cnn_lstm_forward.4} parent=0 // pred_region
    _
  $region17: #{cnn_lstm_forward.4} parent=0 // pred_fallthru
    _
  // Predicated region
  $region18: #{cnn_lstm_forward.4} parent=0 // pred_check
    _
  $region19: #{cnn_lstm_forward.4} parent=0 // pred_check_branch
    %20 = sbr.rel (0) target = $region21
  $region20: #{cnn_lstm_forward.4} parent=0 // pred_region
    _
  $region21: #{cnn_lstm_forward.4} parent=0 // pred_fallthru
    _
  // Predicated region
  $region22: #{cnn_lstm_forward.4} parent=0 // pred_check
    _
  $region23: #{cnn_lstm_forward.4} parent=0 // pred_check_branch
    %22 = sbr.rel (0) target = $region25
  $region24: #{cnn_lstm_forward.4} parent=0 // pred_region
    _
  $region25: #{cnn_lstm_forward.4} parent=0 // pred_fallthru
    _
  %v24 = vld [vmem:[%s1] sm:$0xf]
  %v25 = vld [vmem:[%s1 + $0x4] sm:$0xf]
  %v26 = vld [vmem:[%s1 + $0x8] sm:$0xf]
  %v27 = vld [vmem:[%s1 + $0xc] sm:$0xf]
  %v28 = vld [vmem:[%s1 + $0x10] sm:$0xf]
  %v29 = vld [vmem:[%s1 + $0x14] sm:$0xf]
  %v30 = vld [vmem:[%s1 + $0x18] sm:$0xf]
  %v31 = vld [vmem:[%s1 + $0x1c] sm:$0xf]
  %v32 = vld [vmem:[%s1 + $0x20] sm:$0xf]
  %v33 = vld [vmem:[%s1 + $0x24] sm:$0xf]
  %v34 = vld [vmem:[%s1 + $0x28] sm:$0xf]
  %v35 = vld [vmem:[%s1 + $0x2c] sm:$0xf]
  %v36 = vld [vmem:[%s1 + $0x30] sm:$0xf]
  %v37 = vld [vmem:[%s1 + $0x34] sm:$0xf]
  %v38 = vld [vmem:[%s1 + $0x38] sm:$0xf]
  %v39 = vld [vmem:[%s1 + $0x3c] sm:$0xf]
  %v40 = vld [vmem:[%s2] sm:$0xff]
  %v41 = vld [vmem:[%s2 + $0x8] sm:$0xff]
  %v42 = vld [vmem:[%s2 + $0x10] sm:$0xff]
  %v43 = vld [vmem:[%s2 + $0x18] sm:$0xff]
  %v44 = vld [vmem:[%s3] sm:$0x1]
  %v45 = vld [vmem:[%s4] sm:$0xff]
  %v46 = vld [vmem:[%s4 + $0x8] sm:$0xff]
  %v47 = vld [vmem:[%s4 + $0x10] sm:$0xff]
  %v48 = vld [vmem:[%s4 + $0x18] sm:$0xff]
  %v49 = vld [vmem:[%s4 + $0x20] sm:$0xff]
  %v50 = vld [vmem:[%s4 + $0x28] sm:$0xff]
  %v51 = vld [vmem:[%s4 + $0x30] sm:$0xff]
  %v52 = vld [vmem:[%s4 + $0x38] sm:$0xff]
  %v53 = vld [vmem:[%s5] sm:$0x1]
  %v54 = vld [vmem:[%s0] sm:$0xf]
  %v55 = vld [vmem:[%s0 + $0x4] sm:$0xf]
  %v56 = vld [vmem:[%s0 + $0x8] sm:$0x1]
  %v58 = vlaneseq
  %v59 = vshrl.u32 %v58, 7
  %v60 = vsub.s32 0, %v59
  %v61 = vrot.slane %v44, %v60
  %v66 = vunpack.c.l.b16 %v54
  %v67 = vunpack.c.l.b16 %v55
  %v68 = vunpack.c.l.b16 %v56
  %v69 = vpack.c.b16 %v67, %v66
  %v70 = vpack.c.b16 %v68, %v68
  %v89 = vunpack.c.l.b16 %v24
  %v90 = vunpack.c.l.b16 %v25
  %v91 = vunpack.c.l.b16 %v26
  %v92 = vunpack.c.l.b16 %v27
  %v93 = vunpack.c.l.b16 %v28
  %v94 = vunpack.c.l.b16 %v29
  %v95 = vunpack.c.l.b16 %v30
  %v96 = vunpack.c.l.b16 %v31
  %v97 = vunpack.c.l.b16 %v32
  %v98 = vunpack.c.l.b16 %v33
  %v99 = vunpack.c.l.b16 %v34
  %v100 = vunpack.c.l.b16 %v35
  %v101 = vunpack.c.l.b16 %v36
  %v102 = vunpack.c.l.b16 %v37
  %v103 = vunpack.c.l.b16 %v38
  %v104 = vunpack.c.l.b16 %v39
  %v105 = vpack.c.b16 %v90, %v89
  %v106 = vpack.c.b16 %v92, %v91
  %v107 = vpack.c.b16 %v94, %v93
  %v108 = vpack.c.b16 %v96, %v95
  %v109 = vpack.c.b16 %v98, %v97
  %v110 = vpack.c.b16 %v100, %v99
  %v111 = vpack.c.b16 %v102, %v101
  %v112 = vpack.c.b16 %v104, %v103
  %121 = vmatprep.subr.bf16.mxu0 0
  %122 = vmatpush1.bf16.msra.mxu0 %v112
  %123 = vmatprep.subr.bf16.mxu0 0
  %124 = vmatpush1.bf16.msra.mxu0 %v111
  %125 = vmatprep.subr.bf16.mxu0 0
  %126 = vmatpush1.bf16.msra.mxu0 %v110
  %127 = vmatprep.subr.bf16.mxu0 0
  %128 = vmatpush1.bf16.msra.mxu0 %v109
  %129 = vmatprep.subr.bf16.mxu0 0
  %130 = vmatpush1.bf16.msra.mxu0 %v108
  %131 = vmatprep.subr.bf16.mxu0 0
  %132 = vmatpush1.bf16.msra.mxu0 %v107
  %133 = vmatprep.subr.bf16.mxu0 0
  %134 = vmatpush1.bf16.msra.mxu0 %v106
  %135 = vmatprep.subr.bf16.mxu0 0
  %136 = vmatpush1.bf16.msra.mxu0 %v105
  %137 = vmatprep.subr.bf16.mxu0 0
  %138 = vmatpush2.bf16.msra.mxu0 0
  %139 = vmatprep.subr.bf16.mxu0 0
  %140 = vmatpush2.bf16.msra.mxu0 0
  %141 = vmatprep.subr.bf16.mxu0 0
  %142 = vmatpush2.bf16.msra.mxu0 0
  %143 = vmatprep.subr.bf16.mxu0 0
  %144 = vmatpush2.bf16.msra.mxu0 0
  %145 = vmatprep.subr.bf16.mxu0 0
  %146 = vmatpush2.bf16.msra.mxu0 0
  %147 = vmatprep.subr.bf16.mxu0 0
  %148 = vmatpush2.bf16.msra.mxu0 0
  %149 = vmatprep.subr.bf16.mxu0 0
  %150 = vmatpush2.bf16.msra.mxu0 0
  %151 = vmatprep.subr.bf16.mxu0 0
  %152 = vmatpush2.bf16.msra.mxu0 0
  %153 = vmatprep.mubr.bf16.mxu0 0
  %154 = vmatmul.mubr.bf16.gmra.mxu0 %v69
  %v155 = vpop.f32.mrf.mxu0
  %v156 = vadd.f32 %v61, %v155
  %v157 = vpop.f32.mrf.mxu0
  %v158 = vpop.f32.mrf.mxu0
  %v159 = vadd.f32 %v61, %v158
  %v160 = vpop.f32.mrf.mxu0
  %161 = vmatprep.mubr.bf16.mxu0 0
  %162 = vmatmul.mubr.bf16.gmra.mxu0 %v70
  %v163 = vpop.f32.mrf.mxu0
  %v164 = vadd.f32 %v61, %v163
  %v165 = vpop.f32.mrf.mxu0
  %v166 = vpop.f32.mrf.mxu0
  %v167 = vpop.f32.mrf.mxu0
  %168 = vdwg.mxu0
  %s169 = scalar_lea.vmem %s0, 12
  %v170 = vld [vmem:[%s169] sm:$0xf]
  %v171 = vld [vmem:[%s169 + $0x4] sm:$0xf]
  %v172 = vld [vmem:[%s169 + $0x8] sm:$0x1]
  %v176 = vunpack.c.l.b16 %v170
  %v177 = vunpack.c.l.b16 %v171
  %v178 = vunpack.c.l.b16 %v172
  %v179 = vpack.c.b16 %v177, %v176
  %v180 = vpack.c.b16 %v178, %v178
  %183 = vmatprep.subr.bf16.mxu0 0
  %184 = vmatpush1.bf16.msra.mxu0 %v112
  %185 = vmatprep.subr.bf16.mxu0 0
  %186 = vmatpush1.bf16.msra.mxu0 %v111
  %187 = vmatprep.subr.bf16.mxu0 0
  %188 = vmatpush1.bf16.msra.mxu0 %v110
  %189 = vmatprep.subr.bf16.mxu0 0
  %190 = vmatpush1.bf16.msra.mxu0 %v109
  %191 = vmatprep.subr.bf16.mxu0 0
  %192 = vmatpush1.bf16.msra.mxu0 %v108
  %193 = vmatprep.subr.bf16.mxu0 0
  %194 = vmatpush1.bf16.msra.mxu0 %v107
  %195 = vmatprep.subr.bf16.mxu0 0
  %196 = vmatpush1.bf16.msra.mxu0 %v106
  %197 = vmatprep.subr.bf16.mxu0 0
  %198 = vmatpush1.bf16.msra.mxu0 %v105
  %199 = vmatprep.subr.bf16.mxu0 0
  %200 = vmatpush2.bf16.msra.mxu0 0
  %201 = vmatprep.subr.bf16.mxu0 0
  %202 = vmatpush2.bf16.msra.mxu0 0
  %203 = vmatprep.subr.bf16.mxu0 0
  %204 = vmatpush2.bf16.msra.mxu0 0
  %205 = vmatprep.subr.bf16.mxu0 0
  %206 = vmatpush2.bf16.msra.mxu0 0
  %207 = vmatprep.subr.bf16.mxu0 0
  %208 = vmatpush2.bf16.msra.mxu0 0
  %209 = vmatprep.subr.bf16.mxu0 0
  %210 = vmatpush2.bf16.msra.mxu0 0
  %211 = vmatprep.subr.bf16.mxu0 0
  %212 = vmatpush2.bf16.msra.mxu0 0
  %213 = vmatprep.subr.bf16.mxu0 0
  %214 = vmatpush2.bf16.msra.mxu0 0
  %215 = vmatprep.mubr.bf16.mxu0 0
  %216 = vmatmul.mubr.bf16.gmra.mxu0 %v179
  %v217 = vpop.f32.mrf.mxu0
  %v218 = vadd.f32 %v61, %v217
  %v219 = vpop.f32.mrf.mxu0
  %v220 = vpop.f32.mrf.mxu0
  %v221 = vadd.f32 %v61, %v220
  %v222 = vpop.f32.mrf.mxu0
  %223 = vmatprep.mubr.bf16.mxu0 0
  %224 = vmatmul.mubr.bf16.gmra.mxu0 %v180
  %v225 = vpop.f32.mrf.mxu0
  %v226 = vadd.f32 %v61, %v225
  %v227 = vpop.f32.mrf.mxu0
  %v228 = vpop.f32.mrf.mxu0
  %v229 = vpop.f32.mrf.mxu0
  %230 = vdwg.mxu0
  %v232 = vrot.slane %v218, 7
  %vm234 = vcmask 1040384
  %v235 = vsel %vm234, %v156, %v232
  %vm236 = vcmask 261120
  %v238 = vsel %vm236, 0.0, 0
  %240 = vmatprep.subr.mxu0 0.0
  %241 = vmatpush1.msra.mxu0 0.0
  %242 = vmatprep.subr.mxu0 0.0
  %243 = vmatpush1.msra.mxu0 0.0
  %244 = vmatprep.subr.mxu0 0.0
  %245 = vmatpush1.msra.mxu0 0.0
  %246 = vmatprep.subr.mxu0 0.0
  %247 = vmatpush1.msra.mxu0 0.0
  %248 = vmatprep.subr.mxu0 0.0
  %249 = vmatpush1.msra.mxu0 0.0
  %250 = vmatprep.subr.mxu0 0.0
  %251 = vmatpush1.msra.mxu0 0.0
  %252 = vmatprep.subr.mxu0 0.0
  %253 = vmatpush1.msra.mxu0 0.0
  %254 = vmatprep.subr.mxu0 0.0
  %255 = vmatpush1.msra.mxu0 0.0
  %256 = vmatprep.subr.mxu0 0.0
  %257 = vmatpush1.msra.mxu0 0.0
  %258 = vmatprep.subr.mxu0 0.0
  %259 = vmatpush1.msra.mxu0 0.0
  %260 = vmatprep.subr.mxu0 0.0
  %261 = vmatpush1.msra.mxu0 0.0
  %262 = vmatprep.subr.mxu0 0.0
  %263 = vmatpush1.msra.mxu0 0.0
  %264 = vmatprep.subr.mxu0 0.0
  %265 = vmatpush1.msra.mxu0 %v43
  %266 = vmatprep.subr.mxu0 0.0
  %267 = vmatpush1.msra.mxu0 %v42
  %268 = vmatprep.subr.mxu0 0.0
  %269 = vmatpush1.msra.mxu0 %v41
  %270 = vmatprep.subr.mxu0 0.0
  %271 = vmatpush1.msra.mxu0 %v40
  %272 = vmatprep.subr.mxu0 0.0
  %273 = vmatpush2.msra.mxu0 0.0
  %274 = vmatprep.subr.mxu0 0.0
  %275 = vmatpush2.msra.mxu0 0.0
  %276 = vmatprep.subr.mxu0 0.0
  %277 = vmatpush2.msra.mxu0 0.0
  %278 = vmatprep.subr.mxu0 0.0
  %279 = vmatpush2.msra.mxu0 0.0
  %280 = vmatprep.subr.mxu0 0.0
  %281 = vmatpush2.msra.mxu0 0.0
  %282 = vmatprep.subr.mxu0 0.0
  %283 = vmatpush2.msra.mxu0 0.0
  %284 = vmatprep.subr.mxu0 0.0
  %285 = vmatpush2.msra.mxu0 0.0
  %286 = vmatprep.subr.mxu0 0.0
  %287 = vmatpush2.msra.mxu0 0.0
  %288 = vmatprep.subr.mxu0 0.0
  %289 = vmatpush2.msra.mxu0 0.0
  %290 = vmatprep.subr.mxu0 0.0
  %291 = vmatpush2.msra.mxu0 0.0
  %292 = vmatprep.subr.mxu0 0.0
  %293 = vmatpush2.msra.mxu0 0.0
  %294 = vmatprep.subr.mxu0 0.0
  %295 = vmatpush2.msra.mxu0 0.0
  %296 = vmatprep.subr.mxu0 0.0
  %297 = vmatpush2.msra.mxu0 0.0
  %298 = vmatprep.subr.mxu0 0.0
  %299 = vmatpush2.msra.mxu0 0.0
  %300 = vmatprep.subr.mxu0 0.0
  %301 = vmatpush2.msra.mxu0 0.0
  %302 = vmatprep.subr.mxu0 0.0
  %303 = vmatpush2.msra.mxu0 0.0
  %304 = vmatprep.mubr.f32.mxu0 0.0
  %305 = vmatmul.mubr.f32.gmra.mxu0 %v238
  %v306 = vpop.f32.mrf.mxu0
  %v307 = vadd.f32 0.0, %v306
  %v308 = vpop.f32.mrf.mxu0
  %309 = vdwg.mxu0
  %v310 = vadd.f32 %v235, %v307
  %v311 = vxor.u32 %v310, 2147483648
  %v312 = vmul.f32 %v311, 1.442695
  %v313 = vpow.pop %v312
  %v314 = vadd.f32 %v313, 1.0
  %v315 = vrcp.pop %v314
  %v316 = vmul.f32 1.0, %v315
  %v317 = vtanh.pop %v310
  %v318 = vmul.f32 %v316, 0.0
  %320 = vrot.lane.b32.xlu0 %v317, 64
  %v321 = vpop.permute.xlu0 %320
  %v323 = vmul.f32 %v316, %v321
  %325 = vrot.lane.b32.xlu0 %v323, 32
  %v326 = vpop.permute.xlu0 %325
  %v328 = vadd.f32 %v318, %v326
  %v329 = vtanh.pop %v328
  %331 = vrot.lane.b32.xlu0 %v329, 64
  %v332 = vpop.permute.xlu0 %331
  %v334 = vmul.f32 %v316, %v332
  %v336 = vrot.slane %v156, 1
  %v338 = vsel %vm234, %v336, %v218
  %340 = vrot.lane.b32.xlu0 %v334, 32
  %v341 = vpop.permute.xlu0 %340
  %v342 = vsel %vm236, %v341, 0
  %344 = vmatprep.subr.mxu0 0.0
  %345 = vmatpush1.msra.mxu0 0.0
  %346 = vmatprep.subr.mxu0 0.0
  %347 = vmatpush1.msra.mxu0 0.0
  %348 = vmatprep.subr.mxu0 0.0
  %349 = vmatpush1.msra.mxu0 0.0
  %350 = vmatprep.subr.mxu0 0.0
  %351 = vmatpush1.msra.mxu0 0.0
  %352 = vmatprep.subr.mxu0 0.0
  %353 = vmatpush1.msra.mxu0 0.0
  %354 = vmatprep.subr.mxu0 0.0
  %355 = vmatpush1.msra.mxu0 0.0
  %356 = vmatprep.subr.mxu0 0.0
  %357 = vmatpush1.msra.mxu0 0.0
  %358 = vmatprep.subr.mxu0 0.0
  %359 = vmatpush1.msra.mxu0 0.0
  %360 = vmatprep.subr.mxu0 0.0
  %361 = vmatpush1.msra.mxu0 0.0
  %362 = vmatprep.subr.mxu0 0.0
  %363 = vmatpush1.msra.mxu0 0.0
  %364 = vmatprep.subr.mxu0 0.0
  %365 = vmatpush1.msra.mxu0 0.0
  %366 = vmatprep.subr.mxu0 0.0
  %367 = vmatpush1.msra.mxu0 0.0
  %368 = vmatprep.subr.mxu0 0.0
  %369 = vmatpush1.msra.mxu0 %v43
  %370 = vmatprep.subr.mxu0 0.0
  %371 = vmatpush1.msra.mxu0 %v42
  %372 = vmatprep.subr.mxu0 0.0
  %373 = vmatpush1.msra.mxu0 %v41
  %374 = vmatprep.subr.mxu0 0.0
  %375 = vmatpush1.msra.mxu0 %v40
  %376 = vmatprep.subr.mxu0 0.0
  %377 = vmatpush2.msra.mxu0 0.0
  %378 = vmatprep.subr.mxu0 0.0
  %379 = vmatpush2.msra.mxu0 0.0
  %380 = vmatprep.subr.mxu0 0.0
  %381 = vmatpush2.msra.mxu0 0.0
  %382 = vmatprep.subr.mxu0 0.0
  %383 = vmatpush2.msra.mxu0 0.0
  %384 = vmatprep.subr.mxu0 0.0
  %385 = vmatpush2.msra.mxu0 0.0
  %386 = vmatprep.subr.mxu0 0.0
  %387 = vmatpush2.msra.mxu0 0.0
  %388 = vmatprep.subr.mxu0 0.0
  %389 = vmatpush2.msra.mxu0 0.0
  %390 = vmatprep.subr.mxu0 0.0
  %391 = vmatpush2.msra.mxu0 0.0
  %392 = vmatprep.subr.mxu0 0.0
  %393 = vmatpush2.msra.mxu0 0.0
  %394 = vmatprep.subr.mxu0 0.0
  %395 = vmatpush2.msra.mxu0 0.0
  %396 = vmatprep.subr.mxu0 0.0
  %397 = vmatpush2.msra.mxu0 0.0
  %398 = vmatprep.subr.mxu0 0.0
  %399 = vmatpush2.msra.mxu0 0.0
  %400 = vmatprep.subr.mxu0 0.0
  %401 = vmatpush2.msra.mxu0 0.0
  %402 = vmatprep.subr.mxu0 0.0
  %403 = vmatpush2.msra.mxu0 0.0
  %404 = vmatprep.subr.mxu0 0.0
  %405 = vmatpush2.msra.mxu0 0.0
  %406 = vmatprep.subr.mxu0 0.0
  %407 = vmatpush2.msra.mxu0 0.0
  %408 = vmatprep.mubr.f32.mxu0 0.0
  %409 = vmatmul.mubr.f32.gmra.mxu0 %v342
  %v410 = vpop.f32.mrf.mxu0
  %v411 = vadd.f32 0.0, %v410
  %v412 = vpop.f32.mrf.mxu0
  %413 = vdwg.mxu0
  %v414 = vadd.f32 %v338, %v411
  %v415 = vxor.u32 %v414, 2147483648
  %v416 = vmul.f32 %v415, 1.442695
  %v417 = vpow.pop %v416
  %v418 = vadd.f32 %v417, 1.0
  %v419 = vrcp.pop %v418
  %v420 = vmul.f32 1.0, %v419
  %v421 = vtanh.pop %v414
  %v422 = vmul.f32 %v420, %v328
  %424 = vrot.lane.b32.xlu0 %v421, 64
  %v425 = vpop.permute.xlu0 %424
  %v427 = vmul.f32 %v420, %v425
  %429 = vrot.lane.b32.xlu0 %v427, 32
  %v430 = vpop.permute.xlu0 %429
  %v432 = vadd.f32 %v422, %v430
  %v433 = vtanh.pop %v432
  %435 = vrot.lane.b32.xlu0 %v433, 64
  %v436 = vpop.permute.xlu0 %435
  %v438 = vmul.f32 %v420, %v436
  %v440 = vsel %vm236, %v341, 0.0
  %v442 = vlaneseq
  %v443 = vshrl.u32 %v442, 7
  %v444 = vsub.s32 0, %v443
  %v445 = vrot.slane %v53, %v444
  %vm447 = vcmask 523264
  %v449 = vsel %vm447, %v440, 0
  %451 = vmatprep.subr.mxu0 0.0
  %452 = vmatpush1.msra.mxu0 0.0
  %453 = vmatprep.subr.mxu0 0.0
  %454 = vmatpush1.msra.mxu0 0.0
  %455 = vmatprep.subr.mxu0 0.0
  %456 = vmatpush1.msra.mxu0 0.0
  %457 = vmatprep.subr.mxu0 0.0
  %458 = vmatpush1.msra.mxu0 0.0
  %459 = vmatprep.subr.mxu0 0.0
  %460 = vmatpush1.msra.mxu0 0.0
  %461 = vmatprep.subr.mxu0 0.0
  %462 = vmatpush1.msra.mxu0 0.0
  %463 = vmatprep.subr.mxu0 0.0
  %464 = vmatpush1.msra.mxu0 0.0
  %465 = vmatprep.subr.mxu0 0.0
  %466 = vmatpush1.msra.mxu0 0.0
  %467 = vmatprep.subr.mxu0 0.0
  %468 = vmatpush1.msra.mxu0 %v52
  %469 = vmatprep.subr.mxu0 0.0
  %470 = vmatpush1.msra.mxu0 %v51
  %471 = vmatprep.subr.mxu0 0.0
  %472 = vmatpush1.msra.mxu0 %v50
  %473 = vmatprep.subr.mxu0 0.0
  %474 = vmatpush1.msra.mxu0 %v49
  %475 = vmatprep.subr.mxu0 0.0
  %476 = vmatpush1.msra.mxu0 %v48
  %477 = vmatprep.subr.mxu0 0.0
  %478 = vmatpush1.msra.mxu0 %v47
  %479 = vmatprep.subr.mxu0 0.0
  %480 = vmatpush1.msra.mxu0 %v46
  %481 = vmatprep.subr.mxu0 0.0
  %482 = vmatpush1.msra.mxu0 %v45
  %483 = vmatprep.subr.mxu0 0.0
  %484 = vmatpush2.msra.mxu0 0.0
  %485 = vmatprep.subr.mxu0 0.0
  %486 = vmatpush2.msra.mxu0 0.0
  %487 = vmatprep.subr.mxu0 0.0
  %488 = vmatpush2.msra.mxu0 0.0
  %489 = vmatprep.subr.mxu0 0.0
  %490 = vmatpush2.msra.mxu0 0.0
  %491 = vmatprep.subr.mxu0 0.0
  %492 = vmatpush2.msra.mxu0 0.0
  %493 = vmatprep.subr.mxu0 0.0
  %494 = vmatpush2.msra.mxu0 0.0
  %495 = vmatprep.subr.mxu0 0.0
  %496 = vmatpush2.msra.mxu0 0.0
  %497 = vmatprep.subr.mxu0 0.0
  %498 = vmatpush2.msra.mxu0 0.0
  %499 = vmatprep.subr.mxu0 0.0
  %500 = vmatpush2.msra.mxu0 0.0
  %501 = vmatprep.subr.mxu0 0.0
  %502 = vmatpush2.msra.mxu0 0.0
  %503 = vmatprep.subr.mxu0 0.0
  %504 = vmatpush2.msra.mxu0 0.0
  %505 = vmatprep.subr.mxu0 0.0
  %506 = vmatpush2.msra.mxu0 0.0
  %507 = vmatprep.subr.mxu0 0.0
  %508 = vmatpush2.msra.mxu0 0.0
  %509 = vmatprep.subr.mxu0 0.0
  %510 = vmatpush2.msra.mxu0 0.0
  %511 = vmatprep.subr.mxu0 0.0
  %512 = vmatpush2.msra.mxu0 0.0
  %513 = vmatprep.subr.mxu0 0.0
  %514 = vmatpush2.msra.mxu0 0.0
  %515 = vmatprep.mubr.f32.mxu0 0.0
  %516 = vmatmul.mubr.f32.gmra.mxu0 %v449
  %v517 = vpop.f32.mrf.mxu0
  %v518 = vadd.f32 %v445, %v517
  %v519 = vpop.f32.mrf.mxu0
  %520 = vdwg.mxu0
  %v521 = vxor.u32 %v518, 2147483648
  %v522 = vmul.f32 %v521, 1.442695
  %v523 = vpow.pop %v522
  %v524 = vadd.f32 %v523, 1.0
  %v525 = vrcp.pop %v524
  %v526 = vmul.f32 1.0, %v525
  %v527 = vtanh.pop %v518
  %v528 = vmul.f32 %v526, 0.0
  %530 = vrot.lane.b32.xlu0 %v527, 64
  %v531 = vpop.permute.xlu0 %530
  %v533 = vmul.f32 %v526, %v531
  %535 = vrot.lane.b32.xlu0 %v533, 32
  %v536 = vpop.permute.xlu0 %535
  %v538 = vadd.f32 %v528, %v536
  %v539 = vtanh.pop %v538
  %541 = vrot.lane.b32.xlu0 %v539, 64
  %v542 = vpop.permute.xlu0 %541
  %v544 = vmul.f32 %v526, %v542
  %546 = vrot.lane.b32.xlu0 %v544, 32
  %v547 = vpop.permute.xlu0 %546
  %vm549 = vcmask 253952
  %550 = vst.msk [vmem:[%s6] sm:$0x1] %vm549, %v547
  %s551 = scalar_lea.vmem %s6, 24
  %vm552 = vcmask 254977
  %553 = vst.msk [vmem:[%s551 - $0x1] sm:$0x2] %vm552, %v547
  %v554 = vrot.slane %v156, 2
  %v556 = vrot.slane %v218, 1
  %v558 = vsel %vm234, %v554, %v556
  %560 = vrot.lane.b32.xlu0 %v438, 32
  %v561 = vpop.permute.xlu0 %560
  %v562 = vsel %vm236, %v561, 0
  %564 = vmatprep.subr.mxu0 0.0
  %565 = vmatpush1.msra.mxu0 0.0
  %566 = vmatprep.subr.mxu0 0.0
  %567 = vmatpush1.msra.mxu0 0.0
  %568 = vmatprep.subr.mxu0 0.0
  %569 = vmatpush1.msra.mxu0 0.0
  %570 = vmatprep.subr.mxu0 0.0
  %571 = vmatpush1.msra.mxu0 0.0
  %572 = vmatprep.subr.mxu0 0.0
  %573 = vmatpush1.msra.mxu0 0.0
  %574 = vmatprep.subr.mxu0 0.0
  %575 = vmatpush1.msra.mxu0 0.0
  %576 = vmatprep.subr.mxu0 0.0
  %577 = vmatpush1.msra.mxu0 0.0
  %578 = vmatprep.subr.mxu0 0.0
  %579 = vmatpush1.msra.mxu0 0.0
  %580 = vmatprep.subr.mxu0 0.0
  %581 = vmatpush1.msra.mxu0 0.0
  %582 = vmatprep.subr.mxu0 0.0
  %583 = vmatpush1.msra.mxu0 0.0
  %584 = vmatprep.subr.mxu0 0.0
  %585 = vmatpush1.msra.mxu0 0.0
  %586 = vmatprep.subr.mxu0 0.0
  %587 = vmatpush1.msra.mxu0 0.0
  %588 = vmatprep.subr.mxu0 0.0
  %589 = vmatpush1.msra.mxu0 %v43
  %590 = vmatprep.subr.mxu0 0.0
  %591 = vmatpush1.msra.mxu0 %v42
  %592 = vmatprep.subr.mxu0 0.0
  %593 = vmatpush1.msra.mxu0 %v41
  %594 = vmatprep.subr.mxu0 0.0
  %595 = vmatpush1.msra.mxu0 %v40
  %596 = vmatprep.subr.mxu0 0.0
  %597 = vmatpush2.msra.mxu0 0.0
  %598 = vmatprep.subr.mxu0 0.0
  %599 = vmatpush2.msra.mxu0 0.0
  %600 = vmatprep.subr.mxu0 0.0
  %601 = vmatpush2.msra.mxu0 0.0
  %602 = vmatprep.subr.mxu0 0.0
  %603 = vmatpush2.msra.mxu0 0.0
  %604 = vmatprep.subr.mxu0 0.0
  %605 = vmatpush2.msra.mxu0 0.0
  %606 = vmatprep.subr.mxu0 0.0
  %607 = vmatpush2.msra.mxu0 0.0
  %608 = vmatprep.subr.mxu0 0.0
  %609 = vmatpush2.msra.mxu0 0.0
  %610 = vmatprep.subr.mxu0 0.0
  %611 = vmatpush2.msra.mxu0 0.0
  %612 = vmatprep.subr.mxu0 0.0
  %613 = vmatpush2.msra.mxu0 0.0
  %614 = vmatprep.subr.mxu0 0.0
  %615 = vmatpush2.msra.mxu0 0.0
  %616 = vmatprep.subr.mxu0 0.0
  %617 = vmatpush2.msra.mxu0 0.0
  %618 = vmatprep.subr.mxu0 0.0
  %619 = vmatpush2.msra.mxu0 0.0
  %620 = vmatprep.subr.mxu0 0.0
  %621 = vmatpush2.msra.mxu0 0.0
  %622 = vmatprep.subr.mxu0 0.0
  %623 = vmatpush2.msra.mxu0 0.0
  %624 = vmatprep.subr.mxu0 0.0
  %625 = vmatpush2.msra.mxu0 0.0
  %626 = vmatprep.subr.mxu0 0.0
  %627 = vmatpush2.msra.mxu0 0.0
  %628 = vmatprep.mubr.f32.mxu0 0.0
  %629 = vmatmul.mubr.f32.gmra.mxu0 %v562
  %v630 = vpop.f32.mrf.mxu0
  %v631 = vadd.f32 0.0, %v630
  %v632 = vpop.f32.mrf.mxu0
  %633 = vdwg.mxu0
  %v634 = vadd.f32 %v558, %v631
  %v635 = vxor.u32 %v634, 2147483648
  %v636 = vmul.f32 %v635, 1.442695
  %v637 = vpow.pop %v636
  %v638 = vadd.f32 %v637, 1.0
  %v639 = vrcp.pop %v638
  %v640 = vmul.f32 1.0, %v639
  %v641 = vtanh.pop %v634
  %v642 = vmul.f32 %v640, %v432
  %644 = vrot.lane.b32.xlu0 %v641, 64
  %v645 = vpop.permute.xlu0 %644
  %v647 = vmul.f32 %v640, %v645
  %649 = vrot.lane.b32.xlu0 %v647, 32
  %v650 = vpop.permute.xlu0 %649
  %v652 = vadd.f32 %v642, %v650
  %v653 = vtanh.pop %v652
  %655 = vrot.lane.b32.xlu0 %v653, 64
  %v656 = vpop.permute.xlu0 %655
  %v658 = vmul.f32 %v640, %v656
  %660 = vrot.lane.b32.xlu0 %v544, 64
  %v661 = vpop.permute.xlu0 %660
  %v663 = vsel %vm236, %v561, %v661
  %v665 = vsel %vm447, %v663, 0
  %667 = vmatprep.subr.mxu0 0.0
  %668 = vmatpush1.msra.mxu0 0.0
  %669 = vmatprep.subr.mxu0 0.0
  %670 = vmatpush1.msra.mxu0 0.0
  %671 = vmatprep.subr.mxu0 0.0
  %672 = vmatpush1.msra.mxu0 0.0
  %673 = vmatprep.subr.mxu0 0.0
  %674 = vmatpush1.msra.mxu0 0.0
  %675 = vmatprep.subr.mxu0 0.0
  %676 = vmatpush1.msra.mxu0 0.0
  %677 = vmatprep.subr.mxu0 0.0
  %678 = vmatpush1.msra.mxu0 0.0
  %679 = vmatprep.subr.mxu0 0.0
  %680 = vmatpush1.msra.mxu0 0.0
  %681 = vmatprep.subr.mxu0 0.0
  %682 = vmatpush1.msra.mxu0 0.0
  %683 = vmatprep.subr.mxu0 0.0
  %684 = vmatpush1.msra.mxu0 %v52
  %685 = vmatprep.subr.mxu0 0.0
  %686 = vmatpush1.msra.mxu0 %v51
  %687 = vmatprep.subr.mxu0 0.0
  %688 = vmatpush1.msra.mxu0 %v50
  %689 = vmatprep.subr.mxu0 0.0
  %690 = vmatpush1.msra.mxu0 %v49
  %691 = vmatprep.subr.mxu0 0.0
  %692 = vmatpush1.msra.mxu0 %v48
  %693 = vmatprep.subr.mxu0 0.0
  %694 = vmatpush1.msra.mxu0 %v47
  %695 = vmatprep.subr.mxu0 0.0
  %696 = vmatpush1.msra.mxu0 %v46
  %697 = vmatprep.subr.mxu0 0.0
  %698 = vmatpush1.msra.mxu0 %v45
  %699 = vmatprep.subr.mxu0 0.0
  %700 = vmatpush2.msra.mxu0 0.0
  %701 = vmatprep.subr.mxu0 0.0
  %702 = vmatpush2.msra.mxu0 0.0
  %703 = vmatprep.subr.mxu0 0.0
  %704 = vmatpush2.msra.mxu0 0.0
  %705 = vmatprep.subr.mxu0 0.0
  %706 = vmatpush2.msra.mxu0 0.0
  %707 = vmatprep.subr.mxu0 0.0
  %708 = vmatpush2.msra.mxu0 0.0
  %709 = vmatprep.subr.mxu0 0.0
  %710 = vmatpush2.msra.mxu0 0.0
  %711 = vmatprep.subr.mxu0 0.0
  %712 = vmatpush2.msra.mxu0 0.0
  %713 = vmatprep.subr.mxu0 0.0
  %714 = vmatpush2.msra.mxu0 0.0
  %715 = vmatprep.subr.mxu0 0.0
  %716 = vmatpush2.msra.mxu0 0.0
  %717 = vmatprep.subr.mxu0 0.0
  %718 = vmatpush2.msra.mxu0 0.0
  %719 = vmatprep.subr.mxu0 0.0
  %720 = vmatpush2.msra.mxu0 0.0
  %721 = vmatprep.subr.mxu0 0.0
  %722 = vmatpush2.msra.mxu0 0.0
  %723 = vmatprep.subr.mxu0 0.0
  %724 = vmatpush2.msra.mxu0 0.0
  %725 = vmatprep.subr.mxu0 0.0
  %726 = vmatpush2.msra.mxu0 0.0
  %727 = vmatprep.subr.mxu0 0.0
  %728 = vmatpush2.msra.mxu0 0.0
  %729 = vmatprep.subr.mxu0 0.0
  %730 = vmatpush2.msra.mxu0 0.0
  %731 = vmatprep.mubr.f32.mxu0 0.0
  %732 = vmatmul.mubr.f32.gmra.mxu0 %v665
  %v733 = vpop.f32.mrf.mxu0
  %v734 = vadd.f32 %v445, %v733
  %v735 = vpop.f32.mrf.mxu0
  %736 = vdwg.mxu0
  %v737 = vxor.u32 %v734, 2147483648
  %v738 = vmul.f32 %v737, 1.442695
  %v739 = vpow.pop %v738
  %v740 = vadd.f32 %v739, 1.0
  %v741 = vrcp.pop %v740
  %v742 = vmul.f32 1.0, %v741
  %v743 = vtanh.pop %v734
  %v744 = vmul.f32 %v742, %v538
  %746 = vrot.lane.b32.xlu0 %v743, 64
  %v747 = vpop.permute.xlu0 %746
  %v749 = vmul.f32 %v742, %v747
  %751 = vrot.lane.b32.xlu0 %v749, 32
  %v752 = vpop.permute.xlu0 %751
  %v754 = vadd.f32 %v744, %v752
  %v755 = vtanh.pop %v754
  %757 = vrot.lane.b32.xlu0 %v755, 64
  %v758 = vpop.permute.xlu0 %757
  %v760 = vmul.f32 %v742, %v758
  %762 = vrot.lane.b32.xlu0 %v760, 32
  %v763 = vpop.permute.xlu0 %762
  %765 = vst.msk [vmem:[%s6 + $0x1] sm:$0x1] %vm549, %v763
  %766 = vst.msk [vmem:[%s551] sm:$0x2] %vm552, %v763
  %v767 = vrot.slane %v156, 3
  %v769 = vrot.slane %v218, 2
  %v771 = vsel %vm234, %v767, %v769
  %773 = vrot.lane.b32.xlu0 %v658, 32
  %v774 = vpop.permute.xlu0 %773
  %v775 = vsel %vm236, %v774, 0
  %777 = vmatprep.subr.mxu0 0.0
  %778 = vmatpush1.msra.mxu0 0.0
  %779 = vmatprep.subr.mxu0 0.0
  %780 = vmatpush1.msra.mxu0 0.0
  %781 = vmatprep.subr.mxu0 0.0
  %782 = vmatpush1.msra.mxu0 0.0
  %783 = vmatprep.subr.mxu0 0.0
  %784 = vmatpush1.msra.mxu0 0.0
  %785 = vmatprep.subr.mxu0 0.0
  %786 = vmatpush1.msra.mxu0 0.0
  %787 = vmatprep.subr.mxu0 0.0
  %788 = vmatpush1.msra.mxu0 0.0
  %789 = vmatprep.subr.mxu0 0.0
  %790 = vmatpush1.msra.mxu0 0.0
  %791 = vmatprep.subr.mxu0 0.0
  %792 = vmatpush1.msra.mxu0 0.0
  %793 = vmatprep.subr.mxu0 0.0
  %794 = vmatpush1.msra.mxu0 0.0
  %795 = vmatprep.subr.mxu0 0.0
  %796 = vmatpush1.msra.mxu0 0.0
  %797 = vmatprep.subr.mxu0 0.0
  %798 = vmatpush1.msra.mxu0 0.0
  %799 = vmatprep.subr.mxu0 0.0
  %800 = vmatpush1.msra.mxu0 0.0
  %801 = vmatprep.subr.mxu0 0.0
  %802 = vmatpush1.msra.mxu0 %v43
  %803 = vmatprep.subr.mxu0 0.0
  %804 = vmatpush1.msra.mxu0 %v42
  %805 = vmatprep.subr.mxu0 0.0
  %806 = vmatpush1.msra.mxu0 %v41
  %807 = vmatprep.subr.mxu0 0.0
  %808 = vmatpush1.msra.mxu0 %v40
  %809 = vmatprep.subr.mxu0 0.0
  %810 = vmatpush2.msra.mxu0 0.0
  %811 = vmatprep.subr.mxu0 0.0
  %812 = vmatpush2.msra.mxu0 0.0
  %813 = vmatprep.subr.mxu0 0.0
  %814 = vmatpush2.msra.mxu0 0.0
  %815 = vmatprep.subr.mxu0 0.0
  %816 = vmatpush2.msra.mxu0 0.0
  %817 = vmatprep.subr.mxu0 0.0
  %818 = vmatpush2.msra.mxu0 0.0
  %819 = vmatprep.subr.mxu0 0.0
  %820 = vmatpush2.msra.mxu0 0.0
  %821 = vmatprep.subr.mxu0 0.0
  %822 = vmatpush2.msra.mxu0 0.0
  %823 = vmatprep.subr.mxu0 0.0
  %824 = vmatpush2.msra.mxu0 0.0
  %825 = vmatprep.subr.mxu0 0.0
  %826 = vmatpush2.msra.mxu0 0.0
  %827 = vmatprep.subr.mxu0 0.0
  %828 = vmatpush2.msra.mxu0 0.0
  %829 = vmatprep.subr.mxu0 0.0
  %830 = vmatpush2.msra.mxu0 0.0
  %831 = vmatprep.subr.mxu0 0.0
  %832 = vmatpush2.msra.mxu0 0.0
  %833 = vmatprep.subr.mxu0 0.0
  %834 = vmatpush2.msra.mxu0 0.0
  %835 = vmatprep.subr.mxu0 0.0
  %836 = vmatpush2.msra.mxu0 0.0
  %837 = vmatprep.subr.mxu0 0.0
  %838 = vmatpush2.msra.mxu0 0.0
  %839 = vmatprep.subr.mxu0 0.0
  %840 = vmatpush2.msra.mxu0 0.0
  %841 = vmatprep.mubr.f32.mxu0 0.0
  %842 = vmatmul.mubr.f32.gmra.mxu0 %v775
  %v843 = vpop.f32.mrf.mxu0
  %v844 = vadd.f32 0.0, %v843
  %v845 = vpop.f32.mrf.mxu0
  %846 = vdwg.mxu0
  %v847 = vadd.f32 %v771, %v844
  %v848 = vxor.u32 %v847, 2147483648
  %v849 = vmul.f32 %v848, 1.442695
  %v850 = vpow.pop %v849
  %v851 = vadd.f32 %v850, 1.0
  %v852 = vrcp.pop %v851
  %v853 = vmul.f32 1.0, %v852
  %v854 = vtanh.pop %v847
  %v855 = vmul.f32 %v853, %v652
  %857 = vrot.lane.b32.xlu0 %v854, 64
  %v858 = vpop.permute.xlu0 %857
  %v860 = vmul.f32 %v853, %v858
  %862 = vrot.lane.b32.xlu0 %v860, 32
  %v863 = vpop.permute.xlu0 %862
  %v865 = vadd.f32 %v855, %v863
  %v866 = vtanh.pop %v865
  %868 = vrot.lane.b32.xlu0 %v866, 64
  %v869 = vpop.permute.xlu0 %868
  %v871 = vmul.f32 %v853, %v869
  %873 = vrot.lane.b32.xlu0 %v760, 64
  %v874 = vpop.permute.xlu0 %873
  %v876 = vsel %vm236, %v774, %v874
  %v878 = vsel %vm447, %v876, 0
  %880 = vmatprep.subr.mxu0 0.0
  %881 = vmatpush1.msra.mxu0 0.0
  %882 = vmatprep.subr.mxu0 0.0
  %883 = vmatpush1.msra.mxu0 0.0
  %884 = vmatprep.subr.mxu0 0.0
  %885 = vmatpush1.msra.mxu0 0.0
  %886 = vmatprep.subr.mxu0 0.0
  %887 = vmatpush1.msra.mxu0 0.0
  %888 = vmatprep.subr.mxu0 0.0
  %889 = vmatpush1.msra.mxu0 0.0
  %890 = vmatprep.subr.mxu0 0.0
  %891 = vmatpush1.msra.mxu0 0.0
  %892 = vmatprep.subr.mxu0 0.0
  %893 = vmatpush1.msra.mxu0 0.0
  %894 = vmatprep.subr.mxu0 0.0
  %895 = vmatpush1.msra.mxu0 0.0
  %896 = vmatprep.subr.mxu0 0.0
  %897 = vmatpush1.msra.mxu0 %v52
  %898 = vmatprep.subr.mxu0 0.0
  %899 = vmatpush1.msra.mxu0 %v51
  %900 = vmatprep.subr.mxu0 0.0
  %901 = vmatpush1.msra.mxu0 %v50
  %902 = vmatprep.subr.mxu0 0.0
  %903 = vmatpush1.msra.mxu0 %v49
  %904 = vmatprep.subr.mxu0 0.0
  %905 = vmatpush1.msra.mxu0 %v48
  %906 = vmatprep.subr.mxu0 0.0
  %907 = vmatpush1.msra.mxu0 %v47
  %908 = vmatprep.subr.mxu0 0.0
  %909 = vmatpush1.msra.mxu0 %v46
  %910 = vmatprep.subr.mxu0 0.0
  %911 = vmatpush1.msra.mxu0 %v45
  %912 = vmatprep.subr.mxu0 0.0
  %913 = vmatpush2.msra.mxu0 0.0
  %914 = vmatprep.subr.mxu0 0.0
  %915 = vmatpush2.msra.mxu0 0.0
  %916 = vmatprep.subr.mxu0 0.0
  %917 = vmatpush2.msra.mxu0 0.0
  %918 = vmatprep.subr.mxu0 0.0
  %919 = vmatpush2.msra.mxu0 0.0
  %920 = vmatprep.subr.mxu0 0.0
  %921 = vmatpush2.msra.mxu0 0.0
  %922 = vmatprep.subr.mxu0 0.0
  %923 = vmatpush2.msra.mxu0 0.0
  %924 = vmatprep.subr.mxu0 0.0
  %925 = vmatpush2.msra.mxu0 0.0
  %926 = vmatprep.subr.mxu0 0.0
  %927 = vmatpush2.msra.mxu0 0.0
  %928 = vmatprep.subr.mxu0 0.0
  %929 = vmatpush2.msra.mxu0 0.0
  %930 = vmatprep.subr.mxu0 0.0
  %931 = vmatpush2.msra.mxu0 0.0
  %932 = vmatprep.subr.mxu0 0.0
  %933 = vmatpush2.msra.mxu0 0.0
  %934 = vmatprep.subr.mxu0 0.0
  %935 = vmatpush2.msra.mxu0 0.0
  %936 = vmatprep.subr.mxu0 0.0
  %937 = vmatpush2.msra.mxu0 0.0
  %938 = vmatprep.subr.mxu0 0.0
  %939 = vmatpush2.msra.mxu0 0.0
  %940 = vmatprep.subr.mxu0 0.0
  %941 = vmatpush2.msra.mxu0 0.0
  %942 = vmatprep.subr.mxu0 0.0
  %943 = vmatpush2.msra.mxu0 0.0
  %944 = vmatprep.mubr.f32.mxu0 0.0
  %945 = vmatmul.mubr.f32.gmra.mxu0 %v878
  %v946 = vpop.f32.mrf.mxu0
  %v947 = vadd.f32 %v445, %v946
  %v948 = vpop.f32.mrf.mxu0
  %949 = vdwg.mxu0
  %v950 = vxor.u32 %v947, 2147483648
  %v951 = vmul.f32 %v950, 1.442695
  %v952 = vpow.pop %v951
  %v953 = vadd.f32 %v952, 1.0
  %v954 = vrcp.pop %v953
  %v955 = vmul.f32 1.0, %v954
  %v956 = vtanh.pop %v947
  %v957 = vmul.f32 %v955, %v754
  %959 = vrot.lane.b32.xlu0 %v956, 64
  %v960 = vpop.permute.xlu0 %959
  %v962 = vmul.f32 %v955, %v960
  %964 = vrot.lane.b32.xlu0 %v962, 32
  %v965 = vpop.permute.xlu0 %964
  %v967 = vadd.f32 %v957, %v965
  %v968 = vtanh.pop %v967
  %970 = vrot.lane.b32.xlu0 %v968, 64
  %v971 = vpop.permute.xlu0 %970
  %v973 = vmul.f32 %v955, %v971
  %975 = vrot.lane.b32.xlu0 %v973, 32
  %v976 = vpop.permute.xlu0 %975
  %978 = vst.msk [vmem:[%s6 + $0x2] sm:$0x1] %vm549, %v976
  %979 = vst.msk [vmem:[%s551 + $0x1] sm:$0x2] %vm552, %v976
  %v980 = vrot.slane %v156, 4
  %v982 = vrot.slane %v218, 3
  %v984 = vsel %vm234, %v980, %v982
  %986 = vrot.lane.b32.xlu0 %v871, 32
  %v987 = vpop.permute.xlu0 %986
  %v988 = vsel %vm236, %v987, 0
  %990 = vmatprep.subr.mxu0 0.0
  %991 = vmatpush1.msra.mxu0 0.0
  %992 = vmatprep.subr.mxu0 0.0
  %993 = vmatpush1.msra.mxu0 0.0
  %994 = vmatprep.subr.mxu0 0.0
  %995 = vmatpush1.msra.mxu0 0.0
  %996 = vmatprep.subr.mxu0 0.0
  %997 = vmatpush1.msra.mxu0 0.0
  %998 = vmatprep.subr.mxu0 0.0
  %999 = vmatpush1.msra.mxu0 0.0
  %1000 = vmatprep.subr.mxu0 0.0
  %1001 = vmatpush1.msra.mxu0 0.0
  %1002 = vmatprep.subr.mxu0 0.0
  %1003 = vmatpush1.msra.mxu0 0.0
  %1004 = vmatprep.subr.mxu0 0.0
  %1005 = vmatpush1.msra.mxu0 0.0
  %1006 = vmatprep.subr.mxu0 0.0
  %1007 = vmatpush1.msra.mxu0 0.0
  %1008 = vmatprep.subr.mxu0 0.0
  %1009 = vmatpush1.msra.mxu0 0.0
  %1010 = vmatprep.subr.mxu0 0.0
  %1011 = vmatpush1.msra.mxu0 0.0
  %1012 = vmatprep.subr.mxu0 0.0
  %1013 = vmatpush1.msra.mxu0 0.0
  %1014 = vmatprep.subr.mxu0 0.0
  %1015 = vmatpush1.msra.mxu0 %v43
  %1016 = vmatprep.subr.mxu0 0.0
  %1017 = vmatpush1.msra.mxu0 %v42
  %1018 = vmatprep.subr.mxu0 0.0
  %1019 = vmatpush1.msra.mxu0 %v41
  %1020 = vmatprep.subr.mxu0 0.0
  %1021 = vmatpush1.msra.mxu0 %v40
  %1022 = vmatprep.subr.mxu0 0.0
  %1023 = vmatpush2.msra.mxu0 0.0
  %1024 = vmatprep.subr.mxu0 0.0
  %1025 = vmatpush2.msra.mxu0 0.0
  %1026 = vmatprep.subr.mxu0 0.0
  %1027 = vmatpush2.msra.mxu0 0.0
  %1028 = vmatprep.subr.mxu0 0.0
  %1029 = vmatpush2.msra.mxu0 0.0
  %1030 = vmatprep.subr.mxu0 0.0
  %1031 = vmatpush2.msra.mxu0 0.0
  %1032 = vmatprep.subr.mxu0 0.0
  %1033 = vmatpush2.msra.mxu0 0.0
  %1034 = vmatprep.subr.mxu0 0.0
  %1035 = vmatpush2.msra.mxu0 0.0
  %1036 = vmatprep.subr.mxu0 0.0
  %1037 = vmatpush2.msra.mxu0 0.0
  %1038 = vmatprep.subr.mxu0 0.0
  %1039 = vmatpush2.msra.mxu0 0.0
  %1040 = vmatprep.subr.mxu0 0.0
  %1041 = vmatpush2.msra.mxu0 0.0
  %1042 = vmatprep.subr.mxu0 0.0
  %1043 = vmatpush2.msra.mxu0 0.0
  %1044 = vmatprep.subr.mxu0 0.0
  %1045 = vmatpush2.msra.mxu0 0.0
  %1046 = vmatprep.subr.mxu0 0.0
  %1047 = vmatpush2.msra.mxu0 0.0
  %1048 = vmatprep.subr.mxu0 0.0
  %1049 = vmatpush2.msra.mxu0 0.0
  %1050 = vmatprep.subr.mxu0 0.0
  %1051 = vmatpush2.msra.mxu0 0.0
  %1052 = vmatprep.subr.mxu0 0.0
  %1053 = vmatpush2.msra.mxu0 0.0
  %1054 = vmatprep.mubr.f32.mxu0 0.0
  %1055 = vmatmul.mubr.f32.gmra.mxu0 %v988
  %v1056 = vpop.f32.mrf.mxu0
  %v1057 = vadd.f32 0.0, %v1056
  %v1058 = vpop.f32.mrf.mxu0
  %1059 = vdwg.mxu0
  %v1060 = vadd.f32 %v984, %v1057
  %v1061 = vxor.u32 %v1060, 2147483648
  %v1062 = vmul.f32 %v1061, 1.442695
  %v1063 = vpow.pop %v1062
  %v1064 = vadd.f32 %v1063, 1.0
  %v1065 = vrcp.pop %v1064
  %v1066 = vmul.f32 1.0, %v1065
  %v1067 = vtanh.pop %v1060
  %v1068 = vmul.f32 %v1066, %v865
  %1070 = vrot.lane.b32.xlu0 %v1067, 64
  %v1071 = vpop.permute.xlu0 %1070
  %v1073 = vmul.f32 %v1066, %v1071
  %1075 = vrot.lane.b32.xlu0 %v1073, 32
  %v1076 = vpop.permute.xlu0 %1075
  %v1078 = vadd.f32 %v1068, %v1076
  %v1079 = vtanh.pop %v1078
  %1081 = vrot.lane.b32.xlu0 %v1079, 64
  %v1082 = vpop.permute.xlu0 %1081
  %v1084 = vmul.f32 %v1066, %v1082
  %1086 = vrot.lane.b32.xlu0 %v973, 64
  %v1087 = vpop.permute.xlu0 %1086
  %v1089 = vsel %vm236, %v987, %v1087
  %v1091 = vsel %vm447, %v1089, 0
  %1093 = vmatprep.subr.mxu0 0.0
  %1094 = vmatpush1.msra.mxu0 0.0
  %1095 = vmatprep.subr.mxu0 0.0
  %1096 = vmatpush1.msra.mxu0 0.0
  %1097 = vmatprep.subr.mxu0 0.0
  %1098 = vmatpush1.msra.mxu0 0.0
  %1099 = vmatprep.subr.mxu0 0.0
  %1100 = vmatpush1.msra.mxu0 0.0
  %1101 = vmatprep.subr.mxu0 0.0
  %1102 = vmatpush1.msra.mxu0 0.0
  %1103 = vmatprep.subr.mxu0 0.0
  %1104 = vmatpush1.msra.mxu0 0.0
  %1105 = vmatprep.subr.mxu0 0.0
  %1106 = vmatpush1.msra.mxu0 0.0
  %1107 = vmatprep.subr.mxu0 0.0
  %1108 = vmatpush1.msra.mxu0 0.0
  %1109 = vmatprep.subr.mxu0 0.0
  %1110 = vmatpush1.msra.mxu0 %v52
  %1111 = vmatprep.subr.mxu0 0.0
  %1112 = vmatpush1.msra.mxu0 %v51
  %1113 = vmatprep.subr.mxu0 0.0
  %1114 = vmatpush1.msra.mxu0 %v50
  %1115 = vmatprep.subr.mxu0 0.0
  %1116 = vmatpush1.msra.mxu0 %v49
  %1117 = vmatprep.subr.mxu0 0.0
  %1118 = vmatpush1.msra.mxu0 %v48
  %1119 = vmatprep.subr.mxu0 0.0
  %1120 = vmatpush1.msra.mxu0 %v47
  %1121 = vmatprep.subr.mxu0 0.0
  %1122 = vmatpush1.msra.mxu0 %v46
  %1123 = vmatprep.subr.mxu0 0.0
  %1124 = vmatpush1.msra.mxu0 %v45
  %1125 = vmatprep.subr.mxu0 0.0
  %1126 = vmatpush2.msra.mxu0 0.0
  %1127 = vmatprep.subr.mxu0 0.0
  %1128 = vmatpush2.msra.mxu0 0.0
  %1129 = vmatprep.subr.mxu0 0.0
  %1130 = vmatpush2.msra.mxu0 0.0
  %1131 = vmatprep.subr.mxu0 0.0
  %1132 = vmatpush2.msra.mxu0 0.0
  %1133 = vmatprep.subr.mxu0 0.0
  %1134 = vmatpush2.msra.mxu0 0.0
  %1135 = vmatprep.subr.mxu0 0.0
  %1136 = vmatpush2.msra.mxu0 0.0
  %1137 = vmatprep.subr.mxu0 0.0
  %1138 = vmatpush2.msra.mxu0 0.0
  %1139 = vmatprep.subr.mxu0 0.0
  %1140 = vmatpush2.msra.mxu0 0.0
  %1141 = vmatprep.subr.mxu0 0.0
  %1142 = vmatpush2.msra.mxu0 0.0
  %1143 = vmatprep.subr.mxu0 0.0
  %1144 = vmatpush2.msra.mxu0 0.0
  %1145 = vmatprep.subr.mxu0 0.0
  %1146 = vmatpush2.msra.mxu0 0.0
  %1147 = vmatprep.subr.mxu0 0.0
  %1148 = vmatpush2.msra.mxu0 0.0
  %1149 = vmatprep.subr.mxu0 0.0
  %1150 = vmatpush2.msra.mxu0 0.0
  %1151 = vmatprep.subr.mxu0 0.0
  %1152 = vmatpush2.msra.mxu0 0.0
  %1153 = vmatprep.subr.mxu0 0.0
  %1154 = vmatpush2.msra.mxu0 0.0
  %1155 = vmatprep.subr.mxu0 0.0
  %1156 = vmatpush2.msra.mxu0 0.0
  %1157 = vmatprep.mubr.f32.mxu0 0.0
  %1158 = vmatmul.mubr.f32.gmra.mxu0 %v1091
  %v1159 = vpop.f32.mrf.mxu0
  %v1160 = vadd.f32 %v445, %v1159
  %v1161 = vpop.f32.mrf.mxu0
  %1162 = vdwg.mxu0
  %v1163 = vxor.u32 %v1160, 2147483648
  %v1164 = vmul.f32 %v1163, 1.442695
  %v1165 = vpow.pop %v1164
  %v1166 = vadd.f32 %v1165, 1.0
  %v1167 = vrcp.pop %v1166
  %v1168 = vmul.f32 1.0, %v1167
  %v1169 = vtanh.pop %v1160
  %v1170 = vmul.f32 %v1168, %v967
  %1172 = vrot.lane.b32.xlu0 %v1169, 64
  %v1173 = vpop.permute.xlu0 %1172
  %v1175 = vmul.f32 %v1168, %v1173
  %1177 = vrot.lane.b32.xlu0 %v1175, 32
  %v1178 = vpop.permute.xlu0 %1177
  %v1180 = vadd.f32 %v1170, %v1178
  %v1181 = vtanh.pop %v1180
  %1183 = vrot.lane.b32.xlu0 %v1181, 64
  %v1184 = vpop.permute.xlu0 %1183
  %v1186 = vmul.f32 %v1168, %v1184
  %1188 = vrot.lane.b32.xlu0 %v1186, 32
  %v1189 = vpop.permute.xlu0 %1188
  %1191 = vst.msk [vmem:[%s6 + $0x3] sm:$0x1] %vm549, %v1189
  %1192 = vst.msk [vmem:[%s551 + $0x2] sm:$0x2] %vm552, %v1189
  %v1193 = vrot.slane %v156, 5
  %v1195 = vrot.slane %v218, 4
  %v1197 = vsel %vm234, %v1193, %v1195
  %1199 = vrot.lane.b32.xlu0 %v1084, 32
  %v1200 = vpop.permute.xlu0 %1199
  %v1201 = vsel %vm236, %v1200, 0
  %1203 = vmatprep.subr.mxu0 0.0
  %1204 = vmatpush1.msra.mxu0 0.0
  %1205 = vmatprep.subr.mxu0 0.0
  %1206 = vmatpush1.msra.mxu0 0.0
  %1207 = vmatprep.subr.mxu0 0.0
  %1208 = vmatpush1.msra.mxu0 0.0
  %1209 = vmatprep.subr.mxu0 0.0
  %1210 = vmatpush1.msra.mxu0 0.0
  %1211 = vmatprep.subr.mxu0 0.0
  %1212 = vmatpush1.msra.mxu0 0.0
  %1213 = vmatprep.subr.mxu0 0.0
  %1214 = vmatpush1.msra.mxu0 0.0
  %1215 = vmatprep.subr.mxu0 0.0
  %1216 = vmatpush1.msra.mxu0 0.0
  %1217 = vmatprep.subr.mxu0 0.0
  %1218 = vmatpush1.msra.mxu0 0.0
  %1219 = vmatprep.subr.mxu0 0.0
  %1220 = vmatpush1.msra.mxu0 0.0
  %1221 = vmatprep.subr.mxu0 0.0
  %1222 = vmatpush1.msra.mxu0 0.0
  %1223 = vmatprep.subr.mxu0 0.0
  %1224 = vmatpush1.msra.mxu0 0.0
  %1225 = vmatprep.subr.mxu0 0.0
  %1226 = vmatpush1.msra.mxu0 0.0
  %1227 = vmatprep.subr.mxu0 0.0
  %1228 = vmatpush1.msra.mxu0 %v43
  %1229 = vmatprep.subr.mxu0 0.0
  %1230 = vmatpush1.msra.mxu0 %v42
  %1231 = vmatprep.subr.mxu0 0.0
  %1232 = vmatpush1.msra.mxu0 %v41
  %1233 = vmatprep.subr.mxu0 0.0
  %1234 = vmatpush1.msra.mxu0 %v40
  %1235 = vmatprep.subr.mxu0 0.0
  %1236 = vmatpush2.msra.mxu0 0.0
  %1237 = vmatprep.subr.mxu0 0.0
  %1238 = vmatpush2.msra.mxu0 0.0
  %1239 = vmatprep.subr.mxu0 0.0
  %1240 = vmatpush2.msra.mxu0 0.0
  %1241 = vmatprep.subr.mxu0 0.0
  %1242 = vmatpush2.msra.mxu0 0.0
  %1243 = vmatprep.subr.mxu0 0.0
  %1244 = vmatpush2.msra.mxu0 0.0
  %1245 = vmatprep.subr.mxu0 0.0
  %1246 = vmatpush2.msra.mxu0 0.0
  %1247 = vmatprep.subr.mxu0 0.0
  %1248 = vmatpush2.msra.mxu0 0.0
  %1249 = vmatprep.subr.mxu0 0.0
  %1250 = vmatpush2.msra.mxu0 0.0
  %1251 = vmatprep.subr.mxu0 0.0
  %1252 = vmatpush2.msra.mxu0 0.0
  %1253 = vmatprep.subr.mxu0 0.0
  %1254 = vmatpush2.msra.mxu0 0.0
  %1255 = vmatprep.subr.mxu0 0.0
  %1256 = vmatpush2.msra.mxu0 0.0
  %1257 = vmatprep.subr.mxu0 0.0
  %1258 = vmatpush2.msra.mxu0 0.0
  %1259 = vmatprep.subr.mxu0 0.0
  %1260 = vmatpush2.msra.mxu0 0.0
  %1261 = vmatprep.subr.mxu0 0.0
  %1262 = vmatpush2.msra.mxu0 0.0
  %1263 = vmatprep.subr.mxu0 0.0
  %1264 = vmatpush2.msra.mxu0 0.0
  %1265 = vmatprep.subr.mxu0 0.0
  %1266 = vmatpush2.msra.mxu0 0.0
  %1267 = vmatprep.mubr.f32.mxu0 0.0
  %1268 = vmatmul.mubr.f32.gmra.mxu0 %v1201
  %v1269 = vpop.f32.mrf.mxu0
  %v1270 = vadd.f32 0.0, %v1269
  %v1271 = vpop.f32.mrf.mxu0
  %1272 = vdwg.mxu0
  %v1273 = vadd.f32 %v1197, %v1270
  %v1274 = vxor.u32 %v1273, 2147483648
  %v1275 = vmul.f32 %v1274, 1.442695
  %v1276 = vpow.pop %v1275
  %v1277 = vadd.f32 %v1276, 1.0
  %v1278 = vrcp.pop %v1277
  %v1279 = vmul.f32 1.0, %v1278
  %v1280 = vtanh.pop %v1273
  %v1281 = vmul.f32 %v1279, %v1078
  %1283 = vrot.lane.b32.xlu0 %v1280, 64
  %v1284 = vpop.permute.xlu0 %1283
  %v1286 = vmul.f32 %v1279, %v1284
  %1288 = vrot.lane.b32.xlu0 %v1286, 32
  %v1289 = vpop.permute.xlu0 %1288
  %v1291 = vadd.f32 %v1281, %v1289
  %v1292 = vtanh.pop %v1291
  %1294 = vrot.lane.b32.xlu0 %v1292, 64
  %v1295 = vpop.permute.xlu0 %1294
  %v1297 = vmul.f32 %v1279, %v1295
  %1299 = vrot.lane.b32.xlu0 %v1186, 64
  %v1300 = vpop.permute.xlu0 %1299
  %v1302 = vsel %vm236, %v1200, %v1300
  %v1304 = vsel %vm447, %v1302, 0
  %1306 = vmatprep.subr.mxu0 0.0
  %1307 = vmatpush1.msra.mxu0 0.0
  %1308 = vmatprep.subr.mxu0 0.0
  %1309 = vmatpush1.msra.mxu0 0.0
  %1310 = vmatprep.subr.mxu0 0.0
  %1311 = vmatpush1.msra.mxu0 0.0
  %1312 = vmatprep.subr.mxu0 0.0
  %1313 = vmatpush1.msra.mxu0 0.0
  %1314 = vmatprep.subr.mxu0 0.0
  %1315 = vmatpush1.msra.mxu0 0.0
  %1316 = vmatprep.subr.mxu0 0.0
  %1317 = vmatpush1.msra.mxu0 0.0
  %1318 = vmatprep.subr.mxu0 0.0
  %1319 = vmatpush1.msra.mxu0 0.0
  %1320 = vmatprep.subr.mxu0 0.0
  %1321 = vmatpush1.msra.mxu0 0.0
  %1322 = vmatprep.subr.mxu0 0.0
  %1323 = vmatpush1.msra.mxu0 %v52
  %1324 = vmatprep.subr.mxu0 0.0
  %1325 = vmatpush1.msra.mxu0 %v51
  %1326 = vmatprep.subr.mxu0 0.0
  %1327 = vmatpush1.msra.mxu0 %v50
  %1328 = vmatprep.subr.mxu0 0.0
  %1329 = vmatpush1.msra.mxu0 %v49
  %1330 = vmatprep.subr.mxu0 0.0
  %1331 = vmatpush1.msra.mxu0 %v48
  %1332 = vmatprep.subr.mxu0 0.0
  %1333 = vmatpush1.msra.mxu0 %v47
  %1334 = vmatprep.subr.mxu0 0.0
  %1335 = vmatpush1.msra.mxu0 %v46
  %1336 = vmatprep.subr.mxu0 0.0
  %1337 = vmatpush1.msra.mxu0 %v45
  %1338 = vmatprep.subr.mxu0 0.0
  %1339 = vmatpush2.msra.mxu0 0.0
  %1340 = vmatprep.subr.mxu0 0.0
  %1341 = vmatpush2.msra.mxu0 0.0
  %1342 = vmatprep.subr.mxu0 0.0
  %1343 = vmatpush2.msra.mxu0 0.0
  %1344 = vmatprep.subr.mxu0 0.0
  %1345 = vmatpush2.msra.mxu0 0.0
  %1346 = vmatprep.subr.mxu0 0.0
  %1347 = vmatpush2.msra.mxu0 0.0
  %1348 = vmatprep.subr.mxu0 0.0
  %1349 = vmatpush2.msra.mxu0 0.0
  %1350 = vmatprep.subr.mxu0 0.0
  %1351 = vmatpush2.msra.mxu0 0.0
  %1352 = vmatprep.subr.mxu0 0.0
  %1353 = vmatpush2.msra.mxu0 0.0
  %1354 = vmatprep.subr.mxu0 0.0
  %1355 = vmatpush2.msra.mxu0 0.0
  %1356 = vmatprep.subr.mxu0 0.0
  %1357 = vmatpush2.msra.mxu0 0.0
  %1358 = vmatprep.subr.mxu0 0.0
  %1359 = vmatpush2.msra.mxu0 0.0
  %1360 = vmatprep.subr.mxu0 0.0
  %1361 = vmatpush2.msra.mxu0 0.0
  %1362 = vmatprep.subr.mxu0 0.0
  %1363 = vmatpush2.msra.mxu0 0.0
  %1364 = vmatprep.subr.mxu0 0.0
  %1365 = vmatpush2.msra.mxu0 0.0
  %1366 = vmatprep.subr.mxu0 0.0
  %1367 = vmatpush2.msra.mxu0 0.0
  %1368 = vmatprep.subr.mxu0 0.0
  %1369 = vmatpush2.msra.mxu0 0.0
  %1370 = vmatprep.mubr.f32.mxu0 0.0
  %1371 = vmatmul.mubr.f32.gmra.mxu0 %v1304
  %v1372 = vpop.f32.mrf.mxu0
  %v1373 = vadd.f32 %v445, %v1372
  %v1374 = vpop.f32.mrf.mxu0
  %1375 = vdwg.mxu0
  %v1376 = vxor.u32 %v1373, 2147483648
  %v1377 = vmul.f32 %v1376, 1.442695
  %v1378 = vpow.pop %v1377
  %v1379 = vadd.f32 %v1378, 1.0
  %v1380 = vrcp.pop %v1379
  %v1381 = vmul.f32 1.0, %v1380
  %v1382 = vtanh.pop %v1373
  %v1383 = vmul.f32 %v1381, %v1180
  %1385 = vrot.lane.b32.xlu0 %v1382, 64
  %v1386 = vpop.permute.xlu0 %1385
  %v1388 = vmul.f32 %v1381, %v1386
  %1390 = vrot.lane.b32.xlu0 %v1388, 32
  %v1391 = vpop.permute.xlu0 %1390
  %v1393 = vadd.f32 %v1383, %v1391
  %v1394 = vtanh.pop %v1393
  %1396 = vrot.lane.b32.xlu0 %v1394, 64
  %v1397 = vpop.permute.xlu0 %1396
  %v1399 = vmul.f32 %v1381, %v1397
  %1401 = vrot.lane.b32.xlu0 %v1399, 32
  %v1402 = vpop.permute.xlu0 %1401
  %1404 = vst.msk [vmem:[%s6 + $0x4] sm:$0x1] %vm549, %v1402
  %1405 = vst.msk [vmem:[%s551 + $0x3] sm:$0x2] %vm552, %v1402
  %v1406 = vrot.slane %v156, 6
  %v1408 = vrot.slane %v218, 5
  %v1410 = vsel %vm234, %v1406, %v1408
  %1412 = vrot.lane.b32.xlu0 %v1297, 32
  %v1413 = vpop.permute.xlu0 %1412
  %v1414 = vsel %vm236, %v1413, 0
  %1416 = vmatprep.subr.mxu0 0.0
  %1417 = vmatpush1.msra.mxu0 0.0
  %1418 = vmatprep.subr.mxu0 0.0
  %1419 = vmatpush1.msra.mxu0 0.0
  %1420 = vmatprep.subr.mxu0 0.0
  %1421 = vmatpush1.msra.mxu0 0.0
  %1422 = vmatprep.subr.mxu0 0.0
  %1423 = vmatpush1.msra.mxu0 0.0
  %1424 = vmatprep.subr.mxu0 0.0
  %1425 = vmatpush1.msra.mxu0 0.0
  %1426 = vmatprep.subr.mxu0 0.0
  %1427 = vmatpush1.msra.mxu0 0.0
  %1428 = vmatprep.subr.mxu0 0.0
  %1429 = vmatpush1.msra.mxu0 0.0
  %1430 = vmatprep.subr.mxu0 0.0
  %1431 = vmatpush1.msra.mxu0 0.0
  %1432 = vmatprep.subr.mxu0 0.0
  %1433 = vmatpush1.msra.mxu0 0.0
  %1434 = vmatprep.subr.mxu0 0.0
  %1435 = vmatpush1.msra.mxu0 0.0
  %1436 = vmatprep.subr.mxu0 0.0
  %1437 = vmatpush1.msra.mxu0 0.0
  %1438 = vmatprep.subr.mxu0 0.0
  %1439 = vmatpush1.msra.mxu0 0.0
  %1440 = vmatprep.subr.mxu0 0.0
  %1441 = vmatpush1.msra.mxu0 %v43
  %1442 = vmatprep.subr.mxu0 0.0
  %1443 = vmatpush1.msra.mxu0 %v42
  %1444 = vmatprep.subr.mxu0 0.0
  %1445 = vmatpush1.msra.mxu0 %v41
  %1446 = vmatprep.subr.mxu0 0.0
  %1447 = vmatpush1.msra.mxu0 %v40
  %1448 = vmatprep.subr.mxu0 0.0
  %1449 = vmatpush2.msra.mxu0 0.0
  %1450 = vmatprep.subr.mxu0 0.0
  %1451 = vmatpush2.msra.mxu0 0.0
  %1452 = vmatprep.subr.mxu0 0.0
  %1453 = vmatpush2.msra.mxu0 0.0
  %1454 = vmatprep.subr.mxu0 0.0
  %1455 = vmatpush2.msra.mxu0 0.0
  %1456 = vmatprep.subr.mxu0 0.0
  %1457 = vmatpush2.msra.mxu0 0.0
  %1458 = vmatprep.subr.mxu0 0.0
  %1459 = vmatpush2.msra.mxu0 0.0
  %1460 = vmatprep.subr.mxu0 0.0
  %1461 = vmatpush2.msra.mxu0 0.0
  %1462 = vmatprep.subr.mxu0 0.0
  %1463 = vmatpush2.msra.mxu0 0.0
  %1464 = vmatprep.subr.mxu0 0.0
  %1465 = vmatpush2.msra.mxu0 0.0
  %1466 = vmatprep.subr.mxu0 0.0
  %1467 = vmatpush2.msra.mxu0 0.0
  %1468 = vmatprep.subr.mxu0 0.0
  %1469 = vmatpush2.msra.mxu0 0.0
  %1470 = vmatprep.subr.mxu0 0.0
  %1471 = vmatpush2.msra.mxu0 0.0
  %1472 = vmatprep.subr.mxu0 0.0
  %1473 = vmatpush2.msra.mxu0 0.0
  %1474 = vmatprep.subr.mxu0 0.0
  %1475 = vmatpush2.msra.mxu0 0.0
  %1476 = vmatprep.subr.mxu0 0.0
  %1477 = vmatpush2.msra.mxu0 0.0
  %1478 = vmatprep.subr.mxu0 0.0
  %1479 = vmatpush2.msra.mxu0 0.0
  %1480 = vmatprep.mubr.f32.mxu0 0.0
  %1481 = vmatmul.mubr.f32.gmra.mxu0 %v1414
  %v1482 = vpop.f32.mrf.mxu0
  %v1483 = vadd.f32 0.0, %v1482
  %v1484 = vpop.f32.mrf.mxu0
  %1485 = vdwg.mxu0
  %v1486 = vadd.f32 %v1410, %v1483
  %v1487 = vxor.u32 %v1486, 2147483648
  %v1488 = vmul.f32 %v1487, 1.442695
  %v1489 = vpow.pop %v1488
  %v1490 = vadd.f32 %v1489, 1.0
  %v1491 = vrcp.pop %v1490
  %v1492 = vmul.f32 1.0, %v1491
  %v1493 = vtanh.pop %v1486
  %v1494 = vmul.f32 %v1492, %v1291
  %1496 = vrot.lane.b32.xlu0 %v1493, 64
  %v1497 = vpop.permute.xlu0 %1496
  %v1499 = vmul.f32 %v1492, %v1497
  %1501 = vrot.lane.b32.xlu0 %v1499, 32
  %v1502 = vpop.permute.xlu0 %1501
  %v1504 = vadd.f32 %v1494, %v1502
  %v1505 = vtanh.pop %v1504
  %1507 = vrot.lane.b32.xlu0 %v1505, 64
  %v1508 = vpop.permute.xlu0 %1507
  %v1510 = vmul.f32 %v1492, %v1508
  %1512 = vrot.lane.b32.xlu0 %v1399, 64
  %v1513 = vpop.permute.xlu0 %1512
  %v1515 = vsel %vm236, %v1413, %v1513
  %v1517 = vsel %vm447, %v1515, 0
  %1519 = vmatprep.subr.mxu0 0.0
  %1520 = vmatpush1.msra.mxu0 0.0
  %1521 = vmatprep.subr.mxu0 0.0
  %1522 = vmatpush1.msra.mxu0 0.0
  %1523 = vmatprep.subr.mxu0 0.0
  %1524 = vmatpush1.msra.mxu0 0.0
  %1525 = vmatprep.subr.mxu0 0.0
  %1526 = vmatpush1.msra.mxu0 0.0
  %1527 = vmatprep.subr.mxu0 0.0
  %1528 = vmatpush1.msra.mxu0 0.0
  %1529 = vmatprep.subr.mxu0 0.0
  %1530 = vmatpush1.msra.mxu0 0.0
  %1531 = vmatprep.subr.mxu0 0.0
  %1532 = vmatpush1.msra.mxu0 0.0
  %1533 = vmatprep.subr.mxu0 0.0
  %1534 = vmatpush1.msra.mxu0 0.0
  %1535 = vmatprep.subr.mxu0 0.0
  %1536 = vmatpush1.msra.mxu0 %v52
  %1537 = vmatprep.subr.mxu0 0.0
  %1538 = vmatpush1.msra.mxu0 %v51
  %1539 = vmatprep.subr.mxu0 0.0
  %1540 = vmatpush1.msra.mxu0 %v50
  %1541 = vmatprep.subr.mxu0 0.0
  %1542 = vmatpush1.msra.mxu0 %v49
  %1543 = vmatprep.subr.mxu0 0.0
  %1544 = vmatpush1.msra.mxu0 %v48
  %1545 = vmatprep.subr.mxu0 0.0
  %1546 = vmatpush1.msra.mxu0 %v47
  %1547 = vmatprep.subr.mxu0 0.0
  %1548 = vmatpush1.msra.mxu0 %v46
  %1549 = vmatprep.subr.mxu0 0.0
  %1550 = vmatpush1.msra.mxu0 %v45
  %1551 = vmatprep.subr.mxu0 0.0
  %1552 = vmatpush2.msra.mxu0 0.0
  %1553 = vmatprep.subr.mxu0 0.0
  %1554 = vmatpush2.msra.mxu0 0.0
  %1555 = vmatprep.subr.mxu0 0.0
  %1556 = vmatpush2.msra.mxu0 0.0
  %1557 = vmatprep.subr.mxu0 0.0
  %1558 = vmatpush2.msra.mxu0 0.0
  %1559 = vmatprep.subr.mxu0 0.0
  %1560 = vmatpush2.msra.mxu0 0.0
  %1561 = vmatprep.subr.mxu0 0.0
  %1562 = vmatpush2.msra.mxu0 0.0
  %1563 = vmatprep.subr.mxu0 0.0
  %1564 = vmatpush2.msra.mxu0 0.0
  %1565 = vmatprep.subr.mxu0 0.0
  %1566 = vmatpush2.msra.mxu0 0.0
  %1567 = vmatprep.subr.mxu0 0.0
  %1568 = vmatpush2.msra.mxu0 0.0
  %1569 = vmatprep.subr.mxu0 0.0
  %1570 = vmatpush2.msra.mxu0 0.0
  %1571 = vmatprep.subr.mxu0 0.0
  %1572 = vmatpush2.msra.mxu0 0.0
  %1573 = vmatprep.subr.mxu0 0.0
  %1574 = vmatpush2.msra.mxu0 0.0
  %1575 = vmatprep.subr.mxu0 0.0
  %1576 = vmatpush2.msra.mxu0 0.0
  %1577 = vmatprep.subr.mxu0 0.0
  %1578 = vmatpush2.msra.mxu0 0.0
  %1579 = vmatprep.subr.mxu0 0.0
  %1580 = vmatpush2.msra.mxu0 0.0
  %1581 = vmatprep.subr.mxu0 0.0
  %1582 = vmatpush2.msra.mxu0 0.0
  %1583 = vmatprep.mubr.f32.mxu0 0.0
  %1584 = vmatmul.mubr.f32.gmra.mxu0 %v1517
  %v1585 = vpop.f32.mrf.mxu0
  %v1586 = vadd.f32 %v445, %v1585
  %v1587 = vpop.f32.mrf.mxu0
  %1588 = vdwg.mxu0
  %v1589 = vxor.u32 %v1586, 2147483648
  %v1590 = vmul.f32 %v1589, 1.442695
  %v1591 = vpow.pop %v1590
  %v1592 = vadd.f32 %v1591, 1.0
  %v1593 = vrcp.pop %v1592
  %v1594 = vmul.f32 1.0, %v1593
  %v1595 = vtanh.pop %v1586
  %v1596 = vmul.f32 %v1594, %v1393
  %1598 = vrot.lane.b32.xlu0 %v1595, 64
  %v1599 = vpop.permute.xlu0 %1598
  %v1601 = vmul.f32 %v1594, %v1599
  %1603 = vrot.lane.b32.xlu0 %v1601, 32
  %v1604 = vpop.permute.xlu0 %1603
  %v1606 = vadd.f32 %v1596, %v1604
  %v1607 = vtanh.pop %v1606
  %1609 = vrot.lane.b32.xlu0 %v1607, 64
  %v1610 = vpop.permute.xlu0 %1609
  %v1612 = vmul.f32 %v1594, %v1610
  %1614 = vrot.lane.b32.xlu0 %v1612, 32
  %v1615 = vpop.permute.xlu0 %1614
  %1617 = vst.msk [vmem:[%s6 + $0x5] sm:$0x1] %vm549, %v1615
  %1618 = vst.msk [vmem:[%s551 + $0x4] sm:$0x2] %vm552, %v1615
  %v1619 = vrot.slane %v156, 7
  %v1621 = vrot.slane %v218, 6
  %v1623 = vsel %vm234, %v1619, %v1621
  %1625 = vrot.lane.b32.xlu0 %v1510, 32
  %v1626 = vpop.permute.xlu0 %1625
  %v1627 = vsel %vm236, %v1626, 0
  %1629 = vmatprep.subr.mxu0 0.0
  %1630 = vmatpush1.msra.mxu0 0.0
  %1631 = vmatprep.subr.mxu0 0.0
  %1632 = vmatpush1.msra.mxu0 0.0
  %1633 = vmatprep.subr.mxu0 0.0
  %1634 = vmatpush1.msra.mxu0 0.0
  %1635 = vmatprep.subr.mxu0 0.0
  %1636 = vmatpush1.msra.mxu0 0.0
  %1637 = vmatprep.subr.mxu0 0.0
  %1638 = vmatpush1.msra.mxu0 0.0
  %1639 = vmatprep.subr.mxu0 0.0
  %1640 = vmatpush1.msra.mxu0 0.0
  %1641 = vmatprep.subr.mxu0 0.0
  %1642 = vmatpush1.msra.mxu0 0.0
  %1643 = vmatprep.subr.mxu0 0.0
  %1644 = vmatpush1.msra.mxu0 0.0
  %1645 = vmatprep.subr.mxu0 0.0
  %1646 = vmatpush1.msra.mxu0 0.0
  %1647 = vmatprep.subr.mxu0 0.0
  %1648 = vmatpush1.msra.mxu0 0.0
  %1649 = vmatprep.subr.mxu0 0.0
  %1650 = vmatpush1.msra.mxu0 0.0
  %1651 = vmatprep.subr.mxu0 0.0
  %1652 = vmatpush1.msra.mxu0 0.0
  %1653 = vmatprep.subr.mxu0 0.0
  %1654 = vmatpush1.msra.mxu0 %v43
  %1655 = vmatprep.subr.mxu0 0.0
  %1656 = vmatpush1.msra.mxu0 %v42
  %1657 = vmatprep.subr.mxu0 0.0
  %1658 = vmatpush1.msra.mxu0 %v41
  %1659 = vmatprep.subr.mxu0 0.0
  %1660 = vmatpush1.msra.mxu0 %v40
  %1661 = vmatprep.subr.mxu0 0.0
  %1662 = vmatpush2.msra.mxu0 0.0
  %1663 = vmatprep.subr.mxu0 0.0
  %1664 = vmatpush2.msra.mxu0 0.0
  %1665 = vmatprep.subr.mxu0 0.0
  %1666 = vmatpush2.msra.mxu0 0.0
  %1667 = vmatprep.subr.mxu0 0.0
  %1668 = vmatpush2.msra.mxu0 0.0
  %1669 = vmatprep.subr.mxu0 0.0
  %1670 = vmatpush2.msra.mxu0 0.0
  %1671 = vmatprep.subr.mxu0 0.0
  %1672 = vmatpush2.msra.mxu0 0.0
  %1673 = vmatprep.subr.mxu0 0.0
  %1674 = vmatpush2.msra.mxu0 0.0
  %1675 = vmatprep.subr.mxu0 0.0
  %1676 = vmatpush2.msra.mxu0 0.0
  %1677 = vmatprep.subr.mxu0 0.0
  %1678 = vmatpush2.msra.mxu0 0.0
  %1679 = vmatprep.subr.mxu0 0.0
  %1680 = vmatpush2.msra.mxu0 0.0
  %1681 = vmatprep.subr.mxu0 0.0
  %1682 = vmatpush2.msra.mxu0 0.0
  %1683 = vmatprep.subr.mxu0 0.0
  %1684 = vmatpush2.msra.mxu0 0.0
  %1685 = vmatprep.subr.mxu0 0.0
  %1686 = vmatpush2.msra.mxu0 0.0
  %1687 = vmatprep.subr.mxu0 0.0
  %1688 = vmatpush2.msra.mxu0 0.0
  %1689 = vmatprep.subr.mxu0 0.0
  %1690 = vmatpush2.msra.mxu0 0.0
  %1691 = vmatprep.subr.mxu0 0.0
  %1692 = vmatpush2.msra.mxu0 0.0
  %1693 = vmatprep.mubr.f32.mxu0 0.0
  %1694 = vmatmul.mubr.f32.gmra.mxu0 %v1627
  %v1695 = vpop.f32.mrf.mxu0
  %v1696 = vadd.f32 0.0, %v1695
  %v1697 = vpop.f32.mrf.mxu0
  %1698 = vdwg.mxu0
  %v1699 = vadd.f32 %v1623, %v1696
  %v1700 = vxor.u32 %v1699, 2147483648
  %v1701 = vmul.f32 %v1700, 1.442695
  %v1702 = vpow.pop %v1701
  %v1703 = vadd.f32 %v1702, 1.0
  %v1704 = vrcp.pop %v1703
  %v1705 = vmul.f32 1.0, %v1704
  %v1706 = vtanh.pop %v1699
  %v1707 = vmul.f32 %v1705, %v1504
  %1709 = vrot.lane.b32.xlu0 %v1706, 64
  %v1710 = vpop.permute.xlu0 %1709
  %v1712 = vmul.f32 %v1705, %v1710
  %1714 = vrot.lane.b32.xlu0 %v1712, 32
  %v1715 = vpop.permute.xlu0 %1714
  %v1717 = vadd.f32 %v1707, %v1715
  %v1718 = vtanh.pop %v1717
  %1720 = vrot.lane.b32.xlu0 %v1718, 64
  %v1721 = vpop.permute.xlu0 %1720
  %v1723 = vmul.f32 %v1705, %v1721
  %1725 = vrot.lane.b32.xlu0 %v1612, 64
  %v1726 = vpop.permute.xlu0 %1725
  %v1728 = vsel %vm236, %v1626, %v1726
  %v1730 = vsel %vm447, %v1728, 0
  %1732 = vmatprep.subr.mxu0 0.0
  %1733 = vmatpush1.msra.mxu0 0.0
  %1734 = vmatprep.subr.mxu0 0.0
  %1735 = vmatpush1.msra.mxu0 0.0
  %1736 = vmatprep.subr.mxu0 0.0
  %1737 = vmatpush1.msra.mxu0 0.0
  %1738 = vmatprep.subr.mxu0 0.0
  %1739 = vmatpush1.msra.mxu0 0.0
  %1740 = vmatprep.subr.mxu0 0.0
  %1741 = vmatpush1.msra.mxu0 0.0
  %1742 = vmatprep.subr.mxu0 0.0
  %1743 = vmatpush1.msra.mxu0 0.0
  %1744 = vmatprep.subr.mxu0 0.0
  %1745 = vmatpush1.msra.mxu0 0.0
  %1746 = vmatprep.subr.mxu0 0.0
  %1747 = vmatpush1.msra.mxu0 0.0
  %1748 = vmatprep.subr.mxu0 0.0
  %1749 = vmatpush1.msra.mxu0 %v52
  %1750 = vmatprep.subr.mxu0 0.0
  %1751 = vmatpush1.msra.mxu0 %v51
  %1752 = vmatprep.subr.mxu0 0.0
  %1753 = vmatpush1.msra.mxu0 %v50
  %1754 = vmatprep.subr.mxu0 0.0
  %1755 = vmatpush1.msra.mxu0 %v49
  %1756 = vmatprep.subr.mxu0 0.0
  %1757 = vmatpush1.msra.mxu0 %v48
  %1758 = vmatprep.subr.mxu0 0.0
  %1759 = vmatpush1.msra.mxu0 %v47
  %1760 = vmatprep.subr.mxu0 0.0
  %1761 = vmatpush1.msra.mxu0 %v46
  %1762 = vmatprep.subr.mxu0 0.0
  %1763 = vmatpush1.msra.mxu0 %v45
  %1764 = vmatprep.subr.mxu0 0.0
  %1765 = vmatpush2.msra.mxu0 0.0
  %1766 = vmatprep.subr.mxu0 0.0
  %1767 = vmatpush2.msra.mxu0 0.0
  %1768 = vmatprep.subr.mxu0 0.0
  %1769 = vmatpush2.msra.mxu0 0.0
  %1770 = vmatprep.subr.mxu0 0.0
  %1771 = vmatpush2.msra.mxu0 0.0
  %1772 = vmatprep.subr.mxu0 0.0
  %1773 = vmatpush2.msra.mxu0 0.0
  %1774 = vmatprep.subr.mxu0 0.0
  %1775 = vmatpush2.msra.mxu0 0.0
  %1776 = vmatprep.subr.mxu0 0.0
  %1777 = vmatpush2.msra.mxu0 0.0
  %1778 = vmatprep.subr.mxu0 0.0
  %1779 = vmatpush2.msra.mxu0 0.0
  %1780 = vmatprep.subr.mxu0 0.0
  %1781 = vmatpush2.msra.mxu0 0.0
  %1782 = vmatprep.subr.mxu0 0.0
  %1783 = vmatpush2.msra.mxu0 0.0
  %1784 = vmatprep.subr.mxu0 0.0
  %1785 = vmatpush2.msra.mxu0 0.0
  %1786 = vmatprep.subr.mxu0 0.0
  %1787 = vmatpush2.msra.mxu0 0.0
  %1788 = vmatprep.subr.mxu0 0.0
  %1789 = vmatpush2.msra.mxu0 0.0
  %1790 = vmatprep.subr.mxu0 0.0
  %1791 = vmatpush2.msra.mxu0 0.0
  %1792 = vmatprep.subr.mxu0 0.0
  %1793 = vmatpush2.msra.mxu0 0.0
  %1794 = vmatprep.subr.mxu0 0.0
  %1795 = vmatpush2.msra.mxu0 0.0
  %1796 = vmatprep.mubr.f32.mxu0 0.0
  %1797 = vmatmul.mubr.f32.gmra.mxu0 %v1730
  %v1798 = vpop.f32.mrf.mxu0
  %v1799 = vadd.f32 %v445, %v1798
  %v1800 = vpop.f32.mrf.mxu0
  %1801 = vdwg.mxu0
  %v1802 = vxor.u32 %v1799, 2147483648
  %v1803 = vmul.f32 %v1802, 1.442695
  %v1804 = vpow.pop %v1803
  %v1805 = vadd.f32 %v1804, 1.0
  %v1806 = vrcp.pop %v1805
  %v1807 = vmul.f32 1.0, %v1806
  %v1808 = vtanh.pop %v1799
  %v1809 = vmul.f32 %v1807, %v1606
  %1811 = vrot.lane.b32.xlu0 %v1808, 64
  %v1812 = vpop.permute.xlu0 %1811
  %v1814 = vmul.f32 %v1807, %v1812
  %1816 = vrot.lane.b32.xlu0 %v1814, 32
  %v1817 = vpop.permute.xlu0 %1816
  %v1819 = vadd.f32 %v1809, %v1817
  %v1820 = vtanh.pop %v1819
  %1822 = vrot.lane.b32.xlu0 %v1820, 64
  %v1823 = vpop.permute.xlu0 %1822
  %v1825 = vmul.f32 %v1807, %v1823
  %1827 = vrot.lane.b32.xlu0 %v1825, 32
  %v1828 = vpop.permute.xlu0 %1827
  %1830 = vst.msk [vmem:[%s6 + $0x6] sm:$0x1] %vm549, %v1828
  %1831 = vst.msk [vmem:[%s551 + $0x5] sm:$0x2] %vm552, %v1828
  %v1833 = vrot.slane %v221, 7
  %v1835 = vsel %vm234, %v159, %v1833
  %1837 = vrot.lane.b32.xlu0 %v1723, 32
  %v1838 = vpop.permute.xlu0 %1837
  %v1839 = vsel %vm236, %v1838, 0
  %1841 = vmatprep.subr.mxu0 0.0
  %1842 = vmatpush1.msra.mxu0 0.0
  %1843 = vmatprep.subr.mxu0 0.0
  %1844 = vmatpush1.msra.mxu0 0.0
  %1845 = vmatprep.subr.mxu0 0.0
  %1846 = vmatpush1.msra.mxu0 0.0
  %1847 = vmatprep.subr.mxu0 0.0
  %1848 = vmatpush1.msra.mxu0 0.0
  %1849 = vmatprep.subr.mxu0 0.0
  %1850 = vmatpush1.msra.mxu0 0.0
  %1851 = vmatprep.subr.mxu0 0.0
  %1852 = vmatpush1.msra.mxu0 0.0
  %1853 = vmatprep.subr.mxu0 0.0
  %1854 = vmatpush1.msra.mxu0 0.0
  %1855 = vmatprep.subr.mxu0 0.0
  %1856 = vmatpush1.msra.mxu0 0.0
  %1857 = vmatprep.subr.mxu0 0.0
  %1858 = vmatpush1.msra.mxu0 0.0
  %1859 = vmatprep.subr.mxu0 0.0
  %1860 = vmatpush1.msra.mxu0 0.0
  %1861 = vmatprep.subr.mxu0 0.0
  %1862 = vmatpush1.msra.mxu0 0.0
  %1863 = vmatprep.subr.mxu0 0.0
  %1864 = vmatpush1.msra.mxu0 0.0
  %1865 = vmatprep.subr.mxu0 0.0
  %1866 = vmatpush1.msra.mxu0 %v43
  %1867 = vmatprep.subr.mxu0 0.0
  %1868 = vmatpush1.msra.mxu0 %v42
  %1869 = vmatprep.subr.mxu0 0.0
  %1870 = vmatpush1.msra.mxu0 %v41
  %1871 = vmatprep.subr.mxu0 0.0
  %1872 = vmatpush1.msra.mxu0 %v40
  %1873 = vmatprep.subr.mxu0 0.0
  %1874 = vmatpush2.msra.mxu0 0.0
  %1875 = vmatprep.subr.mxu0 0.0
  %1876 = vmatpush2.msra.mxu0 0.0
  %1877 = vmatprep.subr.mxu0 0.0
  %1878 = vmatpush2.msra.mxu0 0.0
  %1879 = vmatprep.subr.mxu0 0.0
  %1880 = vmatpush2.msra.mxu0 0.0
  %1881 = vmatprep.subr.mxu0 0.0
  %1882 = vmatpush2.msra.mxu0 0.0
  %1883 = vmatprep.subr.mxu0 0.0
  %1884 = vmatpush2.msra.mxu0 0.0
  %1885 = vmatprep.subr.mxu0 0.0
  %1886 = vmatpush2.msra.mxu0 0.0
  %1887 = vmatprep.subr.mxu0 0.0
  %1888 = vmatpush2.msra.mxu0 0.0
  %1889 = vmatprep.subr.mxu0 0.0
  %1890 = vmatpush2.msra.mxu0 0.0
  %1891 = vmatprep.subr.mxu0 0.0
  %1892 = vmatpush2.msra.mxu0 0.0
  %1893 = vmatprep.subr.mxu0 0.0
  %1894 = vmatpush2.msra.mxu0 0.0
  %1895 = vmatprep.subr.mxu0 0.0
  %1896 = vmatpush2.msra.mxu0 0.0
  %1897 = vmatprep.subr.mxu0 0.0
  %1898 = vmatpush2.msra.mxu0 0.0
  %1899 = vmatprep.subr.mxu0 0.0
  %1900 = vmatpush2.msra.mxu0 0.0
  %1901 = vmatprep.subr.mxu0 0.0
  %1902 = vmatpush2.msra.mxu0 0.0
  %1903 = vmatprep.subr.mxu0 0.0
  %1904 = vmatpush2.msra.mxu0 0.0
  %1905 = vmatprep.mubr.f32.mxu0 0.0
  %1906 = vmatmul.mubr.f32.gmra.mxu0 %v1839
  %v1907 = vpop.f32.mrf.mxu0
  %v1908 = vadd.f32 0.0, %v1907
  %v1909 = vpop.f32.mrf.mxu0
  %1910 = vdwg.mxu0
  %v1911 = vadd.f32 %v1835, %v1908
  %v1912 = vxor.u32 %v1911, 2147483648
  %v1913 = vmul.f32 %v1912, 1.442695
  %v1914 = vpow.pop %v1913
  %v1915 = vadd.f32 %v1914, 1.0
  %v1916 = vrcp.pop %v1915
  %v1917 = vmul.f32 1.0, %v1916
  %v1918 = vtanh.pop %v1911
  %v1919 = vmul.f32 %v1917, %v1717
  %1921 = vrot.lane.b32.xlu0 %v1918, 64
  %v1922 = vpop.permute.xlu0 %1921
  %v1924 = vmul.f32 %v1917, %v1922
  %1926 = vrot.lane.b32.xlu0 %v1924, 32
  %v1927 = vpop.permute.xlu0 %1926
  %v1929 = vadd.f32 %v1919, %v1927
  %v1930 = vtanh.pop %v1929
  %1932 = vrot.lane.b32.xlu0 %v1930, 64
  %v1933 = vpop.permute.xlu0 %1932
  %v1935 = vmul.f32 %v1917, %v1933
  %1937 = vrot.lane.b32.xlu0 %v1825, 64
  %v1938 = vpop.permute.xlu0 %1937
  %v1940 = vsel %vm236, %v1838, %v1938
  %v1942 = vsel %vm447, %v1940, 0
  %1944 = vmatprep.subr.mxu0 0.0
  %1945 = vmatpush1.msra.mxu0 0.0
  %1946 = vmatprep.subr.mxu0 0.0
  %1947 = vmatpush1.msra.mxu0 0.0
  %1948 = vmatprep.subr.mxu0 0.0
  %1949 = vmatpush1.msra.mxu0 0.0
  %1950 = vmatprep.subr.mxu0 0.0
  %1951 = vmatpush1.msra.mxu0 0.0
  %1952 = vmatprep.subr.mxu0 0.0
  %1953 = vmatpush1.msra.mxu0 0.0
  %1954 = vmatprep.subr.mxu0 0.0
  %1955 = vmatpush1.msra.mxu0 0.0
  %1956 = vmatprep.subr.mxu0 0.0
  %1957 = vmatpush1.msra.mxu0 0.0
  %1958 = vmatprep.subr.mxu0 0.0
  %1959 = vmatpush1.msra.mxu0 0.0
  %1960 = vmatprep.subr.mxu0 0.0
  %1961 = vmatpush1.msra.mxu0 %v52
  %1962 = vmatprep.subr.mxu0 0.0
  %1963 = vmatpush1.msra.mxu0 %v51
  %1964 = vmatprep.subr.mxu0 0.0
  %1965 = vmatpush1.msra.mxu0 %v50
  %1966 = vmatprep.subr.mxu0 0.0
  %1967 = vmatpush1.msra.mxu0 %v49
  %1968 = vmatprep.subr.mxu0 0.0
  %1969 = vmatpush1.msra.mxu0 %v48
  %1970 = vmatprep.subr.mxu0 0.0
  %1971 = vmatpush1.msra.mxu0 %v47
  %1972 = vmatprep.subr.mxu0 0.0
  %1973 = vmatpush1.msra.mxu0 %v46
  %1974 = vmatprep.subr.mxu0 0.0
  %1975 = vmatpush1.msra.mxu0 %v45
  %1976 = vmatprep.subr.mxu0 0.0
  %1977 = vmatpush2.msra.mxu0 0.0
  %1978 = vmatprep.subr.mxu0 0.0
  %1979 = vmatpush2.msra.mxu0 0.0
  %1980 = vmatprep.subr.mxu0 0.0
  %1981 = vmatpush2.msra.mxu0 0.0
  %1982 = vmatprep.subr.mxu0 0.0
  %1983 = vmatpush2.msra.mxu0 0.0
  %1984 = vmatprep.subr.mxu0 0.0
  %1985 = vmatpush2.msra.mxu0 0.0
  %1986 = vmatprep.subr.mxu0 0.0
  %1987 = vmatpush2.msra.mxu0 0.0
  %1988 = vmatprep.subr.mxu0 0.0
  %1989 = vmatpush2.msra.mxu0 0.0
  %1990 = vmatprep.subr.mxu0 0.0
  %1991 = vmatpush2.msra.mxu0 0.0
  %1992 = vmatprep.subr.mxu0 0.0
  %1993 = vmatpush2.msra.mxu0 0.0
  %1994 = vmatprep.subr.mxu0 0.0
  %1995 = vmatpush2.msra.mxu0 0.0
  %1996 = vmatprep.subr.mxu0 0.0
  %1997 = vmatpush2.msra.mxu0 0.0
  %1998 = vmatprep.subr.mxu0 0.0
  %1999 = vmatpush2.msra.mxu0 0.0
  %2000 = vmatprep.subr.mxu0 0.0
  %2001 = vmatpush2.msra.mxu0 0.0
  %2002 = vmatprep.subr.mxu0 0.0
  %2003 = vmatpush2.msra.mxu0 0.0
  %2004 = vmatprep.subr.mxu0 0.0
  %2005 = vmatpush2.msra.mxu0 0.0
  %2006 = vmatprep.subr.mxu0 0.0
  %2007 = vmatpush2.msra.mxu0 0.0
  %2008 = vmatprep.mubr.f32.mxu0 0.0
  %2009 = vmatmul.mubr.f32.gmra.mxu0 %v1942
  %v2010 = vpop.f32.mrf.mxu0
  %v2011 = vadd.f32 %v445, %v2010
  %v2012 = vpop.f32.mrf.mxu0
  %2013 = vdwg.mxu0
  %v2014 = vxor.u32 %v2011, 2147483648
  %v2015 = vmul.f32 %v2014, 1.442695
  %v2016 = vpow.pop %v2015
  %v2017 = vadd.f32 %v2016, 1.0
  %v2018 = vrcp.pop %v2017
  %v2019 = vmul.f32 1.0, %v2018
  %v2020 = vtanh.pop %v2011
  %v2021 = vmul.f32 %v2019, %v1819
  %2023 = vrot.lane.b32.xlu0 %v2020, 64
  %v2024 = vpop.permute.xlu0 %2023
  %v2026 = vmul.f32 %v2019, %v2024
  %2028 = vrot.lane.b32.xlu0 %v2026, 32
  %v2029 = vpop.permute.xlu0 %2028
  %v2031 = vadd.f32 %v2021, %v2029
  %v2032 = vtanh.pop %v2031
  %2034 = vrot.lane.b32.xlu0 %v2032, 64
  %v2035 = vpop.permute.xlu0 %2034
  %v2037 = vmul.f32 %v2019, %v2035
  %2039 = vrot.lane.b32.xlu0 %v2037, 32
  %v2040 = vpop.permute.xlu0 %2039
  %2042 = vst.msk [vmem:[%s6 + $0x7] sm:$0x1] %vm549, %v2040
  %2043 = vst.msk [vmem:[%s551 + $0x6] sm:$0x2] %vm552, %v2040
  %v2045 = vrot.slane %v159, 1
  %v2047 = vsel %vm234, %v2045, %v221
  %2049 = vrot.lane.b32.xlu0 %v1935, 32
  %v2050 = vpop.permute.xlu0 %2049
  %v2051 = vsel %vm236, %v2050, 0
  %2053 = vmatprep.subr.mxu0 0.0
  %2054 = vmatpush1.msra.mxu0 0.0
  %2055 = vmatprep.subr.mxu0 0.0
  %2056 = vmatpush1.msra.mxu0 0.0
  %2057 = vmatprep.subr.mxu0 0.0
  %2058 = vmatpush1.msra.mxu0 0.0
  %2059 = vmatprep.subr.mxu0 0.0
  %2060 = vmatpush1.msra.mxu0 0.0
  %2061 = vmatprep.subr.mxu0 0.0
  %2062 = vmatpush1.msra.mxu0 0.0
  %2063 = vmatprep.subr.mxu0 0.0
  %2064 = vmatpush1.msra.mxu0 0.0
  %2065 = vmatprep.subr.mxu0 0.0
  %2066 = vmatpush1.msra.mxu0 0.0
  %2067 = vmatprep.subr.mxu0 0.0
  %2068 = vmatpush1.msra.mxu0 0.0
  %2069 = vmatprep.subr.mxu0 0.0
  %2070 = vmatpush1.msra.mxu0 0.0
  %2071 = vmatprep.subr.mxu0 0.0
  %2072 = vmatpush1.msra.mxu0 0.0
  %2073 = vmatprep.subr.mxu0 0.0
  %2074 = vmatpush1.msra.mxu0 0.0
  %2075 = vmatprep.subr.mxu0 0.0
  %2076 = vmatpush1.msra.mxu0 0.0
  %2077 = vmatprep.subr.mxu0 0.0
  %2078 = vmatpush1.msra.mxu0 %v43
  %2079 = vmatprep.subr.mxu0 0.0
  %2080 = vmatpush1.msra.mxu0 %v42
  %2081 = vmatprep.subr.mxu0 0.0
  %2082 = vmatpush1.msra.mxu0 %v41
  %2083 = vmatprep.subr.mxu0 0.0
  %2084 = vmatpush1.msra.mxu0 %v40
  %2085 = vmatprep.subr.mxu0 0.0
  %2086 = vmatpush2.msra.mxu0 0.0
  %2087 = vmatprep.subr.mxu0 0.0
  %2088 = vmatpush2.msra.mxu0 0.0
  %2089 = vmatprep.subr.mxu0 0.0
  %2090 = vmatpush2.msra.mxu0 0.0
  %2091 = vmatprep.subr.mxu0 0.0
  %2092 = vmatpush2.msra.mxu0 0.0
  %2093 = vmatprep.subr.mxu0 0.0
  %2094 = vmatpush2.msra.mxu0 0.0
  %2095 = vmatprep.subr.mxu0 0.0
  %2096 = vmatpush2.msra.mxu0 0.0
  %2097 = vmatprep.subr.mxu0 0.0
  %2098 = vmatpush2.msra.mxu0 0.0
  %2099 = vmatprep.subr.mxu0 0.0
  %2100 = vmatpush2.msra.mxu0 0.0
  %2101 = vmatprep.subr.mxu0 0.0
  %2102 = vmatpush2.msra.mxu0 0.0
  %2103 = vmatprep.subr.mxu0 0.0
  %2104 = vmatpush2.msra.mxu0 0.0
  %2105 = vmatprep.subr.mxu0 0.0
  %2106 = vmatpush2.msra.mxu0 0.0
  %2107 = vmatprep.subr.mxu0 0.0
  %2108 = vmatpush2.msra.mxu0 0.0
  %2109 = vmatprep.subr.mxu0 0.0
  %2110 = vmatpush2.msra.mxu0 0.0
  %2111 = vmatprep.subr.mxu0 0.0
  %2112 = vmatpush2.msra.mxu0 0.0
  %2113 = vmatprep.subr.mxu0 0.0
  %2114 = vmatpush2.msra.mxu0 0.0
  %2115 = vmatprep.subr.mxu0 0.0
  %2116 = vmatpush2.msra.mxu0 0.0
  %2117 = vmatprep.mubr.f32.mxu0 0.0
  %2118 = vmatmul.mubr.f32.gmra.mxu0 %v2051
  %v2119 = vpop.f32.mrf.mxu0
  %v2120 = vadd.f32 0.0, %v2119
  %v2121 = vpop.f32.mrf.mxu0
  %2122 = vdwg.mxu0
  %v2123 = vadd.f32 %v2047, %v2120
  %v2124 = vxor.u32 %v2123, 2147483648
  %v2125 = vmul.f32 %v2124, 1.442695
  %v2126 = vpow.pop %v2125
  %v2127 = vadd.f32 %v2126, 1.0
  %v2128 = vrcp.pop %v2127
  %v2129 = vmul.f32 1.0, %v2128
  %v2130 = vtanh.pop %v2123
  %v2131 = vmul.f32 %v2129, %v1929
  %2133 = vrot.lane.b32.xlu0 %v2130, 64
  %v2134 = vpop.permute.xlu0 %2133
  %v2136 = vmul.f32 %v2129, %v2134
  %2138 = vrot.lane.b32.xlu0 %v2136, 32
  %v2139 = vpop.permute.xlu0 %2138
  %v2141 = vadd.f32 %v2131, %v2139
  %v2142 = vtanh.pop %v2141
  %2144 = vrot.lane.b32.xlu0 %v2142, 64
  %v2145 = vpop.permute.xlu0 %2144
  %v2147 = vmul.f32 %v2129, %v2145
  %2149 = vrot.lane.b32.xlu0 %v2037, 64
  %v2150 = vpop.permute.xlu0 %2149
  %v2152 = vsel %vm236, %v2050, %v2150
  %v2154 = vsel %vm447, %v2152, 0
  %2156 = vmatprep.subr.mxu0 0.0
  %2157 = vmatpush1.msra.mxu0 0.0
  %2158 = vmatprep.subr.mxu0 0.0
  %2159 = vmatpush1.msra.mxu0 0.0
  %2160 = vmatprep.subr.mxu0 0.0
  %2161 = vmatpush1.msra.mxu0 0.0
  %2162 = vmatprep.subr.mxu0 0.0
  %2163 = vmatpush1.msra.mxu0 0.0
  %2164 = vmatprep.subr.mxu0 0.0
  %2165 = vmatpush1.msra.mxu0 0.0
  %2166 = vmatprep.subr.mxu0 0.0
  %2167 = vmatpush1.msra.mxu0 0.0
  %2168 = vmatprep.subr.mxu0 0.0
  %2169 = vmatpush1.msra.mxu0 0.0
  %2170 = vmatprep.subr.mxu0 0.0
  %2171 = vmatpush1.msra.mxu0 0.0
  %2172 = vmatprep.subr.mxu0 0.0
  %2173 = vmatpush1.msra.mxu0 %v52
  %2174 = vmatprep.subr.mxu0 0.0
  %2175 = vmatpush1.msra.mxu0 %v51
  %2176 = vmatprep.subr.mxu0 0.0
  %2177 = vmatpush1.msra.mxu0 %v50
  %2178 = vmatprep.subr.mxu0 0.0
  %2179 = vmatpush1.msra.mxu0 %v49
  %2180 = vmatprep.subr.mxu0 0.0
  %2181 = vmatpush1.msra.mxu0 %v48
  %2182 = vmatprep.subr.mxu0 0.0
  %2183 = vmatpush1.msra.mxu0 %v47
  %2184 = vmatprep.subr.mxu0 0.0
  %2185 = vmatpush1.msra.mxu0 %v46
  %2186 = vmatprep.subr.mxu0 0.0
  %2187 = vmatpush1.msra.mxu0 %v45
  %2188 = vmatprep.subr.mxu0 0.0
  %2189 = vmatpush2.msra.mxu0 0.0
  %2190 = vmatprep.subr.mxu0 0.0
  %2191 = vmatpush2.msra.mxu0 0.0
  %2192 = vmatprep.subr.mxu0 0.0
  %2193 = vmatpush2.msra.mxu0 0.0
  %2194 = vmatprep.subr.mxu0 0.0
  %2195 = vmatpush2.msra.mxu0 0.0
  %2196 = vmatprep.subr.mxu0 0.0
  %2197 = vmatpush2.msra.mxu0 0.0
  %2198 = vmatprep.subr.mxu0 0.0
  %2199 = vmatpush2.msra.mxu0 0.0
  %2200 = vmatprep.subr.mxu0 0.0
  %2201 = vmatpush2.msra.mxu0 0.0
  %2202 = vmatprep.subr.mxu0 0.0
  %2203 = vmatpush2.msra.mxu0 0.0
  %2204 = vmatprep.subr.mxu0 0.0
  %2205 = vmatpush2.msra.mxu0 0.0
  %2206 = vmatprep.subr.mxu0 0.0
  %2207 = vmatpush2.msra.mxu0 0.0
  %2208 = vmatprep.subr.mxu0 0.0
  %2209 = vmatpush2.msra.mxu0 0.0
  %2210 = vmatprep.subr.mxu0 0.0
  %2211 = vmatpush2.msra.mxu0 0.0
  %2212 = vmatprep.subr.mxu0 0.0
  %2213 = vmatpush2.msra.mxu0 0.0
  %2214 = vmatprep.subr.mxu0 0.0
  %2215 = vmatpush2.msra.mxu0 0.0
  %2216 = vmatprep.subr.mxu0 0.0
  %2217 = vmatpush2.msra.mxu0 0.0
  %2218 = vmatprep.subr.mxu0 0.0
  %2219 = vmatpush2.msra.mxu0 0.0
  %2220 = vmatprep.mubr.f32.mxu0 0.0
  %2221 = vmatmul.mubr.f32.gmra.mxu0 %v2154
  %v2222 = vpop.f32.mrf.mxu0
  %v2223 = vadd.f32 %v445, %v2222
  %v2224 = vpop.f32.mrf.mxu0
  %2225 = vdwg.mxu0
  %v2226 = vxor.u32 %v2223, 2147483648
  %v2227 = vmul.f32 %v2226, 1.442695
  %v2228 = vpow.pop %v2227
  %v2229 = vadd.f32 %v2228, 1.0
  %v2230 = vrcp.pop %v2229
  %v2231 = vmul.f32 1.0, %v2230
  %v2232 = vtanh.pop %v2223
  %v2233 = vmul.f32 %v2231, %v2031
  %2235 = vrot.lane.b32.xlu0 %v2232, 64
  %v2236 = vpop.permute.xlu0 %2235
  %v2238 = vmul.f32 %v2231, %v2236
  %2240 = vrot.lane.b32.xlu0 %v2238, 32
  %v2241 = vpop.permute.xlu0 %2240
  %v2243 = vadd.f32 %v2233, %v2241
  %v2244 = vtanh.pop %v2243
  %2246 = vrot.lane.b32.xlu0 %v2244, 64
  %v2247 = vpop.permute.xlu0 %2246
  %v2249 = vmul.f32 %v2231, %v2247
  %2251 = vrot.lane.b32.xlu0 %v2249, 32
  %v2252 = vpop.permute.xlu0 %2251
  %2254 = vst.msk [vmem:[%s6 + $0x8] sm:$0x1] %vm549, %v2252
  %2255 = vst.msk [vmem:[%s551 + $0x7] sm:$0x2] %vm552, %v2252
  %v2256 = vrot.slane %v159, 2
  %v2258 = vrot.slane %v221, 1
  %v2260 = vsel %vm234, %v2256, %v2258
  %2262 = vrot.lane.b32.xlu0 %v2147, 32
  %v2263 = vpop.permute.xlu0 %2262
  %v2264 = vsel %vm236, %v2263, 0
  %2266 = vmatprep.subr.mxu0 0.0
  %2267 = vmatpush1.msra.mxu0 0.0
  %2268 = vmatprep.subr.mxu0 0.0
  %2269 = vmatpush1.msra.mxu0 0.0
  %2270 = vmatprep.subr.mxu0 0.0
  %2271 = vmatpush1.msra.mxu0 0.0
  %2272 = vmatprep.subr.mxu0 0.0
  %2273 = vmatpush1.msra.mxu0 0.0
  %2274 = vmatprep.subr.mxu0 0.0
  %2275 = vmatpush1.msra.mxu0 0.0
  %2276 = vmatprep.subr.mxu0 0.0
  %2277 = vmatpush1.msra.mxu0 0.0
  %2278 = vmatprep.subr.mxu0 0.0
  %2279 = vmatpush1.msra.mxu0 0.0
  %2280 = vmatprep.subr.mxu0 0.0
  %2281 = vmatpush1.msra.mxu0 0.0
  %2282 = vmatprep.subr.mxu0 0.0
  %2283 = vmatpush1.msra.mxu0 0.0
  %2284 = vmatprep.subr.mxu0 0.0
  %2285 = vmatpush1.msra.mxu0 0.0
  %2286 = vmatprep.subr.mxu0 0.0
  %2287 = vmatpush1.msra.mxu0 0.0
  %2288 = vmatprep.subr.mxu0 0.0
  %2289 = vmatpush1.msra.mxu0 0.0
  %2290 = vmatprep.subr.mxu0 0.0
  %2291 = vmatpush1.msra.mxu0 %v43
  %2292 = vmatprep.subr.mxu0 0.0
  %2293 = vmatpush1.msra.mxu0 %v42
  %2294 = vmatprep.subr.mxu0 0.0
  %2295 = vmatpush1.msra.mxu0 %v41
  %2296 = vmatprep.subr.mxu0 0.0
  %2297 = vmatpush1.msra.mxu0 %v40
  %2298 = vmatprep.subr.mxu0 0.0
  %2299 = vmatpush2.msra.mxu0 0.0
  %2300 = vmatprep.subr.mxu0 0.0
  %2301 = vmatpush2.msra.mxu0 0.0
  %2302 = vmatprep.subr.mxu0 0.0
  %2303 = vmatpush2.msra.mxu0 0.0
  %2304 = vmatprep.subr.mxu0 0.0
  %2305 = vmatpush2.msra.mxu0 0.0
  %2306 = vmatprep.subr.mxu0 0.0
  %2307 = vmatpush2.msra.mxu0 0.0
  %2308 = vmatprep.subr.mxu0 0.0
  %2309 = vmatpush2.msra.mxu0 0.0
  %2310 = vmatprep.subr.mxu0 0.0
  %2311 = vmatpush2.msra.mxu0 0.0
  %2312 = vmatprep.subr.mxu0 0.0
  %2313 = vmatpush2.msra.mxu0 0.0
  %2314 = vmatprep.subr.mxu0 0.0
  %2315 = vmatpush2.msra.mxu0 0.0
  %2316 = vmatprep.subr.mxu0 0.0
  %2317 = vmatpush2.msra.mxu0 0.0
  %2318 = vmatprep.subr.mxu0 0.0
  %2319 = vmatpush2.msra.mxu0 0.0
  %2320 = vmatprep.subr.mxu0 0.0
  %2321 = vmatpush2.msra.mxu0 0.0
  %2322 = vmatprep.subr.mxu0 0.0
  %2323 = vmatpush2.msra.mxu0 0.0
  %2324 = vmatprep.subr.mxu0 0.0
  %2325 = vmatpush2.msra.mxu0 0.0
  %2326 = vmatprep.subr.mxu0 0.0
  %2327 = vmatpush2.msra.mxu0 0.0
  %2328 = vmatprep.subr.mxu0 0.0
  %2329 = vmatpush2.msra.mxu0 0.0
  %2330 = vmatprep.mubr.f32.mxu0 0.0
  %2331 = vmatmul.mubr.f32.gmra.mxu0 %v2264
  %v2332 = vpop.f32.mrf.mxu0
  %v2333 = vadd.f32 0.0, %v2332
  %v2334 = vpop.f32.mrf.mxu0
  %2335 = vdwg.mxu0
  %v2336 = vadd.f32 %v2260, %v2333
  %v2337 = vxor.u32 %v2336, 2147483648
  %v2338 = vmul.f32 %v2337, 1.442695
  %v2339 = vpow.pop %v2338
  %v2340 = vadd.f32 %v2339, 1.0
  %v2341 = vrcp.pop %v2340
  %v2342 = vmul.f32 1.0, %v2341
  %v2343 = vtanh.pop %v2336
  %v2344 = vmul.f32 %v2342, %v2141
  %2346 = vrot.lane.b32.xlu0 %v2343, 64
  %v2347 = vpop.permute.xlu0 %2346
  %v2349 = vmul.f32 %v2342, %v2347
  %2351 = vrot.lane.b32.xlu0 %v2349, 32
  %v2352 = vpop.permute.xlu0 %2351
  %v2354 = vadd.f32 %v2344, %v2352
  %v2355 = vtanh.pop %v2354
  %2357 = vrot.lane.b32.xlu0 %v2355, 64
  %v2358 = vpop.permute.xlu0 %2357
  %v2360 = vmul.f32 %v2342, %v2358
  %2362 = vrot.lane.b32.xlu0 %v2249, 64
  %v2363 = vpop.permute.xlu0 %2362
  %v2365 = vsel %vm236, %v2263, %v2363
  %v2367 = vsel %vm447, %v2365, 0
  %2369 = vmatprep.subr.mxu0 0.0
  %2370 = vmatpush1.msra.mxu0 0.0
  %2371 = vmatprep.subr.mxu0 0.0
  %2372 = vmatpush1.msra.mxu0 0.0
  %2373 = vmatprep.subr.mxu0 0.0
  %2374 = vmatpush1.msra.mxu0 0.0
  %2375 = vmatprep.subr.mxu0 0.0
  %2376 = vmatpush1.msra.mxu0 0.0
  %2377 = vmatprep.subr.mxu0 0.0
  %2378 = vmatpush1.msra.mxu0 0.0
  %2379 = vmatprep.subr.mxu0 0.0
  %2380 = vmatpush1.msra.mxu0 0.0
  %2381 = vmatprep.subr.mxu0 0.0
  %2382 = vmatpush1.msra.mxu0 0.0
  %2383 = vmatprep.subr.mxu0 0.0
  %2384 = vmatpush1.msra.mxu0 0.0
  %2385 = vmatprep.subr.mxu0 0.0
  %2386 = vmatpush1.msra.mxu0 %v52
  %2387 = vmatprep.subr.mxu0 0.0
  %2388 = vmatpush1.msra.mxu0 %v51
  %2389 = vmatprep.subr.mxu0 0.0
  %2390 = vmatpush1.msra.mxu0 %v50
  %2391 = vmatprep.subr.mxu0 0.0
  %2392 = vmatpush1.msra.mxu0 %v49
  %2393 = vmatprep.subr.mxu0 0.0
  %2394 = vmatpush1.msra.mxu0 %v48
  %2395 = vmatprep.subr.mxu0 0.0
  %2396 = vmatpush1.msra.mxu0 %v47
  %2397 = vmatprep.subr.mxu0 0.0
  %2398 = vmatpush1.msra.mxu0 %v46
  %2399 = vmatprep.subr.mxu0 0.0
  %2400 = vmatpush1.msra.mxu0 %v45
  %2401 = vmatprep.subr.mxu0 0.0
  %2402 = vmatpush2.msra.mxu0 0.0
  %2403 = vmatprep.subr.mxu0 0.0
  %2404 = vmatpush2.msra.mxu0 0.0
  %2405 = vmatprep.subr.mxu0 0.0
  %2406 = vmatpush2.msra.mxu0 0.0
  %2407 = vmatprep.subr.mxu0 0.0
  %2408 = vmatpush2.msra.mxu0 0.0
  %2409 = vmatprep.subr.mxu0 0.0
  %2410 = vmatpush2.msra.mxu0 0.0
  %2411 = vmatprep.subr.mxu0 0.0
  %2412 = vmatpush2.msra.mxu0 0.0
  %2413 = vmatprep.subr.mxu0 0.0
  %2414 = vmatpush2.msra.mxu0 0.0
  %2415 = vmatprep.subr.mxu0 0.0
  %2416 = vmatpush2.msra.mxu0 0.0
  %2417 = vmatprep.subr.mxu0 0.0
  %2418 = vmatpush2.msra.mxu0 0.0
  %2419 = vmatprep.subr.mxu0 0.0
  %2420 = vmatpush2.msra.mxu0 0.0
  %2421 = vmatprep.subr.mxu0 0.0
  %2422 = vmatpush2.msra.mxu0 0.0
  %2423 = vmatprep.subr.mxu0 0.0
  %2424 = vmatpush2.msra.mxu0 0.0
  %2425 = vmatprep.subr.mxu0 0.0
  %2426 = vmatpush2.msra.mxu0 0.0
  %2427 = vmatprep.subr.mxu0 0.0
  %2428 = vmatpush2.msra.mxu0 0.0
  %2429 = vmatprep.subr.mxu0 0.0
  %2430 = vmatpush2.msra.mxu0 0.0
  %2431 = vmatprep.subr.mxu0 0.0
  %2432 = vmatpush2.msra.mxu0 0.0
  %2433 = vmatprep.mubr.f32.mxu0 0.0
  %2434 = vmatmul.mubr.f32.gmra.mxu0 %v2367
  %v2435 = vpop.f32.mrf.mxu0
  %v2436 = vadd.f32 %v445, %v2435
  %v2437 = vpop.f32.mrf.mxu0
  %2438 = vdwg.mxu0
  %v2439 = vxor.u32 %v2436, 2147483648
  %v2440 = vmul.f32 %v2439, 1.442695
  %v2441 = vpow.pop %v2440
  %v2442 = vadd.f32 %v2441, 1.0
  %v2443 = vrcp.pop %v2442
  %v2444 = vmul.f32 1.0, %v2443
  %v2445 = vtanh.pop %v2436
  %v2446 = vmul.f32 %v2444, %v2243
  %2448 = vrot.lane.b32.xlu0 %v2445, 64
  %v2449 = vpop.permute.xlu0 %2448
  %v2451 = vmul.f32 %v2444, %v2449
  %2453 = vrot.lane.b32.xlu0 %v2451, 32
  %v2454 = vpop.permute.xlu0 %2453
  %v2456 = vadd.f32 %v2446, %v2454
  %v2457 = vtanh.pop %v2456
  %2459 = vrot.lane.b32.xlu0 %v2457, 64
  %v2460 = vpop.permute.xlu0 %2459
  %v2462 = vmul.f32 %v2444, %v2460
  %2464 = vrot.lane.b32.xlu0 %v2462, 32
  %v2465 = vpop.permute.xlu0 %2464
  %2467 = vst.msk [vmem:[%s6 + $0x9] sm:$0x1] %vm549, %v2465
  %2468 = vst.msk [vmem:[%s551 + $0x8] sm:$0x2] %vm552, %v2465
  %v2469 = vrot.slane %v159, 3
  %v2471 = vrot.slane %v221, 2
  %v2473 = vsel %vm234, %v2469, %v2471
  %2475 = vrot.lane.b32.xlu0 %v2360, 32
  %v2476 = vpop.permute.xlu0 %2475
  %v2477 = vsel %vm236, %v2476, 0
  %2479 = vmatprep.subr.mxu0 0.0
  %2480 = vmatpush1.msra.mxu0 0.0
  %2481 = vmatprep.subr.mxu0 0.0
  %2482 = vmatpush1.msra.mxu0 0.0
  %2483 = vmatprep.subr.mxu0 0.0
  %2484 = vmatpush1.msra.mxu0 0.0
  %2485 = vmatprep.subr.mxu0 0.0
  %2486 = vmatpush1.msra.mxu0 0.0
  %2487 = vmatprep.subr.mxu0 0.0
  %2488 = vmatpush1.msra.mxu0 0.0
  %2489 = vmatprep.subr.mxu0 0.0
  %2490 = vmatpush1.msra.mxu0 0.0
  %2491 = vmatprep.subr.mxu0 0.0
  %2492 = vmatpush1.msra.mxu0 0.0
  %2493 = vmatprep.subr.mxu0 0.0
  %2494 = vmatpush1.msra.mxu0 0.0
  %2495 = vmatprep.subr.mxu0 0.0
  %2496 = vmatpush1.msra.mxu0 0.0
  %2497 = vmatprep.subr.mxu0 0.0
  %2498 = vmatpush1.msra.mxu0 0.0
  %2499 = vmatprep.subr.mxu0 0.0
  %2500 = vmatpush1.msra.mxu0 0.0
  %2501 = vmatprep.subr.mxu0 0.0
  %2502 = vmatpush1.msra.mxu0 0.0
  %2503 = vmatprep.subr.mxu0 0.0
  %2504 = vmatpush1.msra.mxu0 %v43
  %2505 = vmatprep.subr.mxu0 0.0
  %2506 = vmatpush1.msra.mxu0 %v42
  %2507 = vmatprep.subr.mxu0 0.0
  %2508 = vmatpush1.msra.mxu0 %v41
  %2509 = vmatprep.subr.mxu0 0.0
  %2510 = vmatpush1.msra.mxu0 %v40
  %2511 = vmatprep.subr.mxu0 0.0
  %2512 = vmatpush2.msra.mxu0 0.0
  %2513 = vmatprep.subr.mxu0 0.0
  %2514 = vmatpush2.msra.mxu0 0.0
  %2515 = vmatprep.subr.mxu0 0.0
  %2516 = vmatpush2.msra.mxu0 0.0
  %2517 = vmatprep.subr.mxu0 0.0
  %2518 = vmatpush2.msra.mxu0 0.0
  %2519 = vmatprep.subr.mxu0 0.0
  %2520 = vmatpush2.msra.mxu0 0.0
  %2521 = vmatprep.subr.mxu0 0.0
  %2522 = vmatpush2.msra.mxu0 0.0
  %2523 = vmatprep.subr.mxu0 0.0
  %2524 = vmatpush2.msra.mxu0 0.0
  %2525 = vmatprep.subr.mxu0 0.0
  %2526 = vmatpush2.msra.mxu0 0.0
  %2527 = vmatprep.subr.mxu0 0.0
  %2528 = vmatpush2.msra.mxu0 0.0
  %2529 = vmatprep.subr.mxu0 0.0
  %2530 = vmatpush2.msra.mxu0 0.0
  %2531 = vmatprep.subr.mxu0 0.0
  %2532 = vmatpush2.msra.mxu0 0.0
  %2533 = vmatprep.subr.mxu0 0.0
  %2534 = vmatpush2.msra.mxu0 0.0
  %2535 = vmatprep.subr.mxu0 0.0
  %2536 = vmatpush2.msra.mxu0 0.0
  %2537 = vmatprep.subr.mxu0 0.0
  %2538 = vmatpush2.msra.mxu0 0.0
  %2539 = vmatprep.subr.mxu0 0.0
  %2540 = vmatpush2.msra.mxu0 0.0
  %2541 = vmatprep.subr.mxu0 0.0
  %2542 = vmatpush2.msra.mxu0 0.0
  %2543 = vmatprep.mubr.f32.mxu0 0.0
  %2544 = vmatmul.mubr.f32.gmra.mxu0 %v2477
  %v2545 = vpop.f32.mrf.mxu0
  %v2546 = vadd.f32 0.0, %v2545
  %v2547 = vpop.f32.mrf.mxu0
  %2548 = vdwg.mxu0
  %v2549 = vadd.f32 %v2473, %v2546
  %v2550 = vxor.u32 %v2549, 2147483648
  %v2551 = vmul.f32 %v2550, 1.442695
  %v2552 = vpow.pop %v2551
  %v2553 = vadd.f32 %v2552, 1.0
  %v2554 = vrcp.pop %v2553
  %v2555 = vmul.f32 1.0, %v2554
  %v2556 = vtanh.pop %v2549
  %v2557 = vmul.f32 %v2555, %v2354
  %2559 = vrot.lane.b32.xlu0 %v2556, 64
  %v2560 = vpop.permute.xlu0 %2559
  %v2562 = vmul.f32 %v2555, %v2560
  %2564 = vrot.lane.b32.xlu0 %v2562, 32
  %v2565 = vpop.permute.xlu0 %2564
  %v2567 = vadd.f32 %v2557, %v2565
  %v2568 = vtanh.pop %v2567
  %2570 = vrot.lane.b32.xlu0 %v2568, 64
  %v2571 = vpop.permute.xlu0 %2570
  %v2573 = vmul.f32 %v2555, %v2571
  %2575 = vrot.lane.b32.xlu0 %v2462, 64
  %v2576 = vpop.permute.xlu0 %2575
  %v2578 = vsel %vm236, %v2476, %v2576
  %v2580 = vsel %vm447, %v2578, 0
  %2582 = vmatprep.subr.mxu0 0.0
  %2583 = vmatpush1.msra.mxu0 0.0
  %2584 = vmatprep.subr.mxu0 0.0
  %2585 = vmatpush1.msra.mxu0 0.0
  %2586 = vmatprep.subr.mxu0 0.0
  %2587 = vmatpush1.msra.mxu0 0.0
  %2588 = vmatprep.subr.mxu0 0.0
  %2589 = vmatpush1.msra.mxu0 0.0
  %2590 = vmatprep.subr.mxu0 0.0
  %2591 = vmatpush1.msra.mxu0 0.0
  %2592 = vmatprep.subr.mxu0 0.0
  %2593 = vmatpush1.msra.mxu0 0.0
  %2594 = vmatprep.subr.mxu0 0.0
  %2595 = vmatpush1.msra.mxu0 0.0
  %2596 = vmatprep.subr.mxu0 0.0
  %2597 = vmatpush1.msra.mxu0 0.0
  %2598 = vmatprep.subr.mxu0 0.0
  %2599 = vmatpush1.msra.mxu0 %v52
  %2600 = vmatprep.subr.mxu0 0.0
  %2601 = vmatpush1.msra.mxu0 %v51
  %2602 = vmatprep.subr.mxu0 0.0
  %2603 = vmatpush1.msra.mxu0 %v50
  %2604 = vmatprep.subr.mxu0 0.0
  %2605 = vmatpush1.msra.mxu0 %v49
  %2606 = vmatprep.subr.mxu0 0.0
  %2607 = vmatpush1.msra.mxu0 %v48
  %2608 = vmatprep.subr.mxu0 0.0
  %2609 = vmatpush1.msra.mxu0 %v47
  %2610 = vmatprep.subr.mxu0 0.0
  %2611 = vmatpush1.msra.mxu0 %v46
  %2612 = vmatprep.subr.mxu0 0.0
  %2613 = vmatpush1.msra.mxu0 %v45
  %2614 = vmatprep.subr.mxu0 0.0
  %2615 = vmatpush2.msra.mxu0 0.0
  %2616 = vmatprep.subr.mxu0 0.0
  %2617 = vmatpush2.msra.mxu0 0.0
  %2618 = vmatprep.subr.mxu0 0.0
  %2619 = vmatpush2.msra.mxu0 0.0
  %2620 = vmatprep.subr.mxu0 0.0
  %2621 = vmatpush2.msra.mxu0 0.0
  %2622 = vmatprep.subr.mxu0 0.0
  %2623 = vmatpush2.msra.mxu0 0.0
  %2624 = vmatprep.subr.mxu0 0.0
  %2625 = vmatpush2.msra.mxu0 0.0
  %2626 = vmatprep.subr.mxu0 0.0
  %2627 = vmatpush2.msra.mxu0 0.0
  %2628 = vmatprep.subr.mxu0 0.0
  %2629 = vmatpush2.msra.mxu0 0.0
  %2630 = vmatprep.subr.mxu0 0.0
  %2631 = vmatpush2.msra.mxu0 0.0
  %2632 = vmatprep.subr.mxu0 0.0
  %2633 = vmatpush2.msra.mxu0 0.0
  %2634 = vmatprep.subr.mxu0 0.0
  %2635 = vmatpush2.msra.mxu0 0.0
  %2636 = vmatprep.subr.mxu0 0.0
  %2637 = vmatpush2.msra.mxu0 0.0
  %2638 = vmatprep.subr.mxu0 0.0
  %2639 = vmatpush2.msra.mxu0 0.0
  %2640 = vmatprep.subr.mxu0 0.0
  %2641 = vmatpush2.msra.mxu0 0.0
  %2642 = vmatprep.subr.mxu0 0.0
  %2643 = vmatpush2.msra.mxu0 0.0
  %2644 = vmatprep.subr.mxu0 0.0
  %2645 = vmatpush2.msra.mxu0 0.0
  %2646 = vmatprep.mubr.f32.mxu0 0.0
  %2647 = vmatmul.mubr.f32.gmra.mxu0 %v2580
  %v2648 = vpop.f32.mrf.mxu0
  %v2649 = vadd.f32 %v445, %v2648
  %v2650 = vpop.f32.mrf.mxu0
  %2651 = vdwg.mxu0
  %v2652 = vxor.u32 %v2649, 2147483648
  %v2653 = vmul.f32 %v2652, 1.442695
  %v2654 = vpow.pop %v2653
  %v2655 = vadd.f32 %v2654, 1.0
  %v2656 = vrcp.pop %v2655
  %v2657 = vmul.f32 1.0, %v2656
  %v2658 = vtanh.pop %v2649
  %v2659 = vmul.f32 %v2657, %v2456
  %2661 = vrot.lane.b32.xlu0 %v2658, 64
  %v2662 = vpop.permute.xlu0 %2661
  %v2664 = vmul.f32 %v2657, %v2662
  %2666 = vrot.lane.b32.xlu0 %v2664, 32
  %v2667 = vpop.permute.xlu0 %2666
  %v2669 = vadd.f32 %v2659, %v2667
  %v2670 = vtanh.pop %v2669
  %2672 = vrot.lane.b32.xlu0 %v2670, 64
  %v2673 = vpop.permute.xlu0 %2672
  %v2675 = vmul.f32 %v2657, %v2673
  %2677 = vrot.lane.b32.xlu0 %v2675, 32
  %v2678 = vpop.permute.xlu0 %2677
  %2680 = vst.msk [vmem:[%s6 + $0xa] sm:$0x1] %vm549, %v2678
  %2681 = vst.msk [vmem:[%s551 + $0x9] sm:$0x2] %vm552, %v2678
  %v2682 = vrot.slane %v159, 4
  %v2684 = vrot.slane %v221, 3
  %v2686 = vsel %vm234, %v2682, %v2684
  %2688 = vrot.lane.b32.xlu0 %v2573, 32
  %v2689 = vpop.permute.xlu0 %2688
  %v2690 = vsel %vm236, %v2689, 0
  %2692 = vmatprep.subr.mxu0 0.0
  %2693 = vmatpush1.msra.mxu0 0.0
  %2694 = vmatprep.subr.mxu0 0.0
  %2695 = vmatpush1.msra.mxu0 0.0
  %2696 = vmatprep.subr.mxu0 0.0
  %2697 = vmatpush1.msra.mxu0 0.0
  %2698 = vmatprep.subr.mxu0 0.0
  %2699 = vmatpush1.msra.mxu0 0.0
  %2700 = vmatprep.subr.mxu0 0.0
  %2701 = vmatpush1.msra.mxu0 0.0
  %2702 = vmatprep.subr.mxu0 0.0
  %2703 = vmatpush1.msra.mxu0 0.0
  %2704 = vmatprep.subr.mxu0 0.0
  %2705 = vmatpush1.msra.mxu0 0.0
  %2706 = vmatprep.subr.mxu0 0.0
  %2707 = vmatpush1.msra.mxu0 0.0
  %2708 = vmatprep.subr.mxu0 0.0
  %2709 = vmatpush1.msra.mxu0 0.0
  %2710 = vmatprep.subr.mxu0 0.0
  %2711 = vmatpush1.msra.mxu0 0.0
  %2712 = vmatprep.subr.mxu0 0.0
  %2713 = vmatpush1.msra.mxu0 0.0
  %2714 = vmatprep.subr.mxu0 0.0
  %2715 = vmatpush1.msra.mxu0 0.0
  %2716 = vmatprep.subr.mxu0 0.0
  %2717 = vmatpush1.msra.mxu0 %v43
  %2718 = vmatprep.subr.mxu0 0.0
  %2719 = vmatpush1.msra.mxu0 %v42
  %2720 = vmatprep.subr.mxu0 0.0
  %2721 = vmatpush1.msra.mxu0 %v41
  %2722 = vmatprep.subr.mxu0 0.0
  %2723 = vmatpush1.msra.mxu0 %v40
  %2724 = vmatprep.subr.mxu0 0.0
  %2725 = vmatpush2.msra.mxu0 0.0
  %2726 = vmatprep.subr.mxu0 0.0
  %2727 = vmatpush2.msra.mxu0 0.0
  %2728 = vmatprep.subr.mxu0 0.0
  %2729 = vmatpush2.msra.mxu0 0.0
  %2730 = vmatprep.subr.mxu0 0.0
  %2731 = vmatpush2.msra.mxu0 0.0
  %2732 = vmatprep.subr.mxu0 0.0
  %2733 = vmatpush2.msra.mxu0 0.0
  %2734 = vmatprep.subr.mxu0 0.0
  %2735 = vmatpush2.msra.mxu0 0.0
  %2736 = vmatprep.subr.mxu0 0.0
  %2737 = vmatpush2.msra.mxu0 0.0
  %2738 = vmatprep.subr.mxu0 0.0
  %2739 = vmatpush2.msra.mxu0 0.0
  %2740 = vmatprep.subr.mxu0 0.0
  %2741 = vmatpush2.msra.mxu0 0.0
  %2742 = vmatprep.subr.mxu0 0.0
  %2743 = vmatpush2.msra.mxu0 0.0
  %2744 = vmatprep.subr.mxu0 0.0
  %2745 = vmatpush2.msra.mxu0 0.0
  %2746 = vmatprep.subr.mxu0 0.0
  %2747 = vmatpush2.msra.mxu0 0.0
  %2748 = vmatprep.subr.mxu0 0.0
  %2749 = vmatpush2.msra.mxu0 0.0
  %2750 = vmatprep.subr.mxu0 0.0
  %2751 = vmatpush2.msra.mxu0 0.0
  %2752 = vmatprep.subr.mxu0 0.0
  %2753 = vmatpush2.msra.mxu0 0.0
  %2754 = vmatprep.subr.mxu0 0.0
  %2755 = vmatpush2.msra.mxu0 0.0
  %2756 = vmatprep.mubr.f32.mxu0 0.0
  %2757 = vmatmul.mubr.f32.gmra.mxu0 %v2690
  %v2758 = vpop.f32.mrf.mxu0
  %v2759 = vadd.f32 0.0, %v2758
  %v2760 = vpop.f32.mrf.mxu0
  %2761 = vdwg.mxu0
  %v2762 = vadd.f32 %v2686, %v2759
  %v2763 = vxor.u32 %v2762, 2147483648
  %v2764 = vmul.f32 %v2763, 1.442695
  %v2765 = vpow.pop %v2764
  %v2766 = vadd.f32 %v2765, 1.0
  %v2767 = vrcp.pop %v2766
  %v2768 = vmul.f32 1.0, %v2767
  %v2769 = vtanh.pop %v2762
  %v2770 = vmul.f32 %v2768, %v2567
  %2772 = vrot.lane.b32.xlu0 %v2769, 64
  %v2773 = vpop.permute.xlu0 %2772
  %v2775 = vmul.f32 %v2768, %v2773
  %2777 = vrot.lane.b32.xlu0 %v2775, 32
  %v2778 = vpop.permute.xlu0 %2777
  %v2780 = vadd.f32 %v2770, %v2778
  %v2781 = vtanh.pop %v2780
  %2783 = vrot.lane.b32.xlu0 %v2781, 64
  %v2784 = vpop.permute.xlu0 %2783
  %v2786 = vmul.f32 %v2768, %v2784
  %2788 = vrot.lane.b32.xlu0 %v2675, 64
  %v2789 = vpop.permute.xlu0 %2788
  %v2791 = vsel %vm236, %v2689, %v2789
  %v2793 = vsel %vm447, %v2791, 0
  %2795 = vmatprep.subr.mxu0 0.0
  %2796 = vmatpush1.msra.mxu0 0.0
  %2797 = vmatprep.subr.mxu0 0.0
  %2798 = vmatpush1.msra.mxu0 0.0
  %2799 = vmatprep.subr.mxu0 0.0
  %2800 = vmatpush1.msra.mxu0 0.0
  %2801 = vmatprep.subr.mxu0 0.0
  %2802 = vmatpush1.msra.mxu0 0.0
  %2803 = vmatprep.subr.mxu0 0.0
  %2804 = vmatpush1.msra.mxu0 0.0
  %2805 = vmatprep.subr.mxu0 0.0
  %2806 = vmatpush1.msra.mxu0 0.0
  %2807 = vmatprep.subr.mxu0 0.0
  %2808 = vmatpush1.msra.mxu0 0.0
  %2809 = vmatprep.subr.mxu0 0.0
  %2810 = vmatpush1.msra.mxu0 0.0
  %2811 = vmatprep.subr.mxu0 0.0
  %2812 = vmatpush1.msra.mxu0 %v52
  %2813 = vmatprep.subr.mxu0 0.0
  %2814 = vmatpush1.msra.mxu0 %v51
  %2815 = vmatprep.subr.mxu0 0.0
  %2816 = vmatpush1.msra.mxu0 %v50
  %2817 = vmatprep.subr.mxu0 0.0
  %2818 = vmatpush1.msra.mxu0 %v49
  %2819 = vmatprep.subr.mxu0 0.0
  %2820 = vmatpush1.msra.mxu0 %v48
  %2821 = vmatprep.subr.mxu0 0.0
  %2822 = vmatpush1.msra.mxu0 %v47
  %2823 = vmatprep.subr.mxu0 0.0
  %2824 = vmatpush1.msra.mxu0 %v46
  %2825 = vmatprep.subr.mxu0 0.0
  %2826 = vmatpush1.msra.mxu0 %v45
  %2827 = vmatprep.subr.mxu0 0.0
  %2828 = vmatpush2.msra.mxu0 0.0
  %2829 = vmatprep.subr.mxu0 0.0
  %2830 = vmatpush2.msra.mxu0 0.0
  %2831 = vmatprep.subr.mxu0 0.0
  %2832 = vmatpush2.msra.mxu0 0.0
  %2833 = vmatprep.subr.mxu0 0.0
  %2834 = vmatpush2.msra.mxu0 0.0
  %2835 = vmatprep.subr.mxu0 0.0
  %2836 = vmatpush2.msra.mxu0 0.0
  %2837 = vmatprep.subr.mxu0 0.0
  %2838 = vmatpush2.msra.mxu0 0.0
  %2839 = vmatprep.subr.mxu0 0.0
  %2840 = vmatpush2.msra.mxu0 0.0
  %2841 = vmatprep.subr.mxu0 0.0
  %2842 = vmatpush2.msra.mxu0 0.0
  %2843 = vmatprep.subr.mxu0 0.0
  %2844 = vmatpush2.msra.mxu0 0.0
  %2845 = vmatprep.subr.mxu0 0.0
  %2846 = vmatpush2.msra.mxu0 0.0
  %2847 = vmatprep.subr.mxu0 0.0
  %2848 = vmatpush2.msra.mxu0 0.0
  %2849 = vmatprep.subr.mxu0 0.0
  %2850 = vmatpush2.msra.mxu0 0.0
  %2851 = vmatprep.subr.mxu0 0.0
  %2852 = vmatpush2.msra.mxu0 0.0
  %2853 = vmatprep.subr.mxu0 0.0
  %2854 = vmatpush2.msra.mxu0 0.0
  %2855 = vmatprep.subr.mxu0 0.0
  %2856 = vmatpush2.msra.mxu0 0.0
  %2857 = vmatprep.subr.mxu0 0.0
  %2858 = vmatpush2.msra.mxu0 0.0
  %2859 = vmatprep.mubr.f32.mxu0 0.0
  %2860 = vmatmul.mubr.f32.gmra.mxu0 %v2793
  %v2861 = vpop.f32.mrf.mxu0
  %v2862 = vadd.f32 %v445, %v2861
  %v2863 = vpop.f32.mrf.mxu0
  %2864 = vdwg.mxu0
  %v2865 = vxor.u32 %v2862, 2147483648
  %v2866 = vmul.f32 %v2865, 1.442695
  %v2867 = vpow.pop %v2866
  %v2868 = vadd.f32 %v2867, 1.0
  %v2869 = vrcp.pop %v2868
  %v2870 = vmul.f32 1.0, %v2869
  %v2871 = vtanh.pop %v2862
  %v2872 = vmul.f32 %v2870, %v2669
  %2874 = vrot.lane.b32.xlu0 %v2871, 64
  %v2875 = vpop.permute.xlu0 %2874
  %v2877 = vmul.f32 %v2870, %v2875
  %2879 = vrot.lane.b32.xlu0 %v2877, 32
  %v2880 = vpop.permute.xlu0 %2879
  %v2882 = vadd.f32 %v2872, %v2880
  %v2883 = vtanh.pop %v2882
  %2885 = vrot.lane.b32.xlu0 %v2883, 64
  %v2886 = vpop.permute.xlu0 %2885
  %v2888 = vmul.f32 %v2870, %v2886
  %2890 = vrot.lane.b32.xlu0 %v2888, 32
  %v2891 = vpop.permute.xlu0 %2890
  %2893 = vst.msk [vmem:[%s6 + $0xb] sm:$0x1] %vm549, %v2891
  %2894 = vst.msk [vmem:[%s551 + $0xa] sm:$0x2] %vm552, %v2891
  %v2895 = vrot.slane %v159, 5
  %v2897 = vrot.slane %v221, 4
  %v2899 = vsel %vm234, %v2895, %v2897
  %2901 = vrot.lane.b32.xlu0 %v2786, 32
  %v2902 = vpop.permute.xlu0 %2901
  %v2903 = vsel %vm236, %v2902, 0
  %2905 = vmatprep.subr.mxu0 0.0
  %2906 = vmatpush1.msra.mxu0 0.0
  %2907 = vmatprep.subr.mxu0 0.0
  %2908 = vmatpush1.msra.mxu0 0.0
  %2909 = vmatprep.subr.mxu0 0.0
  %2910 = vmatpush1.msra.mxu0 0.0
  %2911 = vmatprep.subr.mxu0 0.0
  %2912 = vmatpush1.msra.mxu0 0.0
  %2913 = vmatprep.subr.mxu0 0.0
  %2914 = vmatpush1.msra.mxu0 0.0
  %2915 = vmatprep.subr.mxu0 0.0
  %2916 = vmatpush1.msra.mxu0 0.0
  %2917 = vmatprep.subr.mxu0 0.0
  %2918 = vmatpush1.msra.mxu0 0.0
  %2919 = vmatprep.subr.mxu0 0.0
  %2920 = vmatpush1.msra.mxu0 0.0
  %2921 = vmatprep.subr.mxu0 0.0
  %2922 = vmatpush1.msra.mxu0 0.0
  %2923 = vmatprep.subr.mxu0 0.0
  %2924 = vmatpush1.msra.mxu0 0.0
  %2925 = vmatprep.subr.mxu0 0.0
  %2926 = vmatpush1.msra.mxu0 0.0
  %2927 = vmatprep.subr.mxu0 0.0
  %2928 = vmatpush1.msra.mxu0 0.0
  %2929 = vmatprep.subr.mxu0 0.0
  %2930 = vmatpush1.msra.mxu0 %v43
  %2931 = vmatprep.subr.mxu0 0.0
  %2932 = vmatpush1.msra.mxu0 %v42
  %2933 = vmatprep.subr.mxu0 0.0
  %2934 = vmatpush1.msra.mxu0 %v41
  %2935 = vmatprep.subr.mxu0 0.0
  %2936 = vmatpush1.msra.mxu0 %v40
  %2937 = vmatprep.subr.mxu0 0.0
  %2938 = vmatpush2.msra.mxu0 0.0
  %2939 = vmatprep.subr.mxu0 0.0
  %2940 = vmatpush2.msra.mxu0 0.0
  %2941 = vmatprep.subr.mxu0 0.0
  %2942 = vmatpush2.msra.mxu0 0.0
  %2943 = vmatprep.subr.mxu0 0.0
  %2944 = vmatpush2.msra.mxu0 0.0
  %2945 = vmatprep.subr.mxu0 0.0
  %2946 = vmatpush2.msra.mxu0 0.0
  %2947 = vmatprep.subr.mxu0 0.0
  %2948 = vmatpush2.msra.mxu0 0.0
  %2949 = vmatprep.subr.mxu0 0.0
  %2950 = vmatpush2.msra.mxu0 0.0
  %2951 = vmatprep.subr.mxu0 0.0
  %2952 = vmatpush2.msra.mxu0 0.0
  %2953 = vmatprep.subr.mxu0 0.0
  %2954 = vmatpush2.msra.mxu0 0.0
  %2955 = vmatprep.subr.mxu0 0.0
  %2956 = vmatpush2.msra.mxu0 0.0
  %2957 = vmatprep.subr.mxu0 0.0
  %2958 = vmatpush2.msra.mxu0 0.0
  %2959 = vmatprep.subr.mxu0 0.0
  %2960 = vmatpush2.msra.mxu0 0.0
  %2961 = vmatprep.subr.mxu0 0.0
  %2962 = vmatpush2.msra.mxu0 0.0
  %2963 = vmatprep.subr.mxu0 0.0
  %2964 = vmatpush2.msra.mxu0 0.0
  %2965 = vmatprep.subr.mxu0 0.0
  %2966 = vmatpush2.msra.mxu0 0.0
  %2967 = vmatprep.subr.mxu0 0.0
  %2968 = vmatpush2.msra.mxu0 0.0
  %2969 = vmatprep.mubr.f32.mxu0 0.0
  %2970 = vmatmul.mubr.f32.gmra.mxu0 %v2903
  %v2971 = vpop.f32.mrf.mxu0
  %v2972 = vadd.f32 0.0, %v2971
  %v2973 = vpop.f32.mrf.mxu0
  %2974 = vdwg.mxu0
  %v2975 = vadd.f32 %v2899, %v2972
  %v2976 = vxor.u32 %v2975, 2147483648
  %v2977 = vmul.f32 %v2976, 1.442695
  %v2978 = vpow.pop %v2977
  %v2979 = vadd.f32 %v2978, 1.0
  %v2980 = vrcp.pop %v2979
  %v2981 = vmul.f32 1.0, %v2980
  %v2982 = vtanh.pop %v2975
  %v2983 = vmul.f32 %v2981, %v2780
  %2985 = vrot.lane.b32.xlu0 %v2982, 64
  %v2986 = vpop.permute.xlu0 %2985
  %v2988 = vmul.f32 %v2981, %v2986
  %2990 = vrot.lane.b32.xlu0 %v2988, 32
  %v2991 = vpop.permute.xlu0 %2990
  %v2993 = vadd.f32 %v2983, %v2991
  %v2994 = vtanh.pop %v2993
  %2996 = vrot.lane.b32.xlu0 %v2994, 64
  %v2997 = vpop.permute.xlu0 %2996
  %v2999 = vmul.f32 %v2981, %v2997
  %3001 = vrot.lane.b32.xlu0 %v2888, 64
  %v3002 = vpop.permute.xlu0 %3001
  %v3004 = vsel %vm236, %v2902, %v3002
  %v3006 = vsel %vm447, %v3004, 0
  %3008 = vmatprep.subr.mxu0 0.0
  %3009 = vmatpush1.msra.mxu0 0.0
  %3010 = vmatprep.subr.mxu0 0.0
  %3011 = vmatpush1.msra.mxu0 0.0
  %3012 = vmatprep.subr.mxu0 0.0
  %3013 = vmatpush1.msra.mxu0 0.0
  %3014 = vmatprep.subr.mxu0 0.0
  %3015 = vmatpush1.msra.mxu0 0.0
  %3016 = vmatprep.subr.mxu0 0.0
  %3017 = vmatpush1.msra.mxu0 0.0
  %3018 = vmatprep.subr.mxu0 0.0
  %3019 = vmatpush1.msra.mxu0 0.0
  %3020 = vmatprep.subr.mxu0 0.0
  %3021 = vmatpush1.msra.mxu0 0.0
  %3022 = vmatprep.subr.mxu0 0.0
  %3023 = vmatpush1.msra.mxu0 0.0
  %3024 = vmatprep.subr.mxu0 0.0
  %3025 = vmatpush1.msra.mxu0 %v52
  %3026 = vmatprep.subr.mxu0 0.0
  %3027 = vmatpush1.msra.mxu0 %v51
  %3028 = vmatprep.subr.mxu0 0.0
  %3029 = vmatpush1.msra.mxu0 %v50
  %3030 = vmatprep.subr.mxu0 0.0
  %3031 = vmatpush1.msra.mxu0 %v49
  %3032 = vmatprep.subr.mxu0 0.0
  %3033 = vmatpush1.msra.mxu0 %v48
  %3034 = vmatprep.subr.mxu0 0.0
  %3035 = vmatpush1.msra.mxu0 %v47
  %3036 = vmatprep.subr.mxu0 0.0
  %3037 = vmatpush1.msra.mxu0 %v46
  %3038 = vmatprep.subr.mxu0 0.0
  %3039 = vmatpush1.msra.mxu0 %v45
  %3040 = vmatprep.subr.mxu0 0.0
  %3041 = vmatpush2.msra.mxu0 0.0
  %3042 = vmatprep.subr.mxu0 0.0
  %3043 = vmatpush2.msra.mxu0 0.0
  %3044 = vmatprep.subr.mxu0 0.0
  %3045 = vmatpush2.msra.mxu0 0.0
  %3046 = vmatprep.subr.mxu0 0.0
  %3047 = vmatpush2.msra.mxu0 0.0
  %3048 = vmatprep.subr.mxu0 0.0
  %3049 = vmatpush2.msra.mxu0 0.0
  %3050 = vmatprep.subr.mxu0 0.0
  %3051 = vmatpush2.msra.mxu0 0.0
  %3052 = vmatprep.subr.mxu0 0.0
  %3053 = vmatpush2.msra.mxu0 0.0
  %3054 = vmatprep.subr.mxu0 0.0
  %3055 = vmatpush2.msra.mxu0 0.0
  %3056 = vmatprep.subr.mxu0 0.0
  %3057 = vmatpush2.msra.mxu0 0.0
  %3058 = vmatprep.subr.mxu0 0.0
  %3059 = vmatpush2.msra.mxu0 0.0
  %3060 = vmatprep.subr.mxu0 0.0
  %3061 = vmatpush2.msra.mxu0 0.0
  %3062 = vmatprep.subr.mxu0 0.0
  %3063 = vmatpush2.msra.mxu0 0.0
  %3064 = vmatprep.subr.mxu0 0.0
  %3065 = vmatpush2.msra.mxu0 0.0
  %3066 = vmatprep.subr.mxu0 0.0
  %3067 = vmatpush2.msra.mxu0 0.0
  %3068 = vmatprep.subr.mxu0 0.0
  %3069 = vmatpush2.msra.mxu0 0.0
  %3070 = vmatprep.subr.mxu0 0.0
  %3071 = vmatpush2.msra.mxu0 0.0
  %3072 = vmatprep.mubr.f32.mxu0 0.0
  %3073 = vmatmul.mubr.f32.gmra.mxu0 %v3006
  %v3074 = vpop.f32.mrf.mxu0
  %v3075 = vadd.f32 %v445, %v3074
  %v3076 = vpop.f32.mrf.mxu0
  %3077 = vdwg.mxu0
  %v3078 = vxor.u32 %v3075, 2147483648
  %v3079 = vmul.f32 %v3078, 1.442695
  %v3080 = vpow.pop %v3079
  %v3081 = vadd.f32 %v3080, 1.0
  %v3082 = vrcp.pop %v3081
  %v3083 = vmul.f32 1.0, %v3082
  %v3084 = vtanh.pop %v3075
  %v3085 = vmul.f32 %v3083, %v2882
  %3087 = vrot.lane.b32.xlu0 %v3084, 64
  %v3088 = vpop.permute.xlu0 %3087
  %v3090 = vmul.f32 %v3083, %v3088
  %3092 = vrot.lane.b32.xlu0 %v3090, 32
  %v3093 = vpop.permute.xlu0 %3092
  %v3095 = vadd.f32 %v3085, %v3093
  %v3096 = vtanh.pop %v3095
  %3098 = vrot.lane.b32.xlu0 %v3096, 64
  %v3099 = vpop.permute.xlu0 %3098
  %v3101 = vmul.f32 %v3083, %v3099
  %3103 = vrot.lane.b32.xlu0 %v3101, 32
  %v3104 = vpop.permute.xlu0 %3103
  %3106 = vst.msk [vmem:[%s6 + $0xc] sm:$0x1] %vm549, %v3104
  %3107 = vst.msk [vmem:[%s551 + $0xb] sm:$0x2] %vm552, %v3104
  %v3108 = vrot.slane %v159, 6
  %v3110 = vrot.slane %v221, 5
  %v3112 = vsel %vm234, %v3108, %v3110
  %3114 = vrot.lane.b32.xlu0 %v2999, 32
  %v3115 = vpop.permute.xlu0 %3114
  %v3116 = vsel %vm236, %v3115, 0
  %3118 = vmatprep.subr.mxu0 0.0
  %3119 = vmatpush1.msra.mxu0 0.0
  %3120 = vmatprep.subr.mxu0 0.0
  %3121 = vmatpush1.msra.mxu0 0.0
  %3122 = vmatprep.subr.mxu0 0.0
  %3123 = vmatpush1.msra.mxu0 0.0
  %3124 = vmatprep.subr.mxu0 0.0
  %3125 = vmatpush1.msra.mxu0 0.0
  %3126 = vmatprep.subr.mxu0 0.0
  %3127 = vmatpush1.msra.mxu0 0.0
  %3128 = vmatprep.subr.mxu0 0.0
  %3129 = vmatpush1.msra.mxu0 0.0
  %3130 = vmatprep.subr.mxu0 0.0
  %3131 = vmatpush1.msra.mxu0 0.0
  %3132 = vmatprep.subr.mxu0 0.0
  %3133 = vmatpush1.msra.mxu0 0.0
  %3134 = vmatprep.subr.mxu0 0.0
  %3135 = vmatpush1.msra.mxu0 0.0
  %3136 = vmatprep.subr.mxu0 0.0
  %3137 = vmatpush1.msra.mxu0 0.0
  %3138 = vmatprep.subr.mxu0 0.0
  %3139 = vmatpush1.msra.mxu0 0.0
  %3140 = vmatprep.subr.mxu0 0.0
  %3141 = vmatpush1.msra.mxu0 0.0
  %3142 = vmatprep.subr.mxu0 0.0
  %3143 = vmatpush1.msra.mxu0 %v43
  %3144 = vmatprep.subr.mxu0 0.0
  %3145 = vmatpush1.msra.mxu0 %v42
  %3146 = vmatprep.subr.mxu0 0.0
  %3147 = vmatpush1.msra.mxu0 %v41
  %3148 = vmatprep.subr.mxu0 0.0
  %3149 = vmatpush1.msra.mxu0 %v40
  %3150 = vmatprep.subr.mxu0 0.0
  %3151 = vmatpush2.msra.mxu0 0.0
  %3152 = vmatprep.subr.mxu0 0.0
  %3153 = vmatpush2.msra.mxu0 0.0
  %3154 = vmatprep.subr.mxu0 0.0
  %3155 = vmatpush2.msra.mxu0 0.0
  %3156 = vmatprep.subr.mxu0 0.0
  %3157 = vmatpush2.msra.mxu0 0.0
  %3158 = vmatprep.subr.mxu0 0.0
  %3159 = vmatpush2.msra.mxu0 0.0
  %3160 = vmatprep.subr.mxu0 0.0
  %3161 = vmatpush2.msra.mxu0 0.0
  %3162 = vmatprep.subr.mxu0 0.0
  %3163 = vmatpush2.msra.mxu0 0.0
  %3164 = vmatprep.subr.mxu0 0.0
  %3165 = vmatpush2.msra.mxu0 0.0
  %3166 = vmatprep.subr.mxu0 0.0
  %3167 = vmatpush2.msra.mxu0 0.0
  %3168 = vmatprep.subr.mxu0 0.0
  %3169 = vmatpush2.msra.mxu0 0.0
  %3170 = vmatprep.subr.mxu0 0.0
  %3171 = vmatpush2.msra.mxu0 0.0
  %3172 = vmatprep.subr.mxu0 0.0
  %3173 = vmatpush2.msra.mxu0 0.0
  %3174 = vmatprep.subr.mxu0 0.0
  %3175 = vmatpush2.msra.mxu0 0.0
  %3176 = vmatprep.subr.mxu0 0.0
  %3177 = vmatpush2.msra.mxu0 0.0
  %3178 = vmatprep.subr.mxu0 0.0
  %3179 = vmatpush2.msra.mxu0 0.0
  %3180 = vmatprep.subr.mxu0 0.0
  %3181 = vmatpush2.msra.mxu0 0.0
  %3182 = vmatprep.mubr.f32.mxu0 0.0
  %3183 = vmatmul.mubr.f32.gmra.mxu0 %v3116
  %v3184 = vpop.f32.mrf.mxu0
  %v3185 = vadd.f32 0.0, %v3184
  %v3186 = vpop.f32.mrf.mxu0
  %3187 = vdwg.mxu0
  %v3188 = vadd.f32 %v3112, %v3185
  %v3189 = vxor.u32 %v3188, 2147483648
  %v3190 = vmul.f32 %v3189, 1.442695
  %v3191 = vpow.pop %v3190
  %v3192 = vadd.f32 %v3191, 1.0
  %v3193 = vrcp.pop %v3192
  %v3194 = vmul.f32 1.0, %v3193
  %v3195 = vtanh.pop %v3188
  %v3196 = vmul.f32 %v3194, %v2993
  %3198 = vrot.lane.b32.xlu0 %v3195, 64
  %v3199 = vpop.permute.xlu0 %3198
  %v3201 = vmul.f32 %v3194, %v3199
  %3203 = vrot.lane.b32.xlu0 %v3201, 32
  %v3204 = vpop.permute.xlu0 %3203
  %v3206 = vadd.f32 %v3196, %v3204
  %v3207 = vtanh.pop %v3206
  %3209 = vrot.lane.b32.xlu0 %v3207, 64
  %v3210 = vpop.permute.xlu0 %3209
  %v3212 = vmul.f32 %v3194, %v3210
  %3214 = vrot.lane.b32.xlu0 %v3101, 64
  %v3215 = vpop.permute.xlu0 %3214
  %v3217 = vsel %vm236, %v3115, %v3215
  %v3219 = vsel %vm447, %v3217, 0
  %3221 = vmatprep.subr.mxu0 0.0
  %3222 = vmatpush1.msra.mxu0 0.0
  %3223 = vmatprep.subr.mxu0 0.0
  %3224 = vmatpush1.msra.mxu0 0.0
  %3225 = vmatprep.subr.mxu0 0.0
  %3226 = vmatpush1.msra.mxu0 0.0
  %3227 = vmatprep.subr.mxu0 0.0
  %3228 = vmatpush1.msra.mxu0 0.0
  %3229 = vmatprep.subr.mxu0 0.0
  %3230 = vmatpush1.msra.mxu0 0.0
  %3231 = vmatprep.subr.mxu0 0.0
  %3232 = vmatpush1.msra.mxu0 0.0
  %3233 = vmatprep.subr.mxu0 0.0
  %3234 = vmatpush1.msra.mxu0 0.0
  %3235 = vmatprep.subr.mxu0 0.0
  %3236 = vmatpush1.msra.mxu0 0.0
  %3237 = vmatprep.subr.mxu0 0.0
  %3238 = vmatpush1.msra.mxu0 %v52
  %3239 = vmatprep.subr.mxu0 0.0
  %3240 = vmatpush1.msra.mxu0 %v51
  %3241 = vmatprep.subr.mxu0 0.0
  %3242 = vmatpush1.msra.mxu0 %v50
  %3243 = vmatprep.subr.mxu0 0.0
  %3244 = vmatpush1.msra.mxu0 %v49
  %3245 = vmatprep.subr.mxu0 0.0
  %3246 = vmatpush1.msra.mxu0 %v48
  %3247 = vmatprep.subr.mxu0 0.0
  %3248 = vmatpush1.msra.mxu0 %v47
  %3249 = vmatprep.subr.mxu0 0.0
  %3250 = vmatpush1.msra.mxu0 %v46
  %3251 = vmatprep.subr.mxu0 0.0
  %3252 = vmatpush1.msra.mxu0 %v45
  %3253 = vmatprep.subr.mxu0 0.0
  %3254 = vmatpush2.msra.mxu0 0.0
  %3255 = vmatprep.subr.mxu0 0.0
  %3256 = vmatpush2.msra.mxu0 0.0
  %3257 = vmatprep.subr.mxu0 0.0
  %3258 = vmatpush2.msra.mxu0 0.0
  %3259 = vmatprep.subr.mxu0 0.0
  %3260 = vmatpush2.msra.mxu0 0.0
  %3261 = vmatprep.subr.mxu0 0.0
  %3262 = vmatpush2.msra.mxu0 0.0
  %3263 = vmatprep.subr.mxu0 0.0
  %3264 = vmatpush2.msra.mxu0 0.0
  %3265 = vmatprep.subr.mxu0 0.0
  %3266 = vmatpush2.msra.mxu0 0.0
  %3267 = vmatprep.subr.mxu0 0.0
  %3268 = vmatpush2.msra.mxu0 0.0
  %3269 = vmatprep.subr.mxu0 0.0
  %3270 = vmatpush2.msra.mxu0 0.0
  %3271 = vmatprep.subr.mxu0 0.0
  %3272 = vmatpush2.msra.mxu0 0.0
  %3273 = vmatprep.subr.mxu0 0.0
  %3274 = vmatpush2.msra.mxu0 0.0
  %3275 = vmatprep.subr.mxu0 0.0
  %3276 = vmatpush2.msra.mxu0 0.0
  %3277 = vmatprep.subr.mxu0 0.0
  %3278 = vmatpush2.msra.mxu0 0.0
  %3279 = vmatprep.subr.mxu0 0.0
  %3280 = vmatpush2.msra.mxu0 0.0
  %3281 = vmatprep.subr.mxu0 0.0
  %3282 = vmatpush2.msra.mxu0 0.0
  %3283 = vmatprep.subr.mxu0 0.0
  %3284 = vmatpush2.msra.mxu0 0.0
  %3285 = vmatprep.mubr.f32.mxu0 0.0
  %3286 = vmatmul.mubr.f32.gmra.mxu0 %v3219
  %v3287 = vpop.f32.mrf.mxu0
  %v3288 = vadd.f32 %v445, %v3287
  %v3289 = vpop.f32.mrf.mxu0
  %3290 = vdwg.mxu0
  %v3291 = vxor.u32 %v3288, 2147483648
  %v3292 = vmul.f32 %v3291, 1.442695
  %v3293 = vpow.pop %v3292
  %v3294 = vadd.f32 %v3293, 1.0
  %v3295 = vrcp.pop %v3294
  %v3296 = vmul.f32 1.0, %v3295
  %v3297 = vtanh.pop %v3288
  %v3298 = vmul.f32 %v3296, %v3095
  %3300 = vrot.lane.b32.xlu0 %v3297, 64
  %v3301 = vpop.permute.xlu0 %3300
  %v3303 = vmul.f32 %v3296, %v3301
  %3305 = vrot.lane.b32.xlu0 %v3303, 32
  %v3306 = vpop.permute.xlu0 %3305
  %v3308 = vadd.f32 %v3298, %v3306
  %v3309 = vtanh.pop %v3308
  %3311 = vrot.lane.b32.xlu0 %v3309, 64
  %v3312 = vpop.permute.xlu0 %3311
  %v3314 = vmul.f32 %v3296, %v3312
  %3316 = vrot.lane.b32.xlu0 %v3314, 32
  %v3317 = vpop.permute.xlu0 %3316
  %3319 = vst.msk [vmem:[%s6 + $0xd] sm:$0x1] %vm549, %v3317
  %3320 = vst.msk [vmem:[%s551 + $0xc] sm:$0x2] %vm552, %v3317
  %v3321 = vrot.slane %v159, 7
  %v3323 = vrot.slane %v221, 6
  %v3325 = vsel %vm234, %v3321, %v3323
  %3327 = vrot.lane.b32.xlu0 %v3212, 32
  %v3328 = vpop.permute.xlu0 %3327
  %v3329 = vsel %vm236, %v3328, 0
  %3331 = vmatprep.subr.mxu0 0.0
  %3332 = vmatpush1.msra.mxu0 0.0
  %3333 = vmatprep.subr.mxu0 0.0
  %3334 = vmatpush1.msra.mxu0 0.0
  %3335 = vmatprep.subr.mxu0 0.0
  %3336 = vmatpush1.msra.mxu0 0.0
  %3337 = vmatprep.subr.mxu0 0.0
  %3338 = vmatpush1.msra.mxu0 0.0
  %3339 = vmatprep.subr.mxu0 0.0
  %3340 = vmatpush1.msra.mxu0 0.0
  %3341 = vmatprep.subr.mxu0 0.0
  %3342 = vmatpush1.msra.mxu0 0.0
  %3343 = vmatprep.subr.mxu0 0.0
  %3344 = vmatpush1.msra.mxu0 0.0
  %3345 = vmatprep.subr.mxu0 0.0
  %3346 = vmatpush1.msra.mxu0 0.0
  %3347 = vmatprep.subr.mxu0 0.0
  %3348 = vmatpush1.msra.mxu0 0.0
  %3349 = vmatprep.subr.mxu0 0.0
  %3350 = vmatpush1.msra.mxu0 0.0
  %3351 = vmatprep.subr.mxu0 0.0
  %3352 = vmatpush1.msra.mxu0 0.0
  %3353 = vmatprep.subr.mxu0 0.0
  %3354 = vmatpush1.msra.mxu0 0.0
  %3355 = vmatprep.subr.mxu0 0.0
  %3356 = vmatpush1.msra.mxu0 %v43
  %3357 = vmatprep.subr.mxu0 0.0
  %3358 = vmatpush1.msra.mxu0 %v42
  %3359 = vmatprep.subr.mxu0 0.0
  %3360 = vmatpush1.msra.mxu0 %v41
  %3361 = vmatprep.subr.mxu0 0.0
  %3362 = vmatpush1.msra.mxu0 %v40
  %3363 = vmatprep.subr.mxu0 0.0
  %3364 = vmatpush2.msra.mxu0 0.0
  %3365 = vmatprep.subr.mxu0 0.0
  %3366 = vmatpush2.msra.mxu0 0.0
  %3367 = vmatprep.subr.mxu0 0.0
  %3368 = vmatpush2.msra.mxu0 0.0
  %3369 = vmatprep.subr.mxu0 0.0
  %3370 = vmatpush2.msra.mxu0 0.0
  %3371 = vmatprep.subr.mxu0 0.0
  %3372 = vmatpush2.msra.mxu0 0.0
  %3373 = vmatprep.subr.mxu0 0.0
  %3374 = vmatpush2.msra.mxu0 0.0
  %3375 = vmatprep.subr.mxu0 0.0
  %3376 = vmatpush2.msra.mxu0 0.0
  %3377 = vmatprep.subr.mxu0 0.0
  %3378 = vmatpush2.msra.mxu0 0.0
  %3379 = vmatprep.subr.mxu0 0.0
  %3380 = vmatpush2.msra.mxu0 0.0
  %3381 = vmatprep.subr.mxu0 0.0
  %3382 = vmatpush2.msra.mxu0 0.0
  %3383 = vmatprep.subr.mxu0 0.0
  %3384 = vmatpush2.msra.mxu0 0.0
  %3385 = vmatprep.subr.mxu0 0.0
  %3386 = vmatpush2.msra.mxu0 0.0
  %3387 = vmatprep.subr.mxu0 0.0
  %3388 = vmatpush2.msra.mxu0 0.0
  %3389 = vmatprep.subr.mxu0 0.0
  %3390 = vmatpush2.msra.mxu0 0.0
  %3391 = vmatprep.subr.mxu0 0.0
  %3392 = vmatpush2.msra.mxu0 0.0
  %3393 = vmatprep.subr.mxu0 0.0
  %3394 = vmatpush2.msra.mxu0 0.0
  %3395 = vmatprep.mubr.f32.mxu0 0.0
  %3396 = vmatmul.mubr.f32.gmra.mxu0 %v3329
  %v3397 = vpop.f32.mrf.mxu0
  %v3398 = vadd.f32 0.0, %v3397
  %v3399 = vpop.f32.mrf.mxu0
  %3400 = vdwg.mxu0
  %v3401 = vadd.f32 %v3325, %v3398
  %v3402 = vxor.u32 %v3401, 2147483648
  %v3403 = vmul.f32 %v3402, 1.442695
  %v3404 = vpow.pop %v3403
  %v3405 = vadd.f32 %v3404, 1.0
  %v3406 = vrcp.pop %v3405
  %v3407 = vmul.f32 1.0, %v3406
  %v3408 = vtanh.pop %v3401
  %v3409 = vmul.f32 %v3407, %v3206
  %3411 = vrot.lane.b32.xlu0 %v3408, 64
  %v3412 = vpop.permute.xlu0 %3411
  %v3414 = vmul.f32 %v3407, %v3412
  %3416 = vrot.lane.b32.xlu0 %v3414, 32
  %v3417 = vpop.permute.xlu0 %3416
  %v3419 = vadd.f32 %v3409, %v3417
  %v3420 = vtanh.pop %v3419
  %3422 = vrot.lane.b32.xlu0 %v3420, 64
  %v3423 = vpop.permute.xlu0 %3422
  %v3425 = vmul.f32 %v3407, %v3423
  %3427 = vrot.lane.b32.xlu0 %v3314, 64
  %v3428 = vpop.permute.xlu0 %3427
  %v3430 = vsel %vm236, %v3328, %v3428
  %v3432 = vsel %vm447, %v3430, 0
  %3434 = vmatprep.subr.mxu0 0.0
  %3435 = vmatpush1.msra.mxu0 0.0
  %3436 = vmatprep.subr.mxu0 0.0
  %3437 = vmatpush1.msra.mxu0 0.0
  %3438 = vmatprep.subr.mxu0 0.0
  %3439 = vmatpush1.msra.mxu0 0.0
  %3440 = vmatprep.subr.mxu0 0.0
  %3441 = vmatpush1.msra.mxu0 0.0
  %3442 = vmatprep.subr.mxu0 0.0
  %3443 = vmatpush1.msra.mxu0 0.0
  %3444 = vmatprep.subr.mxu0 0.0
  %3445 = vmatpush1.msra.mxu0 0.0
  %3446 = vmatprep.subr.mxu0 0.0
  %3447 = vmatpush1.msra.mxu0 0.0
  %3448 = vmatprep.subr.mxu0 0.0
  %3449 = vmatpush1.msra.mxu0 0.0
  %3450 = vmatprep.subr.mxu0 0.0
  %3451 = vmatpush1.msra.mxu0 %v52
  %3452 = vmatprep.subr.mxu0 0.0
  %3453 = vmatpush1.msra.mxu0 %v51
  %3454 = vmatprep.subr.mxu0 0.0
  %3455 = vmatpush1.msra.mxu0 %v50
  %3456 = vmatprep.subr.mxu0 0.0
  %3457 = vmatpush1.msra.mxu0 %v49
  %3458 = vmatprep.subr.mxu0 0.0
  %3459 = vmatpush1.msra.mxu0 %v48
  %3460 = vmatprep.subr.mxu0 0.0
  %3461 = vmatpush1.msra.mxu0 %v47
  %3462 = vmatprep.subr.mxu0 0.0
  %3463 = vmatpush1.msra.mxu0 %v46
  %3464 = vmatprep.subr.mxu0 0.0
  %3465 = vmatpush1.msra.mxu0 %v45
  %3466 = vmatprep.subr.mxu0 0.0
  %3467 = vmatpush2.msra.mxu0 0.0
  %3468 = vmatprep.subr.mxu0 0.0
  %3469 = vmatpush2.msra.mxu0 0.0
  %3470 = vmatprep.subr.mxu0 0.0
  %3471 = vmatpush2.msra.mxu0 0.0
  %3472 = vmatprep.subr.mxu0 0.0
  %3473 = vmatpush2.msra.mxu0 0.0
  %3474 = vmatprep.subr.mxu0 0.0
  %3475 = vmatpush2.msra.mxu0 0.0
  %3476 = vmatprep.subr.mxu0 0.0
  %3477 = vmatpush2.msra.mxu0 0.0
  %3478 = vmatprep.subr.mxu0 0.0
  %3479 = vmatpush2.msra.mxu0 0.0
  %3480 = vmatprep.subr.mxu0 0.0
  %3481 = vmatpush2.msra.mxu0 0.0
  %3482 = vmatprep.subr.mxu0 0.0
  %3483 = vmatpush2.msra.mxu0 0.0
  %3484 = vmatprep.subr.mxu0 0.0
  %3485 = vmatpush2.msra.mxu0 0.0
  %3486 = vmatprep.subr.mxu0 0.0
  %3487 = vmatpush2.msra.mxu0 0.0
  %3488 = vmatprep.subr.mxu0 0.0
  %3489 = vmatpush2.msra.mxu0 0.0
  %3490 = vmatprep.subr.mxu0 0.0
  %3491 = vmatpush2.msra.mxu0 0.0
  %3492 = vmatprep.subr.mxu0 0.0
  %3493 = vmatpush2.msra.mxu0 0.0
  %3494 = vmatprep.subr.mxu0 0.0
  %3495 = vmatpush2.msra.mxu0 0.0
  %3496 = vmatprep.subr.mxu0 0.0
  %3497 = vmatpush2.msra.mxu0 0.0
  %3498 = vmatprep.mubr.f32.mxu0 0.0
  %3499 = vmatmul.mubr.f32.gmra.mxu0 %v3432
  %v3500 = vpop.f32.mrf.mxu0
  %v3501 = vadd.f32 %v445, %v3500
  %v3502 = vpop.f32.mrf.mxu0
  %3503 = vdwg.mxu0
  %v3504 = vxor.u32 %v3501, 2147483648
  %v3505 = vmul.f32 %v3504, 1.442695
  %v3506 = vpow.pop %v3505
  %v3507 = vadd.f32 %v3506, 1.0
  %v3508 = vrcp.pop %v3507
  %v3509 = vmul.f32 1.0, %v3508
  %v3510 = vtanh.pop %v3501
  %v3511 = vmul.f32 %v3509, %v3308
  %3513 = vrot.lane.b32.xlu0 %v3510, 64
  %v3514 = vpop.permute.xlu0 %3513
  %v3516 = vmul.f32 %v3509, %v3514
  %3518 = vrot.lane.b32.xlu0 %v3516, 32
  %v3519 = vpop.permute.xlu0 %3518
  %v3521 = vadd.f32 %v3511, %v3519
  %v3522 = vtanh.pop %v3521
  %3524 = vrot.lane.b32.xlu0 %v3522, 64
  %v3525 = vpop.permute.xlu0 %3524
  %v3527 = vmul.f32 %v3509, %v3525
  %3529 = vrot.lane.b32.xlu0 %v3527, 32
  %v3530 = vpop.permute.xlu0 %3529
  %3532 = vst.msk [vmem:[%s6 + $0xe] sm:$0x1] %vm549, %v3530
  %3533 = vst.msk [vmem:[%s551 + $0xd] sm:$0x2] %vm552, %v3530
  %v3535 = vrot.slane %v226, 7
  %v3537 = vsel %vm234, %v164, %v3535
  %3539 = vrot.lane.b32.xlu0 %v3425, 32
  %v3540 = vpop.permute.xlu0 %3539
  %v3541 = vsel %vm236, %v3540, 0
  %3543 = vmatprep.subr.mxu0 0.0
  %3544 = vmatpush1.msra.mxu0 0.0
  %3545 = vmatprep.subr.mxu0 0.0
  %3546 = vmatpush1.msra.mxu0 0.0
  %3547 = vmatprep.subr.mxu0 0.0
  %3548 = vmatpush1.msra.mxu0 0.0
  %3549 = vmatprep.subr.mxu0 0.0
  %3550 = vmatpush1.msra.mxu0 0.0
  %3551 = vmatprep.subr.mxu0 0.0
  %3552 = vmatpush1.msra.mxu0 0.0
  %3553 = vmatprep.subr.mxu0 0.0
  %3554 = vmatpush1.msra.mxu0 0.0
  %3555 = vmatprep.subr.mxu0 0.0
  %3556 = vmatpush1.msra.mxu0 0.0
  %3557 = vmatprep.subr.mxu0 0.0
  %3558 = vmatpush1.msra.mxu0 0.0
  %3559 = vmatprep.subr.mxu0 0.0
  %3560 = vmatpush1.msra.mxu0 0.0
  %3561 = vmatprep.subr.mxu0 0.0
  %3562 = vmatpush1.msra.mxu0 0.0
  %3563 = vmatprep.subr.mxu0 0.0
  %3564 = vmatpush1.msra.mxu0 0.0
  %3565 = vmatprep.subr.mxu0 0.0
  %3566 = vmatpush1.msra.mxu0 0.0
  %3567 = vmatprep.subr.mxu0 0.0
  %3568 = vmatpush1.msra.mxu0 %v43
  %3569 = vmatprep.subr.mxu0 0.0
  %3570 = vmatpush1.msra.mxu0 %v42
  %3571 = vmatprep.subr.mxu0 0.0
  %3572 = vmatpush1.msra.mxu0 %v41
  %3573 = vmatprep.subr.mxu0 0.0
  %3574 = vmatpush1.msra.mxu0 %v40
  %3575 = vmatprep.subr.mxu0 0.0
  %3576 = vmatpush2.msra.mxu0 0.0
  %3577 = vmatprep.subr.mxu0 0.0
  %3578 = vmatpush2.msra.mxu0 0.0
  %3579 = vmatprep.subr.mxu0 0.0
  %3580 = vmatpush2.msra.mxu0 0.0
  %3581 = vmatprep.subr.mxu0 0.0
  %3582 = vmatpush2.msra.mxu0 0.0
  %3583 = vmatprep.subr.mxu0 0.0
  %3584 = vmatpush2.msra.mxu0 0.0
  %3585 = vmatprep.subr.mxu0 0.0
  %3586 = vmatpush2.msra.mxu0 0.0
  %3587 = vmatprep.subr.mxu0 0.0
  %3588 = vmatpush2.msra.mxu0 0.0
  %3589 = vmatprep.subr.mxu0 0.0
  %3590 = vmatpush2.msra.mxu0 0.0
  %3591 = vmatprep.subr.mxu0 0.0
  %3592 = vmatpush2.msra.mxu0 0.0
  %3593 = vmatprep.subr.mxu0 0.0
  %3594 = vmatpush2.msra.mxu0 0.0
  %3595 = vmatprep.subr.mxu0 0.0
  %3596 = vmatpush2.msra.mxu0 0.0
  %3597 = vmatprep.subr.mxu0 0.0
  %3598 = vmatpush2.msra.mxu0 0.0
  %3599 = vmatprep.subr.mxu0 0.0
  %3600 = vmatpush2.msra.mxu0 0.0
  %3601 = vmatprep.subr.mxu0 0.0
  %3602 = vmatpush2.msra.mxu0 0.0
  %3603 = vmatprep.subr.mxu0 0.0
  %3604 = vmatpush2.msra.mxu0 0.0
  %3605 = vmatprep.subr.mxu0 0.0
  %3606 = vmatpush2.msra.mxu0 0.0
  %3607 = vmatprep.mubr.f32.mxu0 0.0
  %3608 = vmatmul.mubr.f32.gmra.mxu0 %v3541
  %v3609 = vpop.f32.mrf.mxu0
  %v3610 = vadd.f32 0.0, %v3609
  %v3611 = vpop.f32.mrf.mxu0
  %3612 = vdwg.mxu0
  %v3613 = vadd.f32 %v3537, %v3610
  %v3614 = vxor.u32 %v3613, 2147483648
  %v3615 = vmul.f32 %v3614, 1.442695
  %v3616 = vpow.pop %v3615
  %v3617 = vadd.f32 %v3616, 1.0
  %v3618 = vrcp.pop %v3617
  %v3619 = vmul.f32 1.0, %v3618
  %v3620 = vtanh.pop %v3613
  %v3621 = vmul.f32 %v3619, %v3419
  %3623 = vrot.lane.b32.xlu0 %v3620, 64
  %v3624 = vpop.permute.xlu0 %3623
  %v3626 = vmul.f32 %v3619, %v3624
  %3628 = vrot.lane.b32.xlu0 %v3626, 32
  %v3629 = vpop.permute.xlu0 %3628
  %v3631 = vadd.f32 %v3621, %v3629
  %v3632 = vtanh.pop %v3631
  %3634 = vrot.lane.b32.xlu0 %v3632, 64
  %v3635 = vpop.permute.xlu0 %3634
  %v3637 = vmul.f32 %v3619, %v3635
  %3639 = vrot.lane.b32.xlu0 %v3527, 64
  %v3640 = vpop.permute.xlu0 %3639
  %v3642 = vsel %vm236, %v3540, %v3640
  %v3644 = vsel %vm447, %v3642, 0
  %3646 = vmatprep.subr.mxu0 0.0
  %3647 = vmatpush1.msra.mxu0 0.0
  %3648 = vmatprep.subr.mxu0 0.0
  %3649 = vmatpush1.msra.mxu0 0.0
  %3650 = vmatprep.subr.mxu0 0.0
  %3651 = vmatpush1.msra.mxu0 0.0
  %3652 = vmatprep.subr.mxu0 0.0
  %3653 = vmatpush1.msra.mxu0 0.0
  %3654 = vmatprep.subr.mxu0 0.0
  %3655 = vmatpush1.msra.mxu0 0.0
  %3656 = vmatprep.subr.mxu0 0.0
  %3657 = vmatpush1.msra.mxu0 0.0
  %3658 = vmatprep.subr.mxu0 0.0
  %3659 = vmatpush1.msra.mxu0 0.0
  %3660 = vmatprep.subr.mxu0 0.0
  %3661 = vmatpush1.msra.mxu0 0.0
  %3662 = vmatprep.subr.mxu0 0.0
  %3663 = vmatpush1.msra.mxu0 %v52
  %3664 = vmatprep.subr.mxu0 0.0
  %3665 = vmatpush1.msra.mxu0 %v51
  %3666 = vmatprep.subr.mxu0 0.0
  %3667 = vmatpush1.msra.mxu0 %v50
  %3668 = vmatprep.subr.mxu0 0.0
  %3669 = vmatpush1.msra.mxu0 %v49
  %3670 = vmatprep.subr.mxu0 0.0
  %3671 = vmatpush1.msra.mxu0 %v48
  %3672 = vmatprep.subr.mxu0 0.0
  %3673 = vmatpush1.msra.mxu0 %v47
  %3674 = vmatprep.subr.mxu0 0.0
  %3675 = vmatpush1.msra.mxu0 %v46
  %3676 = vmatprep.subr.mxu0 0.0
  %3677 = vmatpush1.msra.mxu0 %v45
  %3678 = vmatprep.subr.mxu0 0.0
  %3679 = vmatpush2.msra.mxu0 0.0
  %3680 = vmatprep.subr.mxu0 0.0
  %3681 = vmatpush2.msra.mxu0 0.0
  %3682 = vmatprep.subr.mxu0 0.0
  %3683 = vmatpush2.msra.mxu0 0.0
  %3684 = vmatprep.subr.mxu0 0.0
  %3685 = vmatpush2.msra.mxu0 0.0
  %3686 = vmatprep.subr.mxu0 0.0
  %3687 = vmatpush2.msra.mxu0 0.0
  %3688 = vmatprep.subr.mxu0 0.0
  %3689 = vmatpush2.msra.mxu0 0.0
  %3690 = vmatprep.subr.mxu0 0.0
  %3691 = vmatpush2.msra.mxu0 0.0
  %3692 = vmatprep.subr.mxu0 0.0
  %3693 = vmatpush2.msra.mxu0 0.0
  %3694 = vmatprep.subr.mxu0 0.0
  %3695 = vmatpush2.msra.mxu0 0.0
  %3696 = vmatprep.subr.mxu0 0.0
  %3697 = vmatpush2.msra.mxu0 0.0
  %3698 = vmatprep.subr.mxu0 0.0
  %3699 = vmatpush2.msra.mxu0 0.0
  %3700 = vmatprep.subr.mxu0 0.0
  %3701 = vmatpush2.msra.mxu0 0.0
  %3702 = vmatprep.subr.mxu0 0.0
  %3703 = vmatpush2.msra.mxu0 0.0
  %3704 = vmatprep.subr.mxu0 0.0
  %3705 = vmatpush2.msra.mxu0 0.0
  %3706 = vmatprep.subr.mxu0 0.0
  %3707 = vmatpush2.msra.mxu0 0.0
  %3708 = vmatprep.subr.mxu0 0.0
  %3709 = vmatpush2.msra.mxu0 0.0
  %3710 = vmatprep.mubr.f32.mxu0 0.0
  %3711 = vmatmul.mubr.f32.gmra.mxu0 %v3644
  %v3712 = vpop.f32.mrf.mxu0
  %v3713 = vadd.f32 %v445, %v3712
  %v3714 = vpop.f32.mrf.mxu0
  %3715 = vdwg.mxu0
  %v3716 = vxor.u32 %v3713, 2147483648
  %v3717 = vmul.f32 %v3716, 1.442695
  %v3718 = vpow.pop %v3717
  %v3719 = vadd.f32 %v3718, 1.0
  %v3720 = vrcp.pop %v3719
  %v3721 = vmul.f32 1.0, %v3720
  %v3722 = vtanh.pop %v3713
  %v3723 = vmul.f32 %v3721, %v3521
  %3725 = vrot.lane.b32.xlu0 %v3722, 64
  %v3726 = vpop.permute.xlu0 %3725
  %v3728 = vmul.f32 %v3721, %v3726
  %3730 = vrot.lane.b32.xlu0 %v3728, 32
  %v3731 = vpop.permute.xlu0 %3730
  %v3733 = vadd.f32 %v3723, %v3731
  %v3734 = vtanh.pop %v3733
  %3736 = vrot.lane.b32.xlu0 %v3734, 64
  %v3737 = vpop.permute.xlu0 %3736
  %v3739 = vmul.f32 %v3721, %v3737
  %3741 = vrot.lane.b32.xlu0 %v3739, 32
  %v3742 = vpop.permute.xlu0 %3741
  %3744 = vst.msk [vmem:[%s6 + $0xf] sm:$0x1] %vm549, %v3742
  %3745 = vst.msk [vmem:[%s551 + $0xe] sm:$0x2] %vm552, %v3742
  %v3747 = vrot.slane %v164, 1
  %v3749 = vsel %vm234, %v3747, %v226
  %3751 = vrot.lane.b32.xlu0 %v3637, 32
  %v3752 = vpop.permute.xlu0 %3751
  %v3753 = vsel %vm236, %v3752, 0
  %3755 = vmatprep.subr.mxu0 0.0
  %3756 = vmatpush1.msra.mxu0 0.0
  %3757 = vmatprep.subr.mxu0 0.0
  %3758 = vmatpush1.msra.mxu0 0.0
  %3759 = vmatprep.subr.mxu0 0.0
  %3760 = vmatpush1.msra.mxu0 0.0
  %3761 = vmatprep.subr.mxu0 0.0
  %3762 = vmatpush1.msra.mxu0 0.0
  %3763 = vmatprep.subr.mxu0 0.0
  %3764 = vmatpush1.msra.mxu0 0.0
  %3765 = vmatprep.subr.mxu0 0.0
  %3766 = vmatpush1.msra.mxu0 0.0
  %3767 = vmatprep.subr.mxu0 0.0
  %3768 = vmatpush1.msra.mxu0 0.0
  %3769 = vmatprep.subr.mxu0 0.0
  %3770 = vmatpush1.msra.mxu0 0.0
  %3771 = vmatprep.subr.mxu0 0.0
  %3772 = vmatpush1.msra.mxu0 0.0
  %3773 = vmatprep.subr.mxu0 0.0
  %3774 = vmatpush1.msra.mxu0 0.0
  %3775 = vmatprep.subr.mxu0 0.0
  %3776 = vmatpush1.msra.mxu0 0.0
  %3777 = vmatprep.subr.mxu0 0.0
  %3778 = vmatpush1.msra.mxu0 0.0
  %3779 = vmatprep.subr.mxu0 0.0
  %3780 = vmatpush1.msra.mxu0 %v43
  %3781 = vmatprep.subr.mxu0 0.0
  %3782 = vmatpush1.msra.mxu0 %v42
  %3783 = vmatprep.subr.mxu0 0.0
  %3784 = vmatpush1.msra.mxu0 %v41
  %3785 = vmatprep.subr.mxu0 0.0
  %3786 = vmatpush1.msra.mxu0 %v40
  %3787 = vmatprep.subr.mxu0 0.0
  %3788 = vmatpush2.msra.mxu0 0.0
  %3789 = vmatprep.subr.mxu0 0.0
  %3790 = vmatpush2.msra.mxu0 0.0
  %3791 = vmatprep.subr.mxu0 0.0
  %3792 = vmatpush2.msra.mxu0 0.0
  %3793 = vmatprep.subr.mxu0 0.0
  %3794 = vmatpush2.msra.mxu0 0.0
  %3795 = vmatprep.subr.mxu0 0.0
  %3796 = vmatpush2.msra.mxu0 0.0
  %3797 = vmatprep.subr.mxu0 0.0
  %3798 = vmatpush2.msra.mxu0 0.0
  %3799 = vmatprep.subr.mxu0 0.0
  %3800 = vmatpush2.msra.mxu0 0.0
  %3801 = vmatprep.subr.mxu0 0.0
  %3802 = vmatpush2.msra.mxu0 0.0
  %3803 = vmatprep.subr.mxu0 0.0
  %3804 = vmatpush2.msra.mxu0 0.0
  %3805 = vmatprep.subr.mxu0 0.0
  %3806 = vmatpush2.msra.mxu0 0.0
  %3807 = vmatprep.subr.mxu0 0.0
  %3808 = vmatpush2.msra.mxu0 0.0
  %3809 = vmatprep.subr.mxu0 0.0
  %3810 = vmatpush2.msra.mxu0 0.0
  %3811 = vmatprep.subr.mxu0 0.0
  %3812 = vmatpush2.msra.mxu0 0.0
  %3813 = vmatprep.subr.mxu0 0.0
  %3814 = vmatpush2.msra.mxu0 0.0
  %3815 = vmatprep.subr.mxu0 0.0
  %3816 = vmatpush2.msra.mxu0 0.0
  %3817 = vmatprep.subr.mxu0 0.0
  %3818 = vmatpush2.msra.mxu0 0.0
  %3819 = vmatprep.mubr.f32.mxu0 0.0
  %3820 = vmatmul.mubr.f32.gmra.mxu0 %v3753
  %v3821 = vpop.f32.mrf.mxu0
  %v3822 = vadd.f32 0.0, %v3821
  %v3823 = vpop.f32.mrf.mxu0
  %3824 = vdwg.mxu0
  %v3825 = vadd.f32 %v3749, %v3822
  %v3826 = vxor.u32 %v3825, 2147483648
  %v3827 = vmul.f32 %v3826, 1.442695
  %v3828 = vpow.pop %v3827
  %v3829 = vadd.f32 %v3828, 1.0
  %v3830 = vrcp.pop %v3829
  %v3831 = vmul.f32 1.0, %v3830
  %v3832 = vtanh.pop %v3825
  %v3833 = vmul.f32 %v3831, %v3631
  %3835 = vrot.lane.b32.xlu0 %v3832, 64
  %v3836 = vpop.permute.xlu0 %3835
  %v3838 = vmul.f32 %v3831, %v3836
  %3840 = vrot.lane.b32.xlu0 %v3838, 32
  %v3841 = vpop.permute.xlu0 %3840
  %v3843 = vadd.f32 %v3833, %v3841
  %v3844 = vtanh.pop %v3843
  %3846 = vrot.lane.b32.xlu0 %v3844, 64
  %v3847 = vpop.permute.xlu0 %3846
  %v3849 = vmul.f32 %v3831, %v3847
  %3851 = vrot.lane.b32.xlu0 %v3739, 64
  %v3852 = vpop.permute.xlu0 %3851
  %v3854 = vsel %vm236, %v3752, %v3852
  %v3856 = vsel %vm447, %v3854, 0
  %3858 = vmatprep.subr.mxu0 0.0
  %3859 = vmatpush1.msra.mxu0 0.0
  %3860 = vmatprep.subr.mxu0 0.0
  %3861 = vmatpush1.msra.mxu0 0.0
  %3862 = vmatprep.subr.mxu0 0.0
  %3863 = vmatpush1.msra.mxu0 0.0
  %3864 = vmatprep.subr.mxu0 0.0
  %3865 = vmatpush1.msra.mxu0 0.0
  %3866 = vmatprep.subr.mxu0 0.0
  %3867 = vmatpush1.msra.mxu0 0.0
  %3868 = vmatprep.subr.mxu0 0.0
  %3869 = vmatpush1.msra.mxu0 0.0
  %3870 = vmatprep.subr.mxu0 0.0
  %3871 = vmatpush1.msra.mxu0 0.0
  %3872 = vmatprep.subr.mxu0 0.0
  %3873 = vmatpush1.msra.mxu0 0.0
  %3874 = vmatprep.subr.mxu0 0.0
  %3875 = vmatpush1.msra.mxu0 %v52
  %3876 = vmatprep.subr.mxu0 0.0
  %3877 = vmatpush1.msra.mxu0 %v51
  %3878 = vmatprep.subr.mxu0 0.0
  %3879 = vmatpush1.msra.mxu0 %v50
  %3880 = vmatprep.subr.mxu0 0.0
  %3881 = vmatpush1.msra.mxu0 %v49
  %3882 = vmatprep.subr.mxu0 0.0
  %3883 = vmatpush1.msra.mxu0 %v48
  %3884 = vmatprep.subr.mxu0 0.0
  %3885 = vmatpush1.msra.mxu0 %v47
  %3886 = vmatprep.subr.mxu0 0.0
  %3887 = vmatpush1.msra.mxu0 %v46
  %3888 = vmatprep.subr.mxu0 0.0
  %3889 = vmatpush1.msra.mxu0 %v45
  %3890 = vmatprep.subr.mxu0 0.0
  %3891 = vmatpush2.msra.mxu0 0.0
  %3892 = vmatprep.subr.mxu0 0.0
  %3893 = vmatpush2.msra.mxu0 0.0
  %3894 = vmatprep.subr.mxu0 0.0
  %3895 = vmatpush2.msra.mxu0 0.0
  %3896 = vmatprep.subr.mxu0 0.0
  %3897 = vmatpush2.msra.mxu0 0.0
  %3898 = vmatprep.subr.mxu0 0.0
  %3899 = vmatpush2.msra.mxu0 0.0
  %3900 = vmatprep.subr.mxu0 0.0
  %3901 = vmatpush2.msra.mxu0 0.0
  %3902 = vmatprep.subr.mxu0 0.0
  %3903 = vmatpush2.msra.mxu0 0.0
  %3904 = vmatprep.subr.mxu0 0.0
  %3905 = vmatpush2.msra.mxu0 0.0
  %3906 = vmatprep.subr.mxu0 0.0
  %3907 = vmatpush2.msra.mxu0 0.0
  %3908 = vmatprep.subr.mxu0 0.0
  %3909 = vmatpush2.msra.mxu0 0.0
  %3910 = vmatprep.subr.mxu0 0.0
  %3911 = vmatpush2.msra.mxu0 0.0
  %3912 = vmatprep.subr.mxu0 0.0
  %3913 = vmatpush2.msra.mxu0 0.0
  %3914 = vmatprep.subr.mxu0 0.0
  %3915 = vmatpush2.msra.mxu0 0.0
  %3916 = vmatprep.subr.mxu0 0.0
  %3917 = vmatpush2.msra.mxu0 0.0
  %3918 = vmatprep.subr.mxu0 0.0
  %3919 = vmatpush2.msra.mxu0 0.0
  %3920 = vmatprep.subr.mxu0 0.0
  %3921 = vmatpush2.msra.mxu0 0.0
  %3922 = vmatprep.mubr.f32.mxu0 0.0
  %3923 = vmatmul.mubr.f32.gmra.mxu0 %v3856
  %v3924 = vpop.f32.mrf.mxu0
  %v3925 = vadd.f32 %v445, %v3924
  %v3926 = vpop.f32.mrf.mxu0
  %3927 = vdwg.mxu0
  %v3928 = vxor.u32 %v3925, 2147483648
  %v3929 = vmul.f32 %v3928, 1.442695
  %v3930 = vpow.pop %v3929
  %v3931 = vadd.f32 %v3930, 1.0
  %v3932 = vrcp.pop %v3931
  %v3933 = vmul.f32 1.0, %v3932
  %v3934 = vtanh.pop %v3925
  %v3935 = vmul.f32 %v3933, %v3733
  %3937 = vrot.lane.b32.xlu0 %v3934, 64
  %v3938 = vpop.permute.xlu0 %3937
  %v3940 = vmul.f32 %v3933, %v3938
  %3942 = vrot.lane.b32.xlu0 %v3940, 32
  %v3943 = vpop.permute.xlu0 %3942
  %v3945 = vadd.f32 %v3935, %v3943
  %v3946 = vtanh.pop %v3945
  %3948 = vrot.lane.b32.xlu0 %v3946, 64
  %v3949 = vpop.permute.xlu0 %3948
  %v3951 = vmul.f32 %v3933, %v3949
  %3953 = vrot.lane.b32.xlu0 %v3951, 32
  %v3954 = vpop.permute.xlu0 %3953
  %3956 = vst.msk [vmem:[%s6 + $0x10] sm:$0x1] %vm549, %v3954
  %3957 = vst.msk [vmem:[%s551 + $0xf] sm:$0x2] %vm552, %v3954
  %3959 = vrot.lane.b32.xlu0 %v3849, 32
  %v3960 = vpop.permute.xlu0 %3959
  %3962 = vrot.lane.b32.xlu0 %v3951, 64
  %v3963 = vpop.permute.xlu0 %3962
  %v3965 = vsel %vm236, %v3960, %v3963
  %v3967 = vsel %vm447, %v3965, 0
  %3969 = vmatprep.subr.mxu0 0.0
  %3970 = vmatpush1.msra.mxu0 0.0
  %3971 = vmatprep.subr.mxu0 0.0
  %3972 = vmatpush1.msra.mxu0 0.0
  %3973 = vmatprep.subr.mxu0 0.0
  %3974 = vmatpush1.msra.mxu0 0.0
  %3975 = vmatprep.subr.mxu0 0.0
  %3976 = vmatpush1.msra.mxu0 0.0
  %3977 = vmatprep.subr.mxu0 0.0
  %3978 = vmatpush1.msra.mxu0 0.0
  %3979 = vmatprep.subr.mxu0 0.0
  %3980 = vmatpush1.msra.mxu0 0.0
  %3981 = vmatprep.subr.mxu0 0.0
  %3982 = vmatpush1.msra.mxu0 0.0
  %3983 = vmatprep.subr.mxu0 0.0
  %3984 = vmatpush1.msra.mxu0 0.0
  %3985 = vmatprep.subr.mxu0 0.0
  %3986 = vmatpush1.msra.mxu0 %v52
  %3987 = vmatprep.subr.mxu0 0.0
  %3988 = vmatpush1.msra.mxu0 %v51
  %3989 = vmatprep.subr.mxu0 0.0
  %3990 = vmatpush1.msra.mxu0 %v50
  %3991 = vmatprep.subr.mxu0 0.0
  %3992 = vmatpush1.msra.mxu0 %v49
  %3993 = vmatprep.subr.mxu0 0.0
  %3994 = vmatpush1.msra.mxu0 %v48
  %3995 = vmatprep.subr.mxu0 0.0
  %3996 = vmatpush1.msra.mxu0 %v47
  %3997 = vmatprep.subr.mxu0 0.0
  %3998 = vmatpush1.msra.mxu0 %v46
  %3999 = vmatprep.subr.mxu0 0.0
  %4000 = vmatpush1.msra.mxu0 %v45
  %4001 = vmatprep.subr.mxu0 0.0
  %4002 = vmatpush2.msra.mxu0 0.0
  %4003 = vmatprep.subr.mxu0 0.0
  %4004 = vmatpush2.msra.mxu0 0.0
  %4005 = vmatprep.subr.mxu0 0.0
  %4006 = vmatpush2.msra.mxu0 0.0
  %4007 = vmatprep.subr.mxu0 0.0
  %4008 = vmatpush2.msra.mxu0 0.0
  %4009 = vmatprep.subr.mxu0 0.0
  %4010 = vmatpush2.msra.mxu0 0.0
  %4011 = vmatprep.subr.mxu0 0.0
  %4012 = vmatpush2.msra.mxu0 0.0
  %4013 = vmatprep.subr.mxu0 0.0
  %4014 = vmatpush2.msra.mxu0 0.0
  %4015 = vmatprep.subr.mxu0 0.0
  %4016 = vmatpush2.msra.mxu0 0.0
  %4017 = vmatprep.subr.mxu0 0.0
  %4018 = vmatpush2.msra.mxu0 0.0
  %4019 = vmatprep.subr.mxu0 0.0
  %4020 = vmatpush2.msra.mxu0 0.0
  %4021 = vmatprep.subr.mxu0 0.0
  %4022 = vmatpush2.msra.mxu0 0.0
  %4023 = vmatprep.subr.mxu0 0.0
  %4024 = vmatpush2.msra.mxu0 0.0
  %4025 = vmatprep.subr.mxu0 0.0
  %4026 = vmatpush2.msra.mxu0 0.0
  %4027 = vmatprep.subr.mxu0 0.0
  %4028 = vmatpush2.msra.mxu0 0.0
  %4029 = vmatprep.subr.mxu0 0.0
  %4030 = vmatpush2.msra.mxu0 0.0
  %4031 = vmatprep.subr.mxu0 0.0
  %4032 = vmatpush2.msra.mxu0 0.0
  %4033 = vmatprep.mubr.f32.mxu0 0.0
  %4034 = vmatmul.mubr.f32.gmra.mxu0 %v3967
  %v4035 = vpop.f32.mrf.mxu0
  %v4036 = vadd.f32 %v445, %v4035
  %v4037 = vpop.f32.mrf.mxu0
  %4038 = vdwg.mxu0
  %v4039 = vxor.u32 %v4036, 2147483648
  %v4040 = vmul.f32 %v4039, 1.442695
  %v4041 = vpow.pop %v4040
  %v4042 = vadd.f32 %v4041, 1.0
  %v4043 = vrcp.pop %v4042
  %v4044 = vmul.f32 1.0, %v4043
  %v4045 = vtanh.pop %v4036
  %v4046 = vmul.f32 %v4044, %v3945
  %4048 = vrot.lane.b32.xlu0 %v4045, 64
  %v4049 = vpop.permute.xlu0 %4048
  %v4051 = vmul.f32 %v4044, %v4049
  %4053 = vrot.lane.b32.xlu0 %v4051, 32
  %v4054 = vpop.permute.xlu0 %4053
  %v4056 = vadd.f32 %v4046, %v4054
  %v4057 = vtanh.pop %v4056
  %4059 = vrot.lane.b32.xlu0 %v4057, 64
  %v4060 = vpop.permute.xlu0 %4059
  %v4062 = vmul.f32 %v4044, %v4060
  %4064 = vrot.lane.b32.xlu0 %v4062, 32
  %v4065 = vpop.permute.xlu0 %4064
  %4067 = vst.msk [vmem:[%s6 + $0x11] sm:$0x1] %vm549, %v4065
  %4068 = vst.msk [vmem:[%s551 + $0x10] sm:$0x2] %vm552, %v4065
  // Predicated region
  $region26: #{cnn_lstm_forward.4} parent=0 // pred_check
    _
  $region27: #{cnn_lstm_forward.4} parent=0 // pred_check_branch
    %4070 = sbr.rel (0) target = $region29
  $region28: #{cnn_lstm_forward.4} parent=0 // pred_region
    _
  $region29: #{cnn_lstm_forward.4} parent=0 // pred_fallthru
    _
  // Predicated region
  $region30: #{cnn_lstm_forward.4} parent=0 // pred_check
    _
  $region31: #{cnn_lstm_forward.4} parent=0 // pred_check_branch
    %4072 = sbr.rel (0) target = $region33
  $region32: #{cnn_lstm_forward.4} parent=0 // pred_region
    _
  $region33: #{cnn_lstm_forward.4} parent=0 // pred_fallthru
    _

// kernel: cnn_lstm_forward.5
$region0: #{cnn_lstm_forward.5}
  #allocation0 [shape = 'u32[]', space=smem, size = 0x4, offset = 0x4, fixed_abs, tag = 'smem constant byte address 0x4 - core index']
  #allocation1 [shape = 'u32[144,128]{1,0:T(1,128)}', space=vmem, size = 0x12000, scoped, tag = 'internal scratch']
  %s0 = inlined_call_operand.vmem [shape: f32[2,32,18], index: 0, kind: input, shape index: {}]
  %s1 = inlined_call_operand.vmem [shape: bf16[288,128], index: 1, kind: input, shape index: {}]
  %s2 = inlined_call_operand.vmem [shape: f32[3,128], index: 2, kind: input, shape index: {}]
  %s3 = inlined_call_operand.vmem [shape: f32[384,6], index: 3, kind: input, shape index: {}]
  %s4 = inlined_call_operand.vmem [shape: f32[1,6], index: 4, kind: input, shape index: {}]
  %s5 = inlined_call_operand.hbm [shape: f32[2,6], index: 5, kind: output, shape index: {}]
  %s6 = sld [smem:[#allocation0]]
  $region30: #{cnn_lstm_forward.5} parent=0
    _
  %s8 = ssub.s32 1, %s6
  %s9 = scalar_select 0, %s8, %s6
  $region1: #{cnn_lstm_forward.5} parent=0
    #allocation2 [shape = 'u8[1024]{0}', space=vmem, size = 0x400, scoped, tag = 'output window, operand 0, single buffered']
    #allocation3 [shape = 's32[1]{0}', space=sflag, size = 0x4, scoped, tag = 'scoped memory for cnn_lstm_forward.5']
    %10 = vsyncpa [#allocation3], 0
    // Predicated region
    $region2: #{cnn_lstm_forward.5} parent=1 // pred_check
      _
    $region3: #{cnn_lstm_forward.5} parent=1 // pred_check_branch
      %12 = sbr.rel (0) target = $region5
    $region4: #{cnn_lstm_forward.5} parent=1 // pred_region
      _
    $region5: #{cnn_lstm_forward.5} parent=1 // pred_fallthru
      _
    // Predicated region
    $region6: #{cnn_lstm_forward.5} parent=1 // pred_check
      _
    $region7: #{cnn_lstm_forward.5} parent=1 // pred_check_branch
      %14 = sbr.rel (0) target = $region9
    $region8: #{cnn_lstm_forward.5} parent=1 // pred_region
      _
    $region9: #{cnn_lstm_forward.5} parent=1 // pred_fallthru
      _
    // Predicated region
    $region10: #{cnn_lstm_forward.5} parent=1 // pred_check
      _
    $region11: #{cnn_lstm_forward.5} parent=1 // pred_check_branch
      %16 = sbr.rel (0) target = $region13
    $region12: #{cnn_lstm_forward.5} parent=1 // pred_region
      _
    $region13: #{cnn_lstm_forward.5} parent=1 // pred_fallthru
      _
    // Predicated region
    $region14: #{cnn_lstm_forward.5} parent=1 // pred_check
      _
    $region15: #{cnn_lstm_forward.5} parent=1 // pred_check_branch
      %18 = sbr.rel (0) target = $region17
    $region16: #{cnn_lstm_forward.5} parent=1 // pred_region
      _
    $region17: #{cnn_lstm_forward.5} parent=1 // pred_fallthru
      _
    // Predicated region
    $region18: #{cnn_lstm_forward.5} parent=1 // pred_check
      _
    $region19: #{cnn_lstm_forward.5} parent=1 // pred_check_branch
      %20 = sbr.rel (0) target = $region21
    $region20: #{cnn_lstm_forward.5} parent=1 // pred_region
      _
    $region21: #{cnn_lstm_forward.5} parent=1 // pred_fallthru
      _
    %v22 = vld [vmem:[%s2] sm:$0x1]
    %v23 = vld [vmem:[%s2 + $0x1] sm:$0x1]
    %v24 = vld [vmem:[%s2 + $0x2] sm:$0x1]
    %v25 = vld [vmem:[%s0] sm:$0xff]
    %v26 = vld [vmem:[%s0 + $0x8] sm:$0xff]
    %v27 = vld [vmem:[%s0 + $0x10] sm:$0xff]
    %v28 = vld [vmem:[%s0 + $0x18] sm:$0xff]
    %29 = vxpose.xlu0.b32.start [1/16] %v25, 128
    %30 = vxpose.xlu0.b32.cont [2/16] %v26, 128
    %31 = vxpose.xlu0.b32.cont [3/16] %v27, 128
    %32 = vxpose.xlu0.b32.cont [4/16] %v28, 128
    %33 = vxpose.xlu0.b32.cont [5/16] 0.0, 128
    %34 = vxpose.xlu0.b32.cont [6/16] 0.0, 128
    %35 = vxpose.xlu0.b32.cont [7/16] 0.0, 128
    %36 = vxpose.xlu0.b32.cont [8/16] 0.0, 128
    %37 = vxpose.xlu0.b32.cont [9/16] 0.0, 128
    %38 = vxpose.xlu0.b32.cont [10/16] 0.0, 128
    %39 = vxpose.xlu0.b32.cont [11/16] 0.0, 128
    %40 = vxpose.xlu0.b32.cont [12/16] 0.0, 128
    %41 = vxpose.xlu0.b32.cont [13/16] 0.0, 128
    %42 = vxpose.xlu0.b32.cont [14/16] 0.0, 128
    %43 = vxpose.xlu0.b32.cont [15/16] 0.0, 128
    %44 = vxpose.xlu0.b32.end [16/16] 0.0, 128
    %v45 = vpop.trf.xlu0
    %v46 = vpop.trf.xlu0
    %v47 = vpop.trf.xlu0
    %v48 = vpop.trf.xlu0
    %v49 = vpop.trf.xlu0
    %v50 = vpop.trf.xlu0
    %v51 = vpop.trf.xlu0
    %v52 = vpop.trf.xlu0
    %v53 = vpop.trf.xlu0
    %v54 = vpop.trf.xlu0
    %v55 = vpop.trf.xlu0
    %v56 = vpop.trf.xlu0
    %v57 = vpop.trf.xlu0
    %v58 = vpop.trf.xlu0
    %v59 = vpop.trf.xlu0
    %v60 = vpop.trf.xlu0
    %vm63 = vcmask 1046528
    %v64 = vrot.slane %v45, 1
    %v65 = vrot.slane %v46, 1
    %v66 = vsel %vm63, %v64, %v65
    %67 = vrot.lane.b32.xlu0 %v66, 32
    %v68 = vpop.permute.xlu0 %67
    %69 = vrot.lane.b32.xlu0 %v65, 32
    %v70 = vpop.permute.xlu0 %69
    %vm73 = vcmask 1045504
    %v74 = vrot.slane %v45, 2
    %v75 = vrot.slane %v46, 2
    %v76 = vsel %vm73, %v74, %v75
    %77 = vrot.lane.b32.xlu0 %v76, 64
    %v78 = vpop.permute.xlu0 %77
    %79 = vrot.lane.b32.xlu0 %v75, 64
    %v80 = vpop.permute.xlu0 %79
    %vm83 = vcmask 1044480
    %v84 = vrot.slane %v45, 3
    %v85 = vrot.slane %v46, 3
    %v86 = vsel %vm83, %v84, %v85
    %87 = vrot.lane.b32.xlu0 %v86, 96
    %v88 = vpop.permute.xlu0 %87
    %89 = vrot.lane.b32.xlu0 %v85, 96
    %v90 = vpop.permute.xlu0 %89
    %vm93 = vcmask 1043456
    %v94 = vrot.slane %v45, 4
    %v95 = vrot.slane %v46, 4
    %v96 = vsel %vm93, %v94, %v95
    %vm99 = vcmask 1042432
    %v100 = vrot.slane %v45, 5
    %v101 = vrot.slane %v46, 5
    %v102 = vsel %vm99, %v100, %v101
    %103 = vrot.lane.b32.xlu0 %v102, 32
    %v104 = vpop.permute.xlu0 %103
    %105 = vrot.lane.b32.xlu0 %v101, 32
    %v106 = vpop.permute.xlu0 %105
    %vm109 = vcmask 1041408
    %v110 = vrot.slane %v45, 6
    %v111 = vrot.slane %v46, 6
    %v112 = vsel %vm109, %v110, %v111
    %113 = vrot.lane.b32.xlu0 %v112, 64
    %v114 = vpop.permute.xlu0 %113
    %115 = vrot.lane.b32.xlu0 %v111, 64
    %v116 = vpop.permute.xlu0 %115
    %vm120 = vcmask 1040384
    %v121 = vrot.slane %v45, 7
    %v122 = vrot.slane %v46, 7
    %v123 = vsel %vm120, %v121, %v122
    %v124 = vrot.slane %v47, 7
    %v125 = vsel %vm120, %v122, %v124
    %126 = vrot.lane.b32.xlu0 %v123, 96
    %v127 = vpop.permute.xlu0 %126
    %128 = vrot.lane.b32.xlu0 %v125, 96
    %v129 = vpop.permute.xlu0 %128
    %vm132 = vcmask 261120
    %v133 = vsel %vm132, %v45, %v68
    %v134 = vsel %vm132, %v46, %v70
    %vm135 = vcmask 523264
    %v136 = vsel %vm135, %v133, %v78
    %v137 = vsel %vm135, %v134, %v80
    %vm138 = vcmask 785408
    %v139 = vsel %vm138, %v136, %v88
    %v140 = vsel %vm138, %v137, %v90
    %v141 = vsel %vm132, %v96, %v104
    %v142 = vsel %vm132, %v95, %v106
    %v143 = vsel %vm135, %v141, %v114
    %v144 = vsel %vm135, %v142, %v116
    %v145 = vsel %vm138, %v143, %v127
    %v146 = vsel %vm138, %v144, %v129
    %s147 = scalar_lea.vmem %s0, 32
    %v148 = vld [vmem:[%s147] sm:$0xff]
    %v149 = vld [vmem:[%s147 + $0x8] sm:$0xff]
    %v150 = vld [vmem:[%s147 + $0x10] sm:$0xff]
    %v151 = vld [vmem:[%s147 + $0x18] sm:$0xff]
    %152 = vxpose.xlu0.b32.start [1/16] %v148, 128
    %153 = vxpose.xlu0.b32.cont [2/16] %v149, 128
    %154 = vxpose.xlu0.b32.cont [3/16] %v150, 128
    %155 = vxpose.xlu0.b32.cont [4/16] %v151, 128
    %156 = vxpose.xlu0.b32.cont [5/16] 0.0, 128
    %157 = vxpose.xlu0.b32.cont [6/16] 0.0, 128
    %158 = vxpose.xlu0.b32.cont [7/16] 0.0, 128
    %159 = vxpose.xlu0.b32.cont [8/16] 0.0, 128
    %160 = vxpose.xlu0.b32.cont [9/16] 0.0, 128
    %161 = vxpose.xlu0.b32.cont [10/16] 0.0, 128
    %162 = vxpose.xlu0.b32.cont [11/16] 0.0, 128
    %163 = vxpose.xlu0.b32.cont [12/16] 0.0, 128
    %164 = vxpose.xlu0.b32.cont [13/16] 0.0, 128
    %165 = vxpose.xlu0.b32.cont [14/16] 0.0, 128
    %166 = vxpose.xlu0.b32.cont [15/16] 0.0, 128
    %167 = vxpose.xlu0.b32.end [16/16] 0.0, 128
    %v168 = vpop.trf.xlu0
    %v169 = vpop.trf.xlu0
    %v170 = vpop.trf.xlu0
    %v171 = vpop.trf.xlu0
    %v172 = vpop.trf.xlu0
    %v173 = vpop.trf.xlu0
    %v174 = vpop.trf.xlu0
    %v175 = vpop.trf.xlu0
    %v176 = vpop.trf.xlu0
    %v177 = vpop.trf.xlu0
    %v178 = vpop.trf.xlu0
    %v179 = vpop.trf.xlu0
    %v180 = vpop.trf.xlu0
    %v181 = vpop.trf.xlu0
    %v182 = vpop.trf.xlu0
    %v183 = vpop.trf.xlu0
    %v186 = vrot.slane %v168, 1
    %v187 = vrot.slane %v169, 1
    %v188 = vsel %vm63, %v186, %v187
    %189 = vrot.lane.b32.xlu0 %v188, 32
    %v190 = vpop.permute.xlu0 %189
    %191 = vrot.lane.b32.xlu0 %v187, 32
    %v192 = vpop.permute.xlu0 %191
    %v195 = vrot.slane %v168, 2
    %v196 = vrot.slane %v169, 2
    %v197 = vsel %vm73, %v195, %v196
    %198 = vrot.lane.b32.xlu0 %v197, 64
    %v199 = vpop.permute.xlu0 %198
    %200 = vrot.lane.b32.xlu0 %v196, 64
    %v201 = vpop.permute.xlu0 %200
    %v204 = vrot.slane %v168, 3
    %v205 = vrot.slane %v169, 3
    %v206 = vsel %vm83, %v204, %v205
    %207 = vrot.lane.b32.xlu0 %v206, 96
    %v208 = vpop.permute.xlu0 %207
    %209 = vrot.lane.b32.xlu0 %v205, 96
    %v210 = vpop.permute.xlu0 %209
    %v213 = vrot.slane %v168, 4
    %v214 = vrot.slane %v169, 4
    %v215 = vsel %vm93, %v213, %v214
    %v218 = vrot.slane %v168, 5
    %v219 = vrot.slane %v169, 5
    %v220 = vsel %vm99, %v218, %v219
    %221 = vrot.lane.b32.xlu0 %v220, 32
    %v222 = vpop.permute.xlu0 %221
    %223 = vrot.lane.b32.xlu0 %v219, 32
    %v224 = vpop.permute.xlu0 %223
    %v227 = vrot.slane %v168, 6
    %v228 = vrot.slane %v169, 6
    %v229 = vsel %vm109, %v227, %v228
    %230 = vrot.lane.b32.xlu0 %v229, 64
    %v231 = vpop.permute.xlu0 %230
    %232 = vrot.lane.b32.xlu0 %v228, 64
    %v233 = vpop.permute.xlu0 %232
    %v237 = vrot.slane %v168, 7
    %v238 = vrot.slane %v169, 7
    %v239 = vsel %vm120, %v237, %v238
    %v240 = vrot.slane %v170, 7
    %v241 = vsel %vm120, %v238, %v240
    %242 = vrot.lane.b32.xlu0 %v239, 96
    %v243 = vpop.permute.xlu0 %242
    %244 = vrot.lane.b32.xlu0 %v241, 96
    %v245 = vpop.permute.xlu0 %244
    %v248 = vsel %vm132, %v168, %v190
    %v249 = vsel %vm132, %v169, %v192
    %v250 = vsel %vm135, %v248, %v199
    %v251 = vsel %vm135, %v249, %v201
    %v252 = vsel %vm138, %v250, %v208
    %v253 = vsel %vm138, %v251, %v210
    %v254 = vsel %vm132, %v215, %v222
    %v255 = vsel %vm132, %v214, %v224
    %v256 = vsel %vm135, %v254, %v231
    %v257 = vsel %vm135, %v255, %v233
    %v258 = vsel %vm138, %v256, %v243
    %v259 = vsel %vm138, %v257, %v245
    %v264 = vrot.slane %v252, 6
    %v265 = vrot.slane %v258, 6
    %v266 = vrot.slane %v253, 6
    %v267 = vsel %vm109, %v264, %v266
    %v268 = vrot.slane %v259, 6
    %v269 = vsel %vm109, %v265, %v268
    %v270 = vrot.slane %v170, 6
    %v271 = vsel %vm109, %v228, %v270
    %v278 = vsel %vm109, %v140, %v264
    %v279 = vsel %vm109, %v146, %v265
    %v280 = vsel %vm109, %v47, %v228
    %v281 = vpack.c.bf16 %v278, %v139
    %v282 = vpack.c.bf16 %v279, %v145
    %v283 = vpack.c.bf16 %v280, %v46
    %v284 = vpack.c.bf16 %v267, %v267
    %v285 = vpack.c.bf16 %v269, %v269
    %v286 = vpack.c.bf16 %v271, %v271
    %v287 = vld [vmem:[%s1] sm:$0xf]
    %v288 = vld [vmem:[%s1 + $0x4] sm:$0xf]
    %v289 = vld [vmem:[%s1 + $0x8] sm:$0xf]
    %v290 = vld [vmem:[%s1 + $0xc] sm:$0xf]
    %v291 = vld [vmem:[%s1 + $0x10] sm:$0xf]
    %v292 = vld [vmem:[%s1 + $0x14] sm:$0xf]
    %v293 = vld [vmem:[%s1 + $0x18] sm:$0xf]
    %v294 = vld [vmem:[%s1 + $0x1c] sm:$0xf]
    %v295 = vld [vmem:[%s1 + $0x20] sm:$0xf]
    %v296 = vld [vmem:[%s1 + $0x24] sm:$0xf]
    %v297 = vld [vmem:[%s1 + $0x28] sm:$0xf]
    %v298 = vld [vmem:[%s1 + $0x2c] sm:$0xf]
    %v299 = vld [vmem:[%s1 + $0x30] sm:$0xf]
    %v300 = vld [vmem:[%s1 + $0x34] sm:$0xf]
    %v301 = vld [vmem:[%s1 + $0x38] sm:$0xf]
    %v302 = vld [vmem:[%s1 + $0x3c] sm:$0xf]
    %v303 = vld [vmem:[%s1 + $0x40] sm:$0xf]
    %v304 = vld [vmem:[%s1 + $0x44] sm:$0xf]
    %v305 = vld [vmem:[%s1 + $0x48] sm:$0xf]
    %v306 = vld [vmem:[%s1 + $0x4c] sm:$0xf]
    %v307 = vld [vmem:[%s1 + $0x50] sm:$0xf]
    %v308 = vld [vmem:[%s1 + $0x54] sm:$0xf]
    %v309 = vld [vmem:[%s1 + $0x58] sm:$0xf]
    %v310 = vld [vmem:[%s1 + $0x5c] sm:$0xf]
    %v311 = vld [vmem:[%s1 + $0x60] sm:$0xf]
    %v312 = vld [vmem:[%s1 + $0x64] sm:$0xf]
    %v313 = vld [vmem:[%s1 + $0x68] sm:$0xf]
    %v314 = vld [vmem:[%s1 + $0x6c] sm:$0xf]
    %v315 = vld [vmem:[%s1 + $0x70] sm:$0xf]
    %v316 = vld [vmem:[%s1 + $0x74] sm:$0xf]
    %v317 = vld [vmem:[%s1 + $0x78] sm:$0xf]
    %v318 = vld [vmem:[%s1 + $0x7c] sm:$0xf]
    %v319 = vld [vmem:[%s1 + $0x80] sm:$0xf]
    %v320 = vld [vmem:[%s1 + $0x84] sm:$0xf]
    %v321 = vld [vmem:[%s1 + $0x88] sm:$0xf]
    %v322 = vld [vmem:[%s1 + $0x8c] sm:$0xf]
    %v323 = vlaneseq
    %v324 = vshrl.u32 %v323, 7
    %v325 = vsub.s32 0, %v324
    %v326 = vrot.slane %v22, %v325
    %v363 = vunpack.c.l.b16 %v287
    %v364 = vunpack.c.l.b16 %v288
    %v365 = vunpack.c.l.b16 %v289
    %v366 = vunpack.c.l.b16 %v290
    %v367 = vunpack.c.l.b16 %v291
    %v368 = vunpack.c.l.b16 %v292
    %v369 = vunpack.c.l.b16 %v293
    %v370 = vunpack.c.l.b16 %v294
    %v371 = vunpack.c.l.b16 %v295
    %v372 = vunpack.c.l.b16 %v296
    %v373 = vunpack.c.l.b16 %v297
    %v374 = vunpack.c.l.b16 %v298
    %v375 = vunpack.c.l.b16 %v299
    %v376 = vunpack.c.l.b16 %v300
    %v377 = vunpack.c.l.b16 %v301
    %v378 = vunpack.c.l.b16 %v302
    %v379 = vunpack.c.l.b16 %v303
    %v380 = vunpack.c.l.b16 %v304
    %v381 = vunpack.c.l.b16 %v305
    %v382 = vunpack.c.l.b16 %v306
    %v383 = vunpack.c.l.b16 %v307
    %v384 = vunpack.c.l.b16 %v308
    %v385 = vunpack.c.l.b16 %v309
    %v386 = vunpack.c.l.b16 %v310
    %v387 = vunpack.c.l.b16 %v311
    %v388 = vunpack.c.l.b16 %v312
    %v389 = vunpack.c.l.b16 %v313
    %v390 = vunpack.c.l.b16 %v314
    %v391 = vunpack.c.l.b16 %v315
    %v392 = vunpack.c.l.b16 %v316
    %v393 = vunpack.c.l.b16 %v317
    %v394 = vunpack.c.l.b16 %v318
    %v395 = vunpack.c.l.b16 %v319
    %v396 = vunpack.c.l.b16 %v320
    %v397 = vunpack.c.l.b16 %v321
    %v398 = vunpack.c.l.b16 %v322
    %v399 = vpack.c.b16 %v364, %v363
    %v400 = vpack.c.b16 %v366, %v365
    %v401 = vpack.c.b16 %v368, %v367
    %v402 = vpack.c.b16 %v370, %v369
    %v403 = vpack.c.b16 %v372, %v371
    %v404 = vpack.c.b16 %v374, %v373
    %v405 = vpack.c.b16 %v376, %v375
    %v406 = vpack.c.b16 %v378, %v377
    %v407 = vpack.c.b16 %v380, %v379
    %v408 = vpack.c.b16 %v382, %v381
    %v409 = vpack.c.b16 %v384, %v383
    %v410 = vpack.c.b16 %v386, %v385
    %v411 = vpack.c.b16 %v388, %v387
    %v412 = vpack.c.b16 %v390, %v389
    %v413 = vpack.c.b16 %v392, %v391
    %v414 = vpack.c.b16 %v394, %v393
    %v415 = vpack.c.b16 %v396, %v395
    %v416 = vpack.c.b16 %v398, %v397
    %v436 = vsel %vm132, %v283, 0
    %v439 = vsel %vm132, %v286, 0
    %441 = vmatprep.subr.bf16.mxu0 0
    %442 = vmatpush1.bf16.msra.mxu0 %v406
    %443 = vmatprep.subr.bf16.mxu0 0
    %444 = vmatpush1.bf16.msra.mxu0 %v405
    %445 = vmatprep.subr.bf16.mxu0 0
    %446 = vmatpush1.bf16.msra.mxu0 %v404
    %447 = vmatprep.subr.bf16.mxu0 0
    %448 = vmatpush1.bf16.msra.mxu0 %v403
    %449 = vmatprep.subr.bf16.mxu0 0
    %450 = vmatpush1.bf16.msra.mxu0 %v402
    %451 = vmatprep.subr.bf16.mxu0 0
    %452 = vmatpush1.bf16.msra.mxu0 %v401
    %453 = vmatprep.subr.bf16.mxu0 0
    %454 = vmatpush1.bf16.msra.mxu0 %v400
    %455 = vmatprep.subr.bf16.mxu0 0
    %456 = vmatpush1.bf16.msra.mxu0 %v399
    %457 = vmatprep.subr.bf16.mxu0 0
    %458 = vmatpush2.bf16.msra.mxu0 %v414
    %459 = vmatprep.subr.bf16.mxu0 0
    %460 = vmatpush2.bf16.msra.mxu0 %v413
    %461 = vmatprep.subr.bf16.mxu0 0
    %462 = vmatpush2.bf16.msra.mxu0 %v412
    %463 = vmatprep.subr.bf16.mxu0 0
    %464 = vmatpush2.bf16.msra.mxu0 %v411
    %465 = vmatprep.subr.bf16.mxu0 0
    %466 = vmatpush2.bf16.msra.mxu0 %v410
    %467 = vmatprep.subr.bf16.mxu0 0
    %468 = vmatpush2.bf16.msra.mxu0 %v409
    %469 = vmatprep.subr.bf16.mxu0 0
    %470 = vmatpush2.bf16.msra.mxu0 %v408
    %471 = vmatprep.subr.bf16.mxu0 0
    %472 = vmatpush2.bf16.msra.mxu0 %v407
    %473 = vmatprep.mubr.bf16.mxu0 %v282
    %474 = vmatmul.mubr.bf16.gmra.mxu0 %v281
    %v475 = vpop.f32.mrf.mxu0
    %v476 = vadd.f32 %v326, %v475
    %v477 = vpop.f32.mrf.mxu0
    %v478 = vpop.f32.mrf.mxu0
    %v479 = vadd.f32 %v326, %v478
    %v480 = vpop.f32.mrf.mxu0
    %481 = vmatprep.mubr.bf16.mxu0 %v285
    %482 = vmatmul.mubr.bf16.gmra.mxu0 %v284
    %v483 = vpop.f32.mrf.mxu0
    %v484 = vadd.f32 %v326, %v483
    %v485 = vpop.f32.mrf.mxu0
    %v486 = vpop.f32.mrf.mxu0
    %v487 = vpop.f32.mrf.mxu0
    %488 = vdwg.mxu0
    %489 = vmatprep.subr.bf16.mxu0 0
    %490 = vmatpush1.bf16.msra.mxu0 0
    %491 = vmatprep.subr.bf16.mxu0 0
    %492 = vmatpush1.bf16.msra.mxu0 0
    %493 = vmatprep.subr.bf16.mxu0 0
    %494 = vmatpush1.bf16.msra.mxu0 0
    %495 = vmatprep.subr.bf16.mxu0 0
    %496 = vmatpush1.bf16.msra.mxu0 0
    %497 = vmatprep.subr.bf16.mxu0 0
    %498 = vmatpush1.bf16.msra.mxu0 0
    %499 = vmatprep.subr.bf16.mxu0 0
    %500 = vmatpush1.bf16.msra.mxu0 0
    %501 = vmatprep.subr.bf16.mxu0 0
    %502 = vmatpush1.bf16.msra.mxu0 %v416
    %503 = vmatprep.subr.bf16.mxu0 0
    %504 = vmatpush1.bf16.msra.mxu0 %v415
    %505 = vmatprep.subr.bf16.mxu0 0
    %506 = vmatpush2.bf16.msra.mxu0 0
    %507 = vmatprep.subr.bf16.mxu0 0
    %508 = vmatpush2.bf16.msra.mxu0 0
    %509 = vmatprep.subr.bf16.mxu0 0
    %510 = vmatpush2.bf16.msra.mxu0 0
    %511 = vmatprep.subr.bf16.mxu0 0
    %512 = vmatpush2.bf16.msra.mxu0 0
    %513 = vmatprep.subr.bf16.mxu0 0
    %514 = vmatpush2.bf16.msra.mxu0 0
    %515 = vmatprep.subr.bf16.mxu0 0
    %516 = vmatpush2.bf16.msra.mxu0 0
    %517 = vmatprep.subr.bf16.mxu0 0
    %518 = vmatpush2.bf16.msra.mxu0 0
    %519 = vmatprep.subr.bf16.mxu0 0
    %520 = vmatpush2.bf16.msra.mxu0 0
    %521 = vmatprep.mubr.bf16.mxu0 0
    %522 = vmatmul.mubr.bf16.gmra.mxu0 %v436
    %v523 = vpop.f32.mrf.mxu0
    %v524 = vadd.f32 %v476, %v523
    %v525 = vpop.f32.mrf.mxu0
    %v526 = vpop.f32.mrf.mxu0
    %v527 = vadd.f32 %v479, %v526
    %v528 = vpop.f32.mrf.mxu0
    %529 = vmatprep.mubr.bf16.mxu0 0
    %530 = vmatmul.mubr.bf16.gmra.mxu0 %v439
    %v531 = vpop.f32.mrf.mxu0
    %v532 = vadd.f32 %v484, %v531
    %v533 = vpop.f32.mrf.mxu0
    %v534 = vpop.f32.mrf.mxu0
    %v535 = vpop.f32.mrf.mxu0
    %536 = vdwg.mxu0
    %v537 = vmax.f32 %v524, 0.0
    %v538 = vmax.f32 %v527, 0.0
    %v539 = vmax.f32 %v532, 0.0
    %v540 = vsel %vm99, %v537, -inf
    %v541 = vrot.slane %v540, 4
    %v542 = vmax.f32 %v540, %v541
    %v543 = vrot.slane %v542, 2
    %v544 = vmax.f32 %v542, %v543
    %v545 = vrot.slane %v544, 1
    %v546 = vmax.f32 %v544, %v545
    %v547 = vmul.f32 %v546, %v23
    %v548 = vadd.f32 %v547, %v24
    %vm549 = vcmask 1045507
    %v550 = vsel %vm549, %v537, -inf
    %v551 = vrot.slane %v550, 4
    %v552 = vmax.f32 %v550, %v551
    %v553 = vrot.slane %v552, 2
    %v554 = vmax.f32 %v552, %v553
    %v555 = vrot.slane %v554, 1
    %v556 = vmax.f32 %v554, %v555
    %v557 = vmul.f32 %v556, %v23
    %v558 = vadd.f32 %v557, %v24
    %vm559 = vcmask 1047558
    %v560 = vsel %vm559, %v537, -inf
    %v561 = vsel %vm120, %v538, -inf
    %v562 = vmax.f32 %v560, %v561
    %v563 = vrot.slane %v562, 4
    %v564 = vmax.f32 %v562, %v563
    %v565 = vrot.slane %v564, 2
    %v566 = vmax.f32 %v564, %v565
    %v567 = vrot.slane %v566, 1
    %v568 = vmax.f32 %v566, %v567
    %v569 = vmul.f32 %v568, %v23
    %v570 = vadd.f32 %v569, %v24
    %vm571 = vcmask 1044482
    %v572 = vsel %vm571, %v538, -inf
    %v573 = vrot.slane %v572, 4
    %v574 = vmax.f32 %v572, %v573
    %v575 = vrot.slane %v574, 2
    %v576 = vmax.f32 %v574, %v575
    %v577 = vrot.slane %v576, 1
    %v578 = vmax.f32 %v576, %v577
    %v579 = vmul.f32 %v578, %v23
    %v580 = vadd.f32 %v579, %v24
    %vm581 = vcmask 1047557
    %v582 = vsel %vm581, %v538, -inf
    %v583 = vrot.slane %v582, 4
    %v584 = vmax.f32 %v582, %v583
    %v585 = vrot.slane %v584, 2
    %v586 = vmax.f32 %v584, %v585
    %v587 = vrot.slane %v586, 1
    %v588 = vmax.f32 %v586, %v587
    %v589 = vmul.f32 %v588, %v23
    %v590 = vadd.f32 %v589, %v24
    %v591 = vsel %vm99, %v539, -inf
    %v592 = vrot.slane %v591, 4
    %v593 = vmax.f32 %v591, %v592
    %v594 = vrot.slane %v593, 2
    %v595 = vmax.f32 %v593, %v594
    %v596 = vrot.slane %v595, 1
    %v597 = vmax.f32 %v595, %v596
    %v598 = vmul.f32 %v597, %v23
    %v599 = vadd.f32 %v598, %v24
    %v603 = vrot.slane %v580, 7
    %v604 = vrot.slane %v590, 7
    %v605 = vrot.slane %v599, 7
    %v609 = vsel %vm120, %v548, %v603
    %v610 = vsel %vm120, %v558, %v604
    %v611 = vsel %vm120, %v570, %v605
    %v612 = vld [vmem:[%s3] sm:$0xff]
    %v613 = vld [vmem:[%s3 + $0x8] sm:$0xff]
    %v614 = vld [vmem:[%s3 + $0x10] sm:$0xff]
    %v615 = vld [vmem:[%s3 + $0x18] sm:$0xff]
    %v616 = vld [vmem:[%s3 + $0x20] sm:$0xff]
    %v617 = vld [vmem:[%s3 + $0x28] sm:$0xff]
    %v618 = vld [vmem:[%s3 + $0x30] sm:$0xff]
    %v619 = vld [vmem:[%s3 + $0x38] sm:$0xff]
    %v620 = vld [vmem:[%s3 + $0x40] sm:$0xff]
    %v621 = vld [vmem:[%s3 + $0x48] sm:$0xff]
    %v622 = vld [vmem:[%s3 + $0x50] sm:$0xff]
    %v623 = vld [vmem:[%s3 + $0x58] sm:$0xff]
    %v624 = vld [vmem:[%s3 + $0x60] sm:$0xff]
    %v625 = vld [vmem:[%s3 + $0x68] sm:$0xff]
    %v626 = vld [vmem:[%s3 + $0x70] sm:$0xff]
    %v627 = vld [vmem:[%s3 + $0x78] sm:$0xff]
    %v628 = vld [vmem:[%s3 + $0x80] sm:$0xff]
    %v629 = vld [vmem:[%s3 + $0x88] sm:$0xff]
    %v630 = vld [vmem:[%s3 + $0x90] sm:$0xff]
    %v631 = vld [vmem:[%s3 + $0x98] sm:$0xff]
    %v632 = vld [vmem:[%s3 + $0xa0] sm:$0xff]
    %v633 = vld [vmem:[%s3 + $0xa8] sm:$0xff]
    %v634 = vld [vmem:[%s3 + $0xb0] sm:$0xff]
    %v635 = vld [vmem:[%s3 + $0xb8] sm:$0xff]
    %v636 = vld [vmem:[%s3 + $0xc0] sm:$0xff]
    %v637 = vld [vmem:[%s3 + $0xc8] sm:$0xff]
    %v638 = vld [vmem:[%s3 + $0xd0] sm:$0xff]
    %v639 = vld [vmem:[%s3 + $0xd8] sm:$0xff]
    %v640 = vld [vmem:[%s3 + $0xe0] sm:$0xff]
    %v641 = vld [vmem:[%s3 + $0xe8] sm:$0xff]
    %v642 = vld [vmem:[%s3 + $0xf0] sm:$0xff]
    %v643 = vld [vmem:[%s3 + $0xf8] sm:$0xff]
    %v644 = vld [vmem:[%s3 + $0x100] sm:$0xff]
    %v645 = vld [vmem:[%s3 + $0x108] sm:$0xff]
    %v646 = vld [vmem:[%s3 + $0x110] sm:$0xff]
    %v647 = vld [vmem:[%s3 + $0x118] sm:$0xff]
    %v648 = vld [vmem:[%s3 + $0x120] sm:$0xff]
    %v649 = vld [vmem:[%s3 + $0x128] sm:$0xff]
    %v650 = vld [vmem:[%s3 + $0x130] sm:$0xff]
    %v651 = vld [vmem:[%s3 + $0x138] sm:$0xff]
    %v652 = vld [vmem:[%s3 + $0x140] sm:$0xff]
    %v653 = vld [vmem:[%s3 + $0x148] sm:$0xff]
    %v654 = vld [vmem:[%s3 + $0x150] sm:$0xff]
    %v655 = vld [vmem:[%s3 + $0x158] sm:$0xff]
    %v656 = vld [vmem:[%s3 + $0x160] sm:$0xff]
    %v657 = vld [vmem:[%s3 + $0x168] sm:$0xff]
    %v658 = vld [vmem:[%s3 + $0x170] sm:$0xff]
    %v659 = vld [vmem:[%s3 + $0x178] sm:$0xff]
    %v660 = vld [vmem:[%s4] sm:$0x1]
    %v662 = vlaneseq
    %v663 = vshrl.u32 %v662, 7
    %v664 = vsub.s32 0, %v663
    %v665 = vrot.slane %v660, %v664
    %667 = vmatprep.subr.mxu0 0.0
    %668 = vmatpush1.msra.mxu0 %v627
    %669 = vmatprep.subr.mxu0 0.0
    %670 = vmatpush1.msra.mxu0 %v626
    %671 = vmatprep.subr.mxu0 0.0
    %672 = vmatpush1.msra.mxu0 %v625
    %673 = vmatprep.subr.mxu0 0.0
    %674 = vmatpush1.msra.mxu0 %v624
    %675 = vmatprep.subr.mxu0 0.0
    %676 = vmatpush1.msra.mxu0 %v623
    %677 = vmatprep.subr.mxu0 0.0
    %678 = vmatpush1.msra.mxu0 %v622
    %679 = vmatprep.subr.mxu0 0.0
    %680 = vmatpush1.msra.mxu0 %v621
    %681 = vmatprep.subr.mxu0 0.0
    %682 = vmatpush1.msra.mxu0 %v620
    %683 = vmatprep.subr.mxu0 0.0
    %684 = vmatpush1.msra.mxu0 %v619
    %685 = vmatprep.subr.mxu0 0.0
    %686 = vmatpush1.msra.mxu0 %v618
    %687 = vmatprep.subr.mxu0 0.0
    %688 = vmatpush1.msra.mxu0 %v617
    %689 = vmatprep.subr.mxu0 0.0
    %690 = vmatpush1.msra.mxu0 %v616
    %691 = vmatprep.subr.mxu0 0.0
    %692 = vmatpush1.msra.mxu0 %v615
    %693 = vmatprep.subr.mxu0 0.0
    %694 = vmatpush1.msra.mxu0 %v614
    %695 = vmatprep.subr.mxu0 0.0
    %696 = vmatpush1.msra.mxu0 %v613
    %697 = vmatprep.subr.mxu0 0.0
    %698 = vmatpush1.msra.mxu0 %v612
    %699 = vmatprep.subr.mxu0 0.0
    %700 = vmatpush2.msra.mxu0 %v643
    %701 = vmatprep.subr.mxu0 0.0
    %702 = vmatpush2.msra.mxu0 %v642
    %703 = vmatprep.subr.mxu0 0.0
    %704 = vmatpush2.msra.mxu0 %v641
    %705 = vmatprep.subr.mxu0 0.0
    %706 = vmatpush2.msra.mxu0 %v640
    %707 = vmatprep.subr.mxu0 0.0
    %708 = vmatpush2.msra.mxu0 %v639
    %709 = vmatprep.subr.mxu0 0.0
    %710 = vmatpush2.msra.mxu0 %v638
    %711 = vmatprep.subr.mxu0 0.0
    %712 = vmatpush2.msra.mxu0 %v637
    %713 = vmatprep.subr.mxu0 0.0
    %714 = vmatpush2.msra.mxu0 %v636
    %715 = vmatprep.subr.mxu0 0.0
    %716 = vmatpush2.msra.mxu0 %v635
    %717 = vmatprep.subr.mxu0 0.0
    %718 = vmatpush2.msra.mxu0 %v634
    %719 = vmatprep.subr.mxu0 0.0
    %720 = vmatpush2.msra.mxu0 %v633
    %721 = vmatprep.subr.mxu0 0.0
    %722 = vmatpush2.msra.mxu0 %v632
    %723 = vmatprep.subr.mxu0 0.0
    %724 = vmatpush2.msra.mxu0 %v631
    %725 = vmatprep.subr.mxu0 0.0
    %726 = vmatpush2.msra.mxu0 %v630
    %727 = vmatprep.subr.mxu0 0.0
    %728 = vmatpush2.msra.mxu0 %v629
    %729 = vmatprep.subr.mxu0 0.0
    %730 = vmatpush2.msra.mxu0 %v628
    %731 = vmatprep.mubr.f32.mxu0 %v610
    %732 = vmatmul.mubr.f32.gmra.mxu0 %v609
    %v733 = vpop.f32.mrf.mxu0
    %v734 = vadd.f32 %v665, %v733
    %v735 = vpop.f32.mrf.mxu0
    %736 = vdwg.mxu0
    %737 = vmatprep.subr.mxu0 0.0
    %738 = vmatpush1.msra.mxu0 %v659
    %739 = vmatprep.subr.mxu0 0.0
    %740 = vmatpush1.msra.mxu0 %v658
    %741 = vmatprep.subr.mxu0 0.0
    %742 = vmatpush1.msra.mxu0 %v657
    %743 = vmatprep.subr.mxu0 0.0
    %744 = vmatpush1.msra.mxu0 %v656
    %745 = vmatprep.subr.mxu0 0.0
    %746 = vmatpush1.msra.mxu0 %v655
    %747 = vmatprep.subr.mxu0 0.0
    %748 = vmatpush1.msra.mxu0 %v654
    %749 = vmatprep.subr.mxu0 0.0
    %750 = vmatpush1.msra.mxu0 %v653
    %751 = vmatprep.subr.mxu0 0.0
    %752 = vmatpush1.msra.mxu0 %v652
    %753 = vmatprep.subr.mxu0 0.0
    %754 = vmatpush1.msra.mxu0 %v651
    %755 = vmatprep.subr.mxu0 0.0
    %756 = vmatpush1.msra.mxu0 %v650
    %757 = vmatprep.subr.mxu0 0.0
    %758 = vmatpush1.msra.mxu0 %v649
    %759 = vmatprep.subr.mxu0 0.0
    %760 = vmatpush1.msra.mxu0 %v648
    %761 = vmatprep.subr.mxu0 0.0
    %762 = vmatpush1.msra.mxu0 %v647
    %763 = vmatprep.subr.mxu0 0.0
    %764 = vmatpush1.msra.mxu0 %v646
    %765 = vmatprep.subr.mxu0 0.0
    %766 = vmatpush1.msra.mxu0 %v645
    %767 = vmatprep.subr.mxu0 0.0
    %768 = vmatpush1.msra.mxu0 %v644
    %769 = vmatprep.subr.mxu0 0.0
    %770 = vmatpush2.msra.mxu0 0.0
    %771 = vmatprep.subr.mxu0 0.0
    %772 = vmatpush2.msra.mxu0 0.0
    %773 = vmatprep.subr.mxu0 0.0
    %774 = vmatpush2.msra.mxu0 0.0
    %775 = vmatprep.subr.mxu0 0.0
    %776 = vmatpush2.msra.mxu0 0.0
    %777 = vmatprep.subr.mxu0 0.0
    %778 = vmatpush2.msra.mxu0 0.0
    %779 = vmatprep.subr.mxu0 0.0
    %780 = vmatpush2.msra.mxu0 0.0
    %781 = vmatprep.subr.mxu0 0.0
    %782 = vmatpush2.msra.mxu0 0.0
    %783 = vmatprep.subr.mxu0 0.0
    %784 = vmatpush2.msra.mxu0 0.0
    %785 = vmatprep.subr.mxu0 0.0
    %786 = vmatpush2.msra.mxu0 0.0
    %787 = vmatprep.subr.mxu0 0.0
    %788 = vmatpush2.msra.mxu0 0.0
    %789 = vmatprep.subr.mxu0 0.0
    %790 = vmatpush2.msra.mxu0 0.0
    %791 = vmatprep.subr.mxu0 0.0
    %792 = vmatpush2.msra.mxu0 0.0
    %793 = vmatprep.subr.mxu0 0.0
    %794 = vmatpush2.msra.mxu0 0.0
    %795 = vmatprep.subr.mxu0 0.0
    %796 = vmatpush2.msra.mxu0 0.0
    %797 = vmatprep.subr.mxu0 0.0
    %798 = vmatpush2.msra.mxu0 0.0
    %799 = vmatprep.subr.mxu0 0.0
    %800 = vmatpush2.msra.mxu0 0.0
    %801 = vmatprep.mubr.f32.mxu0 0.0
    %802 = vmatmul.mubr.f32.gmra.mxu0 %v611
    %v803 = vpop.f32.mrf.mxu0
    %v804 = vadd.f32 %v734, %v803
    %v805 = vpop.f32.mrf.mxu0
    %806 = vdwg.mxu0
    %vm807 = vcmask 41984
    %808 = vst.msk [vmem:[#allocation2] sm:$0x3] %vm807, %v804
    // Predicated region
    $region22: #{cnn_lstm_forward.5} parent=1 // pred_check
      _
    $region23: #{cnn_lstm_forward.5} parent=1 // pred_check_branch
      %810 = sbr.rel (0) target = $region25
    $region24: #{cnn_lstm_forward.5} parent=1 // pred_region
      %s812 = ssub.s32 32, 32
      %813 = vsyncadd [#allocation3], %s812
      %s815 = sshll.u32 [#allocation2], 4
      %s816 = int_to_ptr.vmem [resolvable:$true] %s815
      %818 = dma.vmem_to_hbm [thread:$0]  %s816, 32, %s5, [#allocation3]
    $region25: #{cnn_lstm_forward.5} parent=1 // pred_fallthru
      _
    // Predicated region
    $region26: #{cnn_lstm_forward.5} parent=1 // pred_check
      _
    $region27: #{cnn_lstm_forward.5} parent=1 // pred_check_branch
      %820 = sbr.rel (0) target = $region29
    $region28: #{cnn_lstm_forward.5} parent=1 // pred_region
      %821 = dma.done [#allocation3], 32
    $region29: #{cnn_lstm_forward.5} parent=1 // pred_fallthru
      _
    %822 = vsyncpa [#allocation3], 1

</llo_original>
